<compile_context>
chip_gen: v5e
topology: v5e:2x2
jax: 0.10.0
libtpu: 0.0.40
codegen_flags: <defaults>
</compile_context>

<pallas_src>
import jax
import jax.numpy as jnp
import numpy as np
from jax import lax
from jax.experimental import pallas as pl
from jax.experimental.pallas import tpu as pltpu

EPS = 1e-4           # ScaledWSConv2d eps
SPIKE_SCALE = 2.74   # the fixed *2.74 scaling in BasicBlock.forward
V_TH = 1.0
# TODO(synk): `neuron` is an injected callable in the PyTorch module (not defined
# there); it is modeled as a single-step IF neuron: spike = Heaviside(v - 1.0).


# ------------------------------ in-kernel code -------------------------------
def _zero_pad_border(pad_ref):
    """Zero only the 1-pixel spatial border of the (B, H+2, W+2, C) pad scratch."""
    B, Hp, Wp, C = pad_ref.shape
    H, W = Hp - 2, Wp - 2
    zrow = jnp.zeros((B, 1, Wp, C), pad_ref.dtype)
    zcol = jnp.zeros((B, H, 1, C), pad_ref.dtype)
    pad_ref[:, 0:1, :, :] = zrow
    pad_ref[:, H + 1:H + 2, :, :] = zrow
    pad_ref[:, 1:H + 1, 0:1, :] = zcol
    pad_ref[:, 1:H + 1, W + 1:W + 2, :] = zcol


def _conv3x3(spk, w_ref, b_ref, pad_ref, col_ref):
    """3x3 stride-1 'same' conv of a {0,1}-valued spike tensor.

    spk:     (B, H, W, Cin) f32, values in {0,1}
    w_ref:   (9*Cin, Cout) pre-standardized, pre-scaled weights (MXU dtype)
    b_ref:   (1, Cout) f32 bias
    pad_ref: (B, H+2, W+2, Cin) VMEM scratch, border already zeroed
    col_ref: (B*H*W, 9*Cin) VMEM im2col scratch
    Returns (B, H, W, Cout) f32.
    """
    B, H, W, Cin = spk.shape
    Cout = w_ref.shape[1]

    # Interior write only; the zero border persists across calls/iterations.
    pad_ref[:, 1:H + 1, 1:W + 1, :] = spk.astype(pad_ref.dtype)

    # im2col: 9 shifted windows -> one fat-K slab, then a single MXU matmul.
    for k in range(9):
        dy, dx = k // 3, k % 3
        col_ref[:, k * Cin:(k + 1) * Cin] = (
            pad_ref[:, dy:dy + H, dx:dx + W, :].reshape(B * H * W, Cin))

    acc = jnp.dot(col_ref[...], w_ref[...],
                  preferred_element_type=jnp.float32)            # (B*H*W, Cout)
    acc = acc + b_ref[...]                                       # f32 bias
    return acc.reshape(B, H, W, Cout)


def basic_block_kernel(scal_ref, x_ref, w1_ref, b1_ref, w2_ref, b2_ref,
                       o_ref, pad_ref, col_ref):
    th1 = scal_ref[0]        # beta * V_TH  (spike threshold applied to raw x)
    res_scale = scal_ref[1]  # skipinit_gain * alpha

    x = x_ref[...].astype(jnp.float32)                           # (B, H, W, C)

    _zero_pad_border(pad_ref)

    # out = sn1(x / beta) * 2.74 ; the 2.74 is folded into w1 -> spikes are {0,1}.
    s1 = jnp.where(x >= th1, 1.0, 0.0)
    y1 = _conv3x3(s1, w1_ref, b1_ref, pad_ref, col_ref)

    # out = sn2(out) * 2.74 ; the 2.74 is folded into w2.
    s2 = jnp.where(y1 >= V_TH, 1.0, 0.0)
    y2 = _conv3x3(s2, w2_ref, b2_ref, pad_ref, col_ref)

    # out = out * skipinit_gain * alpha + identity   (downsample is None)
    o_ref[...] = (y2 * res_scale + x).astype(o_ref.dtype)


# ------------------------------ host-side prep -------------------------------
def _ws_weight(w, gain):
    """ScaledWSConv2d.get_weight(): per-output-channel weight standardization."""
    fan_in = float(np.prod(w.shape[1:]))
    mean = jnp.mean(w, axis=(1, 2, 3), keepdims=True)
    var = jnp.var(w, axis=(1, 2, 3), keepdims=True, ddof=1)      # torch.var: unbiased
    w = (w - mean) * lax.rsqrt(var * fan_in + EPS)
    return w * gain.reshape(-1, 1, 1, 1)


def _prep_conv(w, gain, mxu_dtype):
    """OIHW -> (9*Cin, Cout) kernel layout.  WS + gain + the 2.74 spike scale are
    folded in exactly (f32); the single cast to the MXU dtype happens last."""
    w = _ws_weight(w, gain) * SPIKE_SCALE
    co, ci, kh, kw = w.shape
    w = jnp.transpose(w, (2, 3, 1, 0)).reshape(kh * kw * ci, co)
    return w.astype(mxu_dtype)


def _pick_b_tile(N, H, W, C, interior_budget=4 << 20):
    """Images folded into the matmul M dimension per grid step: big enough to keep
    the MXU/M dimension fat, but keep >= 2 grid steps (both v7x TensorCores busy)
    and stay within a conservative VMEM scratch budget."""
    best = 1
    for bt in range(1, N + 1):
        if N % bt != 0:
            continue
        if N >= 2 and N // bt < 2:
            break
        foot = (4 * bt * H * W * C * 4                 # x + out blocks, double-buffered f32
                + bt * (H + 2) * (W + 2) * C * 2       # padded spikes (bf16)
                + bt * H * W * 9 * C * 2)              # im2col slab (bf16)
        if foot > interior_budget:
            break
        best = bt
    return best


def _vmem_limit_bytes(bt, H, W, C, itemsize):
    blocks = 2 * 2 * bt * H * W * C * 4
    weights = 2 * (9 * C * C + C) * max(itemsize, 4)
    scratch = bt * (H + 2) * (W + 2) * C * itemsize + bt * H * W * 9 * C * itemsize
    est = blocks + weights + scratch
    # Explicit scoped limit with headroom; 48 MiB also fits v7x's 64 MiB VMEM.
    return int(min(max(2 * est, 32 << 20), 48 << 20))


def basic_block_forward_nhwc(x_nhwc, params, mxu_dtype=jnp.bfloat16):
    """Spiking-ResNet BasicBlock forward (stride=1, downsample=None), NHWC in/out.

    params = (w1, b1, g1, w2, b2, g2, beta, alpha, skipinit_gain);
    w* are PyTorch OIHW (Cout, Cin, 3, 3), b*/g* are (C,)."""
    w1, b1, g1, w2, b2, g2, beta, alpha, skipinit_gain = params
    N, H, W, C = x_nhwc.shape
    Cout = w1.shape[0]
    assert C == w1.shape[1] and C == Cout, \
        "BasicBlock without downsample requires inplanes == planes"

    w1k = _prep_conv(w1, g1, mxu_dtype)
    w2k = _prep_conv(w2, g2, mxu_dtype)
    b1k = b1.reshape(1, C).astype(jnp.float32)
    b2k = b2.reshape(1, C).astype(jnp.float32)
    scalars = jnp.array([beta * V_TH, skipinit_gain * alpha], jnp.float32)

    bt = _pick_b_tile(N, H, W, C)
    itemsize = jnp.dtype(mxu_dtype).itemsize

    out = pl.pallas_call(
        basic_block_kernel,
        out_shape=jax.ShapeDtypeStruct((N, H, W, C), jnp.float32),
        grid=(N // bt,),
        in_specs=[
            pl.BlockSpec(memory_space=pltpu.MemorySpace.SMEM),    # [beta, skip*alpha]
            pl.BlockSpec((bt, H, W, C), lambda n: (n, 0, 0, 0)),  # x (B_TILE images)
            pl.BlockSpec((9 * C, C), lambda n: (0, 0)),           # w1 (WS+gain+2.74 folded)
            pl.BlockSpec((1, C), lambda n: (0, 0)),               # b1
            pl.BlockSpec((9 * C, C), lambda n: (0, 0)),           # w2
            pl.BlockSpec((1, C), lambda n: (0, 0)),               # b2
        ],
        out_specs=pl.BlockSpec((bt, H, W, C), lambda n: (n, 0, 0, 0)),
        scratch_shapes=[
            pltpu.VMEM((bt, H + 2, W + 2, C), mxu_dtype),         # padded spikes
            pltpu.VMEM((bt * H * W, 9 * C), mxu_dtype),           # im2col slab
        ],
        compiler_params=pltpu.CompilerParams(
            dimension_semantics=("parallel",),
            vmem_limit_bytes=_vmem_limit_bytes(bt, H, W, C, itemsize)),
    )(scalars, x_nhwc.astype(jnp.float32), w1k, b1k, w2k, b2k)
    return out


def basic_block_forward(x_nchw, params, mxu_dtype=jnp.bfloat16):
    """NCHW adapter matching the PyTorch module.  NOTE: the two transposes are full
    HBM round trips — keep the surrounding model NHWC and call
    `basic_block_forward_nhwc` directly in production."""
    x = jnp.transpose(x_nchw, (0, 2, 3, 1))
    out = basic_block_forward_nhwc(x, params, mxu_dtype=mxu_dtype)
    return jnp.transpose(out, (0, 3, 1, 2))


# ---------------- pure-JAX reference (for correctness check) ----------------
def basic_block_reference(x_nchw, params, mxu_dtype=jnp.bfloat16):
    """Same math as BasicBlock.forward, with the 2.74 spike scale folded into the
    standardized weights and the weights quantized to the same MXU dtype the
    kernel uses (accumulation in f32), so the comparison is stable and checks the
    kernel structure rather than the deliberate bf16 weight quantization."""
    w1, b1, g1, w2, b2, g2, beta, alpha, skip = params
    w1e = (_ws_weight(w1, g1) * SPIKE_SCALE).astype(mxu_dtype).astype(jnp.float32)
    w2e = (_ws_weight(w2, g2) * SPIKE_SCALE).astype(mxu_dtype).astype(jnp.float32)

    def conv(inp, w, b):
        y = lax.conv_general_dilated(inp, w, (1, 1), ((1, 1), (1, 1)),
                                     dimension_numbers=("NCHW", "OIHW", "NCHW"),
                                     precision=lax.Precision.HIGHEST)
        return y + b.reshape(1, -1, 1, 1)

    s1 = jnp.where(x_nchw / beta >= V_TH, 1.0, 0.0)   # *2.74 folded into w1e
    out = conv(s1, w1e, b1)
    s2 = jnp.where(out >= V_TH, 1.0, 0.0)             # *2.74 folded into w2e
    out = conv(s2, w2e, b2)
    return out * skip * alpha + x_nchw


if __name__ == "__main__":
    key = jax.random.PRNGKey(0)
    N, C, H, W = 2, 4, 16, 16   # inplanes == planes == 4, stride=1, downsample=None
    ks = jax.random.split(key, 5)

    x = jax.random.normal(ks[0], (N, C, H, W), jnp.float32)
    w1 = jax.random.normal(ks[1], (C, C, 3, 3), jnp.float32) * 0.2
    b1 = jax.random.normal(ks[2], (C,), jnp.float32) * 0.1
    w2 = jax.random.normal(ks[3], (C, C, 3, 3), jnp.float32) * 0.2
    b2 = jax.random.normal(ks[4], (C,), jnp.float32) * 0.1
    g1 = jnp.ones((C,), jnp.float32)   # ScaledWSConv2d gain init = ones
    g2 = jnp.ones((C,), jnp.float32)
    beta, alpha = 1.0, 1.0
    # nn.Parameter(torch.zeros(())) at init; nonzero here so the conv path is exercised.
    skipinit_gain = 0.25

    params = (w1, b1, g1, w2, b2, g2, beta, alpha, skipinit_gain)

    out = jax.jit(basic_block_forward)(x, params)
    out = jax.block_until_ready(out)
    ref = basic_block_reference(x, params)

    assert out.shape == (N, C, H, W)
    if not np.allclose(np.asarray(out), np.asarray(ref), rtol=1e-2, atol=1e-2):
        raise AssertionError("Pallas kernel output does not match JAX reference")
    print("KERNEL_OK")
</pallas_src>

<mosaic_0001>
module attributes {stable_mosaic.version = 11 : i64} {
  func.func @basic_block_kernel(%arg0: i32, %arg1: memref<2xf32, #tpu.memory_space<smem>>, %arg2: memref<1x16x16x4xf32, #tpu.memory_space<vmem>>, %arg3: memref<36x4xbf16, #tpu.memory_space<vmem>>, %arg4: memref<1x4xf32, #tpu.memory_space<vmem>>, %arg5: memref<36x4xbf16, #tpu.memory_space<vmem>>, %arg6: memref<1x4xf32, #tpu.memory_space<vmem>>, %arg7: memref<1x16x16x4xf32, #tpu.memory_space<vmem>>, %arg8: memref<1x18x18x4xbf16, #tpu.memory_space<vmem>>, %arg9: memref<256x36xbf16, #tpu.memory_space<vmem>>) attributes {dimension_semantics = [#tpu.dimension_semantics<parallel>], iteration_bounds = array<i64: 2>, scalar_prefetch = 0 : i64, scratch_operands = 2 : i64, tpu.core_type = #tpu.core_type<tc>, window_params = [{transform_indices = @transform_0, window_bounds = array<i64: 2>}, {transform_indices = @transform_1, window_bounds = array<i64: 1, 16, 16, 4>}, {pipeline_mode = #tpu.pipeline_mode<synchronous>, transform_indices = @transform_2, window_bounds = array<i64: 36, 4>}, {pipeline_mode = #tpu.pipeline_mode<synchronous>, transform_indices = @transform_3, window_bounds = array<i64: 1, 4>}, {pipeline_mode = #tpu.pipeline_mode<synchronous>, transform_indices = @transform_4, window_bounds = array<i64: 36, 4>}, {pipeline_mode = #tpu.pipeline_mode<synchronous>, transform_indices = @transform_5, window_bounds = array<i64: 1, 4>}, {transform_indices = @transform_6, window_bounds = array<i64: 1, 16, 16, 4>}]} {
    %c0 = arith.constant 0 : index
    %0 = memref.load %arg1[%c0] : memref<2xf32, #tpu.memory_space<smem>>
    %c1 = arith.constant 1 : index
    %1 = memref.load %arg1[%c1] : memref<2xf32, #tpu.memory_space<smem>>
    %c0_0 = arith.constant 0 : index
    %c0_1 = arith.constant 0 : index
    %c0_2 = arith.constant 0 : index
    %c0_3 = arith.constant 0 : index
    %2 = vector.load %arg2[%c0_0, %c0_1, %c0_2, %c0_3] : memref<1x16x16x4xf32, #tpu.memory_space<vmem>>, vector<1x16x16x4xf32>
    %cst = arith.constant 0.000000e+00 : bf16
    %3 = vector.broadcast %cst : bf16 to vector<1x1x18x4xbf16>
    %cst_4 = arith.constant 0.000000e+00 : bf16
    %4 = vector.broadcast %cst_4 : bf16 to vector<1x16x1x4xbf16>
    %c0_5 = arith.constant 0 : index
    %c0_6 = arith.constant 0 : index
    %c0_7 = arith.constant 0 : index
    %c0_8 = arith.constant 0 : index
    %5 = vector.load %arg8[%c0_5, %c0_6, %c0_7, %c0_8] : memref<1x18x18x4xbf16, #tpu.memory_space<vmem>>, vector<1x1x18x4xbf16>
    tpu.vector_store %arg8[%c0_5, %c0_6, %c0_7, %c0_8], %3 {strides = array<i32>} : memref<1x18x18x4xbf16, #tpu.memory_space<vmem>>, vector<1x1x18x4xbf16>,
    %c0_9 = arith.constant 0 : index
    %c17 = arith.constant 17 : index
    %c0_10 = arith.constant 0 : index
    %c0_11 = arith.constant 0 : index
    %6 = vector.load %arg8[%c0_9, %c17, %c0_10, %c0_11] : memref<1x18x18x4xbf16, #tpu.memory_space<vmem>>, vector<1x1x18x4xbf16>
    tpu.vector_store %arg8[%c0_9, %c17, %c0_10, %c0_11], %3 {strides = array<i32>} : memref<1x18x18x4xbf16, #tpu.memory_space<vmem>>, vector<1x1x18x4xbf16>,
    %c0_12 = arith.constant 0 : index
    %c1_13 = arith.constant 1 : index
    %c0_14 = arith.constant 0 : index
    %c0_15 = arith.constant 0 : index
    %7 = vector.load %arg8[%c0_12, %c1_13, %c0_14, %c0_15] : memref<1x18x18x4xbf16, #tpu.memory_space<vmem>>, vector<1x16x1x4xbf16>
    tpu.vector_store %arg8[%c0_12, %c1_13, %c0_14, %c0_15], %4 {strides = array<i32>} : memref<1x18x18x4xbf16, #tpu.memory_space<vmem>>, vector<1x16x1x4xbf16>,
    %c0_16 = arith.constant 0 : index
    %c1_17 = arith.constant 1 : index
    %c17_18 = arith.constant 17 : index
    %c0_19 = arith.constant 0 : index
    %8 = vector.load %arg8[%c0_16, %c1_17, %c17_18, %c0_19] : memref<1x18x18x4xbf16, #tpu.memory_space<vmem>>, vector<1x16x1x4xbf16>
    tpu.vector_store %arg8[%c0_16, %c1_17, %c17_18, %c0_19], %4 {strides = array<i32>} : memref<1x18x18x4xbf16, #tpu.memory_space<vmem>>, vector<1x16x1x4xbf16>,
    %9 = vector.broadcast %0 : f32 to vector<1x16x16x4xf32>
    %10 = arith.cmpf oge, %2, %9 : vector<1x16x16x4xf32>
    %cst_20 = arith.constant 1.000000e+00 : f32
    %cst_21 = arith.constant 0.000000e+00 : f32
    %11 = vector.broadcast %cst_20 : f32 to vector<1x16x16x4xf32>
    %12 = vector.broadcast %cst_21 : f32 to vector<1x16x16x4xf32>
    %13 = arith.select %10, %11, %12 : vector<1x16x16x4xi1>, vector<1x16x16x4xf32>
    %14 = arith.truncf %13 : vector<1x16x16x4xf32> to vector<1x16x16x4xbf16>
    %c0_22 = arith.constant 0 : index
    %c1_23 = arith.constant 1 : index
    %c1_24 = arith.constant 1 : index
    %c0_25 = arith.constant 0 : index
    %15 = vector.load %arg8[%c0_22, %c1_23, %c1_24, %c0_25] : memref<1x18x18x4xbf16, #tpu.memory_space<vmem>>, vector<1x16x16x4xbf16>
    tpu.vector_store %arg8[%c0_22, %c1_23, %c1_24, %c0_25], %14 {strides = array<i32>} : memref<1x18x18x4xbf16, #tpu.memory_space<vmem>>, vector<1x16x16x4xbf16>,
    %c0_26 = arith.constant 0 : index
    %c0_27 = arith.constant 0 : index
    %c0_28 = arith.constant 0 : index
    %c0_29 = arith.constant 0 : index
    %16 = vector.load %arg8[%c0_26, %c0_27, %c0_28, %c0_29] : memref<1x18x18x4xbf16, #tpu.memory_space<vmem>>, vector<1x16x16x4xbf16>
    %17 = vector.shape_cast %16 : vector<1x16x16x4xbf16> to vector<256x4xbf16>
    %c0_30 = arith.constant 0 : index
    %c0_31 = arith.constant 0 : index
    %18 = vector.load %arg9[%c0_30, %c0_31] : memref<256x36xbf16, #tpu.memory_space<vmem>>, vector<256x4xbf16>
    tpu.vector_store %arg9[%c0_30, %c0_31], %17 {strides = array<i32>} : memref<256x36xbf16, #tpu.memory_space<vmem>>, vector<256x4xbf16>,
    %c0_32 = arith.constant 0 : index
    %c0_33 = arith.constant 0 : index
    %c1_34 = arith.constant 1 : index
    %c0_35 = arith.constant 0 : index
    %19 = vector.load %arg8[%c0_32, %c0_33, %c1_34, %c0_35] : memref<1x18x18x4xbf16, #tpu.memory_space<vmem>>, vector<1x16x16x4xbf16>
    %20 = vector.shape_cast %19 : vector<1x16x16x4xbf16> to vector<256x4xbf16>
    %c0_36 = arith.constant 0 : index
    %c4 = arith.constant 4 : index
    %21 = vector.load %arg9[%c0_36, %c4] : memref<256x36xbf16, #tpu.memory_space<vmem>>, vector<256x4xbf16>
    tpu.vector_store %arg9[%c0_36, %c4], %20 {strides = array<i32>} : memref<256x36xbf16, #tpu.memory_space<vmem>>, vector<256x4xbf16>,
    %c0_37 = arith.constant 0 : index
    %c0_38 = arith.constant 0 : index
    %c2 = arith.constant 2 : index
    %c0_39 = arith.constant 0 : index
    %22 = vector.load %arg8[%c0_37, %c0_38, %c2, %c0_39] : memref<1x18x18x4xbf16, #tpu.memory_space<vmem>>, vector<1x16x16x4xbf16>
    %23 = vector.shape_cast %22 : vector<1x16x16x4xbf16> to vector<256x4xbf16>
    %c0_40 = arith.constant 0 : index
    %c8 = arith.constant 8 : index
    %24 = vector.load %arg9[%c0_40, %c8] : memref<256x36xbf16, #tpu.memory_space<vmem>>, vector<256x4xbf16>
    tpu.vector_store %arg9[%c0_40, %c8], %23 {strides = array<i32>} : memref<256x36xbf16, #tpu.memory_space<vmem>>, vector<256x4xbf16>,
    %c0_41 = arith.constant 0 : index
    %c1_42 = arith.constant 1 : index
    %c0_43 = arith.constant 0 : index
    %c0_44 = arith.constant 0 : index
    %25 = vector.load %arg8[%c0_41, %c1_42, %c0_43, %c0_44] : memref<1x18x18x4xbf16, #tpu.memory_space<vmem>>, vector<1x16x16x4xbf16>
    %26 = vector.shape_cast %25 : vector<1x16x16x4xbf16> to vector<256x4xbf16>
    %c0_45 = arith.constant 0 : index
    %c12 = arith.constant 12 : index
    %27 = vector.load %arg9[%c0_45, %c12] : memref<256x36xbf16, #tpu.memory_space<vmem>>, vector<256x4xbf16>
    tpu.vector_store %arg9[%c0_45, %c12], %26 {strides = array<i32>} : memref<256x36xbf16, #tpu.memory_space<vmem>>, vector<256x4xbf16>,
    %c0_46 = arith.constant 0 : index
    %c1_47 = arith.constant 1 : index
    %c1_48 = arith.constant 1 : index
    %c0_49 = arith.constant 0 : index
    %28 = vector.load %arg8[%c0_46, %c1_47, %c1_48, %c0_49] : memref<1x18x18x4xbf16, #tpu.memory_space<vmem>>, vector<1x16x16x4xbf16>
    %29 = vector.shape_cast %28 : vector<1x16x16x4xbf16> to vector<256x4xbf16>
    %c0_50 = arith.constant 0 : index
    %c16 = arith.constant 16 : index
    %30 = vector.load %arg9[%c0_50, %c16] : memref<256x36xbf16, #tpu.memory_space<vmem>>, vector<256x4xbf16>
    tpu.vector_store %arg9[%c0_50, %c16], %29 {strides = array<i32>} : memref<256x36xbf16, #tpu.memory_space<vmem>>, vector<256x4xbf16>,
    %c0_51 = arith.constant 0 : index
    %c1_52 = arith.constant 1 : index
    %c2_53 = arith.constant 2 : index
    %c0_54 = arith.constant 0 : index
    %31 = vector.load %arg8[%c0_51, %c1_52, %c2_53, %c0_54] : memref<1x18x18x4xbf16, #tpu.memory_space<vmem>>, vector<1x16x16x4xbf16>
    %32 = vector.shape_cast %31 : vector<1x16x16x4xbf16> to vector<256x4xbf16>
    %c0_55 = arith.constant 0 : index
    %c20 = arith.constant 20 : index
    %33 = vector.load %arg9[%c0_55, %c20] : memref<256x36xbf16, #tpu.memory_space<vmem>>, vector<256x4xbf16>
    tpu.vector_store %arg9[%c0_55, %c20], %32 {strides = array<i32>} : memref<256x36xbf16, #tpu.memory_space<vmem>>, vector<256x4xbf16>,
    %c0_56 = arith.constant 0 : index
    %c2_57 = arith.constant 2 : index
    %c0_58 = arith.constant 0 : index
    %c0_59 = arith.constant 0 : index
    %34 = vector.load %arg8[%c0_56, %c2_57, %c0_58, %c0_59] : memref<1x18x18x4xbf16, #tpu.memory_space<vmem>>, vector<1x16x16x4xbf16>
    %35 = vector.shape_cast %34 : vector<1x16x16x4xbf16> to vector<256x4xbf16>
    %c0_60 = arith.constant 0 : index
    %c24 = arith.constant 24 : index
    %36 = vector.load %arg9[%c0_60, %c24] : memref<256x36xbf16, #tpu.memory_space<vmem>>, vector<256x4xbf16>
    tpu.vector_store %arg9[%c0_60, %c24], %35 {strides = array<i32>} : memref<256x36xbf16, #tpu.memory_space<vmem>>, vector<256x4xbf16>,
    %c0_61 = arith.constant 0 : index
    %c2_62 = arith.constant 2 : index
    %c1_63 = arith.constant 1 : index
    %c0_64 = arith.constant 0 : index
    %37 = vector.load %arg8[%c0_61, %c2_62, %c1_63, %c0_64] : memref<1x18x18x4xbf16, #tpu.memory_space<vmem>>, vector<1x16x16x4xbf16>
    %38 = vector.shape_cast %37 : vector<1x16x16x4xbf16> to vector<256x4xbf16>
    %c0_65 = arith.constant 0 : index
    %c28 = arith.constant 28 : index
    %39 = vector.load %arg9[%c0_65, %c28] : memref<256x36xbf16, #tpu.memory_space<vmem>>, vector<256x4xbf16>
    tpu.vector_store %arg9[%c0_65, %c28], %38 {strides = array<i32>} : memref<256x36xbf16, #tpu.memory_space<vmem>>, vector<256x4xbf16>,
    %c0_66 = arith.constant 0 : index
    %c2_67 = arith.constant 2 : index
    %c2_68 = arith.constant 2 : index
    %c0_69 = arith.constant 0 : index
    %40 = vector.load %arg8[%c0_66, %c2_67, %c2_68, %c0_69] : memref<1x18x18x4xbf16, #tpu.memory_space<vmem>>, vector<1x16x16x4xbf16>
    %41 = vector.shape_cast %40 : vector<1x16x16x4xbf16> to vector<256x4xbf16>
    %c0_70 = arith.constant 0 : index
    %c32 = arith.constant 32 : index
    %42 = vector.load %arg9[%c0_70, %c32] : memref<256x36xbf16, #tpu.memory_space<vmem>>, vector<256x4xbf16>
    tpu.vector_store %arg9[%c0_70, %c32], %41 {strides = array<i32>} : memref<256x36xbf16, #tpu.memory_space<vmem>>, vector<256x4xbf16>,
    %c0_71 = arith.constant 0 : index
    %c0_72 = arith.constant 0 : index
    %43 = vector.load %arg9[%c0_71, %c0_72] : memref<256x36xbf16, #tpu.memory_space<vmem>>, vector<256x36xbf16>
    %c0_73 = arith.constant 0 : index
    %c0_74 = arith.constant 0 : index
    %44 = vector.load %arg3[%c0_73, %c0_74] : memref<36x4xbf16, #tpu.memory_space<vmem>>, vector<36x4xbf16>
    %cst_75 = arith.constant dense<0.000000e+00> : vector<256x4xf32>
    %45 = tpu.matmul %43, %44, %cst_75 {dimension_numbers = #tpu.dot_dimension_numbers<[1], [0], [0], [1], [0, 0, 1, 1], [], []>} : vector<256x36xbf16>, vector<36x4xbf16>, vector<256x4xf32> -> vector<256x4xf32>
    %c0_76 = arith.constant 0 : index
    %c0_77 = arith.constant 0 : index
    %46 = vector.load %arg4[%c0_76, %c0_77] : memref<1x4xf32, #tpu.memory_space<vmem>>, vector<1x4xf32>
    %47 = vector.broadcast %46 : vector<1x4xf32> to vector<256x4xf32>
    %48 = arith.addf %45, %47 : vector<256x4xf32>
    %49 = vector.shape_cast %48 : vector<256x4xf32> to vector<1x16x16x4xf32>
    %cst_78 = arith.constant 1.000000e+00 : f32
    %50 = vector.broadcast %cst_78 : f32 to vector<1x16x16x4xf32>
    %51 = arith.cmpf oge, %49, %50 : vector<1x16x16x4xf32>
    %cst_79 = arith.constant 1.000000e+00 : f32
    %cst_80 = arith.constant 0.000000e+00 : f32
    %52 = vector.broadcast %cst_79 : f32 to vector<1x16x16x4xf32>
    %53 = vector.broadcast %cst_80 : f32 to vector<1x16x16x4xf32>
    %54 = arith.select %51, %52, %53 : vector<1x16x16x4xi1>, vector<1x16x16x4xf32>
    %55 = arith.truncf %54 : vector<1x16x16x4xf32> to vector<1x16x16x4xbf16>
    %c0_81 = arith.constant 0 : index
    %c1_82 = arith.constant 1 : index
    %c1_83 = arith.constant 1 : index
    %c0_84 = arith.constant 0 : index
    %56 = vector.load %arg8[%c0_81, %c1_82, %c1_83, %c0_84] : memref<1x18x18x4xbf16, #tpu.memory_space<vmem>>, vector<1x16x16x4xbf16>
    tpu.vector_store %arg8[%c0_81, %c1_82, %c1_83, %c0_84], %55 {strides = array<i32>} : memref<1x18x18x4xbf16, #tpu.memory_space<vmem>>, vector<1x16x16x4xbf16>,
    %c0_85 = arith.constant 0 : index
    %c0_86 = arith.constant 0 : index
    %c0_87 = arith.constant 0 : index
    %c0_88 = arith.constant 0 : index
    %57 = vector.load %arg8[%c0_85, %c0_86, %c0_87, %c0_88] : memref<1x18x18x4xbf16, #tpu.memory_space<vmem>>, vector<1x16x16x4xbf16>
    %58 = vector.shape_cast %57 : vector<1x16x16x4xbf16> to vector<256x4xbf16>
    %c0_89 = arith.constant 0 : index
    %c0_90 = arith.constant 0 : index
    %59 = vector.load %arg9[%c0_89, %c0_90] : memref<256x36xbf16, #tpu.memory_space<vmem>>, vector<256x4xbf16>
    tpu.vector_store %arg9[%c0_89, %c0_90], %58 {strides = array<i32>} : memref<256x36xbf16, #tpu.memory_space<vmem>>, vector<256x4xbf16>,
    %c0_91 = arith.constant 0 : index
    %c0_92 = arith.constant 0 : index
    %c1_93 = arith.constant 1 : index
    %c0_94 = arith.constant 0 : index
    %60 = vector.load %arg8[%c0_91, %c0_92, %c1_93, %c0_94] : memref<1x18x18x4xbf16, #tpu.memory_space<vmem>>, vector<1x16x16x4xbf16>
    %61 = vector.shape_cast %60 : vector<1x16x16x4xbf16> to vector<256x4xbf16>
    %c0_95 = arith.constant 0 : index
    %c4_96 = arith.constant 4 : index
    %62 = vector.load %arg9[%c0_95, %c4_96] : memref<256x36xbf16, #tpu.memory_space<vmem>>, vector<256x4xbf16>
    tpu.vector_store %arg9[%c0_95, %c4_96], %61 {strides = array<i32>} : memref<256x36xbf16, #tpu.memory_space<vmem>>, vector<256x4xbf16>,
    %c0_97 = arith.constant 0 : index
    %c0_98 = arith.constant 0 : index
    %c2_99 = arith.constant 2 : index
    %c0_100 = arith.constant 0 : index
    %63 = vector.load %arg8[%c0_97, %c0_98, %c2_99, %c0_100] : memref<1x18x18x4xbf16, #tpu.memory_space<vmem>>, vector<1x16x16x4xbf16>
    %64 = vector.shape_cast %63 : vector<1x16x16x4xbf16> to vector<256x4xbf16>
    %c0_101 = arith.constant 0 : index
    %c8_102 = arith.constant 8 : index
    %65 = vector.load %arg9[%c0_101, %c8_102] : memref<256x36xbf16, #tpu.memory_space<vmem>>, vector<256x4xbf16>
    tpu.vector_store %arg9[%c0_101, %c8_102], %64 {strides = array<i32>} : memref<256x36xbf16, #tpu.memory_space<vmem>>, vector<256x4xbf16>,
    %c0_103 = arith.constant 0 : index
    %c1_104 = arith.constant 1 : index
    %c0_105 = arith.constant 0 : index
    %c0_106 = arith.constant 0 : index
    %66 = vector.load %arg8[%c0_103, %c1_104, %c0_105, %c0_106] : memref<1x18x18x4xbf16, #tpu.memory_space<vmem>>, vector<1x16x16x4xbf16>
    %67 = vector.shape_cast %66 : vector<1x16x16x4xbf16> to vector<256x4xbf16>
    %c0_107 = arith.constant 0 : index
    %c12_108 = arith.constant 12 : index
    %68 = vector.load %arg9[%c0_107, %c12_108] : memref<256x36xbf16, #tpu.memory_space<vmem>>, vector<256x4xbf16>
    tpu.vector_store %arg9[%c0_107, %c12_108], %67 {strides = array<i32>} : memref<256x36xbf16, #tpu.memory_space<vmem>>, vector<256x4xbf16>,
    %c0_109 = arith.constant 0 : index
    %c1_110 = arith.constant 1 : index
    %c1_111 = arith.constant 1 : index
    %c0_112 = arith.constant 0 : index
    %69 = vector.load %arg8[%c0_109, %c1_110, %c1_111, %c0_112] : memref<1x18x18x4xbf16, #tpu.memory_space<vmem>>, vector<1x16x16x4xbf16>
    %70 = vector.shape_cast %69 : vector<1x16x16x4xbf16> to vector<256x4xbf16>
    %c0_113 = arith.constant 0 : index
    %c16_114 = arith.constant 16 : index
    %71 = vector.load %arg9[%c0_113, %c16_114] : memref<256x36xbf16, #tpu.memory_space<vmem>>, vector<256x4xbf16>
    tpu.vector_store %arg9[%c0_113, %c16_114], %70 {strides = array<i32>} : memref<256x36xbf16, #tpu.memory_space<vmem>>, vector<256x4xbf16>,
    %c0_115 = arith.constant 0 : index
    %c1_116 = arith.constant 1 : index
    %c2_117 = arith.constant 2 : index
    %c0_118 = arith.constant 0 : index
    %72 = vector.load %arg8[%c0_115, %c1_116, %c2_117, %c0_118] : memref<1x18x18x4xbf16, #tpu.memory_space<vmem>>, vector<1x16x16x4xbf16>
    %73 = vector.shape_cast %72 : vector<1x16x16x4xbf16> to vector<256x4xbf16>
    %c0_119 = arith.constant 0 : index
    %c20_120 = arith.constant 20 : index
    %74 = vector.load %arg9[%c0_119, %c20_120] : memref<256x36xbf16, #tpu.memory_space<vmem>>, vector<256x4xbf16>
    tpu.vector_store %arg9[%c0_119, %c20_120], %73 {strides = array<i32>} : memref<256x36xbf16, #tpu.memory_space<vmem>>, vector<256x4xbf16>,
    %c0_121 = arith.constant 0 : index
    %c2_122 = arith.constant 2 : index
    %c0_123 = arith.constant 0 : index
    %c0_124 = arith.constant 0 : index
    %75 = vector.load %arg8[%c0_121, %c2_122, %c0_123, %c0_124] : memref<1x18x18x4xbf16, #tpu.memory_space<vmem>>, vector<1x16x16x4xbf16>
    %76 = vector.shape_cast %75 : vector<1x16x16x4xbf16> to vector<256x4xbf16>
    %c0_125 = arith.constant 0 : index
    %c24_126 = arith.constant 24 : index
    %77 = vector.load %arg9[%c0_125, %c24_126] : memref<256x36xbf16, #tpu.memory_space<vmem>>, vector<256x4xbf16>
    tpu.vector_store %arg9[%c0_125, %c24_126], %76 {strides = array<i32>} : memref<256x36xbf16, #tpu.memory_space<vmem>>, vector<256x4xbf16>,
    %c0_127 = arith.constant 0 : index
    %c2_128 = arith.constant 2 : index
    %c1_129 = arith.constant 1 : index
    %c0_130 = arith.constant 0 : index
    %78 = vector.load %arg8[%c0_127, %c2_128, %c1_129, %c0_130] : memref<1x18x18x4xbf16, #tpu.memory_space<vmem>>, vector<1x16x16x4xbf16>
    %79 = vector.shape_cast %78 : vector<1x16x16x4xbf16> to vector<256x4xbf16>
    %c0_131 = arith.constant 0 : index
    %c28_132 = arith.constant 28 : index
    %80 = vector.load %arg9[%c0_131, %c28_132] : memref<256x36xbf16, #tpu.memory_space<vmem>>, vector<256x4xbf16>
    tpu.vector_store %arg9[%c0_131, %c28_132], %79 {strides = array<i32>} : memref<256x36xbf16, #tpu.memory_space<vmem>>, vector<256x4xbf16>,
    %c0_133 = arith.constant 0 : index
    %c2_134 = arith.constant 2 : index
    %c2_135 = arith.constant 2 : index
    %c0_136 = arith.constant 0 : index
    %81 = vector.load %arg8[%c0_133, %c2_134, %c2_135, %c0_136] : memref<1x18x18x4xbf16, #tpu.memory_space<vmem>>, vector<1x16x16x4xbf16>
    %82 = vector.shape_cast %81 : vector<1x16x16x4xbf16> to vector<256x4xbf16>
    %c0_137 = arith.constant 0 : index
    %c32_138 = arith.constant 32 : index
    %83 = vector.load %arg9[%c0_137, %c32_138] : memref<256x36xbf16, #tpu.memory_space<vmem>>, vector<256x4xbf16>
    tpu.vector_store %arg9[%c0_137, %c32_138], %82 {strides = array<i32>} : memref<256x36xbf16, #tpu.memory_space<vmem>>, vector<256x4xbf16>,
    %c0_139 = arith.constant 0 : index
    %c0_140 = arith.constant 0 : index
    %84 = vector.load %arg9[%c0_139, %c0_140] : memref<256x36xbf16, #tpu.memory_space<vmem>>, vector<256x36xbf16>
    %c0_141 = arith.constant 0 : index
    %c0_142 = arith.constant 0 : index
    %85 = vector.load %arg5[%c0_141, %c0_142] : memref<36x4xbf16, #tpu.memory_space<vmem>>, vector<36x4xbf16>
    %cst_143 = arith.constant dense<0.000000e+00> : vector<256x4xf32>
    %86 = tpu.matmul %84, %85, %cst_143 {dimension_numbers = #tpu.dot_dimension_numbers<[1], [0], [0], [1], [0, 0, 1, 1], [], []>} : vector<256x36xbf16>, vector<36x4xbf16>, vector<256x4xf32> -> vector<256x4xf32>
    %c0_144 = arith.constant 0 : index
    %c0_145 = arith.constant 0 : index
    %87 = vector.load %arg6[%c0_144, %c0_145] : memref<1x4xf32, #tpu.memory_space<vmem>>, vector<1x4xf32>
    %88 = vector.broadcast %87 : vector<1x4xf32> to vector<256x4xf32>
    %89 = arith.addf %86, %88 : vector<256x4xf32>
    %90 = vector.shape_cast %89 : vector<256x4xf32> to vector<1x16x16x4xf32>
    %91 = vector.broadcast %1 : f32 to vector<1x16x16x4xf32>
    %92 = arith.mulf %90, %91 : vector<1x16x16x4xf32>
    %93 = arith.addf %92, %2 : vector<1x16x16x4xf32>
    %c0_146 = arith.constant 0 : index
    %c0_147 = arith.constant 0 : index
    %c0_148 = arith.constant 0 : index
    %c0_149 = arith.constant 0 : index
    %94 = vector.load %arg7[%c0_146, %c0_147, %c0_148, %c0_149] : memref<1x16x16x4xf32, #tpu.memory_space<vmem>>, vector<1x16x16x4xf32>
    tpu.vector_store %arg7[%c0_146, %c0_147, %c0_148, %c0_149], %93 {strides = array<i32>} : memref<1x16x16x4xf32, #tpu.memory_space<vmem>>, vector<1x16x16x4xf32>,
    return
  }
  func.func @transform_0(%arg0: i32) -> i32 {
    %c0_i32 = arith.constant 0 : i32
    %c0_i32_0 = arith.constant 0 : i32
    return %c0_i32 : i32
  }
  func.func @transform_1(%arg0: i32) -> (i32, i32, i32, i32) {
    %c0_i32 = arith.constant 0 : i32
    %c0_i32_0 = arith.constant 0 : i32
    %c0_i32_1 = arith.constant 0 : i32
    %c0_i32_2 = arith.constant 0 : i32
    return %arg0, %c0_i32, %c0_i32_0, %c0_i32_1 : i32, i32, i32, i32
  }
  func.func @transform_2(%arg0: i32) -> (i32, i32) {
    %c0_i32 = arith.constant 0 : i32
    %c0_i32_0 = arith.constant 0 : i32
    %c0_i32_1 = arith.constant 0 : i32
    return %c0_i32, %c0_i32_0 : i32, i32
  }
  func.func @transform_3(%arg0: i32) -> (i32, i32) {
    %c0_i32 = arith.constant 0 : i32
    %c0_i32_0 = arith.constant 0 : i32
    %c0_i32_1 = arith.constant 0 : i32
    return %c0_i32, %c0_i32_0 : i32, i32
  }
  func.func @transform_4(%arg0: i32) -> (i32, i32) {
    %c0_i32 = arith.constant 0 : i32
    %c0_i32_0 = arith.constant 0 : i32
    %c0_i32_1 = arith.constant 0 : i32
    return %c0_i32, %c0_i32_0 : i32, i32
  }
  func.func @transform_5(%arg0: i32) -> (i32, i32) {
    %c0_i32 = arith.constant 0 : i32
    %c0_i32_0 = arith.constant 0 : i32
    %c0_i32_1 = arith.constant 0 : i32
    return %c0_i32, %c0_i32_0 : i32, i32
  }
  func.func @transform_6(%arg0: i32) -> (i32, i32, i32, i32) {
    %c0_i32 = arith.constant 0 : i32
    %c0_i32_0 = arith.constant 0 : i32
    %c0_i32_1 = arith.constant 0 : i32
    %c0_i32_2 = arith.constant 0 : i32
    return %arg0, %c0_i32, %c0_i32_0, %c0_i32_1 : i32, i32, i32, i32
  }
}

</mosaic_0001>

<llo_original>
// kernel: basic_block_forward.1
$region0: #{basic_block_forward.1}
  #allocation0 [shape = 'u32[]', space=smem, size = 0x4, offset = 0x4, fixed_abs, tag = 'smem constant byte address 0x4 - core index']
  #allocation1 [shape = 'u32[72,128]{1,0:T(1,128)}', space=vmem, size = 0x9000, scoped, tag = 'internal scratch']
  #allocation2 [shape = 'bf16[1,18,18,4]{3,2,1,0:T(8,128)(2,1)}', space=vmem, size = 0x1b000, scoped, tag = 'scratch operand']
  #allocation3 [shape = 'bf16[256,36]{1,0:T(8,128)(2,1)}', space=vmem, size = 0x10000, scoped, tag = 'scratch operand']
  %s0 = inlined_call_operand.vmem [shape: f32[2], index: 0, kind: input, shape index: {}]
  %s1 = inlined_call_operand.vmem [shape: f32[2,16,16,4], index: 1, kind: input, shape index: {}]
  %s2 = inlined_call_operand.vmem [shape: bf16[36,4], index: 2, kind: input, shape index: {}]
  %s3 = inlined_call_operand.vmem [shape: f32[1,4], index: 3, kind: input, shape index: {}]
  %s4 = inlined_call_operand.vmem [shape: bf16[36,4], index: 4, kind: input, shape index: {}]
  %s5 = inlined_call_operand.vmem [shape: f32[1,4], index: 5, kind: input, shape index: {}]
  %s6 = inlined_call_operand.vmem [shape: f32[2,16,16,4], index: 6, kind: output, shape index: {}]
  %s7 = sld [smem:[#allocation0]]
  $region61: #{basic_block_forward.1} parent=0
    _
  %s9 = ssub.s32 1, %s7
  %s10 = scalar_select 0, %s9, %s7
  $region1: #{basic_block_forward.1} parent=0
    #allocation4 [shape = 'u8[512]{0}', space=smem, size = 0x200, scoped, tag = 'input window, operand 0, single buffered']
    #allocation5 [shape = 's32[2]{0}', space=sflag, size = 0x8, scoped, tag = 'scoped memory for basic_block_forward.1']
    %11 = vsyncpa [#allocation5], 0
    loop: start=0, step=1, limit=4
    $region2: #{basic_block_forward.1} parent=1 // loop_pre_header
      _
    $region3: #{basic_block_forward.1} parent=1 // loop_header
      %s13 = sphi 0, %s17
      %p14 = scmp.ge.s32.totalorder %s13, 4
      %s21 = sphi 0, %s21
      %s23 = sphi 0, %s21
      %s24 = sphi 0, %s23
      %s38 = sphi 0, %s24
      %s44 = sphi 0, %s46
      %s47 = sphi 0, %s44
      %s48 = sphi 0, %s47
      %s64 = sphi 0, %s48
      %s68 = sphi 0, %s68
      %s70 = sphi 0, %s68
      %s71 = sphi 0, %s70
      %s85 = sphi 0, %s71
      %s89 = sphi 0, %s89
      %s91 = sphi 0, %s89
      %s92 = sphi 0, %s91
      %s106 = sphi 0, %s92
      %s110 = sphi 0, %s110
      %s112 = sphi 0, %s110
      %s113 = sphi 0, %s112
      %s127 = sphi 0, %s113
      %s131 = sphi 0, %s131
      %s133 = sphi 0, %s131
      %s134 = sphi 0, %s133
      %s148 = sphi 0, %s134
      %s154 = sphi 0, %s156
      %s157 = sphi 0, %s154
      %s158 = sphi 0, %s157
      %s174 = sphi 0, %s158
    $region4: #{basic_block_forward.1} parent=1 // loop_header_branch
      %16 = sbr.rel (%p14) target = $region8
    $region5: #{basic_block_forward.1} parent=1 // loop_body
      %s18 = ssub.s32 %s13, 1
      %s19 = ssub.s32 %s13, 2
      %s20 = sadd.s32 %s13, 1
      %s22 = sadd.s32 %s21, 1
      %p25 = scmp.eq.s32.totalorder %s13, 1
      %p26 = scmp.ne.s32.totalorder %s21, %s23
      %p27 = scmp.eq.s32.totalorder %s13, 0
      %p28 = por %p26, %p27
      %p29 = scmp.ne.s32.totalorder %s21, %s23
      %p30 = scmp.eq.s32.totalorder %s18, 1
      %p31 = por %p29, %p30
      %p32 = scmp.ne.s32.totalorder %s23, %s24
      %p33 = scmp.eq.s32.totalorder %s18, 0
      %p34 = por %p32, %p33
      %p35 = scmp.ne.s32.totalorder %s23, %s24
      %p36 = scmp.eq.s32.totalorder %s19, 1
      %p37 = por %p35, %p36
      %p39 = scmp.ne.s32.totalorder %s24, %s38
      %p40 = scmp.eq.s32.totalorder %s19, 0
      %p41 = por %p39, %p40
      %s42 = ssub.s32 %s13, %s20
      %p43 = scmp.eq.s32.totalorder %s42, 0
      %s45 = sadd.s32 %s44, 1
      %s46 = scalar_select %p43, %s44, %s45
      %p49 = pneg %p43
      %p50 = scmp.eq.s32.totalorder %s13, 1
      %p51 = por %p49, %p50
      %p52 = scmp.ne.s32.totalorder %s44, %s47
      %p53 = scmp.eq.s32.totalorder %s13, 0
      %p54 = por %p52, %p53
      %p55 = scmp.ne.s32.totalorder %s44, %s47
      %p56 = scmp.eq.s32.totalorder %s18, 1
      %p57 = por %p55, %p56
      %p58 = scmp.ne.s32.totalorder %s47, %s48
      %p59 = scmp.eq.s32.totalorder %s18, 0
      %p60 = por %p58, %p59
      %p61 = scmp.ne.s32.totalorder %s47, %s48
      %p62 = scmp.eq.s32.totalorder %s19, 1
      %p63 = por %p61, %p62
      %p65 = scmp.ne.s32.totalorder %s48, %s64
      %p66 = scmp.eq.s32.totalorder %s19, 0
      %p67 = por %p65, %p66
      %s69 = sadd.s32 %s68, 1
      %p72 = scmp.eq.s32.totalorder %s13, 1
      %p73 = scmp.ne.s32.totalorder %s68, %s70
      %p74 = scmp.eq.s32.totalorder %s13, 0
      %p75 = por %p73, %p74
      %p76 = scmp.ne.s32.totalorder %s68, %s70
      %p77 = scmp.eq.s32.totalorder %s18, 1
      %p78 = por %p76, %p77
      %p79 = scmp.ne.s32.totalorder %s70, %s71
      %p80 = scmp.eq.s32.totalorder %s18, 0
      %p81 = por %p79, %p80
      %p82 = scmp.ne.s32.totalorder %s70, %s71
      %p83 = scmp.eq.s32.totalorder %s19, 1
      %p84 = por %p82, %p83
      %p86 = scmp.ne.s32.totalorder %s71, %s85
      %p87 = scmp.eq.s32.totalorder %s19, 0
      %p88 = por %p86, %p87
      %s90 = sadd.s32 %s89, 1
      %p93 = scmp.eq.s32.totalorder %s13, 1
      %p94 = scmp.ne.s32.totalorder %s89, %s91
      %p95 = scmp.eq.s32.totalorder %s13, 0
      %p96 = por %p94, %p95
      %p97 = scmp.ne.s32.totalorder %s89, %s91
      %p98 = scmp.eq.s32.totalorder %s18, 1
      %p99 = por %p97, %p98
      %p100 = scmp.ne.s32.totalorder %s91, %s92
      %p101 = scmp.eq.s32.totalorder %s18, 0
      %p102 = por %p100, %p101
      %p103 = scmp.ne.s32.totalorder %s91, %s92
      %p104 = scmp.eq.s32.totalorder %s19, 1
      %p105 = por %p103, %p104
      %p107 = scmp.ne.s32.totalorder %s92, %s106
      %p108 = scmp.eq.s32.totalorder %s19, 0
      %p109 = por %p107, %p108
      %s111 = sadd.s32 %s110, 1
      %p114 = scmp.eq.s32.totalorder %s13, 1
      %p115 = scmp.ne.s32.totalorder %s110, %s112
      %p116 = scmp.eq.s32.totalorder %s13, 0
      %p117 = por %p115, %p116
      %p118 = scmp.ne.s32.totalorder %s110, %s112
      %p119 = scmp.eq.s32.totalorder %s18, 1
      %p120 = por %p118, %p119
      %p121 = scmp.ne.s32.totalorder %s112, %s113
      %p122 = scmp.eq.s32.totalorder %s18, 0
      %p123 = por %p121, %p122
      %p124 = scmp.ne.s32.totalorder %s112, %s113
      %p125 = scmp.eq.s32.totalorder %s19, 1
      %p126 = por %p124, %p125
      %p128 = scmp.ne.s32.totalorder %s113, %s127
      %p129 = scmp.eq.s32.totalorder %s19, 0
      %p130 = por %p128, %p129
      %s132 = sadd.s32 %s131, 1
      %p135 = scmp.eq.s32.totalorder %s13, 1
      %p136 = scmp.ne.s32.totalorder %s131, %s133
      %p137 = scmp.eq.s32.totalorder %s13, 0
      %p138 = por %p136, %p137
      %p139 = scmp.ne.s32.totalorder %s131, %s133
      %p140 = scmp.eq.s32.totalorder %s18, 1
      %p141 = por %p139, %p140
      %p142 = scmp.ne.s32.totalorder %s133, %s134
      %p143 = scmp.eq.s32.totalorder %s18, 0
      %p144 = por %p142, %p143
      %p145 = scmp.ne.s32.totalorder %s133, %s134
      %p146 = scmp.eq.s32.totalorder %s19, 1
      %p147 = por %p145, %p146
      %p149 = scmp.ne.s32.totalorder %s134, %s148
      %p150 = scmp.eq.s32.totalorder %s19, 0
      %p151 = por %p149, %p150
      %s152 = ssub.s32 %s13, %s20
      %p153 = scmp.eq.s32.totalorder %s152, 0
      %s155 = sadd.s32 %s154, 1
      %s156 = scalar_select %p153, %s154, %s155
      %p159 = pneg %p153
      %p160 = scmp.eq.s32.totalorder %s13, 1
      %p161 = por %p159, %p160
      %p162 = scmp.ne.s32.totalorder %s154, %s157
      %p163 = scmp.eq.s32.totalorder %s13, 0
      %p164 = por %p162, %p163
      %p165 = scmp.ne.s32.totalorder %s154, %s157
      %p166 = scmp.eq.s32.totalorder %s18, 1
      %p167 = por %p165, %p166
      %p168 = scmp.ne.s32.totalorder %s157, %s158
      %p169 = scmp.eq.s32.totalorder %s18, 0
      %p170 = por %p168, %p169
      %p171 = scmp.ne.s32.totalorder %s157, %s158
      %p172 = scmp.eq.s32.totalorder %s19, 1
      %p173 = por %p171, %p172
      %p175 = scmp.ne.s32.totalorder %s158, %s174
      %p176 = scmp.eq.s32.totalorder %s19, 0
      %p177 = por %p175, %p176
      %p178 = scmp.le.s32.totalorder 1, %s13
      %p179 = scmp.lt.s32.totalorder %s13, 3
      %p180 = pnand %p178, %p179
      %p181 = pneg %p180
      // Predicated region
      $region9: #{basic_block_forward.1} parent=5 // pred_check
        _
      $region10: #{basic_block_forward.1} parent=5 // pred_check_branch
        %183 = sbr.rel (%p180) target = $region12
      $region11: #{basic_block_forward.1} parent=5 // pred_region
        %s184 = ssub.s32 %s13, 1
        // Predicated region
        $region13: #{basic_block_forward.1} parent=11 // pred_check
          %p185 = pneg %p34
        $region14: #{basic_block_forward.1} parent=11 // pred_check_branch
          %187 = sbr.rel (%p185) target = $region16
        $region15: #{basic_block_forward.1} parent=11 // pred_region
          %189 = vsyncadd [#allocation5], 0
          %s191 = sshll.u32 %s0, 4
          %s192 = int_to_ptr.vmem [resolvable:$true] %s191
          %194 = dma.vmem_to_smem %s192, 16, [#allocation4], [#allocation5]
        $region16: #{basic_block_forward.1} parent=11 // pred_fallthru
          _
        // Predicated region
        $region17: #{basic_block_forward.1} parent=11 // pred_check
          %p195 = pneg %p81
        $region18: #{basic_block_forward.1} parent=11 // pred_check_branch
          %197 = sbr.rel (%p195) target = $region20
        $region19: #{basic_block_forward.1} parent=11 // pred_region
          _
        $region20: #{basic_block_forward.1} parent=11 // pred_fallthru
          _
        // Predicated region
        $region21: #{basic_block_forward.1} parent=11 // pred_check
          %p198 = pneg %p102
        $region22: #{basic_block_forward.1} parent=11 // pred_check_branch
          %200 = sbr.rel (%p198) target = $region24
        $region23: #{basic_block_forward.1} parent=11 // pred_region
          _
        $region24: #{basic_block_forward.1} parent=11 // pred_fallthru
          _
        // Predicated region
        $region25: #{basic_block_forward.1} parent=11 // pred_check
          %p201 = pneg %p123
        $region26: #{basic_block_forward.1} parent=11 // pred_check_branch
          %203 = sbr.rel (%p201) target = $region28
        $region27: #{basic_block_forward.1} parent=11 // pred_region
          _
        $region28: #{basic_block_forward.1} parent=11 // pred_fallthru
          _
        // Predicated region
        $region29: #{basic_block_forward.1} parent=11 // pred_check
          %p204 = pneg %p144
        $region30: #{basic_block_forward.1} parent=11 // pred_check_branch
          %206 = sbr.rel (%p204) target = $region32
        $region31: #{basic_block_forward.1} parent=11 // pred_region
          _
        $region32: #{basic_block_forward.1} parent=11 // pred_fallthru
          _
      $region12: #{basic_block_forward.1} parent=5 // pred_fallthru
        _
      %p207 = scmp.lt.s32.totalorder %s13, 2
      // Predicated region
      $region33: #{basic_block_forward.1} parent=5 // pred_check
        %p208 = pneg %p207
      $region34: #{basic_block_forward.1} parent=5 // pred_check_branch
        %210 = sbr.rel (%p208) target = $region36
      $region35: #{basic_block_forward.1} parent=5 // pred_region
        // Predicated region
        $region37: #{basic_block_forward.1} parent=35 // pred_check
          %p211 = pneg %p54
        $region38: #{basic_block_forward.1} parent=35 // pred_check_branch
          %213 = sbr.rel (%p211) target = $region40
        $region39: #{basic_block_forward.1} parent=35 // pred_region
          %p214 = scmp.lt.s32.totalorder %s13, 1
          %s215 = scalar_select %p214, %s13, 1
          %s216 = smul.addr %s215, 32
          %s217 = smul.addr %s216, 8
          %s218 = scalar_lea.vmem %s1, %s217
        $region40: #{basic_block_forward.1} parent=35 // pred_fallthru
          _
      $region36: #{basic_block_forward.1} parent=5 // pred_fallthru
        _
      %p219 = scmp.le.s32.totalorder 1, %s13
      %p220 = scmp.lt.s32.totalorder %s13, 3
      %p221 = pnand %p219, %p220
      %p222 = pneg %p221
      // Predicated region
      $region41: #{basic_block_forward.1} parent=5 // pred_check
        _
      $region42: #{basic_block_forward.1} parent=5 // pred_check_branch
        %224 = sbr.rel (%p221) target = $region44
      $region43: #{basic_block_forward.1} parent=5 // pred_region
        %s225 = ssub.s32 %s13, 1
        // Predicated region
        $region45: #{basic_block_forward.1} parent=43 // pred_check
          %p226 = pneg %p34
        $region46: #{basic_block_forward.1} parent=43 // pred_check_branch
          %228 = sbr.rel (%p226) target = $region48
        $region47: #{basic_block_forward.1} parent=43 // pred_region
          %230 = dma.done [#allocation5], 16
        $region48: #{basic_block_forward.1} parent=43 // pred_fallthru
          _
        %231 = sfence
        %p232 = pneg %p34
        %p233 = pneg %p31
        %p234 = scmp.lt.s32.totalorder %s18, 1
        %s235 = scalar_select %p234, %s18, 1
        %s236 = smul.addr %s235, 32
        %s237 = smul.addr %s236, 8
        %s238 = scalar_lea.vmem %s1, %s237
        %p239 = pneg %p60
        %p240 = pneg %p57
        %p241 = pneg %p81
        %p242 = pneg %p78
        %p243 = pneg %p102
        %p244 = pneg %p99
        %p245 = pneg %p123
        %p246 = pneg %p120
        %p247 = pneg %p144
        %p248 = pneg %p141
        %p249 = pneg %p170
        %p250 = pneg %p167
        %p251 = scmp.lt.s32.totalorder %s18, 1
        %s252 = scalar_select %p251, %s18, 1
        %s253 = smul.addr %s252, 32
        %s254 = smul.addr %s253, 8
        %s255 = scalar_lea.vmem %s6, %s254
        %p256 = scmp.lt.s32.totalorder %s18, 1
        %s257 = scalar_select %p256, %s18, 1
        %s258 = smul.addr %s257, 32
        %s259 = smul.addr %s258, 8
        %s260 = scalar_lea.vmem %s1, %s259
        %p261 = scmp.lt.s32.totalorder %s18, 1
        %s262 = scalar_select %p261, %s18, 1
        %s263 = smul.addr %s262, 32
        %s264 = smul.addr %s263, 8
        %s265 = scalar_lea.vmem %s6, %s264
        %s267 = sld [smem:[#allocation4]]
        %s268 = sld [smem:[#allocation4 + $0x1]]
        %v269 = vld [vmem:[%s260] sm:$0xff]
        %v270 = vld [vmem:[%s260 + $0x8] sm:$0xff]
        %v271 = vld [vmem:[%s260 + $0x10] sm:$0xff]
        %v272 = vld [vmem:[%s260 + $0x18] sm:$0xff]
        %v273 = vld [vmem:[%s260 + $0x20] sm:$0xff]
        %v274 = vld [vmem:[%s260 + $0x28] sm:$0xff]
        %v275 = vld [vmem:[%s260 + $0x30] sm:$0xff]
        %v276 = vld [vmem:[%s260 + $0x38] sm:$0xff]
        %v277 = vld [vmem:[%s260 + $0x40] sm:$0xff]
        %v278 = vld [vmem:[%s260 + $0x48] sm:$0xff]
        %v279 = vld [vmem:[%s260 + $0x50] sm:$0xff]
        %v280 = vld [vmem:[%s260 + $0x58] sm:$0xff]
        %v281 = vld [vmem:[%s260 + $0x60] sm:$0xff]
        %v282 = vld [vmem:[%s260 + $0x68] sm:$0xff]
        %v283 = vld [vmem:[%s260 + $0x70] sm:$0xff]
        %v284 = vld [vmem:[%s260 + $0x78] sm:$0xff]
        %v285 = vld [vmem:[%s260 + $0x80] sm:$0xff]
        %v286 = vld [vmem:[%s260 + $0x88] sm:$0xff]
        %v287 = vld [vmem:[%s260 + $0x90] sm:$0xff]
        %v288 = vld [vmem:[%s260 + $0x98] sm:$0xff]
        %v289 = vld [vmem:[%s260 + $0xa0] sm:$0xff]
        %v290 = vld [vmem:[%s260 + $0xa8] sm:$0xff]
        %v291 = vld [vmem:[%s260 + $0xb0] sm:$0xff]
        %v292 = vld [vmem:[%s260 + $0xb8] sm:$0xff]
        %v293 = vld [vmem:[%s260 + $0xc0] sm:$0xff]
        %v294 = vld [vmem:[%s260 + $0xc8] sm:$0xff]
        %v295 = vld [vmem:[%s260 + $0xd0] sm:$0xff]
        %v296 = vld [vmem:[%s260 + $0xd8] sm:$0xff]
        %v297 = vld [vmem:[%s260 + $0xe0] sm:$0xff]
        %v298 = vld [vmem:[%s260 + $0xe8] sm:$0xff]
        %v299 = vld [vmem:[%s260 + $0xf0] sm:$0xff]
        %v300 = vld [vmem:[%s260 + $0xf8] sm:$0xff]
        %vm301 = vcmask 27648
        %302 = vst.msk [vmem:[#allocation2] sm:$0xf] %vm301, 0
        %303 = vst.msk [vmem:[#allocation2 + $0x4] sm:$0xf] %vm301, 0
        %vm304 = vcmask 24576
        %305 = vst.msk [vmem:[#allocation2 + $0x8] sm:$0x1] %vm304, 0
        %s306 = scalar_lea.vmem [#allocation2], 204
        %307 = vst.msk [vmem:[%s306] sm:$0xf] %vm301, 0
        %308 = vst.msk [vmem:[%s306 + $0x4] sm:$0xf] %vm301, 0
        %309 = vst.msk [vmem:[%s306 + $0x8] sm:$0x1] %vm304, 0
        %s310 = scalar_lea.vmem [#allocation2], 12
        %vm311 = vcmask 24576
        %vm312 = vsmask.f32 256
        %vm313 = vmand %vm311, %vm312
        %v314 = vld [vmem:[%s310] sm:$0x1]
        %v315 = vsel %vm313, 0, %v314
        %316 = vst [vmem:[%s310] sm:$0x1] %v315
        %v317 = vld [vmem:[%s310 + $0xc] sm:$0x1]
        %v318 = vsel %vm313, 0, %v317
        %319 = vst [vmem:[%s310 + $0xc] sm:$0x1] %v318
        %v320 = vld [vmem:[%s310 + $0x18] sm:$0x1]
        %v321 = vsel %vm313, 0, %v320
        %322 = vst [vmem:[%s310 + $0x18] sm:$0x1] %v321
        %v323 = vld [vmem:[%s310 + $0x24] sm:$0x1]
        %v324 = vsel %vm313, 0, %v323
        %325 = vst [vmem:[%s310 + $0x24] sm:$0x1] %v324
        %v326 = vld [vmem:[%s310 + $0x30] sm:$0x1]
        %v327 = vsel %vm313, 0, %v326
        %328 = vst [vmem:[%s310 + $0x30] sm:$0x1] %v327
        %v329 = vld [vmem:[%s310 + $0x3c] sm:$0x1]
        %v330 = vsel %vm313, 0, %v329
        %331 = vst [vmem:[%s310 + $0x3c] sm:$0x1] %v330
        %v332 = vld [vmem:[%s310 + $0x48] sm:$0x1]
        %v333 = vsel %vm313, 0, %v332
        %334 = vst [vmem:[%s310 + $0x48] sm:$0x1] %v333
        %v335 = vld [vmem:[%s310 + $0x54] sm:$0x1]
        %v336 = vsel %vm313, 0, %v335
        %337 = vst [vmem:[%s310 + $0x54] sm:$0x1] %v336
        %v338 = vld [vmem:[%s310 + $0x60] sm:$0x1]
        %v339 = vsel %vm313, 0, %v338
        %340 = vst [vmem:[%s310 + $0x60] sm:$0x1] %v339
        %v341 = vld [vmem:[%s310 + $0x6c] sm:$0x1]
        %v342 = vsel %vm313, 0, %v341
        %343 = vst [vmem:[%s310 + $0x6c] sm:$0x1] %v342
        %v344 = vld [vmem:[%s310 + $0x78] sm:$0x1]
        %v345 = vsel %vm313, 0, %v344
        %346 = vst [vmem:[%s310 + $0x78] sm:$0x1] %v345
        %v347 = vld [vmem:[%s310 + $0x84] sm:$0x1]
        %v348 = vsel %vm313, 0, %v347
        %349 = vst [vmem:[%s310 + $0x84] sm:$0x1] %v348
        %v350 = vld [vmem:[%s310 + $0x90] sm:$0x1]
        %v351 = vsel %vm313, 0, %v350
        %352 = vst [vmem:[%s310 + $0x90] sm:$0x1] %v351
        %v353 = vld [vmem:[%s310 + $0x9c] sm:$0x1]
        %v354 = vsel %vm313, 0, %v353
        %355 = vst [vmem:[%s310 + $0x9c] sm:$0x1] %v354
        %v356 = vld [vmem:[%s310 + $0xa8] sm:$0x1]
        %v357 = vsel %vm313, 0, %v356
        %358 = vst [vmem:[%s310 + $0xa8] sm:$0x1] %v357
        %v359 = vld [vmem:[%s310 + $0xb4] sm:$0x1]
        %v360 = vsel %vm313, 0, %v359
        %361 = vst [vmem:[%s310 + $0xb4] sm:$0x1] %v360
        %vm362 = vsmask.f32 7938
        %vm363 = vmand %vm311, %vm362
        %v364 = vld [vmem:[%s310 + $0x8] sm:$0x1]
        %v365 = vsel %vm363, 0, %v364
        %366 = vst [vmem:[%s310 + $0x8] sm:$0x1] %v365
        %v367 = vld [vmem:[%s310 + $0x14] sm:$0x1]
        %v368 = vsel %vm363, 0, %v367
        %369 = vst [vmem:[%s310 + $0x14] sm:$0x1] %v368
        %v370 = vld [vmem:[%s310 + $0x20] sm:$0x1]
        %v371 = vsel %vm363, 0, %v370
        %372 = vst [vmem:[%s310 + $0x20] sm:$0x1] %v371
        %v373 = vld [vmem:[%s310 + $0x2c] sm:$0x1]
        %v374 = vsel %vm363, 0, %v373
        %375 = vst [vmem:[%s310 + $0x2c] sm:$0x1] %v374
        %v376 = vld [vmem:[%s310 + $0x38] sm:$0x1]
        %v377 = vsel %vm363, 0, %v376
        %378 = vst [vmem:[%s310 + $0x38] sm:$0x1] %v377
        %v379 = vld [vmem:[%s310 + $0x44] sm:$0x1]
        %v380 = vsel %vm363, 0, %v379
        %381 = vst [vmem:[%s310 + $0x44] sm:$0x1] %v380
        %v382 = vld [vmem:[%s310 + $0x50] sm:$0x1]
        %v383 = vsel %vm363, 0, %v382
        %384 = vst [vmem:[%s310 + $0x50] sm:$0x1] %v383
        %v385 = vld [vmem:[%s310 + $0x5c] sm:$0x1]
        %v386 = vsel %vm363, 0, %v385
        %387 = vst [vmem:[%s310 + $0x5c] sm:$0x1] %v386
        %v388 = vld [vmem:[%s310 + $0x68] sm:$0x1]
        %v389 = vsel %vm363, 0, %v388
        %390 = vst [vmem:[%s310 + $0x68] sm:$0x1] %v389
        %v391 = vld [vmem:[%s310 + $0x74] sm:$0x1]
        %v392 = vsel %vm363, 0, %v391
        %393 = vst [vmem:[%s310 + $0x74] sm:$0x1] %v392
        %v394 = vld [vmem:[%s310 + $0x80] sm:$0x1]
        %v395 = vsel %vm363, 0, %v394
        %396 = vst [vmem:[%s310 + $0x80] sm:$0x1] %v395
        %v397 = vld [vmem:[%s310 + $0x8c] sm:$0x1]
        %v398 = vsel %vm363, 0, %v397
        %399 = vst [vmem:[%s310 + $0x8c] sm:$0x1] %v398
        %v400 = vld [vmem:[%s310 + $0x98] sm:$0x1]
        %v401 = vsel %vm363, 0, %v400
        %402 = vst [vmem:[%s310 + $0x98] sm:$0x1] %v401
        %v403 = vld [vmem:[%s310 + $0xa4] sm:$0x1]
        %v404 = vsel %vm363, 0, %v403
        %405 = vst [vmem:[%s310 + $0xa4] sm:$0x1] %v404
        %v406 = vld [vmem:[%s310 + $0xb0] sm:$0x1]
        %v407 = vsel %vm363, 0, %v406
        %408 = vst [vmem:[%s310 + $0xb0] sm:$0x1] %v407
        %v409 = vld [vmem:[%s310 + $0xbc] sm:$0x1]
        %v410 = vsel %vm363, 0, %v409
        %411 = vst [vmem:[%s310 + $0xbc] sm:$0x1] %v410
        %v412 = vstv %s267
        %vm413 = vcmp.ge.f32.partialorder %v269, %v412
        %vm414 = vcmp.ge.f32.partialorder %v270, %v412
        %vm415 = vcmp.ge.f32.partialorder %v271, %v412
        %vm416 = vcmp.ge.f32.partialorder %v272, %v412
        %vm417 = vcmp.ge.f32.partialorder %v273, %v412
        %vm418 = vcmp.ge.f32.partialorder %v274, %v412
        %vm419 = vcmp.ge.f32.partialorder %v275, %v412
        %vm420 = vcmp.ge.f32.partialorder %v276, %v412
        %vm421 = vcmp.ge.f32.partialorder %v277, %v412
        %vm422 = vcmp.ge.f32.partialorder %v278, %v412
        %vm423 = vcmp.ge.f32.partialorder %v279, %v412
        %vm424 = vcmp.ge.f32.partialorder %v280, %v412
        %vm425 = vcmp.ge.f32.partialorder %v281, %v412
        %vm426 = vcmp.ge.f32.partialorder %v282, %v412
        %vm427 = vcmp.ge.f32.partialorder %v283, %v412
        %vm428 = vcmp.ge.f32.partialorder %v284, %v412
        %vm429 = vcmp.ge.f32.partialorder %v285, %v412
        %vm430 = vcmp.ge.f32.partialorder %v286, %v412
        %vm431 = vcmp.ge.f32.partialorder %v287, %v412
        %vm432 = vcmp.ge.f32.partialorder %v288, %v412
        %vm433 = vcmp.ge.f32.partialorder %v289, %v412
        %vm434 = vcmp.ge.f32.partialorder %v290, %v412
        %vm435 = vcmp.ge.f32.partialorder %v291, %v412
        %vm436 = vcmp.ge.f32.partialorder %v292, %v412
        %vm437 = vcmp.ge.f32.partialorder %v293, %v412
        %vm438 = vcmp.ge.f32.partialorder %v294, %v412
        %vm439 = vcmp.ge.f32.partialorder %v295, %v412
        %vm440 = vcmp.ge.f32.partialorder %v296, %v412
        %vm441 = vcmp.ge.f32.partialorder %v297, %v412
        %vm442 = vcmp.ge.f32.partialorder %v298, %v412
        %vm443 = vcmp.ge.f32.partialorder %v299, %v412
        %vm444 = vcmp.ge.f32.partialorder %v300, %v412
        %v445 = vsel %vm413, 1.0, 0.0
        %v446 = vsel %vm414, 1.0, 0.0
        %v447 = vsel %vm415, 1.0, 0.0
        %v448 = vsel %vm416, 1.0, 0.0
        %v449 = vsel %vm417, 1.0, 0.0
        %v450 = vsel %vm418, 1.0, 0.0
        %v451 = vsel %vm419, 1.0, 0.0
        %v452 = vsel %vm420, 1.0, 0.0
        %v453 = vsel %vm421, 1.0, 0.0
        %v454 = vsel %vm422, 1.0, 0.0
        %v455 = vsel %vm423, 1.0, 0.0
        %v456 = vsel %vm424, 1.0, 0.0
        %v457 = vsel %vm425, 1.0, 0.0
        %v458 = vsel %vm426, 1.0, 0.0
        %v459 = vsel %vm427, 1.0, 0.0
        %v460 = vsel %vm428, 1.0, 0.0
        %v461 = vsel %vm429, 1.0, 0.0
        %v462 = vsel %vm430, 1.0, 0.0
        %v463 = vsel %vm431, 1.0, 0.0
        %v464 = vsel %vm432, 1.0, 0.0
        %v465 = vsel %vm433, 1.0, 0.0
        %v466 = vsel %vm434, 1.0, 0.0
        %v467 = vsel %vm435, 1.0, 0.0
        %v468 = vsel %vm436, 1.0, 0.0
        %v469 = vsel %vm437, 1.0, 0.0
        %v470 = vsel %vm438, 1.0, 0.0
        %v471 = vsel %vm439, 1.0, 0.0
        %v472 = vsel %vm440, 1.0, 0.0
        %v473 = vsel %vm441, 1.0, 0.0
        %v474 = vsel %vm442, 1.0, 0.0
        %v475 = vsel %vm443, 1.0, 0.0
        %v476 = vsel %vm444, 1.0, 0.0
        %v477 = vpack.c.bf16 %v445, %v445
        %v478 = vpack.c.bf16 %v446, %v446
        %v479 = vpack.c.bf16 %v447, %v447
        %v480 = vpack.c.bf16 %v448, %v448
        %v481 = vpack.c.bf16 %v449, %v449
        %v482 = vpack.c.bf16 %v450, %v450
        %v483 = vpack.c.bf16 %v451, %v451
        %v484 = vpack.c.bf16 %v452, %v452
        %v485 = vpack.c.bf16 %v453, %v453
        %v486 = vpack.c.bf16 %v454, %v454
        %v487 = vpack.c.bf16 %v455, %v455
        %v488 = vpack.c.bf16 %v456, %v456
        %v489 = vpack.c.bf16 %v457, %v457
        %v490 = vpack.c.bf16 %v458, %v458
        %v491 = vpack.c.bf16 %v459, %v459
        %v492 = vpack.c.bf16 %v460, %v460
        %v493 = vpack.c.bf16 %v461, %v461
        %v494 = vpack.c.bf16 %v462, %v462
        %v495 = vpack.c.bf16 %v463, %v463
        %v496 = vpack.c.bf16 %v464, %v464
        %v497 = vpack.c.bf16 %v465, %v465
        %v498 = vpack.c.bf16 %v466, %v466
        %v499 = vpack.c.bf16 %v467, %v467
        %v500 = vpack.c.bf16 %v468, %v468
        %v501 = vpack.c.bf16 %v469, %v469
        %v502 = vpack.c.bf16 %v470, %v470
        %v503 = vpack.c.bf16 %v471, %v471
        %v504 = vpack.c.bf16 %v472, %v472
        %v505 = vpack.c.bf16 %v473, %v473
        %v506 = vpack.c.bf16 %v474, %v474
        %v507 = vpack.c.bf16 %v475, %v475
        %v508 = vpack.c.bf16 %v476, %v476
        %vm509 = vsmask.f32 4368
        %vm510 = vmor %vm312, %vm509
        %v512 = vshrl.u32 %v477, 16
        %v514 = vrot.slane %v512, 7
        %v515 = vshll.u32 %v477, 16
        %v517 = vor.u32 %v514, %v515
        %v518 = vrot.slane %v514, 4
        %v520 = vshrl.u32 %v478, 16
        %v522 = vrot.slane %v520, 7
        %v523 = vshll.u32 %v478, 16
        %v525 = vor.u32 %v522, %v523
        %v526 = vsel %vm510, %v518, %v525
        %v527 = vrot.slane %v522, 4
        %v529 = vshrl.u32 %v479, 16
        %v531 = vrot.slane %v529, 7
        %v532 = vshll.u32 %v479, 16
        %v534 = vor.u32 %v531, %v532
        %v535 = vrot.slane %v531, 4
        %v537 = vshrl.u32 %v480, 16
        %v539 = vrot.slane %v537, 7
        %v540 = vshll.u32 %v480, 16
        %v542 = vor.u32 %v539, %v540
        %v543 = vsel %vm510, %v535, %v542
        %v544 = vrot.slane %v539, 4
        %v546 = vshrl.u32 %v481, 16
        %v548 = vrot.slane %v546, 7
        %v549 = vshll.u32 %v481, 16
        %v551 = vor.u32 %v548, %v549
        %v552 = vrot.slane %v548, 4
        %v554 = vshrl.u32 %v482, 16
        %v556 = vrot.slane %v554, 7
        %v557 = vshll.u32 %v482, 16
        %v559 = vor.u32 %v556, %v557
        %v560 = vsel %vm510, %v552, %v559
        %v561 = vrot.slane %v556, 4
        %v563 = vshrl.u32 %v483, 16
        %v565 = vrot.slane %v563, 7
        %v566 = vshll.u32 %v483, 16
        %v568 = vor.u32 %v565, %v566
        %v569 = vrot.slane %v565, 4
        %v571 = vshrl.u32 %v484, 16
        %v573 = vrot.slane %v571, 7
        %v574 = vshll.u32 %v484, 16
        %v576 = vor.u32 %v573, %v574
        %v577 = vsel %vm510, %v569, %v576
        %v578 = vrot.slane %v573, 4
        %v580 = vshrl.u32 %v485, 16
        %v582 = vrot.slane %v580, 7
        %v583 = vshll.u32 %v485, 16
        %v585 = vor.u32 %v582, %v583
        %v586 = vrot.slane %v582, 4
        %v588 = vshrl.u32 %v486, 16
        %v590 = vrot.slane %v588, 7
        %v591 = vshll.u32 %v486, 16
        %v593 = vor.u32 %v590, %v591
        %v594 = vsel %vm510, %v586, %v593
        %v595 = vrot.slane %v590, 4
        %v597 = vshrl.u32 %v487, 16
        %v599 = vrot.slane %v597, 7
        %v600 = vshll.u32 %v487, 16
        %v602 = vor.u32 %v599, %v600
        %v603 = vrot.slane %v599, 4
        %v605 = vshrl.u32 %v488, 16
        %v607 = vrot.slane %v605, 7
        %v608 = vshll.u32 %v488, 16
        %v610 = vor.u32 %v607, %v608
        %v611 = vsel %vm510, %v603, %v610
        %v612 = vrot.slane %v607, 4
        %v614 = vshrl.u32 %v489, 16
        %v616 = vrot.slane %v614, 7
        %v617 = vshll.u32 %v489, 16
        %v619 = vor.u32 %v616, %v617
        %v620 = vrot.slane %v616, 4
        %v622 = vshrl.u32 %v490, 16
        %v624 = vrot.slane %v622, 7
        %v625 = vshll.u32 %v490, 16
        %v627 = vor.u32 %v624, %v625
        %v628 = vsel %vm510, %v620, %v627
        %v629 = vrot.slane %v624, 4
        %v631 = vshrl.u32 %v491, 16
        %v633 = vrot.slane %v631, 7
        %v634 = vshll.u32 %v491, 16
        %v636 = vor.u32 %v633, %v634
        %v637 = vrot.slane %v633, 4
        %v639 = vshrl.u32 %v492, 16
        %v641 = vrot.slane %v639, 7
        %v642 = vshll.u32 %v492, 16
        %v644 = vor.u32 %v641, %v642
        %v645 = vsel %vm510, %v637, %v644
        %v646 = vrot.slane %v641, 4
        %v648 = vshrl.u32 %v493, 16
        %v650 = vrot.slane %v648, 7
        %v651 = vshll.u32 %v493, 16
        %v653 = vor.u32 %v650, %v651
        %v654 = vrot.slane %v650, 4
        %v656 = vshrl.u32 %v494, 16
        %v658 = vrot.slane %v656, 7
        %v659 = vshll.u32 %v494, 16
        %v661 = vor.u32 %v658, %v659
        %v662 = vsel %vm510, %v654, %v661
        %v663 = vrot.slane %v658, 4
        %v665 = vshrl.u32 %v495, 16
        %v667 = vrot.slane %v665, 7
        %v668 = vshll.u32 %v495, 16
        %v670 = vor.u32 %v667, %v668
        %v671 = vrot.slane %v667, 4
        %v673 = vshrl.u32 %v496, 16
        %v675 = vrot.slane %v673, 7
        %v676 = vshll.u32 %v496, 16
        %v678 = vor.u32 %v675, %v676
        %v679 = vsel %vm510, %v671, %v678
        %v680 = vrot.slane %v675, 4
        %v682 = vshrl.u32 %v497, 16
        %v684 = vrot.slane %v682, 7
        %v685 = vshll.u32 %v497, 16
        %v687 = vor.u32 %v684, %v685
        %v688 = vrot.slane %v684, 4
        %v690 = vshrl.u32 %v498, 16
        %v692 = vrot.slane %v690, 7
        %v693 = vshll.u32 %v498, 16
        %v695 = vor.u32 %v692, %v693
        %v696 = vsel %vm510, %v688, %v695
        %v697 = vrot.slane %v692, 4
        %v699 = vshrl.u32 %v499, 16
        %v701 = vrot.slane %v699, 7
        %v702 = vshll.u32 %v499, 16
        %v704 = vor.u32 %v701, %v702
        %v705 = vrot.slane %v701, 4
        %v707 = vshrl.u32 %v500, 16
        %v709 = vrot.slane %v707, 7
        %v710 = vshll.u32 %v500, 16
        %v712 = vor.u32 %v709, %v710
        %v713 = vsel %vm510, %v705, %v712
        %v714 = vrot.slane %v709, 4
        %v716 = vshrl.u32 %v501, 16
        %v718 = vrot.slane %v716, 7
        %v719 = vshll.u32 %v501, 16
        %v721 = vor.u32 %v718, %v719
        %v722 = vrot.slane %v718, 4
        %v724 = vshrl.u32 %v502, 16
        %v726 = vrot.slane %v724, 7
        %v727 = vshll.u32 %v502, 16
        %v729 = vor.u32 %v726, %v727
        %v730 = vsel %vm510, %v722, %v729
        %v731 = vrot.slane %v726, 4
        %v733 = vshrl.u32 %v503, 16
        %v735 = vrot.slane %v733, 7
        %v736 = vshll.u32 %v503, 16
        %v738 = vor.u32 %v735, %v736
        %v739 = vrot.slane %v735, 4
        %v741 = vshrl.u32 %v504, 16
        %v743 = vrot.slane %v741, 7
        %v744 = vshll.u32 %v504, 16
        %v746 = vor.u32 %v743, %v744
        %v747 = vsel %vm510, %v739, %v746
        %v748 = vrot.slane %v743, 4
        %v750 = vshrl.u32 %v505, 16
        %v752 = vrot.slane %v750, 7
        %v753 = vshll.u32 %v505, 16
        %v755 = vor.u32 %v752, %v753
        %v756 = vrot.slane %v752, 4
        %v758 = vshrl.u32 %v506, 16
        %v760 = vrot.slane %v758, 7
        %v761 = vshll.u32 %v506, 16
        %v763 = vor.u32 %v760, %v761
        %v764 = vsel %vm510, %v756, %v763
        %v765 = vrot.slane %v760, 4
        %v767 = vshrl.u32 %v507, 16
        %v769 = vrot.slane %v767, 7
        %v770 = vshll.u32 %v507, 16
        %v772 = vor.u32 %v769, %v770
        %v773 = vrot.slane %v769, 4
        %v775 = vshrl.u32 %v508, 16
        %v777 = vrot.slane %v775, 7
        %v778 = vshll.u32 %v508, 16
        %v780 = vor.u32 %v777, %v778
        %v781 = vsel %vm510, %v773, %v780
        %v782 = vrot.slane %v777, 4
        %vm831 = vcmask 27648
        %vm832 = vmand %vm831, %vm362
        %v833 = vld [vmem:[%s310] sm:$0xf]
        %v834 = vsel %vm832, %v517, %v833
        %835 = vst [vmem:[%s310] sm:$0xf] %v834
        %836 = vst.msk [vmem:[%s310 + $0x4] sm:$0xf] %vm301, %v526
        %v837 = vld [vmem:[%s310 + $0x8] sm:$0x1]
        %v838 = vsel %vm313, %v527, %v837
        %839 = vst [vmem:[%s310 + $0x8] sm:$0x1] %v838
        %v840 = vld [vmem:[%s310 + $0xc] sm:$0xf]
        %v841 = vsel %vm832, %v534, %v840
        %842 = vst [vmem:[%s310 + $0xc] sm:$0xf] %v841
        %843 = vst.msk [vmem:[%s310 + $0x10] sm:$0xf] %vm301, %v543
        %v844 = vld [vmem:[%s310 + $0x14] sm:$0x1]
        %v845 = vsel %vm313, %v544, %v844
        %846 = vst [vmem:[%s310 + $0x14] sm:$0x1] %v845
        %v847 = vld [vmem:[%s310 + $0x18] sm:$0xf]
        %v848 = vsel %vm832, %v551, %v847
        %849 = vst [vmem:[%s310 + $0x18] sm:$0xf] %v848
        %850 = vst.msk [vmem:[%s310 + $0x1c] sm:$0xf] %vm301, %v560
        %v851 = vld [vmem:[%s310 + $0x20] sm:$0x1]
        %v852 = vsel %vm313, %v561, %v851
        %853 = vst [vmem:[%s310 + $0x20] sm:$0x1] %v852
        %v854 = vld [vmem:[%s310 + $0x24] sm:$0xf]
        %v855 = vsel %vm832, %v568, %v854
        %856 = vst [vmem:[%s310 + $0x24] sm:$0xf] %v855
        %857 = vst.msk [vmem:[%s310 + $0x28] sm:$0xf] %vm301, %v577
        %v858 = vld [vmem:[%s310 + $0x2c] sm:$0x1]
        %v859 = vsel %vm313, %v578, %v858
        %860 = vst [vmem:[%s310 + $0x2c] sm:$0x1] %v859
        %v861 = vld [vmem:[%s310 + $0x30] sm:$0xf]
        %v862 = vsel %vm832, %v585, %v861
        %863 = vst [vmem:[%s310 + $0x30] sm:$0xf] %v862
        %864 = vst.msk [vmem:[%s310 + $0x34] sm:$0xf] %vm301, %v594
        %v865 = vld [vmem:[%s310 + $0x38] sm:$0x1]
        %v866 = vsel %vm313, %v595, %v865
        %867 = vst [vmem:[%s310 + $0x38] sm:$0x1] %v866
        %v868 = vld [vmem:[%s310 + $0x3c] sm:$0xf]
        %v869 = vsel %vm832, %v602, %v868
        %870 = vst [vmem:[%s310 + $0x3c] sm:$0xf] %v869
        %871 = vst.msk [vmem:[%s310 + $0x40] sm:$0xf] %vm301, %v611
        %v872 = vld [vmem:[%s310 + $0x44] sm:$0x1]
        %v873 = vsel %vm313, %v612, %v872
        %874 = vst [vmem:[%s310 + $0x44] sm:$0x1] %v873
        %v875 = vld [vmem:[%s310 + $0x48] sm:$0xf]
        %v876 = vsel %vm832, %v619, %v875
        %877 = vst [vmem:[%s310 + $0x48] sm:$0xf] %v876
        %878 = vst.msk [vmem:[%s310 + $0x4c] sm:$0xf] %vm301, %v628
        %v879 = vld [vmem:[%s310 + $0x50] sm:$0x1]
        %v880 = vsel %vm313, %v629, %v879
        %881 = vst [vmem:[%s310 + $0x50] sm:$0x1] %v880
        %v882 = vld [vmem:[%s310 + $0x54] sm:$0xf]
        %v883 = vsel %vm832, %v636, %v882
        %884 = vst [vmem:[%s310 + $0x54] sm:$0xf] %v883
        %885 = vst.msk [vmem:[%s310 + $0x58] sm:$0xf] %vm301, %v645
        %v886 = vld [vmem:[%s310 + $0x5c] sm:$0x1]
        %v887 = vsel %vm313, %v646, %v886
        %888 = vst [vmem:[%s310 + $0x5c] sm:$0x1] %v887
        %v889 = vld [vmem:[%s310 + $0x60] sm:$0xf]
        %v890 = vsel %vm832, %v653, %v889
        %891 = vst [vmem:[%s310 + $0x60] sm:$0xf] %v890
        %892 = vst.msk [vmem:[%s310 + $0x64] sm:$0xf] %vm301, %v662
        %v893 = vld [vmem:[%s310 + $0x68] sm:$0x1]
        %v894 = vsel %vm313, %v663, %v893
        %895 = vst [vmem:[%s310 + $0x68] sm:$0x1] %v894
        %v896 = vld [vmem:[%s310 + $0x6c] sm:$0xf]
        %v897 = vsel %vm832, %v670, %v896
        %898 = vst [vmem:[%s310 + $0x6c] sm:$0xf] %v897
        %899 = vst.msk [vmem:[%s310 + $0x70] sm:$0xf] %vm301, %v679
        %v900 = vld [vmem:[%s310 + $0x74] sm:$0x1]
        %v901 = vsel %vm313, %v680, %v900
        %902 = vst [vmem:[%s310 + $0x74] sm:$0x1] %v901
        %v903 = vld [vmem:[%s310 + $0x78] sm:$0xf]
        %v904 = vsel %vm832, %v687, %v903
        %905 = vst [vmem:[%s310 + $0x78] sm:$0xf] %v904
        %906 = vst.msk [vmem:[%s310 + $0x7c] sm:$0xf] %vm301, %v696
        %v907 = vld [vmem:[%s310 + $0x80] sm:$0x1]
        %v908 = vsel %vm313, %v697, %v907
        %909 = vst [vmem:[%s310 + $0x80] sm:$0x1] %v908
        %v910 = vld [vmem:[%s310 + $0x84] sm:$0xf]
        %v911 = vsel %vm832, %v704, %v910
        %912 = vst [vmem:[%s310 + $0x84] sm:$0xf] %v911
        %913 = vst.msk [vmem:[%s310 + $0x88] sm:$0xf] %vm301, %v713
        %v914 = vld [vmem:[%s310 + $0x8c] sm:$0x1]
        %v915 = vsel %vm313, %v714, %v914
        %916 = vst [vmem:[%s310 + $0x8c] sm:$0x1] %v915
        %v917 = vld [vmem:[%s310 + $0x90] sm:$0xf]
        %v918 = vsel %vm832, %v721, %v917
        %919 = vst [vmem:[%s310 + $0x90] sm:$0xf] %v918
        %920 = vst.msk [vmem:[%s310 + $0x94] sm:$0xf] %vm301, %v730
        %v921 = vld [vmem:[%s310 + $0x98] sm:$0x1]
        %v922 = vsel %vm313, %v731, %v921
        %923 = vst [vmem:[%s310 + $0x98] sm:$0x1] %v922
        %v924 = vld [vmem:[%s310 + $0x9c] sm:$0xf]
        %v925 = vsel %vm832, %v738, %v924
        %926 = vst [vmem:[%s310 + $0x9c] sm:$0xf] %v925
        %927 = vst.msk [vmem:[%s310 + $0xa0] sm:$0xf] %vm301, %v747
        %v928 = vld [vmem:[%s310 + $0xa4] sm:$0x1]
        %v929 = vsel %vm313, %v748, %v928
        %930 = vst [vmem:[%s310 + $0xa4] sm:$0x1] %v929
        %v931 = vld [vmem:[%s310 + $0xa8] sm:$0xf]
        %v932 = vsel %vm832, %v755, %v931
        %933 = vst [vmem:[%s310 + $0xa8] sm:$0xf] %v932
        %934 = vst.msk [vmem:[%s310 + $0xac] sm:$0xf] %vm301, %v764
        %v935 = vld [vmem:[%s310 + $0xb0] sm:$0x1]
        %v936 = vsel %vm313, %v765, %v935
        %937 = vst [vmem:[%s310 + $0xb0] sm:$0x1] %v936
        %v938 = vld [vmem:[%s310 + $0xb4] sm:$0xf]
        %v939 = vsel %vm832, %v772, %v938
        %940 = vst [vmem:[%s310 + $0xb4] sm:$0xf] %v939
        %941 = vst.msk [vmem:[%s310 + $0xb8] sm:$0xf] %vm301, %v781
        %v942 = vld [vmem:[%s310 + $0xbc] sm:$0x1]
        %v943 = vsel %vm313, %v782, %v942
        %944 = vst [vmem:[%s310 + $0xbc] sm:$0x1] %v943
        %v945 = vld [vmem:[#allocation2] sm:$0xf]
        %v946 = vld [vmem:[#allocation2 + $0x4] sm:$0xf]
        %v947 = vld [vmem:[#allocation2 + $0xc] sm:$0xf]
        %v948 = vld [vmem:[#allocation2 + $0x10] sm:$0xf]
        %v949 = vld [vmem:[#allocation2 + $0x18] sm:$0xf]
        %v950 = vld [vmem:[#allocation2 + $0x1c] sm:$0xf]
        %v951 = vld [vmem:[#allocation2 + $0x24] sm:$0xf]
        %v952 = vld [vmem:[#allocation2 + $0x28] sm:$0xf]
        %v953 = vld [vmem:[#allocation2 + $0x30] sm:$0xf]
        %v954 = vld [vmem:[#allocation2 + $0x34] sm:$0xf]
        %v955 = vld [vmem:[#allocation2 + $0x3c] sm:$0xf]
        %v956 = vld [vmem:[#allocation2 + $0x40] sm:$0xf]
        %v957 = vld [vmem:[#allocation2 + $0x48] sm:$0xf]
        %v958 = vld [vmem:[#allocation2 + $0x4c] sm:$0xf]
        %v959 = vld [vmem:[#allocation2 + $0x54] sm:$0xf]
        %v960 = vld [vmem:[#allocation2 + $0x58] sm:$0xf]
        %v961 = vld [vmem:[#allocation2 + $0x60] sm:$0xf]
        %v962 = vld [vmem:[#allocation2 + $0x64] sm:$0xf]
        %v963 = vld [vmem:[#allocation2 + $0x6c] sm:$0xf]
        %v964 = vld [vmem:[#allocation2 + $0x70] sm:$0xf]
        %v965 = vld [vmem:[#allocation2 + $0x78] sm:$0xf]
        %v966 = vld [vmem:[#allocation2 + $0x7c] sm:$0xf]
        %v967 = vld [vmem:[#allocation2 + $0x84] sm:$0xf]
        %v968 = vld [vmem:[#allocation2 + $0x88] sm:$0xf]
        %v969 = vld [vmem:[#allocation2 + $0x90] sm:$0xf]
        %v970 = vld [vmem:[#allocation2 + $0x94] sm:$0xf]
        %v971 = vld [vmem:[#allocation2 + $0x9c] sm:$0xf]
        %v972 = vld [vmem:[#allocation2 + $0xa0] sm:$0xf]
        %v973 = vld [vmem:[#allocation2 + $0xa8] sm:$0xf]
        %v974 = vld [vmem:[#allocation2 + $0xac] sm:$0xf]
        %v975 = vld [vmem:[#allocation2 + $0xb4] sm:$0xf]
        %v976 = vld [vmem:[#allocation2 + $0xb8] sm:$0xf]
        %977 = vst.msk [vmem:[#allocation3] sm:$0xf] %vm301, %v945
        %978 = vst.msk [vmem:[#allocation3 + $0x4] sm:$0xf] %vm301, %v946
        %979 = vst.msk [vmem:[#allocation3 + $0x8] sm:$0xf] %vm301, %v947
        %980 = vst.msk [vmem:[#allocation3 + $0xc] sm:$0xf] %vm301, %v948
        %981 = vst.msk [vmem:[#allocation3 + $0x10] sm:$0xf] %vm301, %v949
        %982 = vst.msk [vmem:[#allocation3 + $0x14] sm:$0xf] %vm301, %v950
        %983 = vst.msk [vmem:[#allocation3 + $0x18] sm:$0xf] %vm301, %v951
        %984 = vst.msk [vmem:[#allocation3 + $0x1c] sm:$0xf] %vm301, %v952
        %985 = vst.msk [vmem:[#allocation3 + $0x20] sm:$0xf] %vm301, %v953
        %986 = vst.msk [vmem:[#allocation3 + $0x24] sm:$0xf] %vm301, %v954
        %987 = vst.msk [vmem:[#allocation3 + $0x28] sm:$0xf] %vm301, %v955
        %988 = vst.msk [vmem:[#allocation3 + $0x2c] sm:$0xf] %vm301, %v956
        %989 = vst.msk [vmem:[#allocation3 + $0x30] sm:$0xf] %vm301, %v957
        %990 = vst.msk [vmem:[#allocation3 + $0x34] sm:$0xf] %vm301, %v958
        %991 = vst.msk [vmem:[#allocation3 + $0x38] sm:$0xf] %vm301, %v959
        %992 = vst.msk [vmem:[#allocation3 + $0x3c] sm:$0xf] %vm301, %v960
        %993 = vst.msk [vmem:[#allocation3 + $0x40] sm:$0xf] %vm301, %v961
        %994 = vst.msk [vmem:[#allocation3 + $0x44] sm:$0xf] %vm301, %v962
        %995 = vst.msk [vmem:[#allocation3 + $0x48] sm:$0xf] %vm301, %v963
        %996 = vst.msk [vmem:[#allocation3 + $0x4c] sm:$0xf] %vm301, %v964
        %997 = vst.msk [vmem:[#allocation3 + $0x50] sm:$0xf] %vm301, %v965
        %998 = vst.msk [vmem:[#allocation3 + $0x54] sm:$0xf] %vm301, %v966
        %999 = vst.msk [vmem:[#allocation3 + $0x58] sm:$0xf] %vm301, %v967
        %1000 = vst.msk [vmem:[#allocation3 + $0x5c] sm:$0xf] %vm301, %v968
        %1001 = vst.msk [vmem:[#allocation3 + $0x60] sm:$0xf] %vm301, %v969
        %1002 = vst.msk [vmem:[#allocation3 + $0x64] sm:$0xf] %vm301, %v970
        %1003 = vst.msk [vmem:[#allocation3 + $0x68] sm:$0xf] %vm301, %v971
        %1004 = vst.msk [vmem:[#allocation3 + $0x6c] sm:$0xf] %vm301, %v972
        %1005 = vst.msk [vmem:[#allocation3 + $0x70] sm:$0xf] %vm301, %v973
        %1006 = vst.msk [vmem:[#allocation3 + $0x74] sm:$0xf] %vm301, %v974
        %1007 = vst.msk [vmem:[#allocation3 + $0x78] sm:$0xf] %vm301, %v975
        %1008 = vst.msk [vmem:[#allocation3 + $0x7c] sm:$0xf] %vm301, %v976
        %v1009 = vld [vmem:[#allocation2] sm:$0xf]
        %v1010 = vld [vmem:[#allocation2 + $0x4] sm:$0xf]
        %v1011 = vld [vmem:[#allocation2 + $0x8] sm:$0x1]
        %v1012 = vld [vmem:[#allocation2 + $0xc] sm:$0xf]
        %v1013 = vld [vmem:[#allocation2 + $0x10] sm:$0xf]
        %v1014 = vld [vmem:[#allocation2 + $0x14] sm:$0x1]
        %v1015 = vld [vmem:[#allocation2 + $0x18] sm:$0xf]
        %v1016 = vld [vmem:[#allocation2 + $0x1c] sm:$0xf]
        %v1017 = vld [vmem:[#allocation2 + $0x20] sm:$0x1]
        %v1018 = vld [vmem:[#allocation2 + $0x24] sm:$0xf]
        %v1019 = vld [vmem:[#allocation2 + $0x28] sm:$0xf]
        %v1020 = vld [vmem:[#allocation2 + $0x2c] sm:$0x1]
        %v1021 = vld [vmem:[#allocation2 + $0x30] sm:$0xf]
        %v1022 = vld [vmem:[#allocation2 + $0x34] sm:$0xf]
        %v1023 = vld [vmem:[#allocation2 + $0x38] sm:$0x1]
        %v1024 = vld [vmem:[#allocation2 + $0x3c] sm:$0xf]
        %v1025 = vld [vmem:[#allocation2 + $0x40] sm:$0xf]
        %v1026 = vld [vmem:[#allocation2 + $0x44] sm:$0x1]
        %v1027 = vld [vmem:[#allocation2 + $0x48] sm:$0xf]
        %v1028 = vld [vmem:[#allocation2 + $0x4c] sm:$0xf]
        %v1029 = vld [vmem:[#allocation2 + $0x50] sm:$0x1]
        %v1030 = vld [vmem:[#allocation2 + $0x54] sm:$0xf]
        %v1031 = vld [vmem:[#allocation2 + $0x58] sm:$0xf]
        %v1032 = vld [vmem:[#allocation2 + $0x5c] sm:$0x1]
        %v1033 = vld [vmem:[#allocation2 + $0x60] sm:$0xf]
        %v1034 = vld [vmem:[#allocation2 + $0x64] sm:$0xf]
        %v1035 = vld [vmem:[#allocation2 + $0x68] sm:$0x1]
        %v1036 = vld [vmem:[#allocation2 + $0x6c] sm:$0xf]
        %v1037 = vld [vmem:[#allocation2 + $0x70] sm:$0xf]
        %v1038 = vld [vmem:[#allocation2 + $0x74] sm:$0x1]
        %v1039 = vld [vmem:[#allocation2 + $0x78] sm:$0xf]
        %v1040 = vld [vmem:[#allocation2 + $0x7c] sm:$0xf]
        %v1041 = vld [vmem:[#allocation2 + $0x80] sm:$0x1]
        %v1042 = vld [vmem:[#allocation2 + $0x84] sm:$0xf]
        %v1043 = vld [vmem:[#allocation2 + $0x88] sm:$0xf]
        %v1044 = vld [vmem:[#allocation2 + $0x8c] sm:$0x1]
        %v1045 = vld [vmem:[#allocation2 + $0x90] sm:$0xf]
        %v1046 = vld [vmem:[#allocation2 + $0x94] sm:$0xf]
        %v1047 = vld [vmem:[#allocation2 + $0x98] sm:$0x1]
        %v1048 = vld [vmem:[#allocation2 + $0x9c] sm:$0xf]
        %v1049 = vld [vmem:[#allocation2 + $0xa0] sm:$0xf]
        %v1050 = vld [vmem:[#allocation2 + $0xa4] sm:$0x1]
        %v1051 = vld [vmem:[#allocation2 + $0xa8] sm:$0xf]
        %v1052 = vld [vmem:[#allocation2 + $0xac] sm:$0xf]
        %v1053 = vld [vmem:[#allocation2 + $0xb0] sm:$0x1]
        %v1054 = vld [vmem:[#allocation2 + $0xb4] sm:$0xf]
        %v1055 = vld [vmem:[#allocation2 + $0xb8] sm:$0xf]
        %v1056 = vld [vmem:[#allocation2 + $0xbc] sm:$0x1]
        %vm1057 = vsmask.f32 3328
        %vm1058 = vsmask.f32 7440
        %vm1059 = vmor %vm1057, %vm1058
        %v1061 = vshrl.u32 %v1009, 16
        %v1063 = vrot.slane %v1061, 4
        %v1064 = vshll.u32 %v1009, 16
        %v1066 = vrot.slane %v1064, 5
        %v1067 = vor.u32 %v1063, %v1066
        %v1068 = vrot.slane %v1067, 4
        %v1070 = vshll.u32 %v1010, 16
        %v1072 = vrot.slane %v1070, 5
        %v1073 = vsel %vm1059, %v1068, %v1072
        %v1074 = vshrl.u32 %v1010, 16
        %v1076 = vrot.slane %v1074, 4
        %v1077 = vor.u32 %v1076, %v1072
        %v1078 = vrot.slane %v1077, 4
        %v1080 = vshll.u32 %v1011, 16
        %v1082 = vrot.slane %v1080, 5
        %v1083 = vsel %vm1059, %v1078, %v1082
        %v1085 = vshrl.u32 %v1012, 16
        %v1087 = vrot.slane %v1085, 4
        %v1088 = vshll.u32 %v1012, 16
        %v1090 = vrot.slane %v1088, 5
        %v1091 = vor.u32 %v1087, %v1090
        %v1092 = vrot.slane %v1091, 4
        %v1094 = vshll.u32 %v1013, 16
        %v1096 = vrot.slane %v1094, 5
        %v1097 = vsel %vm1059, %v1092, %v1096
        %v1098 = vshrl.u32 %v1013, 16
        %v1100 = vrot.slane %v1098, 4
        %v1101 = vor.u32 %v1100, %v1096
        %v1102 = vrot.slane %v1101, 4
        %v1104 = vshll.u32 %v1014, 16
        %v1106 = vrot.slane %v1104, 5
        %v1107 = vsel %vm1059, %v1102, %v1106
        %v1109 = vshrl.u32 %v1015, 16
        %v1111 = vrot.slane %v1109, 4
        %v1112 = vshll.u32 %v1015, 16
        %v1114 = vrot.slane %v1112, 5
        %v1115 = vor.u32 %v1111, %v1114
        %v1116 = vrot.slane %v1115, 4
        %v1118 = vshll.u32 %v1016, 16
        %v1120 = vrot.slane %v1118, 5
        %v1121 = vsel %vm1059, %v1116, %v1120
        %v1122 = vshrl.u32 %v1016, 16
        %v1124 = vrot.slane %v1122, 4
        %v1125 = vor.u32 %v1124, %v1120
        %v1126 = vrot.slane %v1125, 4
        %v1128 = vshll.u32 %v1017, 16
        %v1130 = vrot.slane %v1128, 5
        %v1131 = vsel %vm1059, %v1126, %v1130
        %v1133 = vshrl.u32 %v1018, 16
        %v1135 = vrot.slane %v1133, 4
        %v1136 = vshll.u32 %v1018, 16
        %v1138 = vrot.slane %v1136, 5
        %v1139 = vor.u32 %v1135, %v1138
        %v1140 = vrot.slane %v1139, 4
        %v1142 = vshll.u32 %v1019, 16
        %v1144 = vrot.slane %v1142, 5
        %v1145 = vsel %vm1059, %v1140, %v1144
        %v1146 = vshrl.u32 %v1019, 16
        %v1148 = vrot.slane %v1146, 4
        %v1149 = vor.u32 %v1148, %v1144
        %v1150 = vrot.slane %v1149, 4
        %v1152 = vshll.u32 %v1020, 16
        %v1154 = vrot.slane %v1152, 5
        %v1155 = vsel %vm1059, %v1150, %v1154
        %v1157 = vshrl.u32 %v1021, 16
        %v1159 = vrot.slane %v1157, 4
        %v1160 = vshll.u32 %v1021, 16
        %v1162 = vrot.slane %v1160, 5
        %v1163 = vor.u32 %v1159, %v1162
        %v1164 = vrot.slane %v1163, 4
        %v1166 = vshll.u32 %v1022, 16
        %v1168 = vrot.slane %v1166, 5
        %v1169 = vsel %vm1059, %v1164, %v1168
        %v1170 = vshrl.u32 %v1022, 16
        %v1172 = vrot.slane %v1170, 4
        %v1173 = vor.u32 %v1172, %v1168
        %v1174 = vrot.slane %v1173, 4
        %v1176 = vshll.u32 %v1023, 16
        %v1178 = vrot.slane %v1176, 5
        %v1179 = vsel %vm1059, %v1174, %v1178
        %v1181 = vshrl.u32 %v1024, 16
        %v1183 = vrot.slane %v1181, 4
        %v1184 = vshll.u32 %v1024, 16
        %v1186 = vrot.slane %v1184, 5
        %v1187 = vor.u32 %v1183, %v1186
        %v1188 = vrot.slane %v1187, 4
        %v1190 = vshll.u32 %v1025, 16
        %v1192 = vrot.slane %v1190, 5
        %v1193 = vsel %vm1059, %v1188, %v1192
        %v1194 = vshrl.u32 %v1025, 16
        %v1196 = vrot.slane %v1194, 4
        %v1197 = vor.u32 %v1196, %v1192
        %v1198 = vrot.slane %v1197, 4
        %v1200 = vshll.u32 %v1026, 16
        %v1202 = vrot.slane %v1200, 5
        %v1203 = vsel %vm1059, %v1198, %v1202
        %v1205 = vshrl.u32 %v1027, 16
        %v1207 = vrot.slane %v1205, 4
        %v1208 = vshll.u32 %v1027, 16
        %v1210 = vrot.slane %v1208, 5
        %v1211 = vor.u32 %v1207, %v1210
        %v1212 = vrot.slane %v1211, 4
        %v1214 = vshll.u32 %v1028, 16
        %v1216 = vrot.slane %v1214, 5
        %v1217 = vsel %vm1059, %v1212, %v1216
        %v1218 = vshrl.u32 %v1028, 16
        %v1220 = vrot.slane %v1218, 4
        %v1221 = vor.u32 %v1220, %v1216
        %v1222 = vrot.slane %v1221, 4
        %v1224 = vshll.u32 %v1029, 16
        %v1226 = vrot.slane %v1224, 5
        %v1227 = vsel %vm1059, %v1222, %v1226
        %v1229 = vshrl.u32 %v1030, 16
        %v1231 = vrot.slane %v1229, 4
        %v1232 = vshll.u32 %v1030, 16
        %v1234 = vrot.slane %v1232, 5
        %v1235 = vor.u32 %v1231, %v1234
        %v1236 = vrot.slane %v1235, 4
        %v1238 = vshll.u32 %v1031, 16
        %v1240 = vrot.slane %v1238, 5
        %v1241 = vsel %vm1059, %v1236, %v1240
        %v1242 = vshrl.u32 %v1031, 16
        %v1244 = vrot.slane %v1242, 4
        %v1245 = vor.u32 %v1244, %v1240
        %v1246 = vrot.slane %v1245, 4
        %v1248 = vshll.u32 %v1032, 16
        %v1250 = vrot.slane %v1248, 5
        %v1251 = vsel %vm1059, %v1246, %v1250
        %v1253 = vshrl.u32 %v1033, 16
        %v1255 = vrot.slane %v1253, 4
        %v1256 = vshll.u32 %v1033, 16
        %v1258 = vrot.slane %v1256, 5
        %v1259 = vor.u32 %v1255, %v1258
        %v1260 = vrot.slane %v1259, 4
        %v1262 = vshll.u32 %v1034, 16
        %v1264 = vrot.slane %v1262, 5
        %v1265 = vsel %vm1059, %v1260, %v1264
        %v1266 = vshrl.u32 %v1034, 16
        %v1268 = vrot.slane %v1266, 4
        %v1269 = vor.u32 %v1268, %v1264
        %v1270 = vrot.slane %v1269, 4
        %v1272 = vshll.u32 %v1035, 16
        %v1274 = vrot.slane %v1272, 5
        %v1275 = vsel %vm1059, %v1270, %v1274
        %v1277 = vshrl.u32 %v1036, 16
        %v1279 = vrot.slane %v1277, 4
        %v1280 = vshll.u32 %v1036, 16
        %v1282 = vrot.slane %v1280, 5
        %v1283 = vor.u32 %v1279, %v1282
        %v1284 = vrot.slane %v1283, 4
        %v1286 = vshll.u32 %v1037, 16
        %v1288 = vrot.slane %v1286, 5
        %v1289 = vsel %vm1059, %v1284, %v1288
        %v1290 = vshrl.u32 %v1037, 16
        %v1292 = vrot.slane %v1290, 4
        %v1293 = vor.u32 %v1292, %v1288
        %v1294 = vrot.slane %v1293, 4
        %v1296 = vshll.u32 %v1038, 16
        %v1298 = vrot.slane %v1296, 5
        %v1299 = vsel %vm1059, %v1294, %v1298
        %v1301 = vshrl.u32 %v1039, 16
        %v1303 = vrot.slane %v1301, 4
        %v1304 = vshll.u32 %v1039, 16
        %v1306 = vrot.slane %v1304, 5
        %v1307 = vor.u32 %v1303, %v1306
        %v1308 = vrot.slane %v1307, 4
        %v1310 = vshll.u32 %v1040, 16
        %v1312 = vrot.slane %v1310, 5
        %v1313 = vsel %vm1059, %v1308, %v1312
        %v1314 = vshrl.u32 %v1040, 16
        %v1316 = vrot.slane %v1314, 4
        %v1317 = vor.u32 %v1316, %v1312
        %v1318 = vrot.slane %v1317, 4
        %v1320 = vshll.u32 %v1041, 16
        %v1322 = vrot.slane %v1320, 5
        %v1323 = vsel %vm1059, %v1318, %v1322
        %v1325 = vshrl.u32 %v1042, 16
        %v1327 = vrot.slane %v1325, 4
        %v1328 = vshll.u32 %v1042, 16
        %v1330 = vrot.slane %v1328, 5
        %v1331 = vor.u32 %v1327, %v1330
        %v1332 = vrot.slane %v1331, 4
        %v1334 = vshll.u32 %v1043, 16
        %v1336 = vrot.slane %v1334, 5
        %v1337 = vsel %vm1059, %v1332, %v1336
        %v1338 = vshrl.u32 %v1043, 16
        %v1340 = vrot.slane %v1338, 4
        %v1341 = vor.u32 %v1340, %v1336
        %v1342 = vrot.slane %v1341, 4
        %v1344 = vshll.u32 %v1044, 16
        %v1346 = vrot.slane %v1344, 5
        %v1347 = vsel %vm1059, %v1342, %v1346
        %v1349 = vshrl.u32 %v1045, 16
        %v1351 = vrot.slane %v1349, 4
        %v1352 = vshll.u32 %v1045, 16
        %v1354 = vrot.slane %v1352, 5
        %v1355 = vor.u32 %v1351, %v1354
        %v1356 = vrot.slane %v1355, 4
        %v1358 = vshll.u32 %v1046, 16
        %v1360 = vrot.slane %v1358, 5
        %v1361 = vsel %vm1059, %v1356, %v1360
        %v1362 = vshrl.u32 %v1046, 16
        %v1364 = vrot.slane %v1362, 4
        %v1365 = vor.u32 %v1364, %v1360
        %v1366 = vrot.slane %v1365, 4
        %v1368 = vshll.u32 %v1047, 16
        %v1370 = vrot.slane %v1368, 5
        %v1371 = vsel %vm1059, %v1366, %v1370
        %v1373 = vshrl.u32 %v1048, 16
        %v1375 = vrot.slane %v1373, 4
        %v1376 = vshll.u32 %v1048, 16
        %v1378 = vrot.slane %v1376, 5
        %v1379 = vor.u32 %v1375, %v1378
        %v1380 = vrot.slane %v1379, 4
        %v1382 = vshll.u32 %v1049, 16
        %v1384 = vrot.slane %v1382, 5
        %v1385 = vsel %vm1059, %v1380, %v1384
        %v1386 = vshrl.u32 %v1049, 16
        %v1388 = vrot.slane %v1386, 4
        %v1389 = vor.u32 %v1388, %v1384
        %v1390 = vrot.slane %v1389, 4
        %v1392 = vshll.u32 %v1050, 16
        %v1394 = vrot.slane %v1392, 5
        %v1395 = vsel %vm1059, %v1390, %v1394
        %v1397 = vshrl.u32 %v1051, 16
        %v1399 = vrot.slane %v1397, 4
        %v1400 = vshll.u32 %v1051, 16
        %v1402 = vrot.slane %v1400, 5
        %v1403 = vor.u32 %v1399, %v1402
        %v1404 = vrot.slane %v1403, 4
        %v1406 = vshll.u32 %v1052, 16
        %v1408 = vrot.slane %v1406, 5
        %v1409 = vsel %vm1059, %v1404, %v1408
        %v1410 = vshrl.u32 %v1052, 16
        %v1412 = vrot.slane %v1410, 4
        %v1413 = vor.u32 %v1412, %v1408
        %v1414 = vrot.slane %v1413, 4
        %v1416 = vshll.u32 %v1053, 16
        %v1418 = vrot.slane %v1416, 5
        %v1419 = vsel %vm1059, %v1414, %v1418
        %v1421 = vshrl.u32 %v1054, 16
        %v1423 = vrot.slane %v1421, 4
        %v1424 = vshll.u32 %v1054, 16
        %v1426 = vrot.slane %v1424, 5
        %v1427 = vor.u32 %v1423, %v1426
        %v1428 = vrot.slane %v1427, 4
        %v1430 = vshll.u32 %v1055, 16
        %v1432 = vrot.slane %v1430, 5
        %v1433 = vsel %vm1059, %v1428, %v1432
        %v1434 = vshrl.u32 %v1055, 16
        %v1436 = vrot.slane %v1434, 4
        %v1437 = vor.u32 %v1436, %v1432
        %v1438 = vrot.slane %v1437, 4
        %v1440 = vshll.u32 %v1056, 16
        %v1442 = vrot.slane %v1440, 5
        %v1443 = vsel %vm1059, %v1438, %v1442
        %1444 = vrot.lane.b32.xlu0 %v1073, 4
        %v1445 = vpop.permute.xlu0 %1444
        %1446 = vrot.lane.b32.xlu0 %v1083, 4
        %v1447 = vpop.permute.xlu0 %1446
        %1448 = vrot.lane.b32.xlu0 %v1097, 4
        %v1449 = vpop.permute.xlu0 %1448
        %1450 = vrot.lane.b32.xlu0 %v1107, 4
        %v1451 = vpop.permute.xlu0 %1450
        %1452 = vrot.lane.b32.xlu0 %v1121, 4
        %v1453 = vpop.permute.xlu0 %1452
        %1454 = vrot.lane.b32.xlu0 %v1131, 4
        %v1455 = vpop.permute.xlu0 %1454
        %1456 = vrot.lane.b32.xlu0 %v1145, 4
        %v1457 = vpop.permute.xlu0 %1456
        %1458 = vrot.lane.b32.xlu0 %v1155, 4
        %v1459 = vpop.permute.xlu0 %1458
        %1460 = vrot.lane.b32.xlu0 %v1169, 4
        %v1461 = vpop.permute.xlu0 %1460
        %1462 = vrot.lane.b32.xlu0 %v1179, 4
        %v1463 = vpop.permute.xlu0 %1462
        %1464 = vrot.lane.b32.xlu0 %v1193, 4
        %v1465 = vpop.permute.xlu0 %1464
        %1466 = vrot.lane.b32.xlu0 %v1203, 4
        %v1467 = vpop.permute.xlu0 %1466
        %1468 = vrot.lane.b32.xlu0 %v1217, 4
        %v1469 = vpop.permute.xlu0 %1468
        %1470 = vrot.lane.b32.xlu0 %v1227, 4
        %v1471 = vpop.permute.xlu0 %1470
        %1472 = vrot.lane.b32.xlu0 %v1241, 4
        %v1473 = vpop.permute.xlu0 %1472
        %1474 = vrot.lane.b32.xlu0 %v1251, 4
        %v1475 = vpop.permute.xlu0 %1474
        %1476 = vrot.lane.b32.xlu0 %v1265, 4
        %v1477 = vpop.permute.xlu0 %1476
        %1478 = vrot.lane.b32.xlu0 %v1275, 4
        %v1479 = vpop.permute.xlu0 %1478
        %1480 = vrot.lane.b32.xlu0 %v1289, 4
        %v1481 = vpop.permute.xlu0 %1480
        %1482 = vrot.lane.b32.xlu0 %v1299, 4
        %v1483 = vpop.permute.xlu0 %1482
        %1484 = vrot.lane.b32.xlu0 %v1313, 4
        %v1485 = vpop.permute.xlu0 %1484
        %1486 = vrot.lane.b32.xlu0 %v1323, 4
        %v1487 = vpop.permute.xlu0 %1486
        %1488 = vrot.lane.b32.xlu0 %v1337, 4
        %v1489 = vpop.permute.xlu0 %1488
        %1490 = vrot.lane.b32.xlu0 %v1347, 4
        %v1491 = vpop.permute.xlu0 %1490
        %1492 = vrot.lane.b32.xlu0 %v1361, 4
        %v1493 = vpop.permute.xlu0 %1492
        %1494 = vrot.lane.b32.xlu0 %v1371, 4
        %v1495 = vpop.permute.xlu0 %1494
        %1496 = vrot.lane.b32.xlu0 %v1385, 4
        %v1497 = vpop.permute.xlu0 %1496
        %1498 = vrot.lane.b32.xlu0 %v1395, 4
        %v1499 = vpop.permute.xlu0 %1498
        %1500 = vrot.lane.b32.xlu0 %v1409, 4
        %v1501 = vpop.permute.xlu0 %1500
        %1502 = vrot.lane.b32.xlu0 %v1419, 4
        %v1503 = vpop.permute.xlu0 %1502
        %1504 = vrot.lane.b32.xlu0 %v1433, 4
        %v1505 = vpop.permute.xlu0 %1504
        %1506 = vrot.lane.b32.xlu0 %v1443, 4
        %v1507 = vpop.permute.xlu0 %1506
        %vm1540 = vcmask 60448
        %1541 = vst.msk [vmem:[#allocation3] sm:$0xf] %vm1540, %v1445
        %1542 = vst.msk [vmem:[#allocation3 + $0x4] sm:$0xf] %vm1540, %v1447
        %1543 = vst.msk [vmem:[#allocation3 + $0x8] sm:$0xf] %vm1540, %v1449
        %1544 = vst.msk [vmem:[#allocation3 + $0xc] sm:$0xf] %vm1540, %v1451
        %1545 = vst.msk [vmem:[#allocation3 + $0x10] sm:$0xf] %vm1540, %v1453
        %1546 = vst.msk [vmem:[#allocation3 + $0x14] sm:$0xf] %vm1540, %v1455
        %1547 = vst.msk [vmem:[#allocation3 + $0x18] sm:$0xf] %vm1540, %v1457
        %1548 = vst.msk [vmem:[#allocation3 + $0x1c] sm:$0xf] %vm1540, %v1459
        %1549 = vst.msk [vmem:[#allocation3 + $0x20] sm:$0xf] %vm1540, %v1461
        %1550 = vst.msk [vmem:[#allocation3 + $0x24] sm:$0xf] %vm1540, %v1463
        %1551 = vst.msk [vmem:[#allocation3 + $0x28] sm:$0xf] %vm1540, %v1465
        %1552 = vst.msk [vmem:[#allocation3 + $0x2c] sm:$0xf] %vm1540, %v1467
        %1553 = vst.msk [vmem:[#allocation3 + $0x30] sm:$0xf] %vm1540, %v1469
        %1554 = vst.msk [vmem:[#allocation3 + $0x34] sm:$0xf] %vm1540, %v1471
        %1555 = vst.msk [vmem:[#allocation3 + $0x38] sm:$0xf] %vm1540, %v1473
        %1556 = vst.msk [vmem:[#allocation3 + $0x3c] sm:$0xf] %vm1540, %v1475
        %1557 = vst.msk [vmem:[#allocation3 + $0x40] sm:$0xf] %vm1540, %v1477
        %1558 = vst.msk [vmem:[#allocation3 + $0x44] sm:$0xf] %vm1540, %v1479
        %1559 = vst.msk [vmem:[#allocation3 + $0x48] sm:$0xf] %vm1540, %v1481
        %1560 = vst.msk [vmem:[#allocation3 + $0x4c] sm:$0xf] %vm1540, %v1483
        %1561 = vst.msk [vmem:[#allocation3 + $0x50] sm:$0xf] %vm1540, %v1485
        %1562 = vst.msk [vmem:[#allocation3 + $0x54] sm:$0xf] %vm1540, %v1487
        %1563 = vst.msk [vmem:[#allocation3 + $0x58] sm:$0xf] %vm1540, %v1489
        %1564 = vst.msk [vmem:[#allocation3 + $0x5c] sm:$0xf] %vm1540, %v1491
        %1565 = vst.msk [vmem:[#allocation3 + $0x60] sm:$0xf] %vm1540, %v1493
        %1566 = vst.msk [vmem:[#allocation3 + $0x64] sm:$0xf] %vm1540, %v1495
        %1567 = vst.msk [vmem:[#allocation3 + $0x68] sm:$0xf] %vm1540, %v1497
        %1568 = vst.msk [vmem:[#allocation3 + $0x6c] sm:$0xf] %vm1540, %v1499
        %1569 = vst.msk [vmem:[#allocation3 + $0x70] sm:$0xf] %vm1540, %v1501
        %1570 = vst.msk [vmem:[#allocation3 + $0x74] sm:$0xf] %vm1540, %v1503
        %1571 = vst.msk [vmem:[#allocation3 + $0x78] sm:$0xf] %vm1540, %v1505
        %1572 = vst.msk [vmem:[#allocation3 + $0x7c] sm:$0xf] %vm1540, %v1507
        %v1573 = vld [vmem:[#allocation2] sm:$0xe]
        %v1574 = vld [vmem:[#allocation2 + $0x4] sm:$0xf]
        %v1575 = vld [vmem:[#allocation2 + $0x8] sm:$0x1]
        %v1576 = vld [vmem:[#allocation2 + $0xc] sm:$0xe]
        %v1577 = vld [vmem:[#allocation2 + $0x10] sm:$0xf]
        %v1578 = vld [vmem:[#allocation2 + $0x14] sm:$0x1]
        %v1579 = vld [vmem:[#allocation2 + $0x18] sm:$0xe]
        %v1580 = vld [vmem:[#allocation2 + $0x1c] sm:$0xf]
        %v1581 = vld [vmem:[#allocation2 + $0x20] sm:$0x1]
        %v1582 = vld [vmem:[#allocation2 + $0x24] sm:$0xe]
        %v1583 = vld [vmem:[#allocation2 + $0x28] sm:$0xf]
        %v1584 = vld [vmem:[#allocation2 + $0x2c] sm:$0x1]
        %v1585 = vld [vmem:[#allocation2 + $0x30] sm:$0xe]
        %v1586 = vld [vmem:[#allocation2 + $0x34] sm:$0xf]
        %v1587 = vld [vmem:[#allocation2 + $0x38] sm:$0x1]
        %v1588 = vld [vmem:[#allocation2 + $0x3c] sm:$0xe]
        %v1589 = vld [vmem:[#allocation2 + $0x40] sm:$0xf]
        %v1590 = vld [vmem:[#allocation2 + $0x44] sm:$0x1]
        %v1591 = vld [vmem:[#allocation2 + $0x48] sm:$0xe]
        %v1592 = vld [vmem:[#allocation2 + $0x4c] sm:$0xf]
        %v1593 = vld [vmem:[#allocation2 + $0x50] sm:$0x1]
        %v1594 = vld [vmem:[#allocation2 + $0x54] sm:$0xe]
        %v1595 = vld [vmem:[#allocation2 + $0x58] sm:$0xf]
        %v1596 = vld [vmem:[#allocation2 + $0x5c] sm:$0x1]
        %v1597 = vld [vmem:[#allocation2 + $0x60] sm:$0xe]
        %v1598 = vld [vmem:[#allocation2 + $0x64] sm:$0xf]
        %v1599 = vld [vmem:[#allocation2 + $0x68] sm:$0x1]
        %v1600 = vld [vmem:[#allocation2 + $0x6c] sm:$0xe]
        %v1601 = vld [vmem:[#allocation2 + $0x70] sm:$0xf]
        %v1602 = vld [vmem:[#allocation2 + $0x74] sm:$0x1]
        %v1603 = vld [vmem:[#allocation2 + $0x78] sm:$0xe]
        %v1604 = vld [vmem:[#allocation2 + $0x7c] sm:$0xf]
        %v1605 = vld [vmem:[#allocation2 + $0x80] sm:$0x1]
        %v1606 = vld [vmem:[#allocation2 + $0x84] sm:$0xe]
        %v1607 = vld [vmem:[#allocation2 + $0x88] sm:$0xf]
        %v1608 = vld [vmem:[#allocation2 + $0x8c] sm:$0x1]
        %v1609 = vld [vmem:[#allocation2 + $0x90] sm:$0xe]
        %v1610 = vld [vmem:[#allocation2 + $0x94] sm:$0xf]
        %v1611 = vld [vmem:[#allocation2 + $0x98] sm:$0x1]
        %v1612 = vld [vmem:[#allocation2 + $0x9c] sm:$0xe]
        %v1613 = vld [vmem:[#allocation2 + $0xa0] sm:$0xf]
        %v1614 = vld [vmem:[#allocation2 + $0xa4] sm:$0x1]
        %v1615 = vld [vmem:[#allocation2 + $0xa8] sm:$0xe]
        %v1616 = vld [vmem:[#allocation2 + $0xac] sm:$0xf]
        %v1617 = vld [vmem:[#allocation2 + $0xb0] sm:$0x1]
        %v1618 = vld [vmem:[#allocation2 + $0xb4] sm:$0xe]
        %v1619 = vld [vmem:[#allocation2 + $0xb8] sm:$0xf]
        %v1620 = vld [vmem:[#allocation2 + $0xbc] sm:$0x1]
        %vm1669 = vcmask 1042432
        %vm1670 = vcmask 1046532
        %vm1671 = vmor %vm1669, %vm1670
        %v1672 = vrot.slane %v1573, 5
        %v1673 = vrot.slane %v1672, 4
        %v1674 = vrot.slane %v1574, 5
        %v1675 = vsel %vm1671, %v1673, %v1674
        %v1676 = vrot.slane %v1674, 4
        %v1677 = vrot.slane %v1575, 5
        %v1678 = vsel %vm1671, %v1676, %v1677
        %v1679 = vrot.slane %v1576, 5
        %v1680 = vrot.slane %v1679, 4
        %v1681 = vrot.slane %v1577, 5
        %v1682 = vsel %vm1671, %v1680, %v1681
        %v1683 = vrot.slane %v1681, 4
        %v1684 = vrot.slane %v1578, 5
        %v1685 = vsel %vm1671, %v1683, %v1684
        %v1686 = vrot.slane %v1579, 5
        %v1687 = vrot.slane %v1686, 4
        %v1688 = vrot.slane %v1580, 5
        %v1689 = vsel %vm1671, %v1687, %v1688
        %v1690 = vrot.slane %v1688, 4
        %v1691 = vrot.slane %v1581, 5
        %v1692 = vsel %vm1671, %v1690, %v1691
        %v1693 = vrot.slane %v1582, 5
        %v1694 = vrot.slane %v1693, 4
        %v1695 = vrot.slane %v1583, 5
        %v1696 = vsel %vm1671, %v1694, %v1695
        %v1697 = vrot.slane %v1695, 4
        %v1698 = vrot.slane %v1584, 5
        %v1699 = vsel %vm1671, %v1697, %v1698
        %v1700 = vrot.slane %v1585, 5
        %v1701 = vrot.slane %v1700, 4
        %v1702 = vrot.slane %v1586, 5
        %v1703 = vsel %vm1671, %v1701, %v1702
        %v1704 = vrot.slane %v1702, 4
        %v1705 = vrot.slane %v1587, 5
        %v1706 = vsel %vm1671, %v1704, %v1705
        %v1707 = vrot.slane %v1588, 5
        %v1708 = vrot.slane %v1707, 4
        %v1709 = vrot.slane %v1589, 5
        %v1710 = vsel %vm1671, %v1708, %v1709
        %v1711 = vrot.slane %v1709, 4
        %v1712 = vrot.slane %v1590, 5
        %v1713 = vsel %vm1671, %v1711, %v1712
        %v1714 = vrot.slane %v1591, 5
        %v1715 = vrot.slane %v1714, 4
        %v1716 = vrot.slane %v1592, 5
        %v1717 = vsel %vm1671, %v1715, %v1716
        %v1718 = vrot.slane %v1716, 4
        %v1719 = vrot.slane %v1593, 5
        %v1720 = vsel %vm1671, %v1718, %v1719
        %v1721 = vrot.slane %v1594, 5
        %v1722 = vrot.slane %v1721, 4
        %v1723 = vrot.slane %v1595, 5
        %v1724 = vsel %vm1671, %v1722, %v1723
        %v1725 = vrot.slane %v1723, 4
        %v1726 = vrot.slane %v1596, 5
        %v1727 = vsel %vm1671, %v1725, %v1726
        %v1728 = vrot.slane %v1597, 5
        %v1729 = vrot.slane %v1728, 4
        %v1730 = vrot.slane %v1598, 5
        %v1731 = vsel %vm1671, %v1729, %v1730
        %v1732 = vrot.slane %v1730, 4
        %v1733 = vrot.slane %v1599, 5
        %v1734 = vsel %vm1671, %v1732, %v1733
        %v1735 = vrot.slane %v1600, 5
        %v1736 = vrot.slane %v1735, 4
        %v1737 = vrot.slane %v1601, 5
        %v1738 = vsel %vm1671, %v1736, %v1737
        %v1739 = vrot.slane %v1737, 4
        %v1740 = vrot.slane %v1602, 5
        %v1741 = vsel %vm1671, %v1739, %v1740
        %v1742 = vrot.slane %v1603, 5
        %v1743 = vrot.slane %v1742, 4
        %v1744 = vrot.slane %v1604, 5
        %v1745 = vsel %vm1671, %v1743, %v1744
        %v1746 = vrot.slane %v1744, 4
        %v1747 = vrot.slane %v1605, 5
        %v1748 = vsel %vm1671, %v1746, %v1747
        %v1749 = vrot.slane %v1606, 5
        %v1750 = vrot.slane %v1749, 4
        %v1751 = vrot.slane %v1607, 5
        %v1752 = vsel %vm1671, %v1750, %v1751
        %v1753 = vrot.slane %v1751, 4
        %v1754 = vrot.slane %v1608, 5
        %v1755 = vsel %vm1671, %v1753, %v1754
        %v1756 = vrot.slane %v1609, 5
        %v1757 = vrot.slane %v1756, 4
        %v1758 = vrot.slane %v1610, 5
        %v1759 = vsel %vm1671, %v1757, %v1758
        %v1760 = vrot.slane %v1758, 4
        %v1761 = vrot.slane %v1611, 5
        %v1762 = vsel %vm1671, %v1760, %v1761
        %v1763 = vrot.slane %v1612, 5
        %v1764 = vrot.slane %v1763, 4
        %v1765 = vrot.slane %v1613, 5
        %v1766 = vsel %vm1671, %v1764, %v1765
        %v1767 = vrot.slane %v1765, 4
        %v1768 = vrot.slane %v1614, 5
        %v1769 = vsel %vm1671, %v1767, %v1768
        %v1770 = vrot.slane %v1615, 5
        %v1771 = vrot.slane %v1770, 4
        %v1772 = vrot.slane %v1616, 5
        %v1773 = vsel %vm1671, %v1771, %v1772
        %v1774 = vrot.slane %v1772, 4
        %v1775 = vrot.slane %v1617, 5
        %v1776 = vsel %vm1671, %v1774, %v1775
        %v1777 = vrot.slane %v1618, 5
        %v1778 = vrot.slane %v1777, 4
        %v1779 = vrot.slane %v1619, 5
        %v1780 = vsel %vm1671, %v1778, %v1779
        %v1781 = vrot.slane %v1779, 4
        %v1782 = vrot.slane %v1620, 5
        %v1783 = vsel %vm1671, %v1781, %v1782
        %1784 = vrot.lane.b32.xlu0 %v1675, 8
        %v1785 = vpop.permute.xlu0 %1784
        %1786 = vrot.lane.b32.xlu0 %v1678, 8
        %v1787 = vpop.permute.xlu0 %1786
        %1788 = vrot.lane.b32.xlu0 %v1682, 8
        %v1789 = vpop.permute.xlu0 %1788
        %1790 = vrot.lane.b32.xlu0 %v1685, 8
        %v1791 = vpop.permute.xlu0 %1790
        %1792 = vrot.lane.b32.xlu0 %v1689, 8
        %v1793 = vpop.permute.xlu0 %1792
        %1794 = vrot.lane.b32.xlu0 %v1692, 8
        %v1795 = vpop.permute.xlu0 %1794
        %1796 = vrot.lane.b32.xlu0 %v1696, 8
        %v1797 = vpop.permute.xlu0 %1796
        %1798 = vrot.lane.b32.xlu0 %v1699, 8
        %v1799 = vpop.permute.xlu0 %1798
        %1800 = vrot.lane.b32.xlu0 %v1703, 8
        %v1801 = vpop.permute.xlu0 %1800
        %1802 = vrot.lane.b32.xlu0 %v1706, 8
        %v1803 = vpop.permute.xlu0 %1802
        %1804 = vrot.lane.b32.xlu0 %v1710, 8
        %v1805 = vpop.permute.xlu0 %1804
        %1806 = vrot.lane.b32.xlu0 %v1713, 8
        %v1807 = vpop.permute.xlu0 %1806
        %1808 = vrot.lane.b32.xlu0 %v1717, 8
        %v1809 = vpop.permute.xlu0 %1808
        %1810 = vrot.lane.b32.xlu0 %v1720, 8
        %v1811 = vpop.permute.xlu0 %1810
        %1812 = vrot.lane.b32.xlu0 %v1724, 8
        %v1813 = vpop.permute.xlu0 %1812
        %1814 = vrot.lane.b32.xlu0 %v1727, 8
        %v1815 = vpop.permute.xlu0 %1814
        %1816 = vrot.lane.b32.xlu0 %v1731, 8
        %v1817 = vpop.permute.xlu0 %1816
        %1818 = vrot.lane.b32.xlu0 %v1734, 8
        %v1819 = vpop.permute.xlu0 %1818
        %1820 = vrot.lane.b32.xlu0 %v1738, 8
        %v1821 = vpop.permute.xlu0 %1820
        %1822 = vrot.lane.b32.xlu0 %v1741, 8
        %v1823 = vpop.permute.xlu0 %1822
        %1824 = vrot.lane.b32.xlu0 %v1745, 8
        %v1825 = vpop.permute.xlu0 %1824
        %1826 = vrot.lane.b32.xlu0 %v1748, 8
        %v1827 = vpop.permute.xlu0 %1826
        %1828 = vrot.lane.b32.xlu0 %v1752, 8
        %v1829 = vpop.permute.xlu0 %1828
        %1830 = vrot.lane.b32.xlu0 %v1755, 8
        %v1831 = vpop.permute.xlu0 %1830
        %1832 = vrot.lane.b32.xlu0 %v1759, 8
        %v1833 = vpop.permute.xlu0 %1832
        %1834 = vrot.lane.b32.xlu0 %v1762, 8
        %v1835 = vpop.permute.xlu0 %1834
        %1836 = vrot.lane.b32.xlu0 %v1766, 8
        %v1837 = vpop.permute.xlu0 %1836
        %1838 = vrot.lane.b32.xlu0 %v1769, 8
        %v1839 = vpop.permute.xlu0 %1838
        %1840 = vrot.lane.b32.xlu0 %v1773, 8
        %v1841 = vpop.permute.xlu0 %1840
        %1842 = vrot.lane.b32.xlu0 %v1776, 8
        %v1843 = vpop.permute.xlu0 %1842
        %1844 = vrot.lane.b32.xlu0 %v1780, 8
        %v1845 = vpop.permute.xlu0 %1844
        %1846 = vrot.lane.b32.xlu0 %v1783, 8
        %v1847 = vpop.permute.xlu0 %1846
        %vm1880 = vcmask 93248
        %1881 = vst.msk [vmem:[#allocation3] sm:$0xf] %vm1880, %v1785
        %1882 = vst.msk [vmem:[#allocation3 + $0x4] sm:$0xf] %vm1880, %v1787
        %1883 = vst.msk [vmem:[#allocation3 + $0x8] sm:$0xf] %vm1880, %v1789
        %1884 = vst.msk [vmem:[#allocation3 + $0xc] sm:$0xf] %vm1880, %v1791
        %1885 = vst.msk [vmem:[#allocation3 + $0x10] sm:$0xf] %vm1880, %v1793
        %1886 = vst.msk [vmem:[#allocation3 + $0x14] sm:$0xf] %vm1880, %v1795
        %1887 = vst.msk [vmem:[#allocation3 + $0x18] sm:$0xf] %vm1880, %v1797
        %1888 = vst.msk [vmem:[#allocation3 + $0x1c] sm:$0xf] %vm1880, %v1799
        %1889 = vst.msk [vmem:[#allocation3 + $0x20] sm:$0xf] %vm1880, %v1801
        %1890 = vst.msk [vmem:[#allocation3 + $0x24] sm:$0xf] %vm1880, %v1803
        %1891 = vst.msk [vmem:[#allocation3 + $0x28] sm:$0xf] %vm1880, %v1805
        %1892 = vst.msk [vmem:[#allocation3 + $0x2c] sm:$0xf] %vm1880, %v1807
        %1893 = vst.msk [vmem:[#allocation3 + $0x30] sm:$0xf] %vm1880, %v1809
        %1894 = vst.msk [vmem:[#allocation3 + $0x34] sm:$0xf] %vm1880, %v1811
        %1895 = vst.msk [vmem:[#allocation3 + $0x38] sm:$0xf] %vm1880, %v1813
        %1896 = vst.msk [vmem:[#allocation3 + $0x3c] sm:$0xf] %vm1880, %v1815
        %1897 = vst.msk [vmem:[#allocation3 + $0x40] sm:$0xf] %vm1880, %v1817
        %1898 = vst.msk [vmem:[#allocation3 + $0x44] sm:$0xf] %vm1880, %v1819
        %1899 = vst.msk [vmem:[#allocation3 + $0x48] sm:$0xf] %vm1880, %v1821
        %1900 = vst.msk [vmem:[#allocation3 + $0x4c] sm:$0xf] %vm1880, %v1823
        %1901 = vst.msk [vmem:[#allocation3 + $0x50] sm:$0xf] %vm1880, %v1825
        %1902 = vst.msk [vmem:[#allocation3 + $0x54] sm:$0xf] %vm1880, %v1827
        %1903 = vst.msk [vmem:[#allocation3 + $0x58] sm:$0xf] %vm1880, %v1829
        %1904 = vst.msk [vmem:[#allocation3 + $0x5c] sm:$0xf] %vm1880, %v1831
        %1905 = vst.msk [vmem:[#allocation3 + $0x60] sm:$0xf] %vm1880, %v1833
        %1906 = vst.msk [vmem:[#allocation3 + $0x64] sm:$0xf] %vm1880, %v1835
        %1907 = vst.msk [vmem:[#allocation3 + $0x68] sm:$0xf] %vm1880, %v1837
        %1908 = vst.msk [vmem:[#allocation3 + $0x6c] sm:$0xf] %vm1880, %v1839
        %1909 = vst.msk [vmem:[#allocation3 + $0x70] sm:$0xf] %vm1880, %v1841
        %1910 = vst.msk [vmem:[#allocation3 + $0x74] sm:$0xf] %vm1880, %v1843
        %1911 = vst.msk [vmem:[#allocation3 + $0x78] sm:$0xf] %vm1880, %v1845
        %1912 = vst.msk [vmem:[#allocation3 + $0x7c] sm:$0xf] %vm1880, %v1847
        %v1913 = vld [vmem:[%s310] sm:$0xf]
        %v1914 = vld [vmem:[%s310 + $0x4] sm:$0xf]
        %v1915 = vld [vmem:[%s310 + $0xc] sm:$0xf]
        %v1916 = vld [vmem:[%s310 + $0x10] sm:$0xf]
        %v1917 = vld [vmem:[%s310 + $0x18] sm:$0xf]
        %v1918 = vld [vmem:[%s310 + $0x1c] sm:$0xf]
        %v1919 = vld [vmem:[%s310 + $0x24] sm:$0xf]
        %v1920 = vld [vmem:[%s310 + $0x28] sm:$0xf]
        %v1921 = vld [vmem:[%s310 + $0x30] sm:$0xf]
        %v1922 = vld [vmem:[%s310 + $0x34] sm:$0xf]
        %v1923 = vld [vmem:[%s310 + $0x3c] sm:$0xf]
        %v1924 = vld [vmem:[%s310 + $0x40] sm:$0xf]
        %v1925 = vld [vmem:[%s310 + $0x48] sm:$0xf]
        %v1926 = vld [vmem:[%s310 + $0x4c] sm:$0xf]
        %v1927 = vld [vmem:[%s310 + $0x54] sm:$0xf]
        %v1928 = vld [vmem:[%s310 + $0x58] sm:$0xf]
        %v1929 = vld [vmem:[%s310 + $0x60] sm:$0xf]
        %v1930 = vld [vmem:[%s310 + $0x64] sm:$0xf]
        %v1931 = vld [vmem:[%s310 + $0x6c] sm:$0xf]
        %v1932 = vld [vmem:[%s310 + $0x70] sm:$0xf]
        %v1933 = vld [vmem:[%s310 + $0x78] sm:$0xf]
        %v1934 = vld [vmem:[%s310 + $0x7c] sm:$0xf]
        %v1935 = vld [vmem:[%s310 + $0x84] sm:$0xf]
        %v1936 = vld [vmem:[%s310 + $0x88] sm:$0xf]
        %v1937 = vld [vmem:[%s310 + $0x90] sm:$0xf]
        %v1938 = vld [vmem:[%s310 + $0x94] sm:$0xf]
        %v1939 = vld [vmem:[%s310 + $0x9c] sm:$0xf]
        %v1940 = vld [vmem:[%s310 + $0xa0] sm:$0xf]
        %v1941 = vld [vmem:[%s310 + $0xa8] sm:$0xf]
        %v1942 = vld [vmem:[%s310 + $0xac] sm:$0xf]
        %v1943 = vld [vmem:[%s310 + $0xb4] sm:$0xf]
        %v1944 = vld [vmem:[%s310 + $0xb8] sm:$0xf]
        %1977 = vrot.lane.b32.xlu0 %v1913, 12
        %v1978 = vpop.permute.xlu0 %1977
        %1979 = vrot.lane.b32.xlu0 %v1914, 12
        %v1980 = vpop.permute.xlu0 %1979
        %1981 = vrot.lane.b32.xlu0 %v1915, 12
        %v1982 = vpop.permute.xlu0 %1981
        %1983 = vrot.lane.b32.xlu0 %v1916, 12
        %v1984 = vpop.permute.xlu0 %1983
        %1985 = vrot.lane.b32.xlu0 %v1917, 12
        %v1986 = vpop.permute.xlu0 %1985
        %1987 = vrot.lane.b32.xlu0 %v1918, 12
        %v1988 = vpop.permute.xlu0 %1987
        %1989 = vrot.lane.b32.xlu0 %v1919, 12
        %v1990 = vpop.permute.xlu0 %1989
        %1991 = vrot.lane.b32.xlu0 %v1920, 12
        %v1992 = vpop.permute.xlu0 %1991
        %1993 = vrot.lane.b32.xlu0 %v1921, 12
        %v1994 = vpop.permute.xlu0 %1993
        %1995 = vrot.lane.b32.xlu0 %v1922, 12
        %v1996 = vpop.permute.xlu0 %1995
        %1997 = vrot.lane.b32.xlu0 %v1923, 12
        %v1998 = vpop.permute.xlu0 %1997
        %1999 = vrot.lane.b32.xlu0 %v1924, 12
        %v2000 = vpop.permute.xlu0 %1999
        %2001 = vrot.lane.b32.xlu0 %v1925, 12
        %v2002 = vpop.permute.xlu0 %2001
        %2003 = vrot.lane.b32.xlu0 %v1926, 12
        %v2004 = vpop.permute.xlu0 %2003
        %2005 = vrot.lane.b32.xlu0 %v1927, 12
        %v2006 = vpop.permute.xlu0 %2005
        %2007 = vrot.lane.b32.xlu0 %v1928, 12
        %v2008 = vpop.permute.xlu0 %2007
        %2009 = vrot.lane.b32.xlu0 %v1929, 12
        %v2010 = vpop.permute.xlu0 %2009
        %2011 = vrot.lane.b32.xlu0 %v1930, 12
        %v2012 = vpop.permute.xlu0 %2011
        %2013 = vrot.lane.b32.xlu0 %v1931, 12
        %v2014 = vpop.permute.xlu0 %2013
        %2015 = vrot.lane.b32.xlu0 %v1932, 12
        %v2016 = vpop.permute.xlu0 %2015
        %2017 = vrot.lane.b32.xlu0 %v1933, 12
        %v2018 = vpop.permute.xlu0 %2017
        %2019 = vrot.lane.b32.xlu0 %v1934, 12
        %v2020 = vpop.permute.xlu0 %2019
        %2021 = vrot.lane.b32.xlu0 %v1935, 12
        %v2022 = vpop.permute.xlu0 %2021
        %2023 = vrot.lane.b32.xlu0 %v1936, 12
        %v2024 = vpop.permute.xlu0 %2023
        %2025 = vrot.lane.b32.xlu0 %v1937, 12
        %v2026 = vpop.permute.xlu0 %2025
        %2027 = vrot.lane.b32.xlu0 %v1938, 12
        %v2028 = vpop.permute.xlu0 %2027
        %2029 = vrot.lane.b32.xlu0 %v1939, 12
        %v2030 = vpop.permute.xlu0 %2029
        %2031 = vrot.lane.b32.xlu0 %v1940, 12
        %v2032 = vpop.permute.xlu0 %2031
        %2033 = vrot.lane.b32.xlu0 %v1941, 12
        %v2034 = vpop.permute.xlu0 %2033
        %2035 = vrot.lane.b32.xlu0 %v1942, 12
        %v2036 = vpop.permute.xlu0 %2035
        %2037 = vrot.lane.b32.xlu0 %v1943, 12
        %v2038 = vpop.permute.xlu0 %2037
        %2039 = vrot.lane.b32.xlu0 %v1944, 12
        %v2040 = vpop.permute.xlu0 %2039
        %vm2073 = vcmask 126048
        %2074 = vst.msk [vmem:[#allocation3] sm:$0xf] %vm2073, %v1978
        %2075 = vst.msk [vmem:[#allocation3 + $0x4] sm:$0xf] %vm2073, %v1980
        %2076 = vst.msk [vmem:[#allocation3 + $0x8] sm:$0xf] %vm2073, %v1982
        %2077 = vst.msk [vmem:[#allocation3 + $0xc] sm:$0xf] %vm2073, %v1984
        %2078 = vst.msk [vmem:[#allocation3 + $0x10] sm:$0xf] %vm2073, %v1986
        %2079 = vst.msk [vmem:[#allocation3 + $0x14] sm:$0xf] %vm2073, %v1988
        %2080 = vst.msk [vmem:[#allocation3 + $0x18] sm:$0xf] %vm2073, %v1990
        %2081 = vst.msk [vmem:[#allocation3 + $0x1c] sm:$0xf] %vm2073, %v1992
        %2082 = vst.msk [vmem:[#allocation3 + $0x20] sm:$0xf] %vm2073, %v1994
        %2083 = vst.msk [vmem:[#allocation3 + $0x24] sm:$0xf] %vm2073, %v1996
        %2084 = vst.msk [vmem:[#allocation3 + $0x28] sm:$0xf] %vm2073, %v1998
        %2085 = vst.msk [vmem:[#allocation3 + $0x2c] sm:$0xf] %vm2073, %v2000
        %2086 = vst.msk [vmem:[#allocation3 + $0x30] sm:$0xf] %vm2073, %v2002
        %2087 = vst.msk [vmem:[#allocation3 + $0x34] sm:$0xf] %vm2073, %v2004
        %2088 = vst.msk [vmem:[#allocation3 + $0x38] sm:$0xf] %vm2073, %v2006
        %2089 = vst.msk [vmem:[#allocation3 + $0x3c] sm:$0xf] %vm2073, %v2008
        %2090 = vst.msk [vmem:[#allocation3 + $0x40] sm:$0xf] %vm2073, %v2010
        %2091 = vst.msk [vmem:[#allocation3 + $0x44] sm:$0xf] %vm2073, %v2012
        %2092 = vst.msk [vmem:[#allocation3 + $0x48] sm:$0xf] %vm2073, %v2014
        %2093 = vst.msk [vmem:[#allocation3 + $0x4c] sm:$0xf] %vm2073, %v2016
        %2094 = vst.msk [vmem:[#allocation3 + $0x50] sm:$0xf] %vm2073, %v2018
        %2095 = vst.msk [vmem:[#allocation3 + $0x54] sm:$0xf] %vm2073, %v2020
        %2096 = vst.msk [vmem:[#allocation3 + $0x58] sm:$0xf] %vm2073, %v2022
        %2097 = vst.msk [vmem:[#allocation3 + $0x5c] sm:$0xf] %vm2073, %v2024
        %2098 = vst.msk [vmem:[#allocation3 + $0x60] sm:$0xf] %vm2073, %v2026
        %2099 = vst.msk [vmem:[#allocation3 + $0x64] sm:$0xf] %vm2073, %v2028
        %2100 = vst.msk [vmem:[#allocation3 + $0x68] sm:$0xf] %vm2073, %v2030
        %2101 = vst.msk [vmem:[#allocation3 + $0x6c] sm:$0xf] %vm2073, %v2032
        %2102 = vst.msk [vmem:[#allocation3 + $0x70] sm:$0xf] %vm2073, %v2034
        %2103 = vst.msk [vmem:[#allocation3 + $0x74] sm:$0xf] %vm2073, %v2036
        %2104 = vst.msk [vmem:[#allocation3 + $0x78] sm:$0xf] %vm2073, %v2038
        %2105 = vst.msk [vmem:[#allocation3 + $0x7c] sm:$0xf] %vm2073, %v2040
        %v2106 = vld [vmem:[%s310] sm:$0xf]
        %v2107 = vld [vmem:[%s310 + $0x4] sm:$0xf]
        %v2108 = vld [vmem:[%s310 + $0x8] sm:$0x1]
        %v2109 = vld [vmem:[%s310 + $0xc] sm:$0xf]
        %v2110 = vld [vmem:[%s310 + $0x10] sm:$0xf]
        %v2111 = vld [vmem:[%s310 + $0x14] sm:$0x1]
        %v2112 = vld [vmem:[%s310 + $0x18] sm:$0xf]
        %v2113 = vld [vmem:[%s310 + $0x1c] sm:$0xf]
        %v2114 = vld [vmem:[%s310 + $0x20] sm:$0x1]
        %v2115 = vld [vmem:[%s310 + $0x24] sm:$0xf]
        %v2116 = vld [vmem:[%s310 + $0x28] sm:$0xf]
        %v2117 = vld [vmem:[%s310 + $0x2c] sm:$0x1]
        %v2118 = vld [vmem:[%s310 + $0x30] sm:$0xf]
        %v2119 = vld [vmem:[%s310 + $0x34] sm:$0xf]
        %v2120 = vld [vmem:[%s310 + $0x38] sm:$0x1]
        %v2121 = vld [vmem:[%s310 + $0x3c] sm:$0xf]
        %v2122 = vld [vmem:[%s310 + $0x40] sm:$0xf]
        %v2123 = vld [vmem:[%s310 + $0x44] sm:$0x1]
        %v2124 = vld [vmem:[%s310 + $0x48] sm:$0xf]
        %v2125 = vld [vmem:[%s310 + $0x4c] sm:$0xf]
        %v2126 = vld [vmem:[%s310 + $0x50] sm:$0x1]
        %v2127 = vld [vmem:[%s310 + $0x54] sm:$0xf]
        %v2128 = vld [vmem:[%s310 + $0x58] sm:$0xf]
        %v2129 = vld [vmem:[%s310 + $0x5c] sm:$0x1]
        %v2130 = vld [vmem:[%s310 + $0x60] sm:$0xf]
        %v2131 = vld [vmem:[%s310 + $0x64] sm:$0xf]
        %v2132 = vld [vmem:[%s310 + $0x68] sm:$0x1]
        %v2133 = vld [vmem:[%s310 + $0x6c] sm:$0xf]
        %v2134 = vld [vmem:[%s310 + $0x70] sm:$0xf]
        %v2135 = vld [vmem:[%s310 + $0x74] sm:$0x1]
        %v2136 = vld [vmem:[%s310 + $0x78] sm:$0xf]
        %v2137 = vld [vmem:[%s310 + $0x7c] sm:$0xf]
        %v2138 = vld [vmem:[%s310 + $0x80] sm:$0x1]
        %v2139 = vld [vmem:[%s310 + $0x84] sm:$0xf]
        %v2140 = vld [vmem:[%s310 + $0x88] sm:$0xf]
        %v2141 = vld [vmem:[%s310 + $0x8c] sm:$0x1]
        %v2142 = vld [vmem:[%s310 + $0x90] sm:$0xf]
        %v2143 = vld [vmem:[%s310 + $0x94] sm:$0xf]
        %v2144 = vld [vmem:[%s310 + $0x98] sm:$0x1]
        %v2145 = vld [vmem:[%s310 + $0x9c] sm:$0xf]
        %v2146 = vld [vmem:[%s310 + $0xa0] sm:$0xf]
        %v2147 = vld [vmem:[%s310 + $0xa4] sm:$0x1]
        %v2148 = vld [vmem:[%s310 + $0xa8] sm:$0xf]
        %v2149 = vld [vmem:[%s310 + $0xac] sm:$0xf]
        %v2150 = vld [vmem:[%s310 + $0xb0] sm:$0x1]
        %v2151 = vld [vmem:[%s310 + $0xb4] sm:$0xf]
        %v2152 = vld [vmem:[%s310 + $0xb8] sm:$0xf]
        %v2153 = vld [vmem:[%s310 + $0xbc] sm:$0x1]
        %v2155 = vshrl.u32 %v2106, 16
        %v2157 = vrot.slane %v2155, 4
        %v2158 = vshll.u32 %v2106, 16
        %v2160 = vrot.slane %v2158, 5
        %v2161 = vor.u32 %v2157, %v2160
        %v2162 = vrot.slane %v2161, 4
        %v2164 = vshll.u32 %v2107, 16
        %v2166 = vrot.slane %v2164, 5
        %v2167 = vsel %vm1059, %v2162, %v2166
        %v2168 = vshrl.u32 %v2107, 16
        %v2170 = vrot.slane %v2168, 4
        %v2171 = vor.u32 %v2170, %v2166
        %v2172 = vrot.slane %v2171, 4
        %v2174 = vshll.u32 %v2108, 16
        %v2176 = vrot.slane %v2174, 5
        %v2177 = vsel %vm1059, %v2172, %v2176
        %v2179 = vshrl.u32 %v2109, 16
        %v2181 = vrot.slane %v2179, 4
        %v2182 = vshll.u32 %v2109, 16
        %v2184 = vrot.slane %v2182, 5
        %v2185 = vor.u32 %v2181, %v2184
        %v2186 = vrot.slane %v2185, 4
        %v2188 = vshll.u32 %v2110, 16
        %v2190 = vrot.slane %v2188, 5
        %v2191 = vsel %vm1059, %v2186, %v2190
        %v2192 = vshrl.u32 %v2110, 16
        %v2194 = vrot.slane %v2192, 4
        %v2195 = vor.u32 %v2194, %v2190
        %v2196 = vrot.slane %v2195, 4
        %v2198 = vshll.u32 %v2111, 16
        %v2200 = vrot.slane %v2198, 5
        %v2201 = vsel %vm1059, %v2196, %v2200
        %v2203 = vshrl.u32 %v2112, 16
        %v2205 = vrot.slane %v2203, 4
        %v2206 = vshll.u32 %v2112, 16
        %v2208 = vrot.slane %v2206, 5
        %v2209 = vor.u32 %v2205, %v2208
        %v2210 = vrot.slane %v2209, 4
        %v2212 = vshll.u32 %v2113, 16
        %v2214 = vrot.slane %v2212, 5
        %v2215 = vsel %vm1059, %v2210, %v2214
        %v2216 = vshrl.u32 %v2113, 16
        %v2218 = vrot.slane %v2216, 4
        %v2219 = vor.u32 %v2218, %v2214
        %v2220 = vrot.slane %v2219, 4
        %v2222 = vshll.u32 %v2114, 16
        %v2224 = vrot.slane %v2222, 5
        %v2225 = vsel %vm1059, %v2220, %v2224
        %v2227 = vshrl.u32 %v2115, 16
        %v2229 = vrot.slane %v2227, 4
        %v2230 = vshll.u32 %v2115, 16
        %v2232 = vrot.slane %v2230, 5
        %v2233 = vor.u32 %v2229, %v2232
        %v2234 = vrot.slane %v2233, 4
        %v2236 = vshll.u32 %v2116, 16
        %v2238 = vrot.slane %v2236, 5
        %v2239 = vsel %vm1059, %v2234, %v2238
        %v2240 = vshrl.u32 %v2116, 16
        %v2242 = vrot.slane %v2240, 4
        %v2243 = vor.u32 %v2242, %v2238
        %v2244 = vrot.slane %v2243, 4
        %v2246 = vshll.u32 %v2117, 16
        %v2248 = vrot.slane %v2246, 5
        %v2249 = vsel %vm1059, %v2244, %v2248
        %v2251 = vshrl.u32 %v2118, 16
        %v2253 = vrot.slane %v2251, 4
        %v2254 = vshll.u32 %v2118, 16
        %v2256 = vrot.slane %v2254, 5
        %v2257 = vor.u32 %v2253, %v2256
        %v2258 = vrot.slane %v2257, 4
        %v2260 = vshll.u32 %v2119, 16
        %v2262 = vrot.slane %v2260, 5
        %v2263 = vsel %vm1059, %v2258, %v2262
        %v2264 = vshrl.u32 %v2119, 16
        %v2266 = vrot.slane %v2264, 4
        %v2267 = vor.u32 %v2266, %v2262
        %v2268 = vrot.slane %v2267, 4
        %v2270 = vshll.u32 %v2120, 16
        %v2272 = vrot.slane %v2270, 5
        %v2273 = vsel %vm1059, %v2268, %v2272
        %v2275 = vshrl.u32 %v2121, 16
        %v2277 = vrot.slane %v2275, 4
        %v2278 = vshll.u32 %v2121, 16
        %v2280 = vrot.slane %v2278, 5
        %v2281 = vor.u32 %v2277, %v2280
        %v2282 = vrot.slane %v2281, 4
        %v2284 = vshll.u32 %v2122, 16
        %v2286 = vrot.slane %v2284, 5
        %v2287 = vsel %vm1059, %v2282, %v2286
        %v2288 = vshrl.u32 %v2122, 16
        %v2290 = vrot.slane %v2288, 4
        %v2291 = vor.u32 %v2290, %v2286
        %v2292 = vrot.slane %v2291, 4
        %v2294 = vshll.u32 %v2123, 16
        %v2296 = vrot.slane %v2294, 5
        %v2297 = vsel %vm1059, %v2292, %v2296
        %v2299 = vshrl.u32 %v2124, 16
        %v2301 = vrot.slane %v2299, 4
        %v2302 = vshll.u32 %v2124, 16
        %v2304 = vrot.slane %v2302, 5
        %v2305 = vor.u32 %v2301, %v2304
        %v2306 = vrot.slane %v2305, 4
        %v2308 = vshll.u32 %v2125, 16
        %v2310 = vrot.slane %v2308, 5
        %v2311 = vsel %vm1059, %v2306, %v2310
        %v2312 = vshrl.u32 %v2125, 16
        %v2314 = vrot.slane %v2312, 4
        %v2315 = vor.u32 %v2314, %v2310
        %v2316 = vrot.slane %v2315, 4
        %v2318 = vshll.u32 %v2126, 16
        %v2320 = vrot.slane %v2318, 5
        %v2321 = vsel %vm1059, %v2316, %v2320
        %v2323 = vshrl.u32 %v2127, 16
        %v2325 = vrot.slane %v2323, 4
        %v2326 = vshll.u32 %v2127, 16
        %v2328 = vrot.slane %v2326, 5
        %v2329 = vor.u32 %v2325, %v2328
        %v2330 = vrot.slane %v2329, 4
        %v2332 = vshll.u32 %v2128, 16
        %v2334 = vrot.slane %v2332, 5
        %v2335 = vsel %vm1059, %v2330, %v2334
        %v2336 = vshrl.u32 %v2128, 16
        %v2338 = vrot.slane %v2336, 4
        %v2339 = vor.u32 %v2338, %v2334
        %v2340 = vrot.slane %v2339, 4
        %v2342 = vshll.u32 %v2129, 16
        %v2344 = vrot.slane %v2342, 5
        %v2345 = vsel %vm1059, %v2340, %v2344
        %v2347 = vshrl.u32 %v2130, 16
        %v2349 = vrot.slane %v2347, 4
        %v2350 = vshll.u32 %v2130, 16
        %v2352 = vrot.slane %v2350, 5
        %v2353 = vor.u32 %v2349, %v2352
        %v2354 = vrot.slane %v2353, 4
        %v2356 = vshll.u32 %v2131, 16
        %v2358 = vrot.slane %v2356, 5
        %v2359 = vsel %vm1059, %v2354, %v2358
        %v2360 = vshrl.u32 %v2131, 16
        %v2362 = vrot.slane %v2360, 4
        %v2363 = vor.u32 %v2362, %v2358
        %v2364 = vrot.slane %v2363, 4
        %v2366 = vshll.u32 %v2132, 16
        %v2368 = vrot.slane %v2366, 5
        %v2369 = vsel %vm1059, %v2364, %v2368
        %v2371 = vshrl.u32 %v2133, 16
        %v2373 = vrot.slane %v2371, 4
        %v2374 = vshll.u32 %v2133, 16
        %v2376 = vrot.slane %v2374, 5
        %v2377 = vor.u32 %v2373, %v2376
        %v2378 = vrot.slane %v2377, 4
        %v2380 = vshll.u32 %v2134, 16
        %v2382 = vrot.slane %v2380, 5
        %v2383 = vsel %vm1059, %v2378, %v2382
        %v2384 = vshrl.u32 %v2134, 16
        %v2386 = vrot.slane %v2384, 4
        %v2387 = vor.u32 %v2386, %v2382
        %v2388 = vrot.slane %v2387, 4
        %v2390 = vshll.u32 %v2135, 16
        %v2392 = vrot.slane %v2390, 5
        %v2393 = vsel %vm1059, %v2388, %v2392
        %v2395 = vshrl.u32 %v2136, 16
        %v2397 = vrot.slane %v2395, 4
        %v2398 = vshll.u32 %v2136, 16
        %v2400 = vrot.slane %v2398, 5
        %v2401 = vor.u32 %v2397, %v2400
        %v2402 = vrot.slane %v2401, 4
        %v2404 = vshll.u32 %v2137, 16
        %v2406 = vrot.slane %v2404, 5
        %v2407 = vsel %vm1059, %v2402, %v2406
        %v2408 = vshrl.u32 %v2137, 16
        %v2410 = vrot.slane %v2408, 4
        %v2411 = vor.u32 %v2410, %v2406
        %v2412 = vrot.slane %v2411, 4
        %v2414 = vshll.u32 %v2138, 16
        %v2416 = vrot.slane %v2414, 5
        %v2417 = vsel %vm1059, %v2412, %v2416
        %v2419 = vshrl.u32 %v2139, 16
        %v2421 = vrot.slane %v2419, 4
        %v2422 = vshll.u32 %v2139, 16
        %v2424 = vrot.slane %v2422, 5
        %v2425 = vor.u32 %v2421, %v2424
        %v2426 = vrot.slane %v2425, 4
        %v2428 = vshll.u32 %v2140, 16
        %v2430 = vrot.slane %v2428, 5
        %v2431 = vsel %vm1059, %v2426, %v2430
        %v2432 = vshrl.u32 %v2140, 16
        %v2434 = vrot.slane %v2432, 4
        %v2435 = vor.u32 %v2434, %v2430
        %v2436 = vrot.slane %v2435, 4
        %v2438 = vshll.u32 %v2141, 16
        %v2440 = vrot.slane %v2438, 5
        %v2441 = vsel %vm1059, %v2436, %v2440
        %v2443 = vshrl.u32 %v2142, 16
        %v2445 = vrot.slane %v2443, 4
        %v2446 = vshll.u32 %v2142, 16
        %v2448 = vrot.slane %v2446, 5
        %v2449 = vor.u32 %v2445, %v2448
        %v2450 = vrot.slane %v2449, 4
        %v2452 = vshll.u32 %v2143, 16
        %v2454 = vrot.slane %v2452, 5
        %v2455 = vsel %vm1059, %v2450, %v2454
        %v2456 = vshrl.u32 %v2143, 16
        %v2458 = vrot.slane %v2456, 4
        %v2459 = vor.u32 %v2458, %v2454
        %v2460 = vrot.slane %v2459, 4
        %v2462 = vshll.u32 %v2144, 16
        %v2464 = vrot.slane %v2462, 5
        %v2465 = vsel %vm1059, %v2460, %v2464
        %v2467 = vshrl.u32 %v2145, 16
        %v2469 = vrot.slane %v2467, 4
        %v2470 = vshll.u32 %v2145, 16
        %v2472 = vrot.slane %v2470, 5
        %v2473 = vor.u32 %v2469, %v2472
        %v2474 = vrot.slane %v2473, 4
        %v2476 = vshll.u32 %v2146, 16
        %v2478 = vrot.slane %v2476, 5
        %v2479 = vsel %vm1059, %v2474, %v2478
        %v2480 = vshrl.u32 %v2146, 16
        %v2482 = vrot.slane %v2480, 4
        %v2483 = vor.u32 %v2482, %v2478
        %v2484 = vrot.slane %v2483, 4
        %v2486 = vshll.u32 %v2147, 16
        %v2488 = vrot.slane %v2486, 5
        %v2489 = vsel %vm1059, %v2484, %v2488
        %v2491 = vshrl.u32 %v2148, 16
        %v2493 = vrot.slane %v2491, 4
        %v2494 = vshll.u32 %v2148, 16
        %v2496 = vrot.slane %v2494, 5
        %v2497 = vor.u32 %v2493, %v2496
        %v2498 = vrot.slane %v2497, 4
        %v2500 = vshll.u32 %v2149, 16
        %v2502 = vrot.slane %v2500, 5
        %v2503 = vsel %vm1059, %v2498, %v2502
        %v2504 = vshrl.u32 %v2149, 16
        %v2506 = vrot.slane %v2504, 4
        %v2507 = vor.u32 %v2506, %v2502
        %v2508 = vrot.slane %v2507, 4
        %v2510 = vshll.u32 %v2150, 16
        %v2512 = vrot.slane %v2510, 5
        %v2513 = vsel %vm1059, %v2508, %v2512
        %v2515 = vshrl.u32 %v2151, 16
        %v2517 = vrot.slane %v2515, 4
        %v2518 = vshll.u32 %v2151, 16
        %v2520 = vrot.slane %v2518, 5
        %v2521 = vor.u32 %v2517, %v2520
        %v2522 = vrot.slane %v2521, 4
        %v2524 = vshll.u32 %v2152, 16
        %v2526 = vrot.slane %v2524, 5
        %v2527 = vsel %vm1059, %v2522, %v2526
        %v2528 = vshrl.u32 %v2152, 16
        %v2530 = vrot.slane %v2528, 4
        %v2531 = vor.u32 %v2530, %v2526
        %v2532 = vrot.slane %v2531, 4
        %v2534 = vshll.u32 %v2153, 16
        %v2536 = vrot.slane %v2534, 5
        %v2537 = vsel %vm1059, %v2532, %v2536
        %2538 = vrot.lane.b32.xlu0 %v2167, 16
        %v2539 = vpop.permute.xlu0 %2538
        %2540 = vrot.lane.b32.xlu0 %v2177, 16
        %v2541 = vpop.permute.xlu0 %2540
        %2542 = vrot.lane.b32.xlu0 %v2191, 16
        %v2543 = vpop.permute.xlu0 %2542
        %2544 = vrot.lane.b32.xlu0 %v2201, 16
        %v2545 = vpop.permute.xlu0 %2544
        %2546 = vrot.lane.b32.xlu0 %v2215, 16
        %v2547 = vpop.permute.xlu0 %2546
        %2548 = vrot.lane.b32.xlu0 %v2225, 16
        %v2549 = vpop.permute.xlu0 %2548
        %2550 = vrot.lane.b32.xlu0 %v2239, 16
        %v2551 = vpop.permute.xlu0 %2550
        %2552 = vrot.lane.b32.xlu0 %v2249, 16
        %v2553 = vpop.permute.xlu0 %2552
        %2554 = vrot.lane.b32.xlu0 %v2263, 16
        %v2555 = vpop.permute.xlu0 %2554
        %2556 = vrot.lane.b32.xlu0 %v2273, 16
        %v2557 = vpop.permute.xlu0 %2556
        %2558 = vrot.lane.b32.xlu0 %v2287, 16
        %v2559 = vpop.permute.xlu0 %2558
        %2560 = vrot.lane.b32.xlu0 %v2297, 16
        %v2561 = vpop.permute.xlu0 %2560
        %2562 = vrot.lane.b32.xlu0 %v2311, 16
        %v2563 = vpop.permute.xlu0 %2562
        %2564 = vrot.lane.b32.xlu0 %v2321, 16
        %v2565 = vpop.permute.xlu0 %2564
        %2566 = vrot.lane.b32.xlu0 %v2335, 16
        %v2567 = vpop.permute.xlu0 %2566
        %2568 = vrot.lane.b32.xlu0 %v2345, 16
        %v2569 = vpop.permute.xlu0 %2568
        %2570 = vrot.lane.b32.xlu0 %v2359, 16
        %v2571 = vpop.permute.xlu0 %2570
        %2572 = vrot.lane.b32.xlu0 %v2369, 16
        %v2573 = vpop.permute.xlu0 %2572
        %2574 = vrot.lane.b32.xlu0 %v2383, 16
        %v2575 = vpop.permute.xlu0 %2574
        %2576 = vrot.lane.b32.xlu0 %v2393, 16
        %v2577 = vpop.permute.xlu0 %2576
        %2578 = vrot.lane.b32.xlu0 %v2407, 16
        %v2579 = vpop.permute.xlu0 %2578
        %2580 = vrot.lane.b32.xlu0 %v2417, 16
        %v2581 = vpop.permute.xlu0 %2580
        %2582 = vrot.lane.b32.xlu0 %v2431, 16
        %v2583 = vpop.permute.xlu0 %2582
        %2584 = vrot.lane.b32.xlu0 %v2441, 16
        %v2585 = vpop.permute.xlu0 %2584
        %2586 = vrot.lane.b32.xlu0 %v2455, 16
        %v2587 = vpop.permute.xlu0 %2586
        %2588 = vrot.lane.b32.xlu0 %v2465, 16
        %v2589 = vpop.permute.xlu0 %2588
        %2590 = vrot.lane.b32.xlu0 %v2479, 16
        %v2591 = vpop.permute.xlu0 %2590
        %2592 = vrot.lane.b32.xlu0 %v2489, 16
        %v2593 = vpop.permute.xlu0 %2592
        %2594 = vrot.lane.b32.xlu0 %v2503, 16
        %v2595 = vpop.permute.xlu0 %2594
        %2596 = vrot.lane.b32.xlu0 %v2513, 16
        %v2597 = vpop.permute.xlu0 %2596
        %2598 = vrot.lane.b32.xlu0 %v2527, 16
        %v2599 = vpop.permute.xlu0 %2598
        %2600 = vrot.lane.b32.xlu0 %v2537, 16
        %v2601 = vpop.permute.xlu0 %2600
        %vm2634 = vcmask 158848
        %2635 = vst.msk [vmem:[#allocation3] sm:$0xf] %vm2634, %v2539
        %2636 = vst.msk [vmem:[#allocation3 + $0x4] sm:$0xf] %vm2634, %v2541
        %2637 = vst.msk [vmem:[#allocation3 + $0x8] sm:$0xf] %vm2634, %v2543
        %2638 = vst.msk [vmem:[#allocation3 + $0xc] sm:$0xf] %vm2634, %v2545
        %2639 = vst.msk [vmem:[#allocation3 + $0x10] sm:$0xf] %vm2634, %v2547
        %2640 = vst.msk [vmem:[#allocation3 + $0x14] sm:$0xf] %vm2634, %v2549
        %2641 = vst.msk [vmem:[#allocation3 + $0x18] sm:$0xf] %vm2634, %v2551
        %2642 = vst.msk [vmem:[#allocation3 + $0x1c] sm:$0xf] %vm2634, %v2553
        %2643 = vst.msk [vmem:[#allocation3 + $0x20] sm:$0xf] %vm2634, %v2555
        %2644 = vst.msk [vmem:[#allocation3 + $0x24] sm:$0xf] %vm2634, %v2557
        %2645 = vst.msk [vmem:[#allocation3 + $0x28] sm:$0xf] %vm2634, %v2559
        %2646 = vst.msk [vmem:[#allocation3 + $0x2c] sm:$0xf] %vm2634, %v2561
        %2647 = vst.msk [vmem:[#allocation3 + $0x30] sm:$0xf] %vm2634, %v2563
        %2648 = vst.msk [vmem:[#allocation3 + $0x34] sm:$0xf] %vm2634, %v2565
        %2649 = vst.msk [vmem:[#allocation3 + $0x38] sm:$0xf] %vm2634, %v2567
        %2650 = vst.msk [vmem:[#allocation3 + $0x3c] sm:$0xf] %vm2634, %v2569
        %2651 = vst.msk [vmem:[#allocation3 + $0x40] sm:$0xf] %vm2634, %v2571
        %2652 = vst.msk [vmem:[#allocation3 + $0x44] sm:$0xf] %vm2634, %v2573
        %2653 = vst.msk [vmem:[#allocation3 + $0x48] sm:$0xf] %vm2634, %v2575
        %2654 = vst.msk [vmem:[#allocation3 + $0x4c] sm:$0xf] %vm2634, %v2577
        %2655 = vst.msk [vmem:[#allocation3 + $0x50] sm:$0xf] %vm2634, %v2579
        %2656 = vst.msk [vmem:[#allocation3 + $0x54] sm:$0xf] %vm2634, %v2581
        %2657 = vst.msk [vmem:[#allocation3 + $0x58] sm:$0xf] %vm2634, %v2583
        %2658 = vst.msk [vmem:[#allocation3 + $0x5c] sm:$0xf] %vm2634, %v2585
        %2659 = vst.msk [vmem:[#allocation3 + $0x60] sm:$0xf] %vm2634, %v2587
        %2660 = vst.msk [vmem:[#allocation3 + $0x64] sm:$0xf] %vm2634, %v2589
        %2661 = vst.msk [vmem:[#allocation3 + $0x68] sm:$0xf] %vm2634, %v2591
        %2662 = vst.msk [vmem:[#allocation3 + $0x6c] sm:$0xf] %vm2634, %v2593
        %2663 = vst.msk [vmem:[#allocation3 + $0x70] sm:$0xf] %vm2634, %v2595
        %2664 = vst.msk [vmem:[#allocation3 + $0x74] sm:$0xf] %vm2634, %v2597
        %2665 = vst.msk [vmem:[#allocation3 + $0x78] sm:$0xf] %vm2634, %v2599
        %2666 = vst.msk [vmem:[#allocation3 + $0x7c] sm:$0xf] %vm2634, %v2601
        %v2667 = vld [vmem:[%s310] sm:$0xe]
        %v2668 = vld [vmem:[%s310 + $0x4] sm:$0xf]
        %v2669 = vld [vmem:[%s310 + $0x8] sm:$0x1]
        %v2670 = vld [vmem:[%s310 + $0xc] sm:$0xe]
        %v2671 = vld [vmem:[%s310 + $0x10] sm:$0xf]
        %v2672 = vld [vmem:[%s310 + $0x14] sm:$0x1]
        %v2673 = vld [vmem:[%s310 + $0x18] sm:$0xe]
        %v2674 = vld [vmem:[%s310 + $0x1c] sm:$0xf]
        %v2675 = vld [vmem:[%s310 + $0x20] sm:$0x1]
        %v2676 = vld [vmem:[%s310 + $0x24] sm:$0xe]
        %v2677 = vld [vmem:[%s310 + $0x28] sm:$0xf]
        %v2678 = vld [vmem:[%s310 + $0x2c] sm:$0x1]
        %v2679 = vld [vmem:[%s310 + $0x30] sm:$0xe]
        %v2680 = vld [vmem:[%s310 + $0x34] sm:$0xf]
        %v2681 = vld [vmem:[%s310 + $0x38] sm:$0x1]
        %v2682 = vld [vmem:[%s310 + $0x3c] sm:$0xe]
        %v2683 = vld [vmem:[%s310 + $0x40] sm:$0xf]
        %v2684 = vld [vmem:[%s310 + $0x44] sm:$0x1]
        %v2685 = vld [vmem:[%s310 + $0x48] sm:$0xe]
        %v2686 = vld [vmem:[%s310 + $0x4c] sm:$0xf]
        %v2687 = vld [vmem:[%s310 + $0x50] sm:$0x1]
        %v2688 = vld [vmem:[%s310 + $0x54] sm:$0xe]
        %v2689 = vld [vmem:[%s310 + $0x58] sm:$0xf]
        %v2690 = vld [vmem:[%s310 + $0x5c] sm:$0x1]
        %v2691 = vld [vmem:[%s310 + $0x60] sm:$0xe]
        %v2692 = vld [vmem:[%s310 + $0x64] sm:$0xf]
        %v2693 = vld [vmem:[%s310 + $0x68] sm:$0x1]
        %v2694 = vld [vmem:[%s310 + $0x6c] sm:$0xe]
        %v2695 = vld [vmem:[%s310 + $0x70] sm:$0xf]
        %v2696 = vld [vmem:[%s310 + $0x74] sm:$0x1]
        %v2697 = vld [vmem:[%s310 + $0x78] sm:$0xe]
        %v2698 = vld [vmem:[%s310 + $0x7c] sm:$0xf]
        %v2699 = vld [vmem:[%s310 + $0x80] sm:$0x1]
        %v2700 = vld [vmem:[%s310 + $0x84] sm:$0xe]
        %v2701 = vld [vmem:[%s310 + $0x88] sm:$0xf]
        %v2702 = vld [vmem:[%s310 + $0x8c] sm:$0x1]
        %v2703 = vld [vmem:[%s310 + $0x90] sm:$0xe]
        %v2704 = vld [vmem:[%s310 + $0x94] sm:$0xf]
        %v2705 = vld [vmem:[%s310 + $0x98] sm:$0x1]
        %v2706 = vld [vmem:[%s310 + $0x9c] sm:$0xe]
        %v2707 = vld [vmem:[%s310 + $0xa0] sm:$0xf]
        %v2708 = vld [vmem:[%s310 + $0xa4] sm:$0x1]
        %v2709 = vld [vmem:[%s310 + $0xa8] sm:$0xe]
        %v2710 = vld [vmem:[%s310 + $0xac] sm:$0xf]
        %v2711 = vld [vmem:[%s310 + $0xb0] sm:$0x1]
        %v2712 = vld [vmem:[%s310 + $0xb4] sm:$0xe]
        %v2713 = vld [vmem:[%s310 + $0xb8] sm:$0xf]
        %v2714 = vld [vmem:[%s310 + $0xbc] sm:$0x1]
        %v2763 = vrot.slane %v2667, 5
        %v2764 = vrot.slane %v2763, 4
        %v2765 = vrot.slane %v2668, 5
        %v2766 = vsel %vm1671, %v2764, %v2765
        %v2767 = vrot.slane %v2765, 4
        %v2768 = vrot.slane %v2669, 5
        %v2769 = vsel %vm1671, %v2767, %v2768
        %v2770 = vrot.slane %v2670, 5
        %v2771 = vrot.slane %v2770, 4
        %v2772 = vrot.slane %v2671, 5
        %v2773 = vsel %vm1671, %v2771, %v2772
        %v2774 = vrot.slane %v2772, 4
        %v2775 = vrot.slane %v2672, 5
        %v2776 = vsel %vm1671, %v2774, %v2775
        %v2777 = vrot.slane %v2673, 5
        %v2778 = vrot.slane %v2777, 4
        %v2779 = vrot.slane %v2674, 5
        %v2780 = vsel %vm1671, %v2778, %v2779
        %v2781 = vrot.slane %v2779, 4
        %v2782 = vrot.slane %v2675, 5
        %v2783 = vsel %vm1671, %v2781, %v2782
        %v2784 = vrot.slane %v2676, 5
        %v2785 = vrot.slane %v2784, 4
        %v2786 = vrot.slane %v2677, 5
        %v2787 = vsel %vm1671, %v2785, %v2786
        %v2788 = vrot.slane %v2786, 4
        %v2789 = vrot.slane %v2678, 5
        %v2790 = vsel %vm1671, %v2788, %v2789
        %v2791 = vrot.slane %v2679, 5
        %v2792 = vrot.slane %v2791, 4
        %v2793 = vrot.slane %v2680, 5
        %v2794 = vsel %vm1671, %v2792, %v2793
        %v2795 = vrot.slane %v2793, 4
        %v2796 = vrot.slane %v2681, 5
        %v2797 = vsel %vm1671, %v2795, %v2796
        %v2798 = vrot.slane %v2682, 5
        %v2799 = vrot.slane %v2798, 4
        %v2800 = vrot.slane %v2683, 5
        %v2801 = vsel %vm1671, %v2799, %v2800
        %v2802 = vrot.slane %v2800, 4
        %v2803 = vrot.slane %v2684, 5
        %v2804 = vsel %vm1671, %v2802, %v2803
        %v2805 = vrot.slane %v2685, 5
        %v2806 = vrot.slane %v2805, 4
        %v2807 = vrot.slane %v2686, 5
        %v2808 = vsel %vm1671, %v2806, %v2807
        %v2809 = vrot.slane %v2807, 4
        %v2810 = vrot.slane %v2687, 5
        %v2811 = vsel %vm1671, %v2809, %v2810
        %v2812 = vrot.slane %v2688, 5
        %v2813 = vrot.slane %v2812, 4
        %v2814 = vrot.slane %v2689, 5
        %v2815 = vsel %vm1671, %v2813, %v2814
        %v2816 = vrot.slane %v2814, 4
        %v2817 = vrot.slane %v2690, 5
        %v2818 = vsel %vm1671, %v2816, %v2817
        %v2819 = vrot.slane %v2691, 5
        %v2820 = vrot.slane %v2819, 4
        %v2821 = vrot.slane %v2692, 5
        %v2822 = vsel %vm1671, %v2820, %v2821
        %v2823 = vrot.slane %v2821, 4
        %v2824 = vrot.slane %v2693, 5
        %v2825 = vsel %vm1671, %v2823, %v2824
        %v2826 = vrot.slane %v2694, 5
        %v2827 = vrot.slane %v2826, 4
        %v2828 = vrot.slane %v2695, 5
        %v2829 = vsel %vm1671, %v2827, %v2828
        %v2830 = vrot.slane %v2828, 4
        %v2831 = vrot.slane %v2696, 5
        %v2832 = vsel %vm1671, %v2830, %v2831
        %v2833 = vrot.slane %v2697, 5
        %v2834 = vrot.slane %v2833, 4
        %v2835 = vrot.slane %v2698, 5
        %v2836 = vsel %vm1671, %v2834, %v2835
        %v2837 = vrot.slane %v2835, 4
        %v2838 = vrot.slane %v2699, 5
        %v2839 = vsel %vm1671, %v2837, %v2838
        %v2840 = vrot.slane %v2700, 5
        %v2841 = vrot.slane %v2840, 4
        %v2842 = vrot.slane %v2701, 5
        %v2843 = vsel %vm1671, %v2841, %v2842
        %v2844 = vrot.slane %v2842, 4
        %v2845 = vrot.slane %v2702, 5
        %v2846 = vsel %vm1671, %v2844, %v2845
        %v2847 = vrot.slane %v2703, 5
        %v2848 = vrot.slane %v2847, 4
        %v2849 = vrot.slane %v2704, 5
        %v2850 = vsel %vm1671, %v2848, %v2849
        %v2851 = vrot.slane %v2849, 4
        %v2852 = vrot.slane %v2705, 5
        %v2853 = vsel %vm1671, %v2851, %v2852
        %v2854 = vrot.slane %v2706, 5
        %v2855 = vrot.slane %v2854, 4
        %v2856 = vrot.slane %v2707, 5
        %v2857 = vsel %vm1671, %v2855, %v2856
        %v2858 = vrot.slane %v2856, 4
        %v2859 = vrot.slane %v2708, 5
        %v2860 = vsel %vm1671, %v2858, %v2859
        %v2861 = vrot.slane %v2709, 5
        %v2862 = vrot.slane %v2861, 4
        %v2863 = vrot.slane %v2710, 5
        %v2864 = vsel %vm1671, %v2862, %v2863
        %v2865 = vrot.slane %v2863, 4
        %v2866 = vrot.slane %v2711, 5
        %v2867 = vsel %vm1671, %v2865, %v2866
        %v2868 = vrot.slane %v2712, 5
        %v2869 = vrot.slane %v2868, 4
        %v2870 = vrot.slane %v2713, 5
        %v2871 = vsel %vm1671, %v2869, %v2870
        %v2872 = vrot.slane %v2870, 4
        %v2873 = vrot.slane %v2714, 5
        %v2874 = vsel %vm1671, %v2872, %v2873
        %2875 = vrot.lane.b32.xlu0 %v2766, 20
        %v2876 = vpop.permute.xlu0 %2875
        %2877 = vrot.lane.b32.xlu0 %v2769, 20
        %v2878 = vpop.permute.xlu0 %2877
        %2879 = vrot.lane.b32.xlu0 %v2773, 20
        %v2880 = vpop.permute.xlu0 %2879
        %2881 = vrot.lane.b32.xlu0 %v2776, 20
        %v2882 = vpop.permute.xlu0 %2881
        %2883 = vrot.lane.b32.xlu0 %v2780, 20
        %v2884 = vpop.permute.xlu0 %2883
        %2885 = vrot.lane.b32.xlu0 %v2783, 20
        %v2886 = vpop.permute.xlu0 %2885
        %2887 = vrot.lane.b32.xlu0 %v2787, 20
        %v2888 = vpop.permute.xlu0 %2887
        %2889 = vrot.lane.b32.xlu0 %v2790, 20
        %v2890 = vpop.permute.xlu0 %2889
        %2891 = vrot.lane.b32.xlu0 %v2794, 20
        %v2892 = vpop.permute.xlu0 %2891
        %2893 = vrot.lane.b32.xlu0 %v2797, 20
        %v2894 = vpop.permute.xlu0 %2893
        %2895 = vrot.lane.b32.xlu0 %v2801, 20
        %v2896 = vpop.permute.xlu0 %2895
        %2897 = vrot.lane.b32.xlu0 %v2804, 20
        %v2898 = vpop.permute.xlu0 %2897
        %2899 = vrot.lane.b32.xlu0 %v2808, 20
        %v2900 = vpop.permute.xlu0 %2899
        %2901 = vrot.lane.b32.xlu0 %v2811, 20
        %v2902 = vpop.permute.xlu0 %2901
        %2903 = vrot.lane.b32.xlu0 %v2815, 20
        %v2904 = vpop.permute.xlu0 %2903
        %2905 = vrot.lane.b32.xlu0 %v2818, 20
        %v2906 = vpop.permute.xlu0 %2905
        %2907 = vrot.lane.b32.xlu0 %v2822, 20
        %v2908 = vpop.permute.xlu0 %2907
        %2909 = vrot.lane.b32.xlu0 %v2825, 20
        %v2910 = vpop.permute.xlu0 %2909
        %2911 = vrot.lane.b32.xlu0 %v2829, 20
        %v2912 = vpop.permute.xlu0 %2911
        %2913 = vrot.lane.b32.xlu0 %v2832, 20
        %v2914 = vpop.permute.xlu0 %2913
        %2915 = vrot.lane.b32.xlu0 %v2836, 20
        %v2916 = vpop.permute.xlu0 %2915
        %2917 = vrot.lane.b32.xlu0 %v2839, 20
        %v2918 = vpop.permute.xlu0 %2917
        %2919 = vrot.lane.b32.xlu0 %v2843, 20
        %v2920 = vpop.permute.xlu0 %2919
        %2921 = vrot.lane.b32.xlu0 %v2846, 20
        %v2922 = vpop.permute.xlu0 %2921
        %2923 = vrot.lane.b32.xlu0 %v2850, 20
        %v2924 = vpop.permute.xlu0 %2923
        %2925 = vrot.lane.b32.xlu0 %v2853, 20
        %v2926 = vpop.permute.xlu0 %2925
        %2927 = vrot.lane.b32.xlu0 %v2857, 20
        %v2928 = vpop.permute.xlu0 %2927
        %2929 = vrot.lane.b32.xlu0 %v2860, 20
        %v2930 = vpop.permute.xlu0 %2929
        %2931 = vrot.lane.b32.xlu0 %v2864, 20
        %v2932 = vpop.permute.xlu0 %2931
        %2933 = vrot.lane.b32.xlu0 %v2867, 20
        %v2934 = vpop.permute.xlu0 %2933
        %2935 = vrot.lane.b32.xlu0 %v2871, 20
        %v2936 = vpop.permute.xlu0 %2935
        %2937 = vrot.lane.b32.xlu0 %v2874, 20
        %v2938 = vpop.permute.xlu0 %2937
        %vm2971 = vcmask 191648
        %2972 = vst.msk [vmem:[#allocation3] sm:$0xf] %vm2971, %v2876
        %2973 = vst.msk [vmem:[#allocation3 + $0x4] sm:$0xf] %vm2971, %v2878
        %2974 = vst.msk [vmem:[#allocation3 + $0x8] sm:$0xf] %vm2971, %v2880
        %2975 = vst.msk [vmem:[#allocation3 + $0xc] sm:$0xf] %vm2971, %v2882
        %2976 = vst.msk [vmem:[#allocation3 + $0x10] sm:$0xf] %vm2971, %v2884
        %2977 = vst.msk [vmem:[#allocation3 + $0x14] sm:$0xf] %vm2971, %v2886
        %2978 = vst.msk [vmem:[#allocation3 + $0x18] sm:$0xf] %vm2971, %v2888
        %2979 = vst.msk [vmem:[#allocation3 + $0x1c] sm:$0xf] %vm2971, %v2890
        %2980 = vst.msk [vmem:[#allocation3 + $0x20] sm:$0xf] %vm2971, %v2892
        %2981 = vst.msk [vmem:[#allocation3 + $0x24] sm:$0xf] %vm2971, %v2894
        %2982 = vst.msk [vmem:[#allocation3 + $0x28] sm:$0xf] %vm2971, %v2896
        %2983 = vst.msk [vmem:[#allocation3 + $0x2c] sm:$0xf] %vm2971, %v2898
        %2984 = vst.msk [vmem:[#allocation3 + $0x30] sm:$0xf] %vm2971, %v2900
        %2985 = vst.msk [vmem:[#allocation3 + $0x34] sm:$0xf] %vm2971, %v2902
        %2986 = vst.msk [vmem:[#allocation3 + $0x38] sm:$0xf] %vm2971, %v2904
        %2987 = vst.msk [vmem:[#allocation3 + $0x3c] sm:$0xf] %vm2971, %v2906
        %2988 = vst.msk [vmem:[#allocation3 + $0x40] sm:$0xf] %vm2971, %v2908
        %2989 = vst.msk [vmem:[#allocation3 + $0x44] sm:$0xf] %vm2971, %v2910
        %2990 = vst.msk [vmem:[#allocation3 + $0x48] sm:$0xf] %vm2971, %v2912
        %2991 = vst.msk [vmem:[#allocation3 + $0x4c] sm:$0xf] %vm2971, %v2914
        %2992 = vst.msk [vmem:[#allocation3 + $0x50] sm:$0xf] %vm2971, %v2916
        %2993 = vst.msk [vmem:[#allocation3 + $0x54] sm:$0xf] %vm2971, %v2918
        %2994 = vst.msk [vmem:[#allocation3 + $0x58] sm:$0xf] %vm2971, %v2920
        %2995 = vst.msk [vmem:[#allocation3 + $0x5c] sm:$0xf] %vm2971, %v2922
        %2996 = vst.msk [vmem:[#allocation3 + $0x60] sm:$0xf] %vm2971, %v2924
        %2997 = vst.msk [vmem:[#allocation3 + $0x64] sm:$0xf] %vm2971, %v2926
        %2998 = vst.msk [vmem:[#allocation3 + $0x68] sm:$0xf] %vm2971, %v2928
        %2999 = vst.msk [vmem:[#allocation3 + $0x6c] sm:$0xf] %vm2971, %v2930
        %3000 = vst.msk [vmem:[#allocation3 + $0x70] sm:$0xf] %vm2971, %v2932
        %3001 = vst.msk [vmem:[#allocation3 + $0x74] sm:$0xf] %vm2971, %v2934
        %3002 = vst.msk [vmem:[#allocation3 + $0x78] sm:$0xf] %vm2971, %v2936
        %3003 = vst.msk [vmem:[#allocation3 + $0x7c] sm:$0xf] %vm2971, %v2938
        %s3004 = scalar_lea.vmem [#allocation2], 24
        %v3005 = vld [vmem:[%s3004] sm:$0xf]
        %v3006 = vld [vmem:[%s3004 + $0x4] sm:$0xf]
        %v3007 = vld [vmem:[%s3004 + $0xc] sm:$0xf]
        %v3008 = vld [vmem:[%s3004 + $0x10] sm:$0xf]
        %v3009 = vld [vmem:[%s3004 + $0x18] sm:$0xf]
        %v3010 = vld [vmem:[%s3004 + $0x1c] sm:$0xf]
        %v3011 = vld [vmem:[%s3004 + $0x24] sm:$0xf]
        %v3012 = vld [vmem:[%s3004 + $0x28] sm:$0xf]
        %v3013 = vld [vmem:[%s3004 + $0x30] sm:$0xf]
        %v3014 = vld [vmem:[%s3004 + $0x34] sm:$0xf]
        %v3015 = vld [vmem:[%s3004 + $0x3c] sm:$0xf]
        %v3016 = vld [vmem:[%s3004 + $0x40] sm:$0xf]
        %v3017 = vld [vmem:[%s3004 + $0x48] sm:$0xf]
        %v3018 = vld [vmem:[%s3004 + $0x4c] sm:$0xf]
        %v3019 = vld [vmem:[%s3004 + $0x54] sm:$0xf]
        %v3020 = vld [vmem:[%s3004 + $0x58] sm:$0xf]
        %v3021 = vld [vmem:[%s3004 + $0x60] sm:$0xf]
        %v3022 = vld [vmem:[%s3004 + $0x64] sm:$0xf]
        %v3023 = vld [vmem:[%s3004 + $0x6c] sm:$0xf]
        %v3024 = vld [vmem:[%s3004 + $0x70] sm:$0xf]
        %v3025 = vld [vmem:[%s3004 + $0x78] sm:$0xf]
        %v3026 = vld [vmem:[%s3004 + $0x7c] sm:$0xf]
        %v3027 = vld [vmem:[%s3004 + $0x84] sm:$0xf]
        %v3028 = vld [vmem:[%s3004 + $0x88] sm:$0xf]
        %v3029 = vld [vmem:[%s3004 + $0x90] sm:$0xf]
        %v3030 = vld [vmem:[%s3004 + $0x94] sm:$0xf]
        %v3031 = vld [vmem:[%s3004 + $0x9c] sm:$0xf]
        %v3032 = vld [vmem:[%s3004 + $0xa0] sm:$0xf]
        %v3033 = vld [vmem:[%s3004 + $0xa8] sm:$0xf]
        %v3034 = vld [vmem:[%s3004 + $0xac] sm:$0xf]
        %v3035 = vld [vmem:[%s3004 + $0xb4] sm:$0xf]
        %v3036 = vld [vmem:[%s3004 + $0xb8] sm:$0xf]
        %3069 = vrot.lane.b32.xlu0 %v3005, 24
        %v3070 = vpop.permute.xlu0 %3069
        %3071 = vrot.lane.b32.xlu0 %v3006, 24
        %v3072 = vpop.permute.xlu0 %3071
        %3073 = vrot.lane.b32.xlu0 %v3007, 24
        %v3074 = vpop.permute.xlu0 %3073
        %3075 = vrot.lane.b32.xlu0 %v3008, 24
        %v3076 = vpop.permute.xlu0 %3075
        %3077 = vrot.lane.b32.xlu0 %v3009, 24
        %v3078 = vpop.permute.xlu0 %3077
        %3079 = vrot.lane.b32.xlu0 %v3010, 24
        %v3080 = vpop.permute.xlu0 %3079
        %3081 = vrot.lane.b32.xlu0 %v3011, 24
        %v3082 = vpop.permute.xlu0 %3081
        %3083 = vrot.lane.b32.xlu0 %v3012, 24
        %v3084 = vpop.permute.xlu0 %3083
        %3085 = vrot.lane.b32.xlu0 %v3013, 24
        %v3086 = vpop.permute.xlu0 %3085
        %3087 = vrot.lane.b32.xlu0 %v3014, 24
        %v3088 = vpop.permute.xlu0 %3087
        %3089 = vrot.lane.b32.xlu0 %v3015, 24
        %v3090 = vpop.permute.xlu0 %3089
        %3091 = vrot.lane.b32.xlu0 %v3016, 24
        %v3092 = vpop.permute.xlu0 %3091
        %3093 = vrot.lane.b32.xlu0 %v3017, 24
        %v3094 = vpop.permute.xlu0 %3093
        %3095 = vrot.lane.b32.xlu0 %v3018, 24
        %v3096 = vpop.permute.xlu0 %3095
        %3097 = vrot.lane.b32.xlu0 %v3019, 24
        %v3098 = vpop.permute.xlu0 %3097
        %3099 = vrot.lane.b32.xlu0 %v3020, 24
        %v3100 = vpop.permute.xlu0 %3099
        %3101 = vrot.lane.b32.xlu0 %v3021, 24
        %v3102 = vpop.permute.xlu0 %3101
        %3103 = vrot.lane.b32.xlu0 %v3022, 24
        %v3104 = vpop.permute.xlu0 %3103
        %3105 = vrot.lane.b32.xlu0 %v3023, 24
        %v3106 = vpop.permute.xlu0 %3105
        %3107 = vrot.lane.b32.xlu0 %v3024, 24
        %v3108 = vpop.permute.xlu0 %3107
        %3109 = vrot.lane.b32.xlu0 %v3025, 24
        %v3110 = vpop.permute.xlu0 %3109
        %3111 = vrot.lane.b32.xlu0 %v3026, 24
        %v3112 = vpop.permute.xlu0 %3111
        %3113 = vrot.lane.b32.xlu0 %v3027, 24
        %v3114 = vpop.permute.xlu0 %3113
        %3115 = vrot.lane.b32.xlu0 %v3028, 24
        %v3116 = vpop.permute.xlu0 %3115
        %3117 = vrot.lane.b32.xlu0 %v3029, 24
        %v3118 = vpop.permute.xlu0 %3117
        %3119 = vrot.lane.b32.xlu0 %v3030, 24
        %v3120 = vpop.permute.xlu0 %3119
        %3121 = vrot.lane.b32.xlu0 %v3031, 24
        %v3122 = vpop.permute.xlu0 %3121
        %3123 = vrot.lane.b32.xlu0 %v3032, 24
        %v3124 = vpop.permute.xlu0 %3123
        %3125 = vrot.lane.b32.xlu0 %v3033, 24
        %v3126 = vpop.permute.xlu0 %3125
        %3127 = vrot.lane.b32.xlu0 %v3034, 24
        %v3128 = vpop.permute.xlu0 %3127
        %3129 = vrot.lane.b32.xlu0 %v3035, 24
        %v3130 = vpop.permute.xlu0 %3129
        %3131 = vrot.lane.b32.xlu0 %v3036, 24
        %v3132 = vpop.permute.xlu0 %3131
        %vm3165 = vcmask 224448
        %3166 = vst.msk [vmem:[#allocation3] sm:$0xf] %vm3165, %v3070
        %3167 = vst.msk [vmem:[#allocation3 + $0x4] sm:$0xf] %vm3165, %v3072
        %3168 = vst.msk [vmem:[#allocation3 + $0x8] sm:$0xf] %vm3165, %v3074
        %3169 = vst.msk [vmem:[#allocation3 + $0xc] sm:$0xf] %vm3165, %v3076
        %3170 = vst.msk [vmem:[#allocation3 + $0x10] sm:$0xf] %vm3165, %v3078
        %3171 = vst.msk [vmem:[#allocation3 + $0x14] sm:$0xf] %vm3165, %v3080
        %3172 = vst.msk [vmem:[#allocation3 + $0x18] sm:$0xf] %vm3165, %v3082
        %3173 = vst.msk [vmem:[#allocation3 + $0x1c] sm:$0xf] %vm3165, %v3084
        %3174 = vst.msk [vmem:[#allocation3 + $0x20] sm:$0xf] %vm3165, %v3086
        %3175 = vst.msk [vmem:[#allocation3 + $0x24] sm:$0xf] %vm3165, %v3088
        %3176 = vst.msk [vmem:[#allocation3 + $0x28] sm:$0xf] %vm3165, %v3090
        %3177 = vst.msk [vmem:[#allocation3 + $0x2c] sm:$0xf] %vm3165, %v3092
        %3178 = vst.msk [vmem:[#allocation3 + $0x30] sm:$0xf] %vm3165, %v3094
        %3179 = vst.msk [vmem:[#allocation3 + $0x34] sm:$0xf] %vm3165, %v3096
        %3180 = vst.msk [vmem:[#allocation3 + $0x38] sm:$0xf] %vm3165, %v3098
        %3181 = vst.msk [vmem:[#allocation3 + $0x3c] sm:$0xf] %vm3165, %v3100
        %3182 = vst.msk [vmem:[#allocation3 + $0x40] sm:$0xf] %vm3165, %v3102
        %3183 = vst.msk [vmem:[#allocation3 + $0x44] sm:$0xf] %vm3165, %v3104
        %3184 = vst.msk [vmem:[#allocation3 + $0x48] sm:$0xf] %vm3165, %v3106
        %3185 = vst.msk [vmem:[#allocation3 + $0x4c] sm:$0xf] %vm3165, %v3108
        %3186 = vst.msk [vmem:[#allocation3 + $0x50] sm:$0xf] %vm3165, %v3110
        %3187 = vst.msk [vmem:[#allocation3 + $0x54] sm:$0xf] %vm3165, %v3112
        %3188 = vst.msk [vmem:[#allocation3 + $0x58] sm:$0xf] %vm3165, %v3114
        %3189 = vst.msk [vmem:[#allocation3 + $0x5c] sm:$0xf] %vm3165, %v3116
        %3190 = vst.msk [vmem:[#allocation3 + $0x60] sm:$0xf] %vm3165, %v3118
        %3191 = vst.msk [vmem:[#allocation3 + $0x64] sm:$0xf] %vm3165, %v3120
        %3192 = vst.msk [vmem:[#allocation3 + $0x68] sm:$0xf] %vm3165, %v3122
        %3193 = vst.msk [vmem:[#allocation3 + $0x6c] sm:$0xf] %vm3165, %v3124
        %3194 = vst.msk [vmem:[#allocation3 + $0x70] sm:$0xf] %vm3165, %v3126
        %3195 = vst.msk [vmem:[#allocation3 + $0x74] sm:$0xf] %vm3165, %v3128
        %3196 = vst.msk [vmem:[#allocation3 + $0x78] sm:$0xf] %vm3165, %v3130
        %3197 = vst.msk [vmem:[#allocation3 + $0x7c] sm:$0xf] %vm3165, %v3132
        %v3198 = vld [vmem:[%s3004] sm:$0xf]
        %v3199 = vld [vmem:[%s3004 + $0x4] sm:$0xf]
        %v3200 = vld [vmem:[%s3004 + $0x8] sm:$0x1]
        %v3201 = vld [vmem:[%s3004 + $0xc] sm:$0xf]
        %v3202 = vld [vmem:[%s3004 + $0x10] sm:$0xf]
        %v3203 = vld [vmem:[%s3004 + $0x14] sm:$0x1]
        %v3204 = vld [vmem:[%s3004 + $0x18] sm:$0xf]
        %v3205 = vld [vmem:[%s3004 + $0x1c] sm:$0xf]
        %v3206 = vld [vmem:[%s3004 + $0x20] sm:$0x1]
        %v3207 = vld [vmem:[%s3004 + $0x24] sm:$0xf]
        %v3208 = vld [vmem:[%s3004 + $0x28] sm:$0xf]
        %v3209 = vld [vmem:[%s3004 + $0x2c] sm:$0x1]
        %v3210 = vld [vmem:[%s3004 + $0x30] sm:$0xf]
        %v3211 = vld [vmem:[%s3004 + $0x34] sm:$0xf]
        %v3212 = vld [vmem:[%s3004 + $0x38] sm:$0x1]
        %v3213 = vld [vmem:[%s3004 + $0x3c] sm:$0xf]
        %v3214 = vld [vmem:[%s3004 + $0x40] sm:$0xf]
        %v3215 = vld [vmem:[%s3004 + $0x44] sm:$0x1]
        %v3216 = vld [vmem:[%s3004 + $0x48] sm:$0xf]
        %v3217 = vld [vmem:[%s3004 + $0x4c] sm:$0xf]
        %v3218 = vld [vmem:[%s3004 + $0x50] sm:$0x1]
        %v3219 = vld [vmem:[%s3004 + $0x54] sm:$0xf]
        %v3220 = vld [vmem:[%s3004 + $0x58] sm:$0xf]
        %v3221 = vld [vmem:[%s3004 + $0x5c] sm:$0x1]
        %v3222 = vld [vmem:[%s3004 + $0x60] sm:$0xf]
        %v3223 = vld [vmem:[%s3004 + $0x64] sm:$0xf]
        %v3224 = vld [vmem:[%s3004 + $0x68] sm:$0x1]
        %v3225 = vld [vmem:[%s3004 + $0x6c] sm:$0xf]
        %v3226 = vld [vmem:[%s3004 + $0x70] sm:$0xf]
        %v3227 = vld [vmem:[%s3004 + $0x74] sm:$0x1]
        %v3228 = vld [vmem:[%s3004 + $0x78] sm:$0xf]
        %v3229 = vld [vmem:[%s3004 + $0x7c] sm:$0xf]
        %v3230 = vld [vmem:[%s3004 + $0x80] sm:$0x1]
        %v3231 = vld [vmem:[%s3004 + $0x84] sm:$0xf]
        %v3232 = vld [vmem:[%s3004 + $0x88] sm:$0xf]
        %v3233 = vld [vmem:[%s3004 + $0x8c] sm:$0x1]
        %v3234 = vld [vmem:[%s3004 + $0x90] sm:$0xf]
        %v3235 = vld [vmem:[%s3004 + $0x94] sm:$0xf]
        %v3236 = vld [vmem:[%s3004 + $0x98] sm:$0x1]
        %v3237 = vld [vmem:[%s3004 + $0x9c] sm:$0xf]
        %v3238 = vld [vmem:[%s3004 + $0xa0] sm:$0xf]
        %v3239 = vld [vmem:[%s3004 + $0xa4] sm:$0x1]
        %v3240 = vld [vmem:[%s3004 + $0xa8] sm:$0xf]
        %v3241 = vld [vmem:[%s3004 + $0xac] sm:$0xf]
        %v3242 = vld [vmem:[%s3004 + $0xb0] sm:$0x1]
        %v3243 = vld [vmem:[%s3004 + $0xb4] sm:$0xf]
        %v3244 = vld [vmem:[%s3004 + $0xb8] sm:$0xf]
        %v3245 = vld [vmem:[%s3004 + $0xbc] sm:$0x1]
        %v3247 = vshrl.u32 %v3198, 16
        %v3249 = vrot.slane %v3247, 4
        %v3250 = vshll.u32 %v3198, 16
        %v3252 = vrot.slane %v3250, 5
        %v3253 = vor.u32 %v3249, %v3252
        %v3254 = vrot.slane %v3253, 4
        %v3256 = vshll.u32 %v3199, 16
        %v3258 = vrot.slane %v3256, 5
        %v3259 = vsel %vm1059, %v3254, %v3258
        %v3260 = vshrl.u32 %v3199, 16
        %v3262 = vrot.slane %v3260, 4
        %v3263 = vor.u32 %v3262, %v3258
        %v3264 = vrot.slane %v3263, 4
        %v3266 = vshll.u32 %v3200, 16
        %v3268 = vrot.slane %v3266, 5
        %v3269 = vsel %vm1059, %v3264, %v3268
        %v3271 = vshrl.u32 %v3201, 16
        %v3273 = vrot.slane %v3271, 4
        %v3274 = vshll.u32 %v3201, 16
        %v3276 = vrot.slane %v3274, 5
        %v3277 = vor.u32 %v3273, %v3276
        %v3278 = vrot.slane %v3277, 4
        %v3280 = vshll.u32 %v3202, 16
        %v3282 = vrot.slane %v3280, 5
        %v3283 = vsel %vm1059, %v3278, %v3282
        %v3284 = vshrl.u32 %v3202, 16
        %v3286 = vrot.slane %v3284, 4
        %v3287 = vor.u32 %v3286, %v3282
        %v3288 = vrot.slane %v3287, 4
        %v3290 = vshll.u32 %v3203, 16
        %v3292 = vrot.slane %v3290, 5
        %v3293 = vsel %vm1059, %v3288, %v3292
        %v3295 = vshrl.u32 %v3204, 16
        %v3297 = vrot.slane %v3295, 4
        %v3298 = vshll.u32 %v3204, 16
        %v3300 = vrot.slane %v3298, 5
        %v3301 = vor.u32 %v3297, %v3300
        %v3302 = vrot.slane %v3301, 4
        %v3304 = vshll.u32 %v3205, 16
        %v3306 = vrot.slane %v3304, 5
        %v3307 = vsel %vm1059, %v3302, %v3306
        %v3308 = vshrl.u32 %v3205, 16
        %v3310 = vrot.slane %v3308, 4
        %v3311 = vor.u32 %v3310, %v3306
        %v3312 = vrot.slane %v3311, 4
        %v3314 = vshll.u32 %v3206, 16
        %v3316 = vrot.slane %v3314, 5
        %v3317 = vsel %vm1059, %v3312, %v3316
        %v3319 = vshrl.u32 %v3207, 16
        %v3321 = vrot.slane %v3319, 4
        %v3322 = vshll.u32 %v3207, 16
        %v3324 = vrot.slane %v3322, 5
        %v3325 = vor.u32 %v3321, %v3324
        %v3326 = vrot.slane %v3325, 4
        %v3328 = vshll.u32 %v3208, 16
        %v3330 = vrot.slane %v3328, 5
        %v3331 = vsel %vm1059, %v3326, %v3330
        %v3332 = vshrl.u32 %v3208, 16
        %v3334 = vrot.slane %v3332, 4
        %v3335 = vor.u32 %v3334, %v3330
        %v3336 = vrot.slane %v3335, 4
        %v3338 = vshll.u32 %v3209, 16
        %v3340 = vrot.slane %v3338, 5
        %v3341 = vsel %vm1059, %v3336, %v3340
        %v3343 = vshrl.u32 %v3210, 16
        %v3345 = vrot.slane %v3343, 4
        %v3346 = vshll.u32 %v3210, 16
        %v3348 = vrot.slane %v3346, 5
        %v3349 = vor.u32 %v3345, %v3348
        %v3350 = vrot.slane %v3349, 4
        %v3352 = vshll.u32 %v3211, 16
        %v3354 = vrot.slane %v3352, 5
        %v3355 = vsel %vm1059, %v3350, %v3354
        %v3356 = vshrl.u32 %v3211, 16
        %v3358 = vrot.slane %v3356, 4
        %v3359 = vor.u32 %v3358, %v3354
        %v3360 = vrot.slane %v3359, 4
        %v3362 = vshll.u32 %v3212, 16
        %v3364 = vrot.slane %v3362, 5
        %v3365 = vsel %vm1059, %v3360, %v3364
        %v3367 = vshrl.u32 %v3213, 16
        %v3369 = vrot.slane %v3367, 4
        %v3370 = vshll.u32 %v3213, 16
        %v3372 = vrot.slane %v3370, 5
        %v3373 = vor.u32 %v3369, %v3372
        %v3374 = vrot.slane %v3373, 4
        %v3376 = vshll.u32 %v3214, 16
        %v3378 = vrot.slane %v3376, 5
        %v3379 = vsel %vm1059, %v3374, %v3378
        %v3380 = vshrl.u32 %v3214, 16
        %v3382 = vrot.slane %v3380, 4
        %v3383 = vor.u32 %v3382, %v3378
        %v3384 = vrot.slane %v3383, 4
        %v3386 = vshll.u32 %v3215, 16
        %v3388 = vrot.slane %v3386, 5
        %v3389 = vsel %vm1059, %v3384, %v3388
        %v3391 = vshrl.u32 %v3216, 16
        %v3393 = vrot.slane %v3391, 4
        %v3394 = vshll.u32 %v3216, 16
        %v3396 = vrot.slane %v3394, 5
        %v3397 = vor.u32 %v3393, %v3396
        %v3398 = vrot.slane %v3397, 4
        %v3400 = vshll.u32 %v3217, 16
        %v3402 = vrot.slane %v3400, 5
        %v3403 = vsel %vm1059, %v3398, %v3402
        %v3404 = vshrl.u32 %v3217, 16
        %v3406 = vrot.slane %v3404, 4
        %v3407 = vor.u32 %v3406, %v3402
        %v3408 = vrot.slane %v3407, 4
        %v3410 = vshll.u32 %v3218, 16
        %v3412 = vrot.slane %v3410, 5
        %v3413 = vsel %vm1059, %v3408, %v3412
        %v3415 = vshrl.u32 %v3219, 16
        %v3417 = vrot.slane %v3415, 4
        %v3418 = vshll.u32 %v3219, 16
        %v3420 = vrot.slane %v3418, 5
        %v3421 = vor.u32 %v3417, %v3420
        %v3422 = vrot.slane %v3421, 4
        %v3424 = vshll.u32 %v3220, 16
        %v3426 = vrot.slane %v3424, 5
        %v3427 = vsel %vm1059, %v3422, %v3426
        %v3428 = vshrl.u32 %v3220, 16
        %v3430 = vrot.slane %v3428, 4
        %v3431 = vor.u32 %v3430, %v3426
        %v3432 = vrot.slane %v3431, 4
        %v3434 = vshll.u32 %v3221, 16
        %v3436 = vrot.slane %v3434, 5
        %v3437 = vsel %vm1059, %v3432, %v3436
        %v3439 = vshrl.u32 %v3222, 16
        %v3441 = vrot.slane %v3439, 4
        %v3442 = vshll.u32 %v3222, 16
        %v3444 = vrot.slane %v3442, 5
        %v3445 = vor.u32 %v3441, %v3444
        %v3446 = vrot.slane %v3445, 4
        %v3448 = vshll.u32 %v3223, 16
        %v3450 = vrot.slane %v3448, 5
        %v3451 = vsel %vm1059, %v3446, %v3450
        %v3452 = vshrl.u32 %v3223, 16
        %v3454 = vrot.slane %v3452, 4
        %v3455 = vor.u32 %v3454, %v3450
        %v3456 = vrot.slane %v3455, 4
        %v3458 = vshll.u32 %v3224, 16
        %v3460 = vrot.slane %v3458, 5
        %v3461 = vsel %vm1059, %v3456, %v3460
        %v3463 = vshrl.u32 %v3225, 16
        %v3465 = vrot.slane %v3463, 4
        %v3466 = vshll.u32 %v3225, 16
        %v3468 = vrot.slane %v3466, 5
        %v3469 = vor.u32 %v3465, %v3468
        %v3470 = vrot.slane %v3469, 4
        %v3472 = vshll.u32 %v3226, 16
        %v3474 = vrot.slane %v3472, 5
        %v3475 = vsel %vm1059, %v3470, %v3474
        %v3476 = vshrl.u32 %v3226, 16
        %v3478 = vrot.slane %v3476, 4
        %v3479 = vor.u32 %v3478, %v3474
        %v3480 = vrot.slane %v3479, 4
        %v3482 = vshll.u32 %v3227, 16
        %v3484 = vrot.slane %v3482, 5
        %v3485 = vsel %vm1059, %v3480, %v3484
        %v3487 = vshrl.u32 %v3228, 16
        %v3489 = vrot.slane %v3487, 4
        %v3490 = vshll.u32 %v3228, 16
        %v3492 = vrot.slane %v3490, 5
        %v3493 = vor.u32 %v3489, %v3492
        %v3494 = vrot.slane %v3493, 4
        %v3496 = vshll.u32 %v3229, 16
        %v3498 = vrot.slane %v3496, 5
        %v3499 = vsel %vm1059, %v3494, %v3498
        %v3500 = vshrl.u32 %v3229, 16
        %v3502 = vrot.slane %v3500, 4
        %v3503 = vor.u32 %v3502, %v3498
        %v3504 = vrot.slane %v3503, 4
        %v3506 = vshll.u32 %v3230, 16
        %v3508 = vrot.slane %v3506, 5
        %v3509 = vsel %vm1059, %v3504, %v3508
        %v3511 = vshrl.u32 %v3231, 16
        %v3513 = vrot.slane %v3511, 4
        %v3514 = vshll.u32 %v3231, 16
        %v3516 = vrot.slane %v3514, 5
        %v3517 = vor.u32 %v3513, %v3516
        %v3518 = vrot.slane %v3517, 4
        %v3520 = vshll.u32 %v3232, 16
        %v3522 = vrot.slane %v3520, 5
        %v3523 = vsel %vm1059, %v3518, %v3522
        %v3524 = vshrl.u32 %v3232, 16
        %v3526 = vrot.slane %v3524, 4
        %v3527 = vor.u32 %v3526, %v3522
        %v3528 = vrot.slane %v3527, 4
        %v3530 = vshll.u32 %v3233, 16
        %v3532 = vrot.slane %v3530, 5
        %v3533 = vsel %vm1059, %v3528, %v3532
        %v3535 = vshrl.u32 %v3234, 16
        %v3537 = vrot.slane %v3535, 4
        %v3538 = vshll.u32 %v3234, 16
        %v3540 = vrot.slane %v3538, 5
        %v3541 = vor.u32 %v3537, %v3540
        %v3542 = vrot.slane %v3541, 4
        %v3544 = vshll.u32 %v3235, 16
        %v3546 = vrot.slane %v3544, 5
        %v3547 = vsel %vm1059, %v3542, %v3546
        %v3548 = vshrl.u32 %v3235, 16
        %v3550 = vrot.slane %v3548, 4
        %v3551 = vor.u32 %v3550, %v3546
        %v3552 = vrot.slane %v3551, 4
        %v3554 = vshll.u32 %v3236, 16
        %v3556 = vrot.slane %v3554, 5
        %v3557 = vsel %vm1059, %v3552, %v3556
        %v3559 = vshrl.u32 %v3237, 16
        %v3561 = vrot.slane %v3559, 4
        %v3562 = vshll.u32 %v3237, 16
        %v3564 = vrot.slane %v3562, 5
        %v3565 = vor.u32 %v3561, %v3564
        %v3566 = vrot.slane %v3565, 4
        %v3568 = vshll.u32 %v3238, 16
        %v3570 = vrot.slane %v3568, 5
        %v3571 = vsel %vm1059, %v3566, %v3570
        %v3572 = vshrl.u32 %v3238, 16
        %v3574 = vrot.slane %v3572, 4
        %v3575 = vor.u32 %v3574, %v3570
        %v3576 = vrot.slane %v3575, 4
        %v3578 = vshll.u32 %v3239, 16
        %v3580 = vrot.slane %v3578, 5
        %v3581 = vsel %vm1059, %v3576, %v3580
        %v3583 = vshrl.u32 %v3240, 16
        %v3585 = vrot.slane %v3583, 4
        %v3586 = vshll.u32 %v3240, 16
        %v3588 = vrot.slane %v3586, 5
        %v3589 = vor.u32 %v3585, %v3588
        %v3590 = vrot.slane %v3589, 4
        %v3592 = vshll.u32 %v3241, 16
        %v3594 = vrot.slane %v3592, 5
        %v3595 = vsel %vm1059, %v3590, %v3594
        %v3596 = vshrl.u32 %v3241, 16
        %v3598 = vrot.slane %v3596, 4
        %v3599 = vor.u32 %v3598, %v3594
        %v3600 = vrot.slane %v3599, 4
        %v3602 = vshll.u32 %v3242, 16
        %v3604 = vrot.slane %v3602, 5
        %v3605 = vsel %vm1059, %v3600, %v3604
        %v3607 = vshrl.u32 %v3243, 16
        %v3609 = vrot.slane %v3607, 4
        %v3610 = vshll.u32 %v3243, 16
        %v3612 = vrot.slane %v3610, 5
        %v3613 = vor.u32 %v3609, %v3612
        %v3614 = vrot.slane %v3613, 4
        %v3616 = vshll.u32 %v3244, 16
        %v3618 = vrot.slane %v3616, 5
        %v3619 = vsel %vm1059, %v3614, %v3618
        %v3620 = vshrl.u32 %v3244, 16
        %v3622 = vrot.slane %v3620, 4
        %v3623 = vor.u32 %v3622, %v3618
        %v3624 = vrot.slane %v3623, 4
        %v3626 = vshll.u32 %v3245, 16
        %v3628 = vrot.slane %v3626, 5
        %v3629 = vsel %vm1059, %v3624, %v3628
        %3630 = vrot.lane.b32.xlu0 %v3259, 28
        %v3631 = vpop.permute.xlu0 %3630
        %3632 = vrot.lane.b32.xlu0 %v3269, 28
        %v3633 = vpop.permute.xlu0 %3632
        %3634 = vrot.lane.b32.xlu0 %v3283, 28
        %v3635 = vpop.permute.xlu0 %3634
        %3636 = vrot.lane.b32.xlu0 %v3293, 28
        %v3637 = vpop.permute.xlu0 %3636
        %3638 = vrot.lane.b32.xlu0 %v3307, 28
        %v3639 = vpop.permute.xlu0 %3638
        %3640 = vrot.lane.b32.xlu0 %v3317, 28
        %v3641 = vpop.permute.xlu0 %3640
        %3642 = vrot.lane.b32.xlu0 %v3331, 28
        %v3643 = vpop.permute.xlu0 %3642
        %3644 = vrot.lane.b32.xlu0 %v3341, 28
        %v3645 = vpop.permute.xlu0 %3644
        %3646 = vrot.lane.b32.xlu0 %v3355, 28
        %v3647 = vpop.permute.xlu0 %3646
        %3648 = vrot.lane.b32.xlu0 %v3365, 28
        %v3649 = vpop.permute.xlu0 %3648
        %3650 = vrot.lane.b32.xlu0 %v3379, 28
        %v3651 = vpop.permute.xlu0 %3650
        %3652 = vrot.lane.b32.xlu0 %v3389, 28
        %v3653 = vpop.permute.xlu0 %3652
        %3654 = vrot.lane.b32.xlu0 %v3403, 28
        %v3655 = vpop.permute.xlu0 %3654
        %3656 = vrot.lane.b32.xlu0 %v3413, 28
        %v3657 = vpop.permute.xlu0 %3656
        %3658 = vrot.lane.b32.xlu0 %v3427, 28
        %v3659 = vpop.permute.xlu0 %3658
        %3660 = vrot.lane.b32.xlu0 %v3437, 28
        %v3661 = vpop.permute.xlu0 %3660
        %3662 = vrot.lane.b32.xlu0 %v3451, 28
        %v3663 = vpop.permute.xlu0 %3662
        %3664 = vrot.lane.b32.xlu0 %v3461, 28
        %v3665 = vpop.permute.xlu0 %3664
        %3666 = vrot.lane.b32.xlu0 %v3475, 28
        %v3667 = vpop.permute.xlu0 %3666
        %3668 = vrot.lane.b32.xlu0 %v3485, 28
        %v3669 = vpop.permute.xlu0 %3668
        %3670 = vrot.lane.b32.xlu0 %v3499, 28
        %v3671 = vpop.permute.xlu0 %3670
        %3672 = vrot.lane.b32.xlu0 %v3509, 28
        %v3673 = vpop.permute.xlu0 %3672
        %3674 = vrot.lane.b32.xlu0 %v3523, 28
        %v3675 = vpop.permute.xlu0 %3674
        %3676 = vrot.lane.b32.xlu0 %v3533, 28
        %v3677 = vpop.permute.xlu0 %3676
        %3678 = vrot.lane.b32.xlu0 %v3547, 28
        %v3679 = vpop.permute.xlu0 %3678
        %3680 = vrot.lane.b32.xlu0 %v3557, 28
        %v3681 = vpop.permute.xlu0 %3680
        %3682 = vrot.lane.b32.xlu0 %v3571, 28
        %v3683 = vpop.permute.xlu0 %3682
        %3684 = vrot.lane.b32.xlu0 %v3581, 28
        %v3685 = vpop.permute.xlu0 %3684
        %3686 = vrot.lane.b32.xlu0 %v3595, 28
        %v3687 = vpop.permute.xlu0 %3686
        %3688 = vrot.lane.b32.xlu0 %v3605, 28
        %v3689 = vpop.permute.xlu0 %3688
        %3690 = vrot.lane.b32.xlu0 %v3619, 28
        %v3691 = vpop.permute.xlu0 %3690
        %3692 = vrot.lane.b32.xlu0 %v3629, 28
        %v3693 = vpop.permute.xlu0 %3692
        %vm3726 = vcmask 257248
        %3727 = vst.msk [vmem:[#allocation3] sm:$0xf] %vm3726, %v3631
        %3728 = vst.msk [vmem:[#allocation3 + $0x4] sm:$0xf] %vm3726, %v3633
        %3729 = vst.msk [vmem:[#allocation3 + $0x8] sm:$0xf] %vm3726, %v3635
        %3730 = vst.msk [vmem:[#allocation3 + $0xc] sm:$0xf] %vm3726, %v3637
        %3731 = vst.msk [vmem:[#allocation3 + $0x10] sm:$0xf] %vm3726, %v3639
        %3732 = vst.msk [vmem:[#allocation3 + $0x14] sm:$0xf] %vm3726, %v3641
        %3733 = vst.msk [vmem:[#allocation3 + $0x18] sm:$0xf] %vm3726, %v3643
        %3734 = vst.msk [vmem:[#allocation3 + $0x1c] sm:$0xf] %vm3726, %v3645
        %3735 = vst.msk [vmem:[#allocation3 + $0x20] sm:$0xf] %vm3726, %v3647
        %3736 = vst.msk [vmem:[#allocation3 + $0x24] sm:$0xf] %vm3726, %v3649
        %3737 = vst.msk [vmem:[#allocation3 + $0x28] sm:$0xf] %vm3726, %v3651
        %3738 = vst.msk [vmem:[#allocation3 + $0x2c] sm:$0xf] %vm3726, %v3653
        %3739 = vst.msk [vmem:[#allocation3 + $0x30] sm:$0xf] %vm3726, %v3655
        %3740 = vst.msk [vmem:[#allocation3 + $0x34] sm:$0xf] %vm3726, %v3657
        %3741 = vst.msk [vmem:[#allocation3 + $0x38] sm:$0xf] %vm3726, %v3659
        %3742 = vst.msk [vmem:[#allocation3 + $0x3c] sm:$0xf] %vm3726, %v3661
        %3743 = vst.msk [vmem:[#allocation3 + $0x40] sm:$0xf] %vm3726, %v3663
        %3744 = vst.msk [vmem:[#allocation3 + $0x44] sm:$0xf] %vm3726, %v3665
        %3745 = vst.msk [vmem:[#allocation3 + $0x48] sm:$0xf] %vm3726, %v3667
        %3746 = vst.msk [vmem:[#allocation3 + $0x4c] sm:$0xf] %vm3726, %v3669
        %3747 = vst.msk [vmem:[#allocation3 + $0x50] sm:$0xf] %vm3726, %v3671
        %3748 = vst.msk [vmem:[#allocation3 + $0x54] sm:$0xf] %vm3726, %v3673
        %3749 = vst.msk [vmem:[#allocation3 + $0x58] sm:$0xf] %vm3726, %v3675
        %3750 = vst.msk [vmem:[#allocation3 + $0x5c] sm:$0xf] %vm3726, %v3677
        %3751 = vst.msk [vmem:[#allocation3 + $0x60] sm:$0xf] %vm3726, %v3679
        %3752 = vst.msk [vmem:[#allocation3 + $0x64] sm:$0xf] %vm3726, %v3681
        %3753 = vst.msk [vmem:[#allocation3 + $0x68] sm:$0xf] %vm3726, %v3683
        %3754 = vst.msk [vmem:[#allocation3 + $0x6c] sm:$0xf] %vm3726, %v3685
        %3755 = vst.msk [vmem:[#allocation3 + $0x70] sm:$0xf] %vm3726, %v3687
        %3756 = vst.msk [vmem:[#allocation3 + $0x74] sm:$0xf] %vm3726, %v3689
        %3757 = vst.msk [vmem:[#allocation3 + $0x78] sm:$0xf] %vm3726, %v3691
        %3758 = vst.msk [vmem:[#allocation3 + $0x7c] sm:$0xf] %vm3726, %v3693
        %v3759 = vld [vmem:[%s3004] sm:$0xe]
        %v3760 = vld [vmem:[%s3004 + $0x4] sm:$0xf]
        %v3761 = vld [vmem:[%s3004 + $0x8] sm:$0x1]
        %v3762 = vld [vmem:[%s3004 + $0xc] sm:$0xe]
        %v3763 = vld [vmem:[%s3004 + $0x10] sm:$0xf]
        %v3764 = vld [vmem:[%s3004 + $0x14] sm:$0x1]
        %v3765 = vld [vmem:[%s3004 + $0x18] sm:$0xe]
        %v3766 = vld [vmem:[%s3004 + $0x1c] sm:$0xf]
        %v3767 = vld [vmem:[%s3004 + $0x20] sm:$0x1]
        %v3768 = vld [vmem:[%s3004 + $0x24] sm:$0xe]
        %v3769 = vld [vmem:[%s3004 + $0x28] sm:$0xf]
        %v3770 = vld [vmem:[%s3004 + $0x2c] sm:$0x1]
        %v3771 = vld [vmem:[%s3004 + $0x30] sm:$0xe]
        %v3772 = vld [vmem:[%s3004 + $0x34] sm:$0xf]
        %v3773 = vld [vmem:[%s3004 + $0x38] sm:$0x1]
        %v3774 = vld [vmem:[%s3004 + $0x3c] sm:$0xe]
        %v3775 = vld [vmem:[%s3004 + $0x40] sm:$0xf]
        %v3776 = vld [vmem:[%s3004 + $0x44] sm:$0x1]
        %v3777 = vld [vmem:[%s3004 + $0x48] sm:$0xe]
        %v3778 = vld [vmem:[%s3004 + $0x4c] sm:$0xf]
        %v3779 = vld [vmem:[%s3004 + $0x50] sm:$0x1]
        %v3780 = vld [vmem:[%s3004 + $0x54] sm:$0xe]
        %v3781 = vld [vmem:[%s3004 + $0x58] sm:$0xf]
        %v3782 = vld [vmem:[%s3004 + $0x5c] sm:$0x1]
        %v3783 = vld [vmem:[%s3004 + $0x60] sm:$0xe]
        %v3784 = vld [vmem:[%s3004 + $0x64] sm:$0xf]
        %v3785 = vld [vmem:[%s3004 + $0x68] sm:$0x1]
        %v3786 = vld [vmem:[%s3004 + $0x6c] sm:$0xe]
        %v3787 = vld [vmem:[%s3004 + $0x70] sm:$0xf]
        %v3788 = vld [vmem:[%s3004 + $0x74] sm:$0x1]
        %v3789 = vld [vmem:[%s3004 + $0x78] sm:$0xe]
        %v3790 = vld [vmem:[%s3004 + $0x7c] sm:$0xf]
        %v3791 = vld [vmem:[%s3004 + $0x80] sm:$0x1]
        %v3792 = vld [vmem:[%s3004 + $0x84] sm:$0xe]
        %v3793 = vld [vmem:[%s3004 + $0x88] sm:$0xf]
        %v3794 = vld [vmem:[%s3004 + $0x8c] sm:$0x1]
        %v3795 = vld [vmem:[%s3004 + $0x90] sm:$0xe]
        %v3796 = vld [vmem:[%s3004 + $0x94] sm:$0xf]
        %v3797 = vld [vmem:[%s3004 + $0x98] sm:$0x1]
        %v3798 = vld [vmem:[%s3004 + $0x9c] sm:$0xe]
        %v3799 = vld [vmem:[%s3004 + $0xa0] sm:$0xf]
        %v3800 = vld [vmem:[%s3004 + $0xa4] sm:$0x1]
        %v3801 = vld [vmem:[%s3004 + $0xa8] sm:$0xe]
        %v3802 = vld [vmem:[%s3004 + $0xac] sm:$0xf]
        %v3803 = vld [vmem:[%s3004 + $0xb0] sm:$0x1]
        %v3804 = vld [vmem:[%s3004 + $0xb4] sm:$0xe]
        %v3805 = vld [vmem:[%s3004 + $0xb8] sm:$0xf]
        %v3806 = vld [vmem:[%s3004 + $0xbc] sm:$0x1]
        %v3855 = vrot.slane %v3759, 5
        %v3856 = vrot.slane %v3855, 4
        %v3857 = vrot.slane %v3760, 5
        %v3858 = vsel %vm1671, %v3856, %v3857
        %v3859 = vrot.slane %v3857, 4
        %v3860 = vrot.slane %v3761, 5
        %v3861 = vsel %vm1671, %v3859, %v3860
        %v3862 = vrot.slane %v3762, 5
        %v3863 = vrot.slane %v3862, 4
        %v3864 = vrot.slane %v3763, 5
        %v3865 = vsel %vm1671, %v3863, %v3864
        %v3866 = vrot.slane %v3864, 4
        %v3867 = vrot.slane %v3764, 5
        %v3868 = vsel %vm1671, %v3866, %v3867
        %v3869 = vrot.slane %v3765, 5
        %v3870 = vrot.slane %v3869, 4
        %v3871 = vrot.slane %v3766, 5
        %v3872 = vsel %vm1671, %v3870, %v3871
        %v3873 = vrot.slane %v3871, 4
        %v3874 = vrot.slane %v3767, 5
        %v3875 = vsel %vm1671, %v3873, %v3874
        %v3876 = vrot.slane %v3768, 5
        %v3877 = vrot.slane %v3876, 4
        %v3878 = vrot.slane %v3769, 5
        %v3879 = vsel %vm1671, %v3877, %v3878
        %v3880 = vrot.slane %v3878, 4
        %v3881 = vrot.slane %v3770, 5
        %v3882 = vsel %vm1671, %v3880, %v3881
        %v3883 = vrot.slane %v3771, 5
        %v3884 = vrot.slane %v3883, 4
        %v3885 = vrot.slane %v3772, 5
        %v3886 = vsel %vm1671, %v3884, %v3885
        %v3887 = vrot.slane %v3885, 4
        %v3888 = vrot.slane %v3773, 5
        %v3889 = vsel %vm1671, %v3887, %v3888
        %v3890 = vrot.slane %v3774, 5
        %v3891 = vrot.slane %v3890, 4
        %v3892 = vrot.slane %v3775, 5
        %v3893 = vsel %vm1671, %v3891, %v3892
        %v3894 = vrot.slane %v3892, 4
        %v3895 = vrot.slane %v3776, 5
        %v3896 = vsel %vm1671, %v3894, %v3895
        %v3897 = vrot.slane %v3777, 5
        %v3898 = vrot.slane %v3897, 4
        %v3899 = vrot.slane %v3778, 5
        %v3900 = vsel %vm1671, %v3898, %v3899
        %v3901 = vrot.slane %v3899, 4
        %v3902 = vrot.slane %v3779, 5
        %v3903 = vsel %vm1671, %v3901, %v3902
        %v3904 = vrot.slane %v3780, 5
        %v3905 = vrot.slane %v3904, 4
        %v3906 = vrot.slane %v3781, 5
        %v3907 = vsel %vm1671, %v3905, %v3906
        %v3908 = vrot.slane %v3906, 4
        %v3909 = vrot.slane %v3782, 5
        %v3910 = vsel %vm1671, %v3908, %v3909
        %v3911 = vrot.slane %v3783, 5
        %v3912 = vrot.slane %v3911, 4
        %v3913 = vrot.slane %v3784, 5
        %v3914 = vsel %vm1671, %v3912, %v3913
        %v3915 = vrot.slane %v3913, 4
        %v3916 = vrot.slane %v3785, 5
        %v3917 = vsel %vm1671, %v3915, %v3916
        %v3918 = vrot.slane %v3786, 5
        %v3919 = vrot.slane %v3918, 4
        %v3920 = vrot.slane %v3787, 5
        %v3921 = vsel %vm1671, %v3919, %v3920
        %v3922 = vrot.slane %v3920, 4
        %v3923 = vrot.slane %v3788, 5
        %v3924 = vsel %vm1671, %v3922, %v3923
        %v3925 = vrot.slane %v3789, 5
        %v3926 = vrot.slane %v3925, 4
        %v3927 = vrot.slane %v3790, 5
        %v3928 = vsel %vm1671, %v3926, %v3927
        %v3929 = vrot.slane %v3927, 4
        %v3930 = vrot.slane %v3791, 5
        %v3931 = vsel %vm1671, %v3929, %v3930
        %v3932 = vrot.slane %v3792, 5
        %v3933 = vrot.slane %v3932, 4
        %v3934 = vrot.slane %v3793, 5
        %v3935 = vsel %vm1671, %v3933, %v3934
        %v3936 = vrot.slane %v3934, 4
        %v3937 = vrot.slane %v3794, 5
        %v3938 = vsel %vm1671, %v3936, %v3937
        %v3939 = vrot.slane %v3795, 5
        %v3940 = vrot.slane %v3939, 4
        %v3941 = vrot.slane %v3796, 5
        %v3942 = vsel %vm1671, %v3940, %v3941
        %v3943 = vrot.slane %v3941, 4
        %v3944 = vrot.slane %v3797, 5
        %v3945 = vsel %vm1671, %v3943, %v3944
        %v3946 = vrot.slane %v3798, 5
        %v3947 = vrot.slane %v3946, 4
        %v3948 = vrot.slane %v3799, 5
        %v3949 = vsel %vm1671, %v3947, %v3948
        %v3950 = vrot.slane %v3948, 4
        %v3951 = vrot.slane %v3800, 5
        %v3952 = vsel %vm1671, %v3950, %v3951
        %v3953 = vrot.slane %v3801, 5
        %v3954 = vrot.slane %v3953, 4
        %v3955 = vrot.slane %v3802, 5
        %v3956 = vsel %vm1671, %v3954, %v3955
        %v3957 = vrot.slane %v3955, 4
        %v3958 = vrot.slane %v3803, 5
        %v3959 = vsel %vm1671, %v3957, %v3958
        %v3960 = vrot.slane %v3804, 5
        %v3961 = vrot.slane %v3960, 4
        %v3962 = vrot.slane %v3805, 5
        %v3963 = vsel %vm1671, %v3961, %v3962
        %v3964 = vrot.slane %v3962, 4
        %v3965 = vrot.slane %v3806, 5
        %v3966 = vsel %vm1671, %v3964, %v3965
        %3967 = vrot.lane.b32.xlu0 %v3858, 32
        %v3968 = vpop.permute.xlu0 %3967
        %3969 = vrot.lane.b32.xlu0 %v3861, 32
        %v3970 = vpop.permute.xlu0 %3969
        %3971 = vrot.lane.b32.xlu0 %v3865, 32
        %v3972 = vpop.permute.xlu0 %3971
        %3973 = vrot.lane.b32.xlu0 %v3868, 32
        %v3974 = vpop.permute.xlu0 %3973
        %3975 = vrot.lane.b32.xlu0 %v3872, 32
        %v3976 = vpop.permute.xlu0 %3975
        %3977 = vrot.lane.b32.xlu0 %v3875, 32
        %v3978 = vpop.permute.xlu0 %3977
        %3979 = vrot.lane.b32.xlu0 %v3879, 32
        %v3980 = vpop.permute.xlu0 %3979
        %3981 = vrot.lane.b32.xlu0 %v3882, 32
        %v3982 = vpop.permute.xlu0 %3981
        %3983 = vrot.lane.b32.xlu0 %v3886, 32
        %v3984 = vpop.permute.xlu0 %3983
        %3985 = vrot.lane.b32.xlu0 %v3889, 32
        %v3986 = vpop.permute.xlu0 %3985
        %3987 = vrot.lane.b32.xlu0 %v3893, 32
        %v3988 = vpop.permute.xlu0 %3987
        %3989 = vrot.lane.b32.xlu0 %v3896, 32
        %v3990 = vpop.permute.xlu0 %3989
        %3991 = vrot.lane.b32.xlu0 %v3900, 32
        %v3992 = vpop.permute.xlu0 %3991
        %3993 = vrot.lane.b32.xlu0 %v3903, 32
        %v3994 = vpop.permute.xlu0 %3993
        %3995 = vrot.lane.b32.xlu0 %v3907, 32
        %v3996 = vpop.permute.xlu0 %3995
        %3997 = vrot.lane.b32.xlu0 %v3910, 32
        %v3998 = vpop.permute.xlu0 %3997
        %3999 = vrot.lane.b32.xlu0 %v3914, 32
        %v4000 = vpop.permute.xlu0 %3999
        %4001 = vrot.lane.b32.xlu0 %v3917, 32
        %v4002 = vpop.permute.xlu0 %4001
        %4003 = vrot.lane.b32.xlu0 %v3921, 32
        %v4004 = vpop.permute.xlu0 %4003
        %4005 = vrot.lane.b32.xlu0 %v3924, 32
        %v4006 = vpop.permute.xlu0 %4005
        %4007 = vrot.lane.b32.xlu0 %v3928, 32
        %v4008 = vpop.permute.xlu0 %4007
        %4009 = vrot.lane.b32.xlu0 %v3931, 32
        %v4010 = vpop.permute.xlu0 %4009
        %4011 = vrot.lane.b32.xlu0 %v3935, 32
        %v4012 = vpop.permute.xlu0 %4011
        %4013 = vrot.lane.b32.xlu0 %v3938, 32
        %v4014 = vpop.permute.xlu0 %4013
        %4015 = vrot.lane.b32.xlu0 %v3942, 32
        %v4016 = vpop.permute.xlu0 %4015
        %4017 = vrot.lane.b32.xlu0 %v3945, 32
        %v4018 = vpop.permute.xlu0 %4017
        %4019 = vrot.lane.b32.xlu0 %v3949, 32
        %v4020 = vpop.permute.xlu0 %4019
        %4021 = vrot.lane.b32.xlu0 %v3952, 32
        %v4022 = vpop.permute.xlu0 %4021
        %4023 = vrot.lane.b32.xlu0 %v3956, 32
        %v4024 = vpop.permute.xlu0 %4023
        %4025 = vrot.lane.b32.xlu0 %v3959, 32
        %v4026 = vpop.permute.xlu0 %4025
        %4027 = vrot.lane.b32.xlu0 %v3963, 32
        %v4028 = vpop.permute.xlu0 %4027
        %4029 = vrot.lane.b32.xlu0 %v3966, 32
        %v4030 = vpop.permute.xlu0 %4029
        %vm4063 = vcmask 290048
        %4064 = vst.msk [vmem:[#allocation3] sm:$0xf] %vm4063, %v3968
        %4065 = vst.msk [vmem:[#allocation3 + $0x4] sm:$0xf] %vm4063, %v3970
        %4066 = vst.msk [vmem:[#allocation3 + $0x8] sm:$0xf] %vm4063, %v3972
        %4067 = vst.msk [vmem:[#allocation3 + $0xc] sm:$0xf] %vm4063, %v3974
        %4068 = vst.msk [vmem:[#allocation3 + $0x10] sm:$0xf] %vm4063, %v3976
        %4069 = vst.msk [vmem:[#allocation3 + $0x14] sm:$0xf] %vm4063, %v3978
        %4070 = vst.msk [vmem:[#allocation3 + $0x18] sm:$0xf] %vm4063, %v3980
        %4071 = vst.msk [vmem:[#allocation3 + $0x1c] sm:$0xf] %vm4063, %v3982
        %4072 = vst.msk [vmem:[#allocation3 + $0x20] sm:$0xf] %vm4063, %v3984
        %4073 = vst.msk [vmem:[#allocation3 + $0x24] sm:$0xf] %vm4063, %v3986
        %4074 = vst.msk [vmem:[#allocation3 + $0x28] sm:$0xf] %vm4063, %v3988
        %4075 = vst.msk [vmem:[#allocation3 + $0x2c] sm:$0xf] %vm4063, %v3990
        %4076 = vst.msk [vmem:[#allocation3 + $0x30] sm:$0xf] %vm4063, %v3992
        %4077 = vst.msk [vmem:[#allocation3 + $0x34] sm:$0xf] %vm4063, %v3994
        %4078 = vst.msk [vmem:[#allocation3 + $0x38] sm:$0xf] %vm4063, %v3996
        %4079 = vst.msk [vmem:[#allocation3 + $0x3c] sm:$0xf] %vm4063, %v3998
        %4080 = vst.msk [vmem:[#allocation3 + $0x40] sm:$0xf] %vm4063, %v4000
        %4081 = vst.msk [vmem:[#allocation3 + $0x44] sm:$0xf] %vm4063, %v4002
        %4082 = vst.msk [vmem:[#allocation3 + $0x48] sm:$0xf] %vm4063, %v4004
        %4083 = vst.msk [vmem:[#allocation3 + $0x4c] sm:$0xf] %vm4063, %v4006
        %4084 = vst.msk [vmem:[#allocation3 + $0x50] sm:$0xf] %vm4063, %v4008
        %4085 = vst.msk [vmem:[#allocation3 + $0x54] sm:$0xf] %vm4063, %v4010
        %4086 = vst.msk [vmem:[#allocation3 + $0x58] sm:$0xf] %vm4063, %v4012
        %4087 = vst.msk [vmem:[#allocation3 + $0x5c] sm:$0xf] %vm4063, %v4014
        %4088 = vst.msk [vmem:[#allocation3 + $0x60] sm:$0xf] %vm4063, %v4016
        %4089 = vst.msk [vmem:[#allocation3 + $0x64] sm:$0xf] %vm4063, %v4018
        %4090 = vst.msk [vmem:[#allocation3 + $0x68] sm:$0xf] %vm4063, %v4020
        %4091 = vst.msk [vmem:[#allocation3 + $0x6c] sm:$0xf] %vm4063, %v4022
        %4092 = vst.msk [vmem:[#allocation3 + $0x70] sm:$0xf] %vm4063, %v4024
        %4093 = vst.msk [vmem:[#allocation3 + $0x74] sm:$0xf] %vm4063, %v4026
        %4094 = vst.msk [vmem:[#allocation3 + $0x78] sm:$0xf] %vm4063, %v4028
        %4095 = vst.msk [vmem:[#allocation3 + $0x7c] sm:$0xf] %vm4063, %v4030
        %v4096 = vld [vmem:[#allocation3] sm:$0xf]
        %v4097 = vld [vmem:[#allocation3 + $0x4] sm:$0xf]
        %v4098 = vld [vmem:[#allocation3 + $0x8] sm:$0xf]
        %v4099 = vld [vmem:[#allocation3 + $0xc] sm:$0xf]
        %v4100 = vld [vmem:[#allocation3 + $0x10] sm:$0xf]
        %v4101 = vld [vmem:[#allocation3 + $0x14] sm:$0xf]
        %v4102 = vld [vmem:[#allocation3 + $0x18] sm:$0xf]
        %v4103 = vld [vmem:[#allocation3 + $0x1c] sm:$0xf]
        %v4104 = vld [vmem:[#allocation3 + $0x20] sm:$0xf]
        %v4105 = vld [vmem:[#allocation3 + $0x24] sm:$0xf]
        %v4106 = vld [vmem:[#allocation3 + $0x28] sm:$0xf]
        %v4107 = vld [vmem:[#allocation3 + $0x2c] sm:$0xf]
        %v4108 = vld [vmem:[#allocation3 + $0x30] sm:$0xf]
        %v4109 = vld [vmem:[#allocation3 + $0x34] sm:$0xf]
        %v4110 = vld [vmem:[#allocation3 + $0x38] sm:$0xf]
        %v4111 = vld [vmem:[#allocation3 + $0x3c] sm:$0xf]
        %v4112 = vld [vmem:[#allocation3 + $0x40] sm:$0xf]
        %v4113 = vld [vmem:[#allocation3 + $0x44] sm:$0xf]
        %v4114 = vld [vmem:[#allocation3 + $0x48] sm:$0xf]
        %v4115 = vld [vmem:[#allocation3 + $0x4c] sm:$0xf]
        %v4116 = vld [vmem:[#allocation3 + $0x50] sm:$0xf]
        %v4117 = vld [vmem:[#allocation3 + $0x54] sm:$0xf]
        %v4118 = vld [vmem:[#allocation3 + $0x58] sm:$0xf]
        %v4119 = vld [vmem:[#allocation3 + $0x5c] sm:$0xf]
        %v4120 = vld [vmem:[#allocation3 + $0x60] sm:$0xf]
        %v4121 = vld [vmem:[#allocation3 + $0x64] sm:$0xf]
        %v4122 = vld [vmem:[#allocation3 + $0x68] sm:$0xf]
        %v4123 = vld [vmem:[#allocation3 + $0x6c] sm:$0xf]
        %v4124 = vld [vmem:[#allocation3 + $0x70] sm:$0xf]
        %v4125 = vld [vmem:[#allocation3 + $0x74] sm:$0xf]
        %v4126 = vld [vmem:[#allocation3 + $0x78] sm:$0xf]
        %v4127 = vld [vmem:[#allocation3 + $0x7c] sm:$0xf]
        %v4128 = vld [vmem:[%s2] sm:$0xf]
        %v4129 = vld [vmem:[%s2 + $0x4] sm:$0xf]
        %v4130 = vld [vmem:[%s2 + $0x8] sm:$0xf]
        %v4131 = vld [vmem:[%s2 + $0xc] sm:$0xf]
        %v4132 = vld [vmem:[%s2 + $0x10] sm:$0x3]
        %v4133 = vld [vmem:[%s3] sm:$0x1]
        %v4135 = vperm.slane %v4133, 0
        %v4169 = vunpack.c.l.b16 %v4096
        %v4170 = vunpack.c.l.b16 %v4097
        %v4171 = vunpack.c.l.b16 %v4098
        %v4172 = vunpack.c.l.b16 %v4099
        %v4173 = vunpack.c.l.b16 %v4100
        %v4174 = vunpack.c.l.b16 %v4101
        %v4175 = vunpack.c.l.b16 %v4102
        %v4176 = vunpack.c.l.b16 %v4103
        %v4177 = vunpack.c.l.b16 %v4104
        %v4178 = vunpack.c.l.b16 %v4105
        %v4179 = vunpack.c.l.b16 %v4106
        %v4180 = vunpack.c.l.b16 %v4107
        %v4181 = vunpack.c.l.b16 %v4108
        %v4182 = vunpack.c.l.b16 %v4109
        %v4183 = vunpack.c.l.b16 %v4110
        %v4184 = vunpack.c.l.b16 %v4111
        %v4185 = vunpack.c.l.b16 %v4112
        %v4186 = vunpack.c.l.b16 %v4113
        %v4187 = vunpack.c.l.b16 %v4114
        %v4188 = vunpack.c.l.b16 %v4115
        %v4189 = vunpack.c.l.b16 %v4116
        %v4190 = vunpack.c.l.b16 %v4117
        %v4191 = vunpack.c.l.b16 %v4118
        %v4192 = vunpack.c.l.b16 %v4119
        %v4193 = vunpack.c.l.b16 %v4120
        %v4194 = vunpack.c.l.b16 %v4121
        %v4195 = vunpack.c.l.b16 %v4122
        %v4196 = vunpack.c.l.b16 %v4123
        %v4197 = vunpack.c.l.b16 %v4124
        %v4198 = vunpack.c.l.b16 %v4125
        %v4199 = vunpack.c.l.b16 %v4126
        %v4200 = vunpack.c.l.b16 %v4127
        %v4201 = vpack.c.b16 %v4170, %v4169
        %v4202 = vpack.c.b16 %v4172, %v4171
        %v4203 = vpack.c.b16 %v4174, %v4173
        %v4204 = vpack.c.b16 %v4176, %v4175
        %v4205 = vpack.c.b16 %v4178, %v4177
        %v4206 = vpack.c.b16 %v4180, %v4179
        %v4207 = vpack.c.b16 %v4182, %v4181
        %v4208 = vpack.c.b16 %v4184, %v4183
        %v4209 = vpack.c.b16 %v4186, %v4185
        %v4210 = vpack.c.b16 %v4188, %v4187
        %v4211 = vpack.c.b16 %v4190, %v4189
        %v4212 = vpack.c.b16 %v4192, %v4191
        %v4213 = vpack.c.b16 %v4194, %v4193
        %v4214 = vpack.c.b16 %v4196, %v4195
        %v4215 = vpack.c.b16 %v4198, %v4197
        %v4216 = vpack.c.b16 %v4200, %v4199
        %v4222 = vunpack.c.l.b16 %v4128
        %v4223 = vunpack.c.l.b16 %v4129
        %v4224 = vunpack.c.l.b16 %v4130
        %v4225 = vunpack.c.l.b16 %v4131
        %v4226 = vunpack.c.l.b16 %v4132
        %v4227 = vpack.c.b16 %v4223, %v4222
        %v4228 = vpack.c.b16 %v4225, %v4224
        %v4229 = vpack.c.b16 %v4226, %v4226
        %vm4232 = vcmask 293888
        %v4234 = vsel %vm4232, %v4201, 0
        %v4237 = vsel %vm4232, %v4202, 0
        %v4240 = vsel %vm4232, %v4203, 0
        %v4243 = vsel %vm4232, %v4204, 0
        %v4246 = vsel %vm4232, %v4205, 0
        %v4249 = vsel %vm4232, %v4206, 0
        %v4252 = vsel %vm4232, %v4207, 0
        %v4255 = vsel %vm4232, %v4208, 0
        %v4258 = vsel %vm4232, %v4209, 0
        %v4261 = vsel %vm4232, %v4210, 0
        %v4264 = vsel %vm4232, %v4211, 0
        %v4267 = vsel %vm4232, %v4212, 0
        %v4270 = vsel %vm4232, %v4213, 0
        %v4273 = vsel %vm4232, %v4214, 0
        %v4276 = vsel %vm4232, %v4215, 0
        %v4279 = vsel %vm4232, %v4216, 0
        %vm4281 = vcmask 1041408
        %v4283 = vsel %vm4281, %v4229, 0
        %4285 = vmatpush.bf16.msra.mxu0 0
        %4286 = vmatpush.bf16.msra.mxu0 0
        %4287 = vmatpush.bf16.msra.mxu0 0
        %4288 = vmatpush.bf16.msra.mxu0 0
        %4289 = vmatpush.bf16.msra.mxu0 0
        %4290 = vmatpush.bf16.msra.mxu0 %v4283
        %4291 = vmatpush.bf16.msra.mxu0 %v4228
        %4292 = vmatpush.bf16.msra.mxu0 %v4227
        %4293 = vmatmul.bf16.gmra.mxu0 %v4234
        %v4294 = vpop.f32.mrf.mxu0
        %v4295 = vadd.f32 %v4135, %v4294
        %v4296 = vpop.f32.mrf.mxu0
        %v4297 = vadd.f32 %v4135, %v4296
        %4298 = vmatmul.bf16.gmra.mxu0 %v4237
        %v4299 = vpop.f32.mrf.mxu0
        %v4300 = vadd.f32 %v4135, %v4299
        %v4301 = vpop.f32.mrf.mxu0
        %v4302 = vadd.f32 %v4135, %v4301
        %4303 = vmatmul.bf16.gmra.mxu0 %v4240
        %v4304 = vpop.f32.mrf.mxu0
        %v4305 = vadd.f32 %v4135, %v4304
        %v4306 = vpop.f32.mrf.mxu0
        %v4307 = vadd.f32 %v4135, %v4306
        %4308 = vmatmul.bf16.gmra.mxu0 %v4243
        %v4309 = vpop.f32.mrf.mxu0
        %v4310 = vadd.f32 %v4135, %v4309
        %v4311 = vpop.f32.mrf.mxu0
        %v4312 = vadd.f32 %v4135, %v4311
        %4313 = vmatmul.bf16.gmra.mxu0 %v4246
        %v4314 = vpop.f32.mrf.mxu0
        %v4315 = vadd.f32 %v4135, %v4314
        %v4316 = vpop.f32.mrf.mxu0
        %v4317 = vadd.f32 %v4135, %v4316
        %4318 = vmatmul.bf16.gmra.mxu0 %v4249
        %v4319 = vpop.f32.mrf.mxu0
        %v4320 = vadd.f32 %v4135, %v4319
        %v4321 = vpop.f32.mrf.mxu0
        %v4322 = vadd.f32 %v4135, %v4321
        %4323 = vmatmul.bf16.gmra.mxu0 %v4252
        %v4324 = vpop.f32.mrf.mxu0
        %v4325 = vadd.f32 %v4135, %v4324
        %v4326 = vpop.f32.mrf.mxu0
        %v4327 = vadd.f32 %v4135, %v4326
        %4328 = vmatmul.bf16.gmra.mxu0 %v4255
        %v4329 = vpop.f32.mrf.mxu0
        %v4330 = vadd.f32 %v4135, %v4329
        %v4331 = vpop.f32.mrf.mxu0
        %v4332 = vadd.f32 %v4135, %v4331
        %4333 = vmatmul.bf16.gmra.mxu0 %v4258
        %v4334 = vpop.f32.mrf.mxu0
        %v4335 = vadd.f32 %v4135, %v4334
        %v4336 = vpop.f32.mrf.mxu0
        %v4337 = vadd.f32 %v4135, %v4336
        %4338 = vmatmul.bf16.gmra.mxu0 %v4261
        %v4339 = vpop.f32.mrf.mxu0
        %v4340 = vadd.f32 %v4135, %v4339
        %v4341 = vpop.f32.mrf.mxu0
        %v4342 = vadd.f32 %v4135, %v4341
        %4343 = vmatmul.bf16.gmra.mxu0 %v4264
        %v4344 = vpop.f32.mrf.mxu0
        %v4345 = vadd.f32 %v4135, %v4344
        %v4346 = vpop.f32.mrf.mxu0
        %v4347 = vadd.f32 %v4135, %v4346
        %4348 = vmatmul.bf16.gmra.mxu0 %v4267
        %v4349 = vpop.f32.mrf.mxu0
        %v4350 = vadd.f32 %v4135, %v4349
        %v4351 = vpop.f32.mrf.mxu0
        %v4352 = vadd.f32 %v4135, %v4351
        %4353 = vmatmul.bf16.gmra.mxu0 %v4270
        %v4354 = vpop.f32.mrf.mxu0
        %v4355 = vadd.f32 %v4135, %v4354
        %v4356 = vpop.f32.mrf.mxu0
        %v4357 = vadd.f32 %v4135, %v4356
        %4358 = vmatmul.bf16.gmra.mxu0 %v4273
        %v4359 = vpop.f32.mrf.mxu0
        %v4360 = vadd.f32 %v4135, %v4359
        %v4361 = vpop.f32.mrf.mxu0
        %v4362 = vadd.f32 %v4135, %v4361
        %4363 = vmatmul.bf16.gmra.mxu0 %v4276
        %v4364 = vpop.f32.mrf.mxu0
        %v4365 = vadd.f32 %v4135, %v4364
        %v4366 = vpop.f32.mrf.mxu0
        %v4367 = vadd.f32 %v4135, %v4366
        %4368 = vmatmul.bf16.gmra.mxu0 %v4279
        %v4369 = vpop.f32.mrf.mxu0
        %v4370 = vadd.f32 %v4135, %v4369
        %v4371 = vpop.f32.mrf.mxu0
        %v4372 = vadd.f32 %v4135, %v4371
        %4373 = vdwg.mxu0
        %vm4374 = vcmp.ge.f32.partialorder %v4295, 1.0
        %vm4375 = vcmp.ge.f32.partialorder %v4297, 1.0
        %vm4376 = vcmp.ge.f32.partialorder %v4300, 1.0
        %vm4377 = vcmp.ge.f32.partialorder %v4302, 1.0
        %vm4378 = vcmp.ge.f32.partialorder %v4305, 1.0
        %vm4379 = vcmp.ge.f32.partialorder %v4307, 1.0
        %vm4380 = vcmp.ge.f32.partialorder %v4310, 1.0
        %vm4381 = vcmp.ge.f32.partialorder %v4312, 1.0
        %vm4382 = vcmp.ge.f32.partialorder %v4315, 1.0
        %vm4383 = vcmp.ge.f32.partialorder %v4317, 1.0
        %vm4384 = vcmp.ge.f32.partialorder %v4320, 1.0
        %vm4385 = vcmp.ge.f32.partialorder %v4322, 1.0
        %vm4386 = vcmp.ge.f32.partialorder %v4325, 1.0
        %vm4387 = vcmp.ge.f32.partialorder %v4327, 1.0
        %vm4388 = vcmp.ge.f32.partialorder %v4330, 1.0
        %vm4389 = vcmp.ge.f32.partialorder %v4332, 1.0
        %vm4390 = vcmp.ge.f32.partialorder %v4335, 1.0
        %vm4391 = vcmp.ge.f32.partialorder %v4337, 1.0
        %vm4392 = vcmp.ge.f32.partialorder %v4340, 1.0
        %vm4393 = vcmp.ge.f32.partialorder %v4342, 1.0
        %vm4394 = vcmp.ge.f32.partialorder %v4345, 1.0
        %vm4395 = vcmp.ge.f32.partialorder %v4347, 1.0
        %vm4396 = vcmp.ge.f32.partialorder %v4350, 1.0
        %vm4397 = vcmp.ge.f32.partialorder %v4352, 1.0
        %vm4398 = vcmp.ge.f32.partialorder %v4355, 1.0
        %vm4399 = vcmp.ge.f32.partialorder %v4357, 1.0
        %vm4400 = vcmp.ge.f32.partialorder %v4360, 1.0
        %vm4401 = vcmp.ge.f32.partialorder %v4362, 1.0
        %vm4402 = vcmp.ge.f32.partialorder %v4365, 1.0
        %vm4403 = vcmp.ge.f32.partialorder %v4367, 1.0
        %vm4404 = vcmp.ge.f32.partialorder %v4370, 1.0
        %vm4405 = vcmp.ge.f32.partialorder %v4372, 1.0
        %v4406 = vsel %vm4374, 1.0, 0.0
        %v4407 = vsel %vm4375, 1.0, 0.0
        %v4408 = vsel %vm4376, 1.0, 0.0
        %v4409 = vsel %vm4377, 1.0, 0.0
        %v4410 = vsel %vm4378, 1.0, 0.0
        %v4411 = vsel %vm4379, 1.0, 0.0
        %v4412 = vsel %vm4380, 1.0, 0.0
        %v4413 = vsel %vm4381, 1.0, 0.0
        %v4414 = vsel %vm4382, 1.0, 0.0
        %v4415 = vsel %vm4383, 1.0, 0.0
        %v4416 = vsel %vm4384, 1.0, 0.0
        %v4417 = vsel %vm4385, 1.0, 0.0
        %v4418 = vsel %vm4386, 1.0, 0.0
        %v4419 = vsel %vm4387, 1.0, 0.0
        %v4420 = vsel %vm4388, 1.0, 0.0
        %v4421 = vsel %vm4389, 1.0, 0.0
        %v4422 = vsel %vm4390, 1.0, 0.0
        %v4423 = vsel %vm4391, 1.0, 0.0
        %v4424 = vsel %vm4392, 1.0, 0.0
        %v4425 = vsel %vm4393, 1.0, 0.0
        %v4426 = vsel %vm4394, 1.0, 0.0
        %v4427 = vsel %vm4395, 1.0, 0.0
        %v4428 = vsel %vm4396, 1.0, 0.0
        %v4429 = vsel %vm4397, 1.0, 0.0
        %v4430 = vsel %vm4398, 1.0, 0.0
        %v4431 = vsel %vm4399, 1.0, 0.0
        %v4432 = vsel %vm4400, 1.0, 0.0
        %v4433 = vsel %vm4401, 1.0, 0.0
        %v4434 = vsel %vm4402, 1.0, 0.0
        %v4435 = vsel %vm4403, 1.0, 0.0
        %v4436 = vsel %vm4404, 1.0, 0.0
        %v4437 = vsel %vm4405, 1.0, 0.0
        %v4438 = vpack.c.bf16 %v4406, %v4406
        %v4439 = vpack.c.bf16 %v4407, %v4407
        %v4440 = vpack.c.bf16 %v4408, %v4408
        %v4441 = vpack.c.bf16 %v4409, %v4409
        %v4442 = vpack.c.bf16 %v4410, %v4410
        %v4443 = vpack.c.bf16 %v4411, %v4411
        %v4444 = vpack.c.bf16 %v4412, %v4412
        %v4445 = vpack.c.bf16 %v4413, %v4413
        %v4446 = vpack.c.bf16 %v4414, %v4414
        %v4447 = vpack.c.bf16 %v4415, %v4415
        %v4448 = vpack.c.bf16 %v4416, %v4416
        %v4449 = vpack.c.bf16 %v4417, %v4417
        %v4450 = vpack.c.bf16 %v4418, %v4418
        %v4451 = vpack.c.bf16 %v4419, %v4419
        %v4452 = vpack.c.bf16 %v4420, %v4420
        %v4453 = vpack.c.bf16 %v4421, %v4421
        %v4454 = vpack.c.bf16 %v4422, %v4422
        %v4455 = vpack.c.bf16 %v4423, %v4423
        %v4456 = vpack.c.bf16 %v4424, %v4424
        %v4457 = vpack.c.bf16 %v4425, %v4425
        %v4458 = vpack.c.bf16 %v4426, %v4426
        %v4459 = vpack.c.bf16 %v4427, %v4427
        %v4460 = vpack.c.bf16 %v4428, %v4428
        %v4461 = vpack.c.bf16 %v4429, %v4429
        %v4462 = vpack.c.bf16 %v4430, %v4430
        %v4463 = vpack.c.bf16 %v4431, %v4431
        %v4464 = vpack.c.bf16 %v4432, %v4432
        %v4465 = vpack.c.bf16 %v4433, %v4433
        %v4466 = vpack.c.bf16 %v4434, %v4434
        %v4467 = vpack.c.bf16 %v4435, %v4435
        %v4468 = vpack.c.bf16 %v4436, %v4436
        %v4469 = vpack.c.bf16 %v4437, %v4437
        %v4471 = vshrl.u32 %v4438, 16
        %v4473 = vrot.slane %v4471, 7
        %v4474 = vshll.u32 %v4438, 16
        %v4476 = vor.u32 %v4473, %v4474
        %v4477 = vrot.slane %v4473, 4
        %v4479 = vshrl.u32 %v4439, 16
        %v4481 = vrot.slane %v4479, 7
        %v4482 = vshll.u32 %v4439, 16
        %v4484 = vor.u32 %v4481, %v4482
        %v4485 = vsel %vm510, %v4477, %v4484
        %v4486 = vrot.slane %v4481, 4
        %v4488 = vshrl.u32 %v4440, 16
        %v4490 = vrot.slane %v4488, 7
        %v4491 = vshll.u32 %v4440, 16
        %v4493 = vor.u32 %v4490, %v4491
        %v4494 = vrot.slane %v4490, 4
        %v4496 = vshrl.u32 %v4441, 16
        %v4498 = vrot.slane %v4496, 7
        %v4499 = vshll.u32 %v4441, 16
        %v4501 = vor.u32 %v4498, %v4499
        %v4502 = vsel %vm510, %v4494, %v4501
        %v4503 = vrot.slane %v4498, 4
        %v4505 = vshrl.u32 %v4442, 16
        %v4507 = vrot.slane %v4505, 7
        %v4508 = vshll.u32 %v4442, 16
        %v4510 = vor.u32 %v4507, %v4508
        %v4511 = vrot.slane %v4507, 4
        %v4513 = vshrl.u32 %v4443, 16
        %v4515 = vrot.slane %v4513, 7
        %v4516 = vshll.u32 %v4443, 16
        %v4518 = vor.u32 %v4515, %v4516
        %v4519 = vsel %vm510, %v4511, %v4518
        %v4520 = vrot.slane %v4515, 4
        %v4522 = vshrl.u32 %v4444, 16
        %v4524 = vrot.slane %v4522, 7
        %v4525 = vshll.u32 %v4444, 16
        %v4527 = vor.u32 %v4524, %v4525
        %v4528 = vrot.slane %v4524, 4
        %v4530 = vshrl.u32 %v4445, 16
        %v4532 = vrot.slane %v4530, 7
        %v4533 = vshll.u32 %v4445, 16
        %v4535 = vor.u32 %v4532, %v4533
        %v4536 = vsel %vm510, %v4528, %v4535
        %v4537 = vrot.slane %v4532, 4
        %v4539 = vshrl.u32 %v4446, 16
        %v4541 = vrot.slane %v4539, 7
        %v4542 = vshll.u32 %v4446, 16
        %v4544 = vor.u32 %v4541, %v4542
        %v4545 = vrot.slane %v4541, 4
        %v4547 = vshrl.u32 %v4447, 16
        %v4549 = vrot.slane %v4547, 7
        %v4550 = vshll.u32 %v4447, 16
        %v4552 = vor.u32 %v4549, %v4550
        %v4553 = vsel %vm510, %v4545, %v4552
        %v4554 = vrot.slane %v4549, 4
        %v4556 = vshrl.u32 %v4448, 16
        %v4558 = vrot.slane %v4556, 7
        %v4559 = vshll.u32 %v4448, 16
        %v4561 = vor.u32 %v4558, %v4559
        %v4562 = vrot.slane %v4558, 4
        %v4564 = vshrl.u32 %v4449, 16
        %v4566 = vrot.slane %v4564, 7
        %v4567 = vshll.u32 %v4449, 16
        %v4569 = vor.u32 %v4566, %v4567
        %v4570 = vsel %vm510, %v4562, %v4569
        %v4571 = vrot.slane %v4566, 4
        %v4573 = vshrl.u32 %v4450, 16
        %v4575 = vrot.slane %v4573, 7
        %v4576 = vshll.u32 %v4450, 16
        %v4578 = vor.u32 %v4575, %v4576
        %v4579 = vrot.slane %v4575, 4
        %v4581 = vshrl.u32 %v4451, 16
        %v4583 = vrot.slane %v4581, 7
        %v4584 = vshll.u32 %v4451, 16
        %v4586 = vor.u32 %v4583, %v4584
        %v4587 = vsel %vm510, %v4579, %v4586
        %v4588 = vrot.slane %v4583, 4
        %v4590 = vshrl.u32 %v4452, 16
        %v4592 = vrot.slane %v4590, 7
        %v4593 = vshll.u32 %v4452, 16
        %v4595 = vor.u32 %v4592, %v4593
        %v4596 = vrot.slane %v4592, 4
        %v4598 = vshrl.u32 %v4453, 16
        %v4600 = vrot.slane %v4598, 7
        %v4601 = vshll.u32 %v4453, 16
        %v4603 = vor.u32 %v4600, %v4601
        %v4604 = vsel %vm510, %v4596, %v4603
        %v4605 = vrot.slane %v4600, 4
        %v4607 = vshrl.u32 %v4454, 16
        %v4609 = vrot.slane %v4607, 7
        %v4610 = vshll.u32 %v4454, 16
        %v4612 = vor.u32 %v4609, %v4610
        %v4613 = vrot.slane %v4609, 4
        %v4615 = vshrl.u32 %v4455, 16
        %v4617 = vrot.slane %v4615, 7
        %v4618 = vshll.u32 %v4455, 16
        %v4620 = vor.u32 %v4617, %v4618
        %v4621 = vsel %vm510, %v4613, %v4620
        %v4622 = vrot.slane %v4617, 4
        %v4624 = vshrl.u32 %v4456, 16
        %v4626 = vrot.slane %v4624, 7
        %v4627 = vshll.u32 %v4456, 16
        %v4629 = vor.u32 %v4626, %v4627
        %v4630 = vrot.slane %v4626, 4
        %v4632 = vshrl.u32 %v4457, 16
        %v4634 = vrot.slane %v4632, 7
        %v4635 = vshll.u32 %v4457, 16
        %v4637 = vor.u32 %v4634, %v4635
        %v4638 = vsel %vm510, %v4630, %v4637
        %v4639 = vrot.slane %v4634, 4
        %v4641 = vshrl.u32 %v4458, 16
        %v4643 = vrot.slane %v4641, 7
        %v4644 = vshll.u32 %v4458, 16
        %v4646 = vor.u32 %v4643, %v4644
        %v4647 = vrot.slane %v4643, 4
        %v4649 = vshrl.u32 %v4459, 16
        %v4651 = vrot.slane %v4649, 7
        %v4652 = vshll.u32 %v4459, 16
        %v4654 = vor.u32 %v4651, %v4652
        %v4655 = vsel %vm510, %v4647, %v4654
        %v4656 = vrot.slane %v4651, 4
        %v4658 = vshrl.u32 %v4460, 16
        %v4660 = vrot.slane %v4658, 7
        %v4661 = vshll.u32 %v4460, 16
        %v4663 = vor.u32 %v4660, %v4661
        %v4664 = vrot.slane %v4660, 4
        %v4666 = vshrl.u32 %v4461, 16
        %v4668 = vrot.slane %v4666, 7
        %v4669 = vshll.u32 %v4461, 16
        %v4671 = vor.u32 %v4668, %v4669
        %v4672 = vsel %vm510, %v4664, %v4671
        %v4673 = vrot.slane %v4668, 4
        %v4675 = vshrl.u32 %v4462, 16
        %v4677 = vrot.slane %v4675, 7
        %v4678 = vshll.u32 %v4462, 16
        %v4680 = vor.u32 %v4677, %v4678
        %v4681 = vrot.slane %v4677, 4
        %v4683 = vshrl.u32 %v4463, 16
        %v4685 = vrot.slane %v4683, 7
        %v4686 = vshll.u32 %v4463, 16
        %v4688 = vor.u32 %v4685, %v4686
        %v4689 = vsel %vm510, %v4681, %v4688
        %v4690 = vrot.slane %v4685, 4
        %v4692 = vshrl.u32 %v4464, 16
        %v4694 = vrot.slane %v4692, 7
        %v4695 = vshll.u32 %v4464, 16
        %v4697 = vor.u32 %v4694, %v4695
        %v4698 = vrot.slane %v4694, 4
        %v4700 = vshrl.u32 %v4465, 16
        %v4702 = vrot.slane %v4700, 7
        %v4703 = vshll.u32 %v4465, 16
        %v4705 = vor.u32 %v4702, %v4703
        %v4706 = vsel %vm510, %v4698, %v4705
        %v4707 = vrot.slane %v4702, 4
        %v4709 = vshrl.u32 %v4466, 16
        %v4711 = vrot.slane %v4709, 7
        %v4712 = vshll.u32 %v4466, 16
        %v4714 = vor.u32 %v4711, %v4712
        %v4715 = vrot.slane %v4711, 4
        %v4717 = vshrl.u32 %v4467, 16
        %v4719 = vrot.slane %v4717, 7
        %v4720 = vshll.u32 %v4467, 16
        %v4722 = vor.u32 %v4719, %v4720
        %v4723 = vsel %vm510, %v4715, %v4722
        %v4724 = vrot.slane %v4719, 4
        %v4726 = vshrl.u32 %v4468, 16
        %v4728 = vrot.slane %v4726, 7
        %v4729 = vshll.u32 %v4468, 16
        %v4731 = vor.u32 %v4728, %v4729
        %v4732 = vrot.slane %v4728, 4
        %v4734 = vshrl.u32 %v4469, 16
        %v4736 = vrot.slane %v4734, 7
        %v4737 = vshll.u32 %v4469, 16
        %v4739 = vor.u32 %v4736, %v4737
        %v4740 = vsel %vm510, %v4732, %v4739
        %v4741 = vrot.slane %v4736, 4
        %v4790 = vld [vmem:[%s310] sm:$0xf]
        %v4791 = vsel %vm832, %v4476, %v4790
        %4792 = vst [vmem:[%s310] sm:$0xf] %v4791
        %4793 = vst.msk [vmem:[%s310 + $0x4] sm:$0xf] %vm301, %v4485
        %v4794 = vld [vmem:[%s310 + $0x8] sm:$0x1]
        %v4795 = vsel %vm313, %v4486, %v4794
        %4796 = vst [vmem:[%s310 + $0x8] sm:$0x1] %v4795
        %v4797 = vld [vmem:[%s310 + $0xc] sm:$0xf]
        %v4798 = vsel %vm832, %v4493, %v4797
        %4799 = vst [vmem:[%s310 + $0xc] sm:$0xf] %v4798
        %4800 = vst.msk [vmem:[%s310 + $0x10] sm:$0xf] %vm301, %v4502
        %v4801 = vld [vmem:[%s310 + $0x14] sm:$0x1]
        %v4802 = vsel %vm313, %v4503, %v4801
        %4803 = vst [vmem:[%s310 + $0x14] sm:$0x1] %v4802
        %v4804 = vld [vmem:[%s310 + $0x18] sm:$0xf]
        %v4805 = vsel %vm832, %v4510, %v4804
        %4806 = vst [vmem:[%s310 + $0x18] sm:$0xf] %v4805
        %4807 = vst.msk [vmem:[%s310 + $0x1c] sm:$0xf] %vm301, %v4519
        %v4808 = vld [vmem:[%s310 + $0x20] sm:$0x1]
        %v4809 = vsel %vm313, %v4520, %v4808
        %4810 = vst [vmem:[%s310 + $0x20] sm:$0x1] %v4809
        %v4811 = vld [vmem:[%s310 + $0x24] sm:$0xf]
        %v4812 = vsel %vm832, %v4527, %v4811
        %4813 = vst [vmem:[%s310 + $0x24] sm:$0xf] %v4812
        %4814 = vst.msk [vmem:[%s310 + $0x28] sm:$0xf] %vm301, %v4536
        %v4815 = vld [vmem:[%s310 + $0x2c] sm:$0x1]
        %v4816 = vsel %vm313, %v4537, %v4815
        %4817 = vst [vmem:[%s310 + $0x2c] sm:$0x1] %v4816
        %v4818 = vld [vmem:[%s310 + $0x30] sm:$0xf]
        %v4819 = vsel %vm832, %v4544, %v4818
        %4820 = vst [vmem:[%s310 + $0x30] sm:$0xf] %v4819
        %4821 = vst.msk [vmem:[%s310 + $0x34] sm:$0xf] %vm301, %v4553
        %v4822 = vld [vmem:[%s310 + $0x38] sm:$0x1]
        %v4823 = vsel %vm313, %v4554, %v4822
        %4824 = vst [vmem:[%s310 + $0x38] sm:$0x1] %v4823
        %v4825 = vld [vmem:[%s310 + $0x3c] sm:$0xf]
        %v4826 = vsel %vm832, %v4561, %v4825
        %4827 = vst [vmem:[%s310 + $0x3c] sm:$0xf] %v4826
        %4828 = vst.msk [vmem:[%s310 + $0x40] sm:$0xf] %vm301, %v4570
        %v4829 = vld [vmem:[%s310 + $0x44] sm:$0x1]
        %v4830 = vsel %vm313, %v4571, %v4829
        %4831 = vst [vmem:[%s310 + $0x44] sm:$0x1] %v4830
        %v4832 = vld [vmem:[%s310 + $0x48] sm:$0xf]
        %v4833 = vsel %vm832, %v4578, %v4832
        %4834 = vst [vmem:[%s310 + $0x48] sm:$0xf] %v4833
        %4835 = vst.msk [vmem:[%s310 + $0x4c] sm:$0xf] %vm301, %v4587
        %v4836 = vld [vmem:[%s310 + $0x50] sm:$0x1]
        %v4837 = vsel %vm313, %v4588, %v4836
        %4838 = vst [vmem:[%s310 + $0x50] sm:$0x1] %v4837
        %v4839 = vld [vmem:[%s310 + $0x54] sm:$0xf]
        %v4840 = vsel %vm832, %v4595, %v4839
        %4841 = vst [vmem:[%s310 + $0x54] sm:$0xf] %v4840
        %4842 = vst.msk [vmem:[%s310 + $0x58] sm:$0xf] %vm301, %v4604
        %v4843 = vld [vmem:[%s310 + $0x5c] sm:$0x1]
        %v4844 = vsel %vm313, %v4605, %v4843
        %4845 = vst [vmem:[%s310 + $0x5c] sm:$0x1] %v4844
        %v4846 = vld [vmem:[%s310 + $0x60] sm:$0xf]
        %v4847 = vsel %vm832, %v4612, %v4846
        %4848 = vst [vmem:[%s310 + $0x60] sm:$0xf] %v4847
        %4849 = vst.msk [vmem:[%s310 + $0x64] sm:$0xf] %vm301, %v4621
        %v4850 = vld [vmem:[%s310 + $0x68] sm:$0x1]
        %v4851 = vsel %vm313, %v4622, %v4850
        %4852 = vst [vmem:[%s310 + $0x68] sm:$0x1] %v4851
        %v4853 = vld [vmem:[%s310 + $0x6c] sm:$0xf]
        %v4854 = vsel %vm832, %v4629, %v4853
        %4855 = vst [vmem:[%s310 + $0x6c] sm:$0xf] %v4854
        %4856 = vst.msk [vmem:[%s310 + $0x70] sm:$0xf] %vm301, %v4638
        %v4857 = vld [vmem:[%s310 + $0x74] sm:$0x1]
        %v4858 = vsel %vm313, %v4639, %v4857
        %4859 = vst [vmem:[%s310 + $0x74] sm:$0x1] %v4858
        %v4860 = vld [vmem:[%s310 + $0x78] sm:$0xf]
        %v4861 = vsel %vm832, %v4646, %v4860
        %4862 = vst [vmem:[%s310 + $0x78] sm:$0xf] %v4861
        %4863 = vst.msk [vmem:[%s310 + $0x7c] sm:$0xf] %vm301, %v4655
        %v4864 = vld [vmem:[%s310 + $0x80] sm:$0x1]
        %v4865 = vsel %vm313, %v4656, %v4864
        %4866 = vst [vmem:[%s310 + $0x80] sm:$0x1] %v4865
        %v4867 = vld [vmem:[%s310 + $0x84] sm:$0xf]
        %v4868 = vsel %vm832, %v4663, %v4867
        %4869 = vst [vmem:[%s310 + $0x84] sm:$0xf] %v4868
        %4870 = vst.msk [vmem:[%s310 + $0x88] sm:$0xf] %vm301, %v4672
        %v4871 = vld [vmem:[%s310 + $0x8c] sm:$0x1]
        %v4872 = vsel %vm313, %v4673, %v4871
        %4873 = vst [vmem:[%s310 + $0x8c] sm:$0x1] %v4872
        %v4874 = vld [vmem:[%s310 + $0x90] sm:$0xf]
        %v4875 = vsel %vm832, %v4680, %v4874
        %4876 = vst [vmem:[%s310 + $0x90] sm:$0xf] %v4875
        %4877 = vst.msk [vmem:[%s310 + $0x94] sm:$0xf] %vm301, %v4689
        %v4878 = vld [vmem:[%s310 + $0x98] sm:$0x1]
        %v4879 = vsel %vm313, %v4690, %v4878
        %4880 = vst [vmem:[%s310 + $0x98] sm:$0x1] %v4879
        %v4881 = vld [vmem:[%s310 + $0x9c] sm:$0xf]
        %v4882 = vsel %vm832, %v4697, %v4881
        %4883 = vst [vmem:[%s310 + $0x9c] sm:$0xf] %v4882
        %4884 = vst.msk [vmem:[%s310 + $0xa0] sm:$0xf] %vm301, %v4706
        %v4885 = vld [vmem:[%s310 + $0xa4] sm:$0x1]
        %v4886 = vsel %vm313, %v4707, %v4885
        %4887 = vst [vmem:[%s310 + $0xa4] sm:$0x1] %v4886
        %v4888 = vld [vmem:[%s310 + $0xa8] sm:$0xf]
        %v4889 = vsel %vm832, %v4714, %v4888
        %4890 = vst [vmem:[%s310 + $0xa8] sm:$0xf] %v4889
        %4891 = vst.msk [vmem:[%s310 + $0xac] sm:$0xf] %vm301, %v4723
        %v4892 = vld [vmem:[%s310 + $0xb0] sm:$0x1]
        %v4893 = vsel %vm313, %v4724, %v4892
        %4894 = vst [vmem:[%s310 + $0xb0] sm:$0x1] %v4893
        %v4895 = vld [vmem:[%s310 + $0xb4] sm:$0xf]
        %v4896 = vsel %vm832, %v4731, %v4895
        %4897 = vst [vmem:[%s310 + $0xb4] sm:$0xf] %v4896
        %4898 = vst.msk [vmem:[%s310 + $0xb8] sm:$0xf] %vm301, %v4740
        %v4899 = vld [vmem:[%s310 + $0xbc] sm:$0x1]
        %v4900 = vsel %vm313, %v4741, %v4899
        %4901 = vst [vmem:[%s310 + $0xbc] sm:$0x1] %v4900
        %v4902 = vld [vmem:[#allocation2] sm:$0xf]
        %v4903 = vld [vmem:[#allocation2 + $0x4] sm:$0xf]
        %v4904 = vld [vmem:[#allocation2 + $0xc] sm:$0xf]
        %v4905 = vld [vmem:[#allocation2 + $0x10] sm:$0xf]
        %v4906 = vld [vmem:[#allocation2 + $0x18] sm:$0xf]
        %v4907 = vld [vmem:[#allocation2 + $0x1c] sm:$0xf]
        %v4908 = vld [vmem:[#allocation2 + $0x24] sm:$0xf]
        %v4909 = vld [vmem:[#allocation2 + $0x28] sm:$0xf]
        %v4910 = vld [vmem:[#allocation2 + $0x30] sm:$0xf]
        %v4911 = vld [vmem:[#allocation2 + $0x34] sm:$0xf]
        %v4912 = vld [vmem:[#allocation2 + $0x3c] sm:$0xf]
        %v4913 = vld [vmem:[#allocation2 + $0x40] sm:$0xf]
        %v4914 = vld [vmem:[#allocation2 + $0x48] sm:$0xf]
        %v4915 = vld [vmem:[#allocation2 + $0x4c] sm:$0xf]
        %v4916 = vld [vmem:[#allocation2 + $0x54] sm:$0xf]
        %v4917 = vld [vmem:[#allocation2 + $0x58] sm:$0xf]
        %v4918 = vld [vmem:[#allocation2 + $0x60] sm:$0xf]
        %v4919 = vld [vmem:[#allocation2 + $0x64] sm:$0xf]
        %v4920 = vld [vmem:[#allocation2 + $0x6c] sm:$0xf]
        %v4921 = vld [vmem:[#allocation2 + $0x70] sm:$0xf]
        %v4922 = vld [vmem:[#allocation2 + $0x78] sm:$0xf]
        %v4923 = vld [vmem:[#allocation2 + $0x7c] sm:$0xf]
        %v4924 = vld [vmem:[#allocation2 + $0x84] sm:$0xf]
        %v4925 = vld [vmem:[#allocation2 + $0x88] sm:$0xf]
        %v4926 = vld [vmem:[#allocation2 + $0x90] sm:$0xf]
        %v4927 = vld [vmem:[#allocation2 + $0x94] sm:$0xf]
        %v4928 = vld [vmem:[#allocation2 + $0x9c] sm:$0xf]
        %v4929 = vld [vmem:[#allocation2 + $0xa0] sm:$0xf]
        %v4930 = vld [vmem:[#allocation2 + $0xa8] sm:$0xf]
        %v4931 = vld [vmem:[#allocation2 + $0xac] sm:$0xf]
        %v4932 = vld [vmem:[#allocation2 + $0xb4] sm:$0xf]
        %v4933 = vld [vmem:[#allocation2 + $0xb8] sm:$0xf]
        %4934 = vst.msk [vmem:[#allocation3] sm:$0xf] %vm301, %v4902
        %4935 = vst.msk [vmem:[#allocation3 + $0x4] sm:$0xf] %vm301, %v4903
        %4936 = vst.msk [vmem:[#allocation3 + $0x8] sm:$0xf] %vm301, %v4904
        %4937 = vst.msk [vmem:[#allocation3 + $0xc] sm:$0xf] %vm301, %v4905
        %4938 = vst.msk [vmem:[#allocation3 + $0x10] sm:$0xf] %vm301, %v4906
        %4939 = vst.msk [vmem:[#allocation3 + $0x14] sm:$0xf] %vm301, %v4907
        %4940 = vst.msk [vmem:[#allocation3 + $0x18] sm:$0xf] %vm301, %v4908
        %4941 = vst.msk [vmem:[#allocation3 + $0x1c] sm:$0xf] %vm301, %v4909
        %4942 = vst.msk [vmem:[#allocation3 + $0x20] sm:$0xf] %vm301, %v4910
        %4943 = vst.msk [vmem:[#allocation3 + $0x24] sm:$0xf] %vm301, %v4911
        %4944 = vst.msk [vmem:[#allocation3 + $0x28] sm:$0xf] %vm301, %v4912
        %4945 = vst.msk [vmem:[#allocation3 + $0x2c] sm:$0xf] %vm301, %v4913
        %4946 = vst.msk [vmem:[#allocation3 + $0x30] sm:$0xf] %vm301, %v4914
        %4947 = vst.msk [vmem:[#allocation3 + $0x34] sm:$0xf] %vm301, %v4915
        %4948 = vst.msk [vmem:[#allocation3 + $0x38] sm:$0xf] %vm301, %v4916
        %4949 = vst.msk [vmem:[#allocation3 + $0x3c] sm:$0xf] %vm301, %v4917
        %4950 = vst.msk [vmem:[#allocation3 + $0x40] sm:$0xf] %vm301, %v4918
        %4951 = vst.msk [vmem:[#allocation3 + $0x44] sm:$0xf] %vm301, %v4919
        %4952 = vst.msk [vmem:[#allocation3 + $0x48] sm:$0xf] %vm301, %v4920
        %4953 = vst.msk [vmem:[#allocation3 + $0x4c] sm:$0xf] %vm301, %v4921
        %4954 = vst.msk [vmem:[#allocation3 + $0x50] sm:$0xf] %vm301, %v4922
        %4955 = vst.msk [vmem:[#allocation3 + $0x54] sm:$0xf] %vm301, %v4923
        %4956 = vst.msk [vmem:[#allocation3 + $0x58] sm:$0xf] %vm301, %v4924
        %4957 = vst.msk [vmem:[#allocation3 + $0x5c] sm:$0xf] %vm301, %v4925
        %4958 = vst.msk [vmem:[#allocation3 + $0x60] sm:$0xf] %vm301, %v4926
        %4959 = vst.msk [vmem:[#allocation3 + $0x64] sm:$0xf] %vm301, %v4927
        %4960 = vst.msk [vmem:[#allocation3 + $0x68] sm:$0xf] %vm301, %v4928
        %4961 = vst.msk [vmem:[#allocation3 + $0x6c] sm:$0xf] %vm301, %v4929
        %4962 = vst.msk [vmem:[#allocation3 + $0x70] sm:$0xf] %vm301, %v4930
        %4963 = vst.msk [vmem:[#allocation3 + $0x74] sm:$0xf] %vm301, %v4931
        %4964 = vst.msk [vmem:[#allocation3 + $0x78] sm:$0xf] %vm301, %v4932
        %4965 = vst.msk [vmem:[#allocation3 + $0x7c] sm:$0xf] %vm301, %v4933
        %v4966 = vld [vmem:[#allocation2] sm:$0xf]
        %v4967 = vld [vmem:[#allocation2 + $0x4] sm:$0xf]
        %v4968 = vld [vmem:[#allocation2 + $0x8] sm:$0x1]
        %v4969 = vld [vmem:[#allocation2 + $0xc] sm:$0xf]
        %v4970 = vld [vmem:[#allocation2 + $0x10] sm:$0xf]
        %v4971 = vld [vmem:[#allocation2 + $0x14] sm:$0x1]
        %v4972 = vld [vmem:[#allocation2 + $0x18] sm:$0xf]
        %v4973 = vld [vmem:[#allocation2 + $0x1c] sm:$0xf]
        %v4974 = vld [vmem:[#allocation2 + $0x20] sm:$0x1]
        %v4975 = vld [vmem:[#allocation2 + $0x24] sm:$0xf]
        %v4976 = vld [vmem:[#allocation2 + $0x28] sm:$0xf]
        %v4977 = vld [vmem:[#allocation2 + $0x2c] sm:$0x1]
        %v4978 = vld [vmem:[#allocation2 + $0x30] sm:$0xf]
        %v4979 = vld [vmem:[#allocation2 + $0x34] sm:$0xf]
        %v4980 = vld [vmem:[#allocation2 + $0x38] sm:$0x1]
        %v4981 = vld [vmem:[#allocation2 + $0x3c] sm:$0xf]
        %v4982 = vld [vmem:[#allocation2 + $0x40] sm:$0xf]
        %v4983 = vld [vmem:[#allocation2 + $0x44] sm:$0x1]
        %v4984 = vld [vmem:[#allocation2 + $0x48] sm:$0xf]
        %v4985 = vld [vmem:[#allocation2 + $0x4c] sm:$0xf]
        %v4986 = vld [vmem:[#allocation2 + $0x50] sm:$0x1]
        %v4987 = vld [vmem:[#allocation2 + $0x54] sm:$0xf]
        %v4988 = vld [vmem:[#allocation2 + $0x58] sm:$0xf]
        %v4989 = vld [vmem:[#allocation2 + $0x5c] sm:$0x1]
        %v4990 = vld [vmem:[#allocation2 + $0x60] sm:$0xf]
        %v4991 = vld [vmem:[#allocation2 + $0x64] sm:$0xf]
        %v4992 = vld [vmem:[#allocation2 + $0x68] sm:$0x1]
        %v4993 = vld [vmem:[#allocation2 + $0x6c] sm:$0xf]
        %v4994 = vld [vmem:[#allocation2 + $0x70] sm:$0xf]
        %v4995 = vld [vmem:[#allocation2 + $0x74] sm:$0x1]
        %v4996 = vld [vmem:[#allocation2 + $0x78] sm:$0xf]
        %v4997 = vld [vmem:[#allocation2 + $0x7c] sm:$0xf]
        %v4998 = vld [vmem:[#allocation2 + $0x80] sm:$0x1]
        %v4999 = vld [vmem:[#allocation2 + $0x84] sm:$0xf]
        %v5000 = vld [vmem:[#allocation2 + $0x88] sm:$0xf]
        %v5001 = vld [vmem:[#allocation2 + $0x8c] sm:$0x1]
        %v5002 = vld [vmem:[#allocation2 + $0x90] sm:$0xf]
        %v5003 = vld [vmem:[#allocation2 + $0x94] sm:$0xf]
        %v5004 = vld [vmem:[#allocation2 + $0x98] sm:$0x1]
        %v5005 = vld [vmem:[#allocation2 + $0x9c] sm:$0xf]
        %v5006 = vld [vmem:[#allocation2 + $0xa0] sm:$0xf]
        %v5007 = vld [vmem:[#allocation2 + $0xa4] sm:$0x1]
        %v5008 = vld [vmem:[#allocation2 + $0xa8] sm:$0xf]
        %v5009 = vld [vmem:[#allocation2 + $0xac] sm:$0xf]
        %v5010 = vld [vmem:[#allocation2 + $0xb0] sm:$0x1]
        %v5011 = vld [vmem:[#allocation2 + $0xb4] sm:$0xf]
        %v5012 = vld [vmem:[#allocation2 + $0xb8] sm:$0xf]
        %v5013 = vld [vmem:[#allocation2 + $0xbc] sm:$0x1]
        %v5015 = vshrl.u32 %v4966, 16
        %v5017 = vrot.slane %v5015, 4
        %v5018 = vshll.u32 %v4966, 16
        %v5020 = vrot.slane %v5018, 5
        %v5021 = vor.u32 %v5017, %v5020
        %v5022 = vrot.slane %v5021, 4
        %v5024 = vshll.u32 %v4967, 16
        %v5026 = vrot.slane %v5024, 5
        %v5027 = vsel %vm1059, %v5022, %v5026
        %v5028 = vshrl.u32 %v4967, 16
        %v5030 = vrot.slane %v5028, 4
        %v5031 = vor.u32 %v5030, %v5026
        %v5032 = vrot.slane %v5031, 4
        %v5034 = vshll.u32 %v4968, 16
        %v5036 = vrot.slane %v5034, 5
        %v5037 = vsel %vm1059, %v5032, %v5036
        %v5039 = vshrl.u32 %v4969, 16
        %v5041 = vrot.slane %v5039, 4
        %v5042 = vshll.u32 %v4969, 16
        %v5044 = vrot.slane %v5042, 5
        %v5045 = vor.u32 %v5041, %v5044
        %v5046 = vrot.slane %v5045, 4
        %v5048 = vshll.u32 %v4970, 16
        %v5050 = vrot.slane %v5048, 5
        %v5051 = vsel %vm1059, %v5046, %v5050
        %v5052 = vshrl.u32 %v4970, 16
        %v5054 = vrot.slane %v5052, 4
        %v5055 = vor.u32 %v5054, %v5050
        %v5056 = vrot.slane %v5055, 4
        %v5058 = vshll.u32 %v4971, 16
        %v5060 = vrot.slane %v5058, 5
        %v5061 = vsel %vm1059, %v5056, %v5060
        %v5063 = vshrl.u32 %v4972, 16
        %v5065 = vrot.slane %v5063, 4
        %v5066 = vshll.u32 %v4972, 16
        %v5068 = vrot.slane %v5066, 5
        %v5069 = vor.u32 %v5065, %v5068
        %v5070 = vrot.slane %v5069, 4
        %v5072 = vshll.u32 %v4973, 16
        %v5074 = vrot.slane %v5072, 5
        %v5075 = vsel %vm1059, %v5070, %v5074
        %v5076 = vshrl.u32 %v4973, 16
        %v5078 = vrot.slane %v5076, 4
        %v5079 = vor.u32 %v5078, %v5074
        %v5080 = vrot.slane %v5079, 4
        %v5082 = vshll.u32 %v4974, 16
        %v5084 = vrot.slane %v5082, 5
        %v5085 = vsel %vm1059, %v5080, %v5084
        %v5087 = vshrl.u32 %v4975, 16
        %v5089 = vrot.slane %v5087, 4
        %v5090 = vshll.u32 %v4975, 16
        %v5092 = vrot.slane %v5090, 5
        %v5093 = vor.u32 %v5089, %v5092
        %v5094 = vrot.slane %v5093, 4
        %v5096 = vshll.u32 %v4976, 16
        %v5098 = vrot.slane %v5096, 5
        %v5099 = vsel %vm1059, %v5094, %v5098
        %v5100 = vshrl.u32 %v4976, 16
        %v5102 = vrot.slane %v5100, 4
        %v5103 = vor.u32 %v5102, %v5098
        %v5104 = vrot.slane %v5103, 4
        %v5106 = vshll.u32 %v4977, 16
        %v5108 = vrot.slane %v5106, 5
        %v5109 = vsel %vm1059, %v5104, %v5108
        %v5111 = vshrl.u32 %v4978, 16
        %v5113 = vrot.slane %v5111, 4
        %v5114 = vshll.u32 %v4978, 16
        %v5116 = vrot.slane %v5114, 5
        %v5117 = vor.u32 %v5113, %v5116
        %v5118 = vrot.slane %v5117, 4
        %v5120 = vshll.u32 %v4979, 16
        %v5122 = vrot.slane %v5120, 5
        %v5123 = vsel %vm1059, %v5118, %v5122
        %v5124 = vshrl.u32 %v4979, 16
        %v5126 = vrot.slane %v5124, 4
        %v5127 = vor.u32 %v5126, %v5122
        %v5128 = vrot.slane %v5127, 4
        %v5130 = vshll.u32 %v4980, 16
        %v5132 = vrot.slane %v5130, 5
        %v5133 = vsel %vm1059, %v5128, %v5132
        %v5135 = vshrl.u32 %v4981, 16
        %v5137 = vrot.slane %v5135, 4
        %v5138 = vshll.u32 %v4981, 16
        %v5140 = vrot.slane %v5138, 5
        %v5141 = vor.u32 %v5137, %v5140
        %v5142 = vrot.slane %v5141, 4
        %v5144 = vshll.u32 %v4982, 16
        %v5146 = vrot.slane %v5144, 5
        %v5147 = vsel %vm1059, %v5142, %v5146
        %v5148 = vshrl.u32 %v4982, 16
        %v5150 = vrot.slane %v5148, 4
        %v5151 = vor.u32 %v5150, %v5146
        %v5152 = vrot.slane %v5151, 4
        %v5154 = vshll.u32 %v4983, 16
        %v5156 = vrot.slane %v5154, 5
        %v5157 = vsel %vm1059, %v5152, %v5156
        %v5159 = vshrl.u32 %v4984, 16
        %v5161 = vrot.slane %v5159, 4
        %v5162 = vshll.u32 %v4984, 16
        %v5164 = vrot.slane %v5162, 5
        %v5165 = vor.u32 %v5161, %v5164
        %v5166 = vrot.slane %v5165, 4
        %v5168 = vshll.u32 %v4985, 16
        %v5170 = vrot.slane %v5168, 5
        %v5171 = vsel %vm1059, %v5166, %v5170
        %v5172 = vshrl.u32 %v4985, 16
        %v5174 = vrot.slane %v5172, 4
        %v5175 = vor.u32 %v5174, %v5170
        %v5176 = vrot.slane %v5175, 4
        %v5178 = vshll.u32 %v4986, 16
        %v5180 = vrot.slane %v5178, 5
        %v5181 = vsel %vm1059, %v5176, %v5180
        %v5183 = vshrl.u32 %v4987, 16
        %v5185 = vrot.slane %v5183, 4
        %v5186 = vshll.u32 %v4987, 16
        %v5188 = vrot.slane %v5186, 5
        %v5189 = vor.u32 %v5185, %v5188
        %v5190 = vrot.slane %v5189, 4
        %v5192 = vshll.u32 %v4988, 16
        %v5194 = vrot.slane %v5192, 5
        %v5195 = vsel %vm1059, %v5190, %v5194
        %v5196 = vshrl.u32 %v4988, 16
        %v5198 = vrot.slane %v5196, 4
        %v5199 = vor.u32 %v5198, %v5194
        %v5200 = vrot.slane %v5199, 4
        %v5202 = vshll.u32 %v4989, 16
        %v5204 = vrot.slane %v5202, 5
        %v5205 = vsel %vm1059, %v5200, %v5204
        %v5207 = vshrl.u32 %v4990, 16
        %v5209 = vrot.slane %v5207, 4
        %v5210 = vshll.u32 %v4990, 16
        %v5212 = vrot.slane %v5210, 5
        %v5213 = vor.u32 %v5209, %v5212
        %v5214 = vrot.slane %v5213, 4
        %v5216 = vshll.u32 %v4991, 16
        %v5218 = vrot.slane %v5216, 5
        %v5219 = vsel %vm1059, %v5214, %v5218
        %v5220 = vshrl.u32 %v4991, 16
        %v5222 = vrot.slane %v5220, 4
        %v5223 = vor.u32 %v5222, %v5218
        %v5224 = vrot.slane %v5223, 4
        %v5226 = vshll.u32 %v4992, 16
        %v5228 = vrot.slane %v5226, 5
        %v5229 = vsel %vm1059, %v5224, %v5228
        %v5231 = vshrl.u32 %v4993, 16
        %v5233 = vrot.slane %v5231, 4
        %v5234 = vshll.u32 %v4993, 16
        %v5236 = vrot.slane %v5234, 5
        %v5237 = vor.u32 %v5233, %v5236
        %v5238 = vrot.slane %v5237, 4
        %v5240 = vshll.u32 %v4994, 16
        %v5242 = vrot.slane %v5240, 5
        %v5243 = vsel %vm1059, %v5238, %v5242
        %v5244 = vshrl.u32 %v4994, 16
        %v5246 = vrot.slane %v5244, 4
        %v5247 = vor.u32 %v5246, %v5242
        %v5248 = vrot.slane %v5247, 4
        %v5250 = vshll.u32 %v4995, 16
        %v5252 = vrot.slane %v5250, 5
        %v5253 = vsel %vm1059, %v5248, %v5252
        %v5255 = vshrl.u32 %v4996, 16
        %v5257 = vrot.slane %v5255, 4
        %v5258 = vshll.u32 %v4996, 16
        %v5260 = vrot.slane %v5258, 5
        %v5261 = vor.u32 %v5257, %v5260
        %v5262 = vrot.slane %v5261, 4
        %v5264 = vshll.u32 %v4997, 16
        %v5266 = vrot.slane %v5264, 5
        %v5267 = vsel %vm1059, %v5262, %v5266
        %v5268 = vshrl.u32 %v4997, 16
        %v5270 = vrot.slane %v5268, 4
        %v5271 = vor.u32 %v5270, %v5266
        %v5272 = vrot.slane %v5271, 4
        %v5274 = vshll.u32 %v4998, 16
        %v5276 = vrot.slane %v5274, 5
        %v5277 = vsel %vm1059, %v5272, %v5276
        %v5279 = vshrl.u32 %v4999, 16
        %v5281 = vrot.slane %v5279, 4
        %v5282 = vshll.u32 %v4999, 16
        %v5284 = vrot.slane %v5282, 5
        %v5285 = vor.u32 %v5281, %v5284
        %v5286 = vrot.slane %v5285, 4
        %v5288 = vshll.u32 %v5000, 16
        %v5290 = vrot.slane %v5288, 5
        %v5291 = vsel %vm1059, %v5286, %v5290
        %v5292 = vshrl.u32 %v5000, 16
        %v5294 = vrot.slane %v5292, 4
        %v5295 = vor.u32 %v5294, %v5290
        %v5296 = vrot.slane %v5295, 4
        %v5298 = vshll.u32 %v5001, 16
        %v5300 = vrot.slane %v5298, 5
        %v5301 = vsel %vm1059, %v5296, %v5300
        %v5303 = vshrl.u32 %v5002, 16
        %v5305 = vrot.slane %v5303, 4
        %v5306 = vshll.u32 %v5002, 16
        %v5308 = vrot.slane %v5306, 5
        %v5309 = vor.u32 %v5305, %v5308
        %v5310 = vrot.slane %v5309, 4
        %v5312 = vshll.u32 %v5003, 16
        %v5314 = vrot.slane %v5312, 5
        %v5315 = vsel %vm1059, %v5310, %v5314
        %v5316 = vshrl.u32 %v5003, 16
        %v5318 = vrot.slane %v5316, 4
        %v5319 = vor.u32 %v5318, %v5314
        %v5320 = vrot.slane %v5319, 4
        %v5322 = vshll.u32 %v5004, 16
        %v5324 = vrot.slane %v5322, 5
        %v5325 = vsel %vm1059, %v5320, %v5324
        %v5327 = vshrl.u32 %v5005, 16
        %v5329 = vrot.slane %v5327, 4
        %v5330 = vshll.u32 %v5005, 16
        %v5332 = vrot.slane %v5330, 5
        %v5333 = vor.u32 %v5329, %v5332
        %v5334 = vrot.slane %v5333, 4
        %v5336 = vshll.u32 %v5006, 16
        %v5338 = vrot.slane %v5336, 5
        %v5339 = vsel %vm1059, %v5334, %v5338
        %v5340 = vshrl.u32 %v5006, 16
        %v5342 = vrot.slane %v5340, 4
        %v5343 = vor.u32 %v5342, %v5338
        %v5344 = vrot.slane %v5343, 4
        %v5346 = vshll.u32 %v5007, 16
        %v5348 = vrot.slane %v5346, 5
        %v5349 = vsel %vm1059, %v5344, %v5348
        %v5351 = vshrl.u32 %v5008, 16
        %v5353 = vrot.slane %v5351, 4
        %v5354 = vshll.u32 %v5008, 16
        %v5356 = vrot.slane %v5354, 5
        %v5357 = vor.u32 %v5353, %v5356
        %v5358 = vrot.slane %v5357, 4
        %v5360 = vshll.u32 %v5009, 16
        %v5362 = vrot.slane %v5360, 5
        %v5363 = vsel %vm1059, %v5358, %v5362
        %v5364 = vshrl.u32 %v5009, 16
        %v5366 = vrot.slane %v5364, 4
        %v5367 = vor.u32 %v5366, %v5362
        %v5368 = vrot.slane %v5367, 4
        %v5370 = vshll.u32 %v5010, 16
        %v5372 = vrot.slane %v5370, 5
        %v5373 = vsel %vm1059, %v5368, %v5372
        %v5375 = vshrl.u32 %v5011, 16
        %v5377 = vrot.slane %v5375, 4
        %v5378 = vshll.u32 %v5011, 16
        %v5380 = vrot.slane %v5378, 5
        %v5381 = vor.u32 %v5377, %v5380
        %v5382 = vrot.slane %v5381, 4
        %v5384 = vshll.u32 %v5012, 16
        %v5386 = vrot.slane %v5384, 5
        %v5387 = vsel %vm1059, %v5382, %v5386
        %v5388 = vshrl.u32 %v5012, 16
        %v5390 = vrot.slane %v5388, 4
        %v5391 = vor.u32 %v5390, %v5386
        %v5392 = vrot.slane %v5391, 4
        %v5394 = vshll.u32 %v5013, 16
        %v5396 = vrot.slane %v5394, 5
        %v5397 = vsel %vm1059, %v5392, %v5396
        %5398 = vrot.lane.b32.xlu0 %v5027, 4
        %v5399 = vpop.permute.xlu0 %5398
        %5400 = vrot.lane.b32.xlu0 %v5037, 4
        %v5401 = vpop.permute.xlu0 %5400
        %5402 = vrot.lane.b32.xlu0 %v5051, 4
        %v5403 = vpop.permute.xlu0 %5402
        %5404 = vrot.lane.b32.xlu0 %v5061, 4
        %v5405 = vpop.permute.xlu0 %5404
        %5406 = vrot.lane.b32.xlu0 %v5075, 4
        %v5407 = vpop.permute.xlu0 %5406
        %5408 = vrot.lane.b32.xlu0 %v5085, 4
        %v5409 = vpop.permute.xlu0 %5408
        %5410 = vrot.lane.b32.xlu0 %v5099, 4
        %v5411 = vpop.permute.xlu0 %5410
        %5412 = vrot.lane.b32.xlu0 %v5109, 4
        %v5413 = vpop.permute.xlu0 %5412
        %5414 = vrot.lane.b32.xlu0 %v5123, 4
        %v5415 = vpop.permute.xlu0 %5414
        %5416 = vrot.lane.b32.xlu0 %v5133, 4
        %v5417 = vpop.permute.xlu0 %5416
        %5418 = vrot.lane.b32.xlu0 %v5147, 4
        %v5419 = vpop.permute.xlu0 %5418
        %5420 = vrot.lane.b32.xlu0 %v5157, 4
        %v5421 = vpop.permute.xlu0 %5420
        %5422 = vrot.lane.b32.xlu0 %v5171, 4
        %v5423 = vpop.permute.xlu0 %5422
        %5424 = vrot.lane.b32.xlu0 %v5181, 4
        %v5425 = vpop.permute.xlu0 %5424
        %5426 = vrot.lane.b32.xlu0 %v5195, 4
        %v5427 = vpop.permute.xlu0 %5426
        %5428 = vrot.lane.b32.xlu0 %v5205, 4
        %v5429 = vpop.permute.xlu0 %5428
        %5430 = vrot.lane.b32.xlu0 %v5219, 4
        %v5431 = vpop.permute.xlu0 %5430
        %5432 = vrot.lane.b32.xlu0 %v5229, 4
        %v5433 = vpop.permute.xlu0 %5432
        %5434 = vrot.lane.b32.xlu0 %v5243, 4
        %v5435 = vpop.permute.xlu0 %5434
        %5436 = vrot.lane.b32.xlu0 %v5253, 4
        %v5437 = vpop.permute.xlu0 %5436
        %5438 = vrot.lane.b32.xlu0 %v5267, 4
        %v5439 = vpop.permute.xlu0 %5438
        %5440 = vrot.lane.b32.xlu0 %v5277, 4
        %v5441 = vpop.permute.xlu0 %5440
        %5442 = vrot.lane.b32.xlu0 %v5291, 4
        %v5443 = vpop.permute.xlu0 %5442
        %5444 = vrot.lane.b32.xlu0 %v5301, 4
        %v5445 = vpop.permute.xlu0 %5444
        %5446 = vrot.lane.b32.xlu0 %v5315, 4
        %v5447 = vpop.permute.xlu0 %5446
        %5448 = vrot.lane.b32.xlu0 %v5325, 4
        %v5449 = vpop.permute.xlu0 %5448
        %5450 = vrot.lane.b32.xlu0 %v5339, 4
        %v5451 = vpop.permute.xlu0 %5450
        %5452 = vrot.lane.b32.xlu0 %v5349, 4
        %v5453 = vpop.permute.xlu0 %5452
        %5454 = vrot.lane.b32.xlu0 %v5363, 4
        %v5455 = vpop.permute.xlu0 %5454
        %5456 = vrot.lane.b32.xlu0 %v5373, 4
        %v5457 = vpop.permute.xlu0 %5456
        %5458 = vrot.lane.b32.xlu0 %v5387, 4
        %v5459 = vpop.permute.xlu0 %5458
        %5460 = vrot.lane.b32.xlu0 %v5397, 4
        %v5461 = vpop.permute.xlu0 %5460
        %5494 = vst.msk [vmem:[#allocation3] sm:$0xf] %vm1540, %v5399
        %5495 = vst.msk [vmem:[#allocation3 + $0x4] sm:$0xf] %vm1540, %v5401
        %5496 = vst.msk [vmem:[#allocation3 + $0x8] sm:$0xf] %vm1540, %v5403
        %5497 = vst.msk [vmem:[#allocation3 + $0xc] sm:$0xf] %vm1540, %v5405
        %5498 = vst.msk [vmem:[#allocation3 + $0x10] sm:$0xf] %vm1540, %v5407
        %5499 = vst.msk [vmem:[#allocation3 + $0x14] sm:$0xf] %vm1540, %v5409
        %5500 = vst.msk [vmem:[#allocation3 + $0x18] sm:$0xf] %vm1540, %v5411
        %5501 = vst.msk [vmem:[#allocation3 + $0x1c] sm:$0xf] %vm1540, %v5413
        %5502 = vst.msk [vmem:[#allocation3 + $0x20] sm:$0xf] %vm1540, %v5415
        %5503 = vst.msk [vmem:[#allocation3 + $0x24] sm:$0xf] %vm1540, %v5417
        %5504 = vst.msk [vmem:[#allocation3 + $0x28] sm:$0xf] %vm1540, %v5419
        %5505 = vst.msk [vmem:[#allocation3 + $0x2c] sm:$0xf] %vm1540, %v5421
        %5506 = vst.msk [vmem:[#allocation3 + $0x30] sm:$0xf] %vm1540, %v5423
        %5507 = vst.msk [vmem:[#allocation3 + $0x34] sm:$0xf] %vm1540, %v5425
        %5508 = vst.msk [vmem:[#allocation3 + $0x38] sm:$0xf] %vm1540, %v5427
        %5509 = vst.msk [vmem:[#allocation3 + $0x3c] sm:$0xf] %vm1540, %v5429
        %5510 = vst.msk [vmem:[#allocation3 + $0x40] sm:$0xf] %vm1540, %v5431
        %5511 = vst.msk [vmem:[#allocation3 + $0x44] sm:$0xf] %vm1540, %v5433
        %5512 = vst.msk [vmem:[#allocation3 + $0x48] sm:$0xf] %vm1540, %v5435
        %5513 = vst.msk [vmem:[#allocation3 + $0x4c] sm:$0xf] %vm1540, %v5437
        %5514 = vst.msk [vmem:[#allocation3 + $0x50] sm:$0xf] %vm1540, %v5439
        %5515 = vst.msk [vmem:[#allocation3 + $0x54] sm:$0xf] %vm1540, %v5441
        %5516 = vst.msk [vmem:[#allocation3 + $0x58] sm:$0xf] %vm1540, %v5443
        %5517 = vst.msk [vmem:[#allocation3 + $0x5c] sm:$0xf] %vm1540, %v5445
        %5518 = vst.msk [vmem:[#allocation3 + $0x60] sm:$0xf] %vm1540, %v5447
        %5519 = vst.msk [vmem:[#allocation3 + $0x64] sm:$0xf] %vm1540, %v5449
        %5520 = vst.msk [vmem:[#allocation3 + $0x68] sm:$0xf] %vm1540, %v5451
        %5521 = vst.msk [vmem:[#allocation3 + $0x6c] sm:$0xf] %vm1540, %v5453
        %5522 = vst.msk [vmem:[#allocation3 + $0x70] sm:$0xf] %vm1540, %v5455
        %5523 = vst.msk [vmem:[#allocation3 + $0x74] sm:$0xf] %vm1540, %v5457
        %5524 = vst.msk [vmem:[#allocation3 + $0x78] sm:$0xf] %vm1540, %v5459
        %5525 = vst.msk [vmem:[#allocation3 + $0x7c] sm:$0xf] %vm1540, %v5461
        %v5526 = vld [vmem:[#allocation2] sm:$0xe]
        %v5527 = vld [vmem:[#allocation2 + $0x4] sm:$0xf]
        %v5528 = vld [vmem:[#allocation2 + $0x8] sm:$0x1]
        %v5529 = vld [vmem:[#allocation2 + $0xc] sm:$0xe]
        %v5530 = vld [vmem:[#allocation2 + $0x10] sm:$0xf]
        %v5531 = vld [vmem:[#allocation2 + $0x14] sm:$0x1]
        %v5532 = vld [vmem:[#allocation2 + $0x18] sm:$0xe]
        %v5533 = vld [vmem:[#allocation2 + $0x1c] sm:$0xf]
        %v5534 = vld [vmem:[#allocation2 + $0x20] sm:$0x1]
        %v5535 = vld [vmem:[#allocation2 + $0x24] sm:$0xe]
        %v5536 = vld [vmem:[#allocation2 + $0x28] sm:$0xf]
        %v5537 = vld [vmem:[#allocation2 + $0x2c] sm:$0x1]
        %v5538 = vld [vmem:[#allocation2 + $0x30] sm:$0xe]
        %v5539 = vld [vmem:[#allocation2 + $0x34] sm:$0xf]
        %v5540 = vld [vmem:[#allocation2 + $0x38] sm:$0x1]
        %v5541 = vld [vmem:[#allocation2 + $0x3c] sm:$0xe]
        %v5542 = vld [vmem:[#allocation2 + $0x40] sm:$0xf]
        %v5543 = vld [vmem:[#allocation2 + $0x44] sm:$0x1]
        %v5544 = vld [vmem:[#allocation2 + $0x48] sm:$0xe]
        %v5545 = vld [vmem:[#allocation2 + $0x4c] sm:$0xf]
        %v5546 = vld [vmem:[#allocation2 + $0x50] sm:$0x1]
        %v5547 = vld [vmem:[#allocation2 + $0x54] sm:$0xe]
        %v5548 = vld [vmem:[#allocation2 + $0x58] sm:$0xf]
        %v5549 = vld [vmem:[#allocation2 + $0x5c] sm:$0x1]
        %v5550 = vld [vmem:[#allocation2 + $0x60] sm:$0xe]
        %v5551 = vld [vmem:[#allocation2 + $0x64] sm:$0xf]
        %v5552 = vld [vmem:[#allocation2 + $0x68] sm:$0x1]
        %v5553 = vld [vmem:[#allocation2 + $0x6c] sm:$0xe]
        %v5554 = vld [vmem:[#allocation2 + $0x70] sm:$0xf]
        %v5555 = vld [vmem:[#allocation2 + $0x74] sm:$0x1]
        %v5556 = vld [vmem:[#allocation2 + $0x78] sm:$0xe]
        %v5557 = vld [vmem:[#allocation2 + $0x7c] sm:$0xf]
        %v5558 = vld [vmem:[#allocation2 + $0x80] sm:$0x1]
        %v5559 = vld [vmem:[#allocation2 + $0x84] sm:$0xe]
        %v5560 = vld [vmem:[#allocation2 + $0x88] sm:$0xf]
        %v5561 = vld [vmem:[#allocation2 + $0x8c] sm:$0x1]
        %v5562 = vld [vmem:[#allocation2 + $0x90] sm:$0xe]
        %v5563 = vld [vmem:[#allocation2 + $0x94] sm:$0xf]
        %v5564 = vld [vmem:[#allocation2 + $0x98] sm:$0x1]
        %v5565 = vld [vmem:[#allocation2 + $0x9c] sm:$0xe]
        %v5566 = vld [vmem:[#allocation2 + $0xa0] sm:$0xf]
        %v5567 = vld [vmem:[#allocation2 + $0xa4] sm:$0x1]
        %v5568 = vld [vmem:[#allocation2 + $0xa8] sm:$0xe]
        %v5569 = vld [vmem:[#allocation2 + $0xac] sm:$0xf]
        %v5570 = vld [vmem:[#allocation2 + $0xb0] sm:$0x1]
        %v5571 = vld [vmem:[#allocation2 + $0xb4] sm:$0xe]
        %v5572 = vld [vmem:[#allocation2 + $0xb8] sm:$0xf]
        %v5573 = vld [vmem:[#allocation2 + $0xbc] sm:$0x1]
        %v5622 = vrot.slane %v5526, 5
        %v5623 = vrot.slane %v5622, 4
        %v5624 = vrot.slane %v5527, 5
        %v5625 = vsel %vm1671, %v5623, %v5624
        %v5626 = vrot.slane %v5624, 4
        %v5627 = vrot.slane %v5528, 5
        %v5628 = vsel %vm1671, %v5626, %v5627
        %v5629 = vrot.slane %v5529, 5
        %v5630 = vrot.slane %v5629, 4
        %v5631 = vrot.slane %v5530, 5
        %v5632 = vsel %vm1671, %v5630, %v5631
        %v5633 = vrot.slane %v5631, 4
        %v5634 = vrot.slane %v5531, 5
        %v5635 = vsel %vm1671, %v5633, %v5634
        %v5636 = vrot.slane %v5532, 5
        %v5637 = vrot.slane %v5636, 4
        %v5638 = vrot.slane %v5533, 5
        %v5639 = vsel %vm1671, %v5637, %v5638
        %v5640 = vrot.slane %v5638, 4
        %v5641 = vrot.slane %v5534, 5
        %v5642 = vsel %vm1671, %v5640, %v5641
        %v5643 = vrot.slane %v5535, 5
        %v5644 = vrot.slane %v5643, 4
        %v5645 = vrot.slane %v5536, 5
        %v5646 = vsel %vm1671, %v5644, %v5645
        %v5647 = vrot.slane %v5645, 4
        %v5648 = vrot.slane %v5537, 5
        %v5649 = vsel %vm1671, %v5647, %v5648
        %v5650 = vrot.slane %v5538, 5
        %v5651 = vrot.slane %v5650, 4
        %v5652 = vrot.slane %v5539, 5
        %v5653 = vsel %vm1671, %v5651, %v5652
        %v5654 = vrot.slane %v5652, 4
        %v5655 = vrot.slane %v5540, 5
        %v5656 = vsel %vm1671, %v5654, %v5655
        %v5657 = vrot.slane %v5541, 5
        %v5658 = vrot.slane %v5657, 4
        %v5659 = vrot.slane %v5542, 5
        %v5660 = vsel %vm1671, %v5658, %v5659
        %v5661 = vrot.slane %v5659, 4
        %v5662 = vrot.slane %v5543, 5
        %v5663 = vsel %vm1671, %v5661, %v5662
        %v5664 = vrot.slane %v5544, 5
        %v5665 = vrot.slane %v5664, 4
        %v5666 = vrot.slane %v5545, 5
        %v5667 = vsel %vm1671, %v5665, %v5666
        %v5668 = vrot.slane %v5666, 4
        %v5669 = vrot.slane %v5546, 5
        %v5670 = vsel %vm1671, %v5668, %v5669
        %v5671 = vrot.slane %v5547, 5
        %v5672 = vrot.slane %v5671, 4
        %v5673 = vrot.slane %v5548, 5
        %v5674 = vsel %vm1671, %v5672, %v5673
        %v5675 = vrot.slane %v5673, 4
        %v5676 = vrot.slane %v5549, 5
        %v5677 = vsel %vm1671, %v5675, %v5676
        %v5678 = vrot.slane %v5550, 5
        %v5679 = vrot.slane %v5678, 4
        %v5680 = vrot.slane %v5551, 5
        %v5681 = vsel %vm1671, %v5679, %v5680
        %v5682 = vrot.slane %v5680, 4
        %v5683 = vrot.slane %v5552, 5
        %v5684 = vsel %vm1671, %v5682, %v5683
        %v5685 = vrot.slane %v5553, 5
        %v5686 = vrot.slane %v5685, 4
        %v5687 = vrot.slane %v5554, 5
        %v5688 = vsel %vm1671, %v5686, %v5687
        %v5689 = vrot.slane %v5687, 4
        %v5690 = vrot.slane %v5555, 5
        %v5691 = vsel %vm1671, %v5689, %v5690
        %v5692 = vrot.slane %v5556, 5
        %v5693 = vrot.slane %v5692, 4
        %v5694 = vrot.slane %v5557, 5
        %v5695 = vsel %vm1671, %v5693, %v5694
        %v5696 = vrot.slane %v5694, 4
        %v5697 = vrot.slane %v5558, 5
        %v5698 = vsel %vm1671, %v5696, %v5697
        %v5699 = vrot.slane %v5559, 5
        %v5700 = vrot.slane %v5699, 4
        %v5701 = vrot.slane %v5560, 5
        %v5702 = vsel %vm1671, %v5700, %v5701
        %v5703 = vrot.slane %v5701, 4
        %v5704 = vrot.slane %v5561, 5
        %v5705 = vsel %vm1671, %v5703, %v5704
        %v5706 = vrot.slane %v5562, 5
        %v5707 = vrot.slane %v5706, 4
        %v5708 = vrot.slane %v5563, 5
        %v5709 = vsel %vm1671, %v5707, %v5708
        %v5710 = vrot.slane %v5708, 4
        %v5711 = vrot.slane %v5564, 5
        %v5712 = vsel %vm1671, %v5710, %v5711
        %v5713 = vrot.slane %v5565, 5
        %v5714 = vrot.slane %v5713, 4
        %v5715 = vrot.slane %v5566, 5
        %v5716 = vsel %vm1671, %v5714, %v5715
        %v5717 = vrot.slane %v5715, 4
        %v5718 = vrot.slane %v5567, 5
        %v5719 = vsel %vm1671, %v5717, %v5718
        %v5720 = vrot.slane %v5568, 5
        %v5721 = vrot.slane %v5720, 4
        %v5722 = vrot.slane %v5569, 5
        %v5723 = vsel %vm1671, %v5721, %v5722
        %v5724 = vrot.slane %v5722, 4
        %v5725 = vrot.slane %v5570, 5
        %v5726 = vsel %vm1671, %v5724, %v5725
        %v5727 = vrot.slane %v5571, 5
        %v5728 = vrot.slane %v5727, 4
        %v5729 = vrot.slane %v5572, 5
        %v5730 = vsel %vm1671, %v5728, %v5729
        %v5731 = vrot.slane %v5729, 4
        %v5732 = vrot.slane %v5573, 5
        %v5733 = vsel %vm1671, %v5731, %v5732
        %5734 = vrot.lane.b32.xlu0 %v5625, 8
        %v5735 = vpop.permute.xlu0 %5734
        %5736 = vrot.lane.b32.xlu0 %v5628, 8
        %v5737 = vpop.permute.xlu0 %5736
        %5738 = vrot.lane.b32.xlu0 %v5632, 8
        %v5739 = vpop.permute.xlu0 %5738
        %5740 = vrot.lane.b32.xlu0 %v5635, 8
        %v5741 = vpop.permute.xlu0 %5740
        %5742 = vrot.lane.b32.xlu0 %v5639, 8
        %v5743 = vpop.permute.xlu0 %5742
        %5744 = vrot.lane.b32.xlu0 %v5642, 8
        %v5745 = vpop.permute.xlu0 %5744
        %5746 = vrot.lane.b32.xlu0 %v5646, 8
        %v5747 = vpop.permute.xlu0 %5746
        %5748 = vrot.lane.b32.xlu0 %v5649, 8
        %v5749 = vpop.permute.xlu0 %5748
        %5750 = vrot.lane.b32.xlu0 %v5653, 8
        %v5751 = vpop.permute.xlu0 %5750
        %5752 = vrot.lane.b32.xlu0 %v5656, 8
        %v5753 = vpop.permute.xlu0 %5752
        %5754 = vrot.lane.b32.xlu0 %v5660, 8
        %v5755 = vpop.permute.xlu0 %5754
        %5756 = vrot.lane.b32.xlu0 %v5663, 8
        %v5757 = vpop.permute.xlu0 %5756
        %5758 = vrot.lane.b32.xlu0 %v5667, 8
        %v5759 = vpop.permute.xlu0 %5758
        %5760 = vrot.lane.b32.xlu0 %v5670, 8
        %v5761 = vpop.permute.xlu0 %5760
        %5762 = vrot.lane.b32.xlu0 %v5674, 8
        %v5763 = vpop.permute.xlu0 %5762
        %5764 = vrot.lane.b32.xlu0 %v5677, 8
        %v5765 = vpop.permute.xlu0 %5764
        %5766 = vrot.lane.b32.xlu0 %v5681, 8
        %v5767 = vpop.permute.xlu0 %5766
        %5768 = vrot.lane.b32.xlu0 %v5684, 8
        %v5769 = vpop.permute.xlu0 %5768
        %5770 = vrot.lane.b32.xlu0 %v5688, 8
        %v5771 = vpop.permute.xlu0 %5770
        %5772 = vrot.lane.b32.xlu0 %v5691, 8
        %v5773 = vpop.permute.xlu0 %5772
        %5774 = vrot.lane.b32.xlu0 %v5695, 8
        %v5775 = vpop.permute.xlu0 %5774
        %5776 = vrot.lane.b32.xlu0 %v5698, 8
        %v5777 = vpop.permute.xlu0 %5776
        %5778 = vrot.lane.b32.xlu0 %v5702, 8
        %v5779 = vpop.permute.xlu0 %5778
        %5780 = vrot.lane.b32.xlu0 %v5705, 8
        %v5781 = vpop.permute.xlu0 %5780
        %5782 = vrot.lane.b32.xlu0 %v5709, 8
        %v5783 = vpop.permute.xlu0 %5782
        %5784 = vrot.lane.b32.xlu0 %v5712, 8
        %v5785 = vpop.permute.xlu0 %5784
        %5786 = vrot.lane.b32.xlu0 %v5716, 8
        %v5787 = vpop.permute.xlu0 %5786
        %5788 = vrot.lane.b32.xlu0 %v5719, 8
        %v5789 = vpop.permute.xlu0 %5788
        %5790 = vrot.lane.b32.xlu0 %v5723, 8
        %v5791 = vpop.permute.xlu0 %5790
        %5792 = vrot.lane.b32.xlu0 %v5726, 8
        %v5793 = vpop.permute.xlu0 %5792
        %5794 = vrot.lane.b32.xlu0 %v5730, 8
        %v5795 = vpop.permute.xlu0 %5794
        %5796 = vrot.lane.b32.xlu0 %v5733, 8
        %v5797 = vpop.permute.xlu0 %5796
        %5830 = vst.msk [vmem:[#allocation3] sm:$0xf] %vm1880, %v5735
        %5831 = vst.msk [vmem:[#allocation3 + $0x4] sm:$0xf] %vm1880, %v5737
        %5832 = vst.msk [vmem:[#allocation3 + $0x8] sm:$0xf] %vm1880, %v5739
        %5833 = vst.msk [vmem:[#allocation3 + $0xc] sm:$0xf] %vm1880, %v5741
        %5834 = vst.msk [vmem:[#allocation3 + $0x10] sm:$0xf] %vm1880, %v5743
        %5835 = vst.msk [vmem:[#allocation3 + $0x14] sm:$0xf] %vm1880, %v5745
        %5836 = vst.msk [vmem:[#allocation3 + $0x18] sm:$0xf] %vm1880, %v5747
        %5837 = vst.msk [vmem:[#allocation3 + $0x1c] sm:$0xf] %vm1880, %v5749
        %5838 = vst.msk [vmem:[#allocation3 + $0x20] sm:$0xf] %vm1880, %v5751
        %5839 = vst.msk [vmem:[#allocation3 + $0x24] sm:$0xf] %vm1880, %v5753
        %5840 = vst.msk [vmem:[#allocation3 + $0x28] sm:$0xf] %vm1880, %v5755
        %5841 = vst.msk [vmem:[#allocation3 + $0x2c] sm:$0xf] %vm1880, %v5757
        %5842 = vst.msk [vmem:[#allocation3 + $0x30] sm:$0xf] %vm1880, %v5759
        %5843 = vst.msk [vmem:[#allocation3 + $0x34] sm:$0xf] %vm1880, %v5761
        %5844 = vst.msk [vmem:[#allocation3 + $0x38] sm:$0xf] %vm1880, %v5763
        %5845 = vst.msk [vmem:[#allocation3 + $0x3c] sm:$0xf] %vm1880, %v5765
        %5846 = vst.msk [vmem:[#allocation3 + $0x40] sm:$0xf] %vm1880, %v5767
        %5847 = vst.msk [vmem:[#allocation3 + $0x44] sm:$0xf] %vm1880, %v5769
        %5848 = vst.msk [vmem:[#allocation3 + $0x48] sm:$0xf] %vm1880, %v5771
        %5849 = vst.msk [vmem:[#allocation3 + $0x4c] sm:$0xf] %vm1880, %v5773
        %5850 = vst.msk [vmem:[#allocation3 + $0x50] sm:$0xf] %vm1880, %v5775
        %5851 = vst.msk [vmem:[#allocation3 + $0x54] sm:$0xf] %vm1880, %v5777
        %5852 = vst.msk [vmem:[#allocation3 + $0x58] sm:$0xf] %vm1880, %v5779
        %5853 = vst.msk [vmem:[#allocation3 + $0x5c] sm:$0xf] %vm1880, %v5781
        %5854 = vst.msk [vmem:[#allocation3 + $0x60] sm:$0xf] %vm1880, %v5783
        %5855 = vst.msk [vmem:[#allocation3 + $0x64] sm:$0xf] %vm1880, %v5785
        %5856 = vst.msk [vmem:[#allocation3 + $0x68] sm:$0xf] %vm1880, %v5787
        %5857 = vst.msk [vmem:[#allocation3 + $0x6c] sm:$0xf] %vm1880, %v5789
        %5858 = vst.msk [vmem:[#allocation3 + $0x70] sm:$0xf] %vm1880, %v5791
        %5859 = vst.msk [vmem:[#allocation3 + $0x74] sm:$0xf] %vm1880, %v5793
        %5860 = vst.msk [vmem:[#allocation3 + $0x78] sm:$0xf] %vm1880, %v5795
        %5861 = vst.msk [vmem:[#allocation3 + $0x7c] sm:$0xf] %vm1880, %v5797
        %v5862 = vld [vmem:[%s310] sm:$0xf]
        %v5863 = vld [vmem:[%s310 + $0x4] sm:$0xf]
        %v5864 = vld [vmem:[%s310 + $0xc] sm:$0xf]
        %v5865 = vld [vmem:[%s310 + $0x10] sm:$0xf]
        %v5866 = vld [vmem:[%s310 + $0x18] sm:$0xf]
        %v5867 = vld [vmem:[%s310 + $0x1c] sm:$0xf]
        %v5868 = vld [vmem:[%s310 + $0x24] sm:$0xf]
        %v5869 = vld [vmem:[%s310 + $0x28] sm:$0xf]
        %v5870 = vld [vmem:[%s310 + $0x30] sm:$0xf]
        %v5871 = vld [vmem:[%s310 + $0x34] sm:$0xf]
        %v5872 = vld [vmem:[%s310 + $0x3c] sm:$0xf]
        %v5873 = vld [vmem:[%s310 + $0x40] sm:$0xf]
        %v5874 = vld [vmem:[%s310 + $0x48] sm:$0xf]
        %v5875 = vld [vmem:[%s310 + $0x4c] sm:$0xf]
        %v5876 = vld [vmem:[%s310 + $0x54] sm:$0xf]
        %v5877 = vld [vmem:[%s310 + $0x58] sm:$0xf]
        %v5878 = vld [vmem:[%s310 + $0x60] sm:$0xf]
        %v5879 = vld [vmem:[%s310 + $0x64] sm:$0xf]
        %v5880 = vld [vmem:[%s310 + $0x6c] sm:$0xf]
        %v5881 = vld [vmem:[%s310 + $0x70] sm:$0xf]
        %v5882 = vld [vmem:[%s310 + $0x78] sm:$0xf]
        %v5883 = vld [vmem:[%s310 + $0x7c] sm:$0xf]
        %v5884 = vld [vmem:[%s310 + $0x84] sm:$0xf]
        %v5885 = vld [vmem:[%s310 + $0x88] sm:$0xf]
        %v5886 = vld [vmem:[%s310 + $0x90] sm:$0xf]
        %v5887 = vld [vmem:[%s310 + $0x94] sm:$0xf]
        %v5888 = vld [vmem:[%s310 + $0x9c] sm:$0xf]
        %v5889 = vld [vmem:[%s310 + $0xa0] sm:$0xf]
        %v5890 = vld [vmem:[%s310 + $0xa8] sm:$0xf]
        %v5891 = vld [vmem:[%s310 + $0xac] sm:$0xf]
        %v5892 = vld [vmem:[%s310 + $0xb4] sm:$0xf]
        %v5893 = vld [vmem:[%s310 + $0xb8] sm:$0xf]
        %5926 = vrot.lane.b32.xlu0 %v5862, 12
        %v5927 = vpop.permute.xlu0 %5926
        %5928 = vrot.lane.b32.xlu0 %v5863, 12
        %v5929 = vpop.permute.xlu0 %5928
        %5930 = vrot.lane.b32.xlu0 %v5864, 12
        %v5931 = vpop.permute.xlu0 %5930
        %5932 = vrot.lane.b32.xlu0 %v5865, 12
        %v5933 = vpop.permute.xlu0 %5932
        %5934 = vrot.lane.b32.xlu0 %v5866, 12
        %v5935 = vpop.permute.xlu0 %5934
        %5936 = vrot.lane.b32.xlu0 %v5867, 12
        %v5937 = vpop.permute.xlu0 %5936
        %5938 = vrot.lane.b32.xlu0 %v5868, 12
        %v5939 = vpop.permute.xlu0 %5938
        %5940 = vrot.lane.b32.xlu0 %v5869, 12
        %v5941 = vpop.permute.xlu0 %5940
        %5942 = vrot.lane.b32.xlu0 %v5870, 12
        %v5943 = vpop.permute.xlu0 %5942
        %5944 = vrot.lane.b32.xlu0 %v5871, 12
        %v5945 = vpop.permute.xlu0 %5944
        %5946 = vrot.lane.b32.xlu0 %v5872, 12
        %v5947 = vpop.permute.xlu0 %5946
        %5948 = vrot.lane.b32.xlu0 %v5873, 12
        %v5949 = vpop.permute.xlu0 %5948
        %5950 = vrot.lane.b32.xlu0 %v5874, 12
        %v5951 = vpop.permute.xlu0 %5950
        %5952 = vrot.lane.b32.xlu0 %v5875, 12
        %v5953 = vpop.permute.xlu0 %5952
        %5954 = vrot.lane.b32.xlu0 %v5876, 12
        %v5955 = vpop.permute.xlu0 %5954
        %5956 = vrot.lane.b32.xlu0 %v5877, 12
        %v5957 = vpop.permute.xlu0 %5956
        %5958 = vrot.lane.b32.xlu0 %v5878, 12
        %v5959 = vpop.permute.xlu0 %5958
        %5960 = vrot.lane.b32.xlu0 %v5879, 12
        %v5961 = vpop.permute.xlu0 %5960
        %5962 = vrot.lane.b32.xlu0 %v5880, 12
        %v5963 = vpop.permute.xlu0 %5962
        %5964 = vrot.lane.b32.xlu0 %v5881, 12
        %v5965 = vpop.permute.xlu0 %5964
        %5966 = vrot.lane.b32.xlu0 %v5882, 12
        %v5967 = vpop.permute.xlu0 %5966
        %5968 = vrot.lane.b32.xlu0 %v5883, 12
        %v5969 = vpop.permute.xlu0 %5968
        %5970 = vrot.lane.b32.xlu0 %v5884, 12
        %v5971 = vpop.permute.xlu0 %5970
        %5972 = vrot.lane.b32.xlu0 %v5885, 12
        %v5973 = vpop.permute.xlu0 %5972
        %5974 = vrot.lane.b32.xlu0 %v5886, 12
        %v5975 = vpop.permute.xlu0 %5974
        %5976 = vrot.lane.b32.xlu0 %v5887, 12
        %v5977 = vpop.permute.xlu0 %5976
        %5978 = vrot.lane.b32.xlu0 %v5888, 12
        %v5979 = vpop.permute.xlu0 %5978
        %5980 = vrot.lane.b32.xlu0 %v5889, 12
        %v5981 = vpop.permute.xlu0 %5980
        %5982 = vrot.lane.b32.xlu0 %v5890, 12
        %v5983 = vpop.permute.xlu0 %5982
        %5984 = vrot.lane.b32.xlu0 %v5891, 12
        %v5985 = vpop.permute.xlu0 %5984
        %5986 = vrot.lane.b32.xlu0 %v5892, 12
        %v5987 = vpop.permute.xlu0 %5986
        %5988 = vrot.lane.b32.xlu0 %v5893, 12
        %v5989 = vpop.permute.xlu0 %5988
        %6022 = vst.msk [vmem:[#allocation3] sm:$0xf] %vm2073, %v5927
        %6023 = vst.msk [vmem:[#allocation3 + $0x4] sm:$0xf] %vm2073, %v5929
        %6024 = vst.msk [vmem:[#allocation3 + $0x8] sm:$0xf] %vm2073, %v5931
        %6025 = vst.msk [vmem:[#allocation3 + $0xc] sm:$0xf] %vm2073, %v5933
        %6026 = vst.msk [vmem:[#allocation3 + $0x10] sm:$0xf] %vm2073, %v5935
        %6027 = vst.msk [vmem:[#allocation3 + $0x14] sm:$0xf] %vm2073, %v5937
        %6028 = vst.msk [vmem:[#allocation3 + $0x18] sm:$0xf] %vm2073, %v5939
        %6029 = vst.msk [vmem:[#allocation3 + $0x1c] sm:$0xf] %vm2073, %v5941
        %6030 = vst.msk [vmem:[#allocation3 + $0x20] sm:$0xf] %vm2073, %v5943
        %6031 = vst.msk [vmem:[#allocation3 + $0x24] sm:$0xf] %vm2073, %v5945
        %6032 = vst.msk [vmem:[#allocation3 + $0x28] sm:$0xf] %vm2073, %v5947
        %6033 = vst.msk [vmem:[#allocation3 + $0x2c] sm:$0xf] %vm2073, %v5949
        %6034 = vst.msk [vmem:[#allocation3 + $0x30] sm:$0xf] %vm2073, %v5951
        %6035 = vst.msk [vmem:[#allocation3 + $0x34] sm:$0xf] %vm2073, %v5953
        %6036 = vst.msk [vmem:[#allocation3 + $0x38] sm:$0xf] %vm2073, %v5955
        %6037 = vst.msk [vmem:[#allocation3 + $0x3c] sm:$0xf] %vm2073, %v5957
        %6038 = vst.msk [vmem:[#allocation3 + $0x40] sm:$0xf] %vm2073, %v5959
        %6039 = vst.msk [vmem:[#allocation3 + $0x44] sm:$0xf] %vm2073, %v5961
        %6040 = vst.msk [vmem:[#allocation3 + $0x48] sm:$0xf] %vm2073, %v5963
        %6041 = vst.msk [vmem:[#allocation3 + $0x4c] sm:$0xf] %vm2073, %v5965
        %6042 = vst.msk [vmem:[#allocation3 + $0x50] sm:$0xf] %vm2073, %v5967
        %6043 = vst.msk [vmem:[#allocation3 + $0x54] sm:$0xf] %vm2073, %v5969
        %6044 = vst.msk [vmem:[#allocation3 + $0x58] sm:$0xf] %vm2073, %v5971
        %6045 = vst.msk [vmem:[#allocation3 + $0x5c] sm:$0xf] %vm2073, %v5973
        %6046 = vst.msk [vmem:[#allocation3 + $0x60] sm:$0xf] %vm2073, %v5975
        %6047 = vst.msk [vmem:[#allocation3 + $0x64] sm:$0xf] %vm2073, %v5977
        %6048 = vst.msk [vmem:[#allocation3 + $0x68] sm:$0xf] %vm2073, %v5979
        %6049 = vst.msk [vmem:[#allocation3 + $0x6c] sm:$0xf] %vm2073, %v5981
        %6050 = vst.msk [vmem:[#allocation3 + $0x70] sm:$0xf] %vm2073, %v5983
        %6051 = vst.msk [vmem:[#allocation3 + $0x74] sm:$0xf] %vm2073, %v5985
        %6052 = vst.msk [vmem:[#allocation3 + $0x78] sm:$0xf] %vm2073, %v5987
        %6053 = vst.msk [vmem:[#allocation3 + $0x7c] sm:$0xf] %vm2073, %v5989
        %v6054 = vld [vmem:[%s310] sm:$0xf]
        %v6055 = vld [vmem:[%s310 + $0x4] sm:$0xf]
        %v6056 = vld [vmem:[%s310 + $0x8] sm:$0x1]
        %v6057 = vld [vmem:[%s310 + $0xc] sm:$0xf]
        %v6058 = vld [vmem:[%s310 + $0x10] sm:$0xf]
        %v6059 = vld [vmem:[%s310 + $0x14] sm:$0x1]
        %v6060 = vld [vmem:[%s310 + $0x18] sm:$0xf]
        %v6061 = vld [vmem:[%s310 + $0x1c] sm:$0xf]
        %v6062 = vld [vmem:[%s310 + $0x20] sm:$0x1]
        %v6063 = vld [vmem:[%s310 + $0x24] sm:$0xf]
        %v6064 = vld [vmem:[%s310 + $0x28] sm:$0xf]
        %v6065 = vld [vmem:[%s310 + $0x2c] sm:$0x1]
        %v6066 = vld [vmem:[%s310 + $0x30] sm:$0xf]
        %v6067 = vld [vmem:[%s310 + $0x34] sm:$0xf]
        %v6068 = vld [vmem:[%s310 + $0x38] sm:$0x1]
        %v6069 = vld [vmem:[%s310 + $0x3c] sm:$0xf]
        %v6070 = vld [vmem:[%s310 + $0x40] sm:$0xf]
        %v6071 = vld [vmem:[%s310 + $0x44] sm:$0x1]
        %v6072 = vld [vmem:[%s310 + $0x48] sm:$0xf]
        %v6073 = vld [vmem:[%s310 + $0x4c] sm:$0xf]
        %v6074 = vld [vmem:[%s310 + $0x50] sm:$0x1]
        %v6075 = vld [vmem:[%s310 + $0x54] sm:$0xf]
        %v6076 = vld [vmem:[%s310 + $0x58] sm:$0xf]
        %v6077 = vld [vmem:[%s310 + $0x5c] sm:$0x1]
        %v6078 = vld [vmem:[%s310 + $0x60] sm:$0xf]
        %v6079 = vld [vmem:[%s310 + $0x64] sm:$0xf]
        %v6080 = vld [vmem:[%s310 + $0x68] sm:$0x1]
        %v6081 = vld [vmem:[%s310 + $0x6c] sm:$0xf]
        %v6082 = vld [vmem:[%s310 + $0x70] sm:$0xf]
        %v6083 = vld [vmem:[%s310 + $0x74] sm:$0x1]
        %v6084 = vld [vmem:[%s310 + $0x78] sm:$0xf]
        %v6085 = vld [vmem:[%s310 + $0x7c] sm:$0xf]
        %v6086 = vld [vmem:[%s310 + $0x80] sm:$0x1]
        %v6087 = vld [vmem:[%s310 + $0x84] sm:$0xf]
        %v6088 = vld [vmem:[%s310 + $0x88] sm:$0xf]
        %v6089 = vld [vmem:[%s310 + $0x8c] sm:$0x1]
        %v6090 = vld [vmem:[%s310 + $0x90] sm:$0xf]
        %v6091 = vld [vmem:[%s310 + $0x94] sm:$0xf]
        %v6092 = vld [vmem:[%s310 + $0x98] sm:$0x1]
        %v6093 = vld [vmem:[%s310 + $0x9c] sm:$0xf]
        %v6094 = vld [vmem:[%s310 + $0xa0] sm:$0xf]
        %v6095 = vld [vmem:[%s310 + $0xa4] sm:$0x1]
        %v6096 = vld [vmem:[%s310 + $0xa8] sm:$0xf]
        %v6097 = vld [vmem:[%s310 + $0xac] sm:$0xf]
        %v6098 = vld [vmem:[%s310 + $0xb0] sm:$0x1]
        %v6099 = vld [vmem:[%s310 + $0xb4] sm:$0xf]
        %v6100 = vld [vmem:[%s310 + $0xb8] sm:$0xf]
        %v6101 = vld [vmem:[%s310 + $0xbc] sm:$0x1]
        %v6103 = vshrl.u32 %v6054, 16
        %v6105 = vrot.slane %v6103, 4
        %v6106 = vshll.u32 %v6054, 16
        %v6108 = vrot.slane %v6106, 5
        %v6109 = vor.u32 %v6105, %v6108
        %v6110 = vrot.slane %v6109, 4
        %v6112 = vshll.u32 %v6055, 16
        %v6114 = vrot.slane %v6112, 5
        %v6115 = vsel %vm1059, %v6110, %v6114
        %v6116 = vshrl.u32 %v6055, 16
        %v6118 = vrot.slane %v6116, 4
        %v6119 = vor.u32 %v6118, %v6114
        %v6120 = vrot.slane %v6119, 4
        %v6122 = vshll.u32 %v6056, 16
        %v6124 = vrot.slane %v6122, 5
        %v6125 = vsel %vm1059, %v6120, %v6124
        %v6127 = vshrl.u32 %v6057, 16
        %v6129 = vrot.slane %v6127, 4
        %v6130 = vshll.u32 %v6057, 16
        %v6132 = vrot.slane %v6130, 5
        %v6133 = vor.u32 %v6129, %v6132
        %v6134 = vrot.slane %v6133, 4
        %v6136 = vshll.u32 %v6058, 16
        %v6138 = vrot.slane %v6136, 5
        %v6139 = vsel %vm1059, %v6134, %v6138
        %v6140 = vshrl.u32 %v6058, 16
        %v6142 = vrot.slane %v6140, 4
        %v6143 = vor.u32 %v6142, %v6138
        %v6144 = vrot.slane %v6143, 4
        %v6146 = vshll.u32 %v6059, 16
        %v6148 = vrot.slane %v6146, 5
        %v6149 = vsel %vm1059, %v6144, %v6148
        %v6151 = vshrl.u32 %v6060, 16
        %v6153 = vrot.slane %v6151, 4
        %v6154 = vshll.u32 %v6060, 16
        %v6156 = vrot.slane %v6154, 5
        %v6157 = vor.u32 %v6153, %v6156
        %v6158 = vrot.slane %v6157, 4
        %v6160 = vshll.u32 %v6061, 16
        %v6162 = vrot.slane %v6160, 5
        %v6163 = vsel %vm1059, %v6158, %v6162
        %v6164 = vshrl.u32 %v6061, 16
        %v6166 = vrot.slane %v6164, 4
        %v6167 = vor.u32 %v6166, %v6162
        %v6168 = vrot.slane %v6167, 4
        %v6170 = vshll.u32 %v6062, 16
        %v6172 = vrot.slane %v6170, 5
        %v6173 = vsel %vm1059, %v6168, %v6172
        %v6175 = vshrl.u32 %v6063, 16
        %v6177 = vrot.slane %v6175, 4
        %v6178 = vshll.u32 %v6063, 16
        %v6180 = vrot.slane %v6178, 5
        %v6181 = vor.u32 %v6177, %v6180
        %v6182 = vrot.slane %v6181, 4
        %v6184 = vshll.u32 %v6064, 16
        %v6186 = vrot.slane %v6184, 5
        %v6187 = vsel %vm1059, %v6182, %v6186
        %v6188 = vshrl.u32 %v6064, 16
        %v6190 = vrot.slane %v6188, 4
        %v6191 = vor.u32 %v6190, %v6186
        %v6192 = vrot.slane %v6191, 4
        %v6194 = vshll.u32 %v6065, 16
        %v6196 = vrot.slane %v6194, 5
        %v6197 = vsel %vm1059, %v6192, %v6196
        %v6199 = vshrl.u32 %v6066, 16
        %v6201 = vrot.slane %v6199, 4
        %v6202 = vshll.u32 %v6066, 16
        %v6204 = vrot.slane %v6202, 5
        %v6205 = vor.u32 %v6201, %v6204
        %v6206 = vrot.slane %v6205, 4
        %v6208 = vshll.u32 %v6067, 16
        %v6210 = vrot.slane %v6208, 5
        %v6211 = vsel %vm1059, %v6206, %v6210
        %v6212 = vshrl.u32 %v6067, 16
        %v6214 = vrot.slane %v6212, 4
        %v6215 = vor.u32 %v6214, %v6210
        %v6216 = vrot.slane %v6215, 4
        %v6218 = vshll.u32 %v6068, 16
        %v6220 = vrot.slane %v6218, 5
        %v6221 = vsel %vm1059, %v6216, %v6220
        %v6223 = vshrl.u32 %v6069, 16
        %v6225 = vrot.slane %v6223, 4
        %v6226 = vshll.u32 %v6069, 16
        %v6228 = vrot.slane %v6226, 5
        %v6229 = vor.u32 %v6225, %v6228
        %v6230 = vrot.slane %v6229, 4
        %v6232 = vshll.u32 %v6070, 16
        %v6234 = vrot.slane %v6232, 5
        %v6235 = vsel %vm1059, %v6230, %v6234
        %v6236 = vshrl.u32 %v6070, 16
        %v6238 = vrot.slane %v6236, 4
        %v6239 = vor.u32 %v6238, %v6234
        %v6240 = vrot.slane %v6239, 4
        %v6242 = vshll.u32 %v6071, 16
        %v6244 = vrot.slane %v6242, 5
        %v6245 = vsel %vm1059, %v6240, %v6244
        %v6247 = vshrl.u32 %v6072, 16
        %v6249 = vrot.slane %v6247, 4
        %v6250 = vshll.u32 %v6072, 16
        %v6252 = vrot.slane %v6250, 5
        %v6253 = vor.u32 %v6249, %v6252
        %v6254 = vrot.slane %v6253, 4
        %v6256 = vshll.u32 %v6073, 16
        %v6258 = vrot.slane %v6256, 5
        %v6259 = vsel %vm1059, %v6254, %v6258
        %v6260 = vshrl.u32 %v6073, 16
        %v6262 = vrot.slane %v6260, 4
        %v6263 = vor.u32 %v6262, %v6258
        %v6264 = vrot.slane %v6263, 4
        %v6266 = vshll.u32 %v6074, 16
        %v6268 = vrot.slane %v6266, 5
        %v6269 = vsel %vm1059, %v6264, %v6268
        %v6271 = vshrl.u32 %v6075, 16
        %v6273 = vrot.slane %v6271, 4
        %v6274 = vshll.u32 %v6075, 16
        %v6276 = vrot.slane %v6274, 5
        %v6277 = vor.u32 %v6273, %v6276
        %v6278 = vrot.slane %v6277, 4
        %v6280 = vshll.u32 %v6076, 16
        %v6282 = vrot.slane %v6280, 5
        %v6283 = vsel %vm1059, %v6278, %v6282
        %v6284 = vshrl.u32 %v6076, 16
        %v6286 = vrot.slane %v6284, 4
        %v6287 = vor.u32 %v6286, %v6282
        %v6288 = vrot.slane %v6287, 4
        %v6290 = vshll.u32 %v6077, 16
        %v6292 = vrot.slane %v6290, 5
        %v6293 = vsel %vm1059, %v6288, %v6292
        %v6295 = vshrl.u32 %v6078, 16
        %v6297 = vrot.slane %v6295, 4
        %v6298 = vshll.u32 %v6078, 16
        %v6300 = vrot.slane %v6298, 5
        %v6301 = vor.u32 %v6297, %v6300
        %v6302 = vrot.slane %v6301, 4
        %v6304 = vshll.u32 %v6079, 16
        %v6306 = vrot.slane %v6304, 5
        %v6307 = vsel %vm1059, %v6302, %v6306
        %v6308 = vshrl.u32 %v6079, 16
        %v6310 = vrot.slane %v6308, 4
        %v6311 = vor.u32 %v6310, %v6306
        %v6312 = vrot.slane %v6311, 4
        %v6314 = vshll.u32 %v6080, 16
        %v6316 = vrot.slane %v6314, 5
        %v6317 = vsel %vm1059, %v6312, %v6316
        %v6319 = vshrl.u32 %v6081, 16
        %v6321 = vrot.slane %v6319, 4
        %v6322 = vshll.u32 %v6081, 16
        %v6324 = vrot.slane %v6322, 5
        %v6325 = vor.u32 %v6321, %v6324
        %v6326 = vrot.slane %v6325, 4
        %v6328 = vshll.u32 %v6082, 16
        %v6330 = vrot.slane %v6328, 5
        %v6331 = vsel %vm1059, %v6326, %v6330
        %v6332 = vshrl.u32 %v6082, 16
        %v6334 = vrot.slane %v6332, 4
        %v6335 = vor.u32 %v6334, %v6330
        %v6336 = vrot.slane %v6335, 4
        %v6338 = vshll.u32 %v6083, 16
        %v6340 = vrot.slane %v6338, 5
        %v6341 = vsel %vm1059, %v6336, %v6340
        %v6343 = vshrl.u32 %v6084, 16
        %v6345 = vrot.slane %v6343, 4
        %v6346 = vshll.u32 %v6084, 16
        %v6348 = vrot.slane %v6346, 5
        %v6349 = vor.u32 %v6345, %v6348
        %v6350 = vrot.slane %v6349, 4
        %v6352 = vshll.u32 %v6085, 16
        %v6354 = vrot.slane %v6352, 5
        %v6355 = vsel %vm1059, %v6350, %v6354
        %v6356 = vshrl.u32 %v6085, 16
        %v6358 = vrot.slane %v6356, 4
        %v6359 = vor.u32 %v6358, %v6354
        %v6360 = vrot.slane %v6359, 4
        %v6362 = vshll.u32 %v6086, 16
        %v6364 = vrot.slane %v6362, 5
        %v6365 = vsel %vm1059, %v6360, %v6364
        %v6367 = vshrl.u32 %v6087, 16
        %v6369 = vrot.slane %v6367, 4
        %v6370 = vshll.u32 %v6087, 16
        %v6372 = vrot.slane %v6370, 5
        %v6373 = vor.u32 %v6369, %v6372
        %v6374 = vrot.slane %v6373, 4
        %v6376 = vshll.u32 %v6088, 16
        %v6378 = vrot.slane %v6376, 5
        %v6379 = vsel %vm1059, %v6374, %v6378
        %v6380 = vshrl.u32 %v6088, 16
        %v6382 = vrot.slane %v6380, 4
        %v6383 = vor.u32 %v6382, %v6378
        %v6384 = vrot.slane %v6383, 4
        %v6386 = vshll.u32 %v6089, 16
        %v6388 = vrot.slane %v6386, 5
        %v6389 = vsel %vm1059, %v6384, %v6388
        %v6391 = vshrl.u32 %v6090, 16
        %v6393 = vrot.slane %v6391, 4
        %v6394 = vshll.u32 %v6090, 16
        %v6396 = vrot.slane %v6394, 5
        %v6397 = vor.u32 %v6393, %v6396
        %v6398 = vrot.slane %v6397, 4
        %v6400 = vshll.u32 %v6091, 16
        %v6402 = vrot.slane %v6400, 5
        %v6403 = vsel %vm1059, %v6398, %v6402
        %v6404 = vshrl.u32 %v6091, 16
        %v6406 = vrot.slane %v6404, 4
        %v6407 = vor.u32 %v6406, %v6402
        %v6408 = vrot.slane %v6407, 4
        %v6410 = vshll.u32 %v6092, 16
        %v6412 = vrot.slane %v6410, 5
        %v6413 = vsel %vm1059, %v6408, %v6412
        %v6415 = vshrl.u32 %v6093, 16
        %v6417 = vrot.slane %v6415, 4
        %v6418 = vshll.u32 %v6093, 16
        %v6420 = vrot.slane %v6418, 5
        %v6421 = vor.u32 %v6417, %v6420
        %v6422 = vrot.slane %v6421, 4
        %v6424 = vshll.u32 %v6094, 16
        %v6426 = vrot.slane %v6424, 5
        %v6427 = vsel %vm1059, %v6422, %v6426
        %v6428 = vshrl.u32 %v6094, 16
        %v6430 = vrot.slane %v6428, 4
        %v6431 = vor.u32 %v6430, %v6426
        %v6432 = vrot.slane %v6431, 4
        %v6434 = vshll.u32 %v6095, 16
        %v6436 = vrot.slane %v6434, 5
        %v6437 = vsel %vm1059, %v6432, %v6436
        %v6439 = vshrl.u32 %v6096, 16
        %v6441 = vrot.slane %v6439, 4
        %v6442 = vshll.u32 %v6096, 16
        %v6444 = vrot.slane %v6442, 5
        %v6445 = vor.u32 %v6441, %v6444
        %v6446 = vrot.slane %v6445, 4
        %v6448 = vshll.u32 %v6097, 16
        %v6450 = vrot.slane %v6448, 5
        %v6451 = vsel %vm1059, %v6446, %v6450
        %v6452 = vshrl.u32 %v6097, 16
        %v6454 = vrot.slane %v6452, 4
        %v6455 = vor.u32 %v6454, %v6450
        %v6456 = vrot.slane %v6455, 4
        %v6458 = vshll.u32 %v6098, 16
        %v6460 = vrot.slane %v6458, 5
        %v6461 = vsel %vm1059, %v6456, %v6460
        %v6463 = vshrl.u32 %v6099, 16
        %v6465 = vrot.slane %v6463, 4
        %v6466 = vshll.u32 %v6099, 16
        %v6468 = vrot.slane %v6466, 5
        %v6469 = vor.u32 %v6465, %v6468
        %v6470 = vrot.slane %v6469, 4
        %v6472 = vshll.u32 %v6100, 16
        %v6474 = vrot.slane %v6472, 5
        %v6475 = vsel %vm1059, %v6470, %v6474
        %v6476 = vshrl.u32 %v6100, 16
        %v6478 = vrot.slane %v6476, 4
        %v6479 = vor.u32 %v6478, %v6474
        %v6480 = vrot.slane %v6479, 4
        %v6482 = vshll.u32 %v6101, 16
        %v6484 = vrot.slane %v6482, 5
        %v6485 = vsel %vm1059, %v6480, %v6484
        %6486 = vrot.lane.b32.xlu0 %v6115, 16
        %v6487 = vpop.permute.xlu0 %6486
        %6488 = vrot.lane.b32.xlu0 %v6125, 16
        %v6489 = vpop.permute.xlu0 %6488
        %6490 = vrot.lane.b32.xlu0 %v6139, 16
        %v6491 = vpop.permute.xlu0 %6490
        %6492 = vrot.lane.b32.xlu0 %v6149, 16
        %v6493 = vpop.permute.xlu0 %6492
        %6494 = vrot.lane.b32.xlu0 %v6163, 16
        %v6495 = vpop.permute.xlu0 %6494
        %6496 = vrot.lane.b32.xlu0 %v6173, 16
        %v6497 = vpop.permute.xlu0 %6496
        %6498 = vrot.lane.b32.xlu0 %v6187, 16
        %v6499 = vpop.permute.xlu0 %6498
        %6500 = vrot.lane.b32.xlu0 %v6197, 16
        %v6501 = vpop.permute.xlu0 %6500
        %6502 = vrot.lane.b32.xlu0 %v6211, 16
        %v6503 = vpop.permute.xlu0 %6502
        %6504 = vrot.lane.b32.xlu0 %v6221, 16
        %v6505 = vpop.permute.xlu0 %6504
        %6506 = vrot.lane.b32.xlu0 %v6235, 16
        %v6507 = vpop.permute.xlu0 %6506
        %6508 = vrot.lane.b32.xlu0 %v6245, 16
        %v6509 = vpop.permute.xlu0 %6508
        %6510 = vrot.lane.b32.xlu0 %v6259, 16
        %v6511 = vpop.permute.xlu0 %6510
        %6512 = vrot.lane.b32.xlu0 %v6269, 16
        %v6513 = vpop.permute.xlu0 %6512
        %6514 = vrot.lane.b32.xlu0 %v6283, 16
        %v6515 = vpop.permute.xlu0 %6514
        %6516 = vrot.lane.b32.xlu0 %v6293, 16
        %v6517 = vpop.permute.xlu0 %6516
        %6518 = vrot.lane.b32.xlu0 %v6307, 16
        %v6519 = vpop.permute.xlu0 %6518
        %6520 = vrot.lane.b32.xlu0 %v6317, 16
        %v6521 = vpop.permute.xlu0 %6520
        %6522 = vrot.lane.b32.xlu0 %v6331, 16
        %v6523 = vpop.permute.xlu0 %6522
        %6524 = vrot.lane.b32.xlu0 %v6341, 16
        %v6525 = vpop.permute.xlu0 %6524
        %6526 = vrot.lane.b32.xlu0 %v6355, 16
        %v6527 = vpop.permute.xlu0 %6526
        %6528 = vrot.lane.b32.xlu0 %v6365, 16
        %v6529 = vpop.permute.xlu0 %6528
        %6530 = vrot.lane.b32.xlu0 %v6379, 16
        %v6531 = vpop.permute.xlu0 %6530
        %6532 = vrot.lane.b32.xlu0 %v6389, 16
        %v6533 = vpop.permute.xlu0 %6532
        %6534 = vrot.lane.b32.xlu0 %v6403, 16
        %v6535 = vpop.permute.xlu0 %6534
        %6536 = vrot.lane.b32.xlu0 %v6413, 16
        %v6537 = vpop.permute.xlu0 %6536
        %6538 = vrot.lane.b32.xlu0 %v6427, 16
        %v6539 = vpop.permute.xlu0 %6538
        %6540 = vrot.lane.b32.xlu0 %v6437, 16
        %v6541 = vpop.permute.xlu0 %6540
        %6542 = vrot.lane.b32.xlu0 %v6451, 16
        %v6543 = vpop.permute.xlu0 %6542
        %6544 = vrot.lane.b32.xlu0 %v6461, 16
        %v6545 = vpop.permute.xlu0 %6544
        %6546 = vrot.lane.b32.xlu0 %v6475, 16
        %v6547 = vpop.permute.xlu0 %6546
        %6548 = vrot.lane.b32.xlu0 %v6485, 16
        %v6549 = vpop.permute.xlu0 %6548
        %6582 = vst.msk [vmem:[#allocation3] sm:$0xf] %vm2634, %v6487
        %6583 = vst.msk [vmem:[#allocation3 + $0x4] sm:$0xf] %vm2634, %v6489
        %6584 = vst.msk [vmem:[#allocation3 + $0x8] sm:$0xf] %vm2634, %v6491
        %6585 = vst.msk [vmem:[#allocation3 + $0xc] sm:$0xf] %vm2634, %v6493
        %6586 = vst.msk [vmem:[#allocation3 + $0x10] sm:$0xf] %vm2634, %v6495
        %6587 = vst.msk [vmem:[#allocation3 + $0x14] sm:$0xf] %vm2634, %v6497
        %6588 = vst.msk [vmem:[#allocation3 + $0x18] sm:$0xf] %vm2634, %v6499
        %6589 = vst.msk [vmem:[#allocation3 + $0x1c] sm:$0xf] %vm2634, %v6501
        %6590 = vst.msk [vmem:[#allocation3 + $0x20] sm:$0xf] %vm2634, %v6503
        %6591 = vst.msk [vmem:[#allocation3 + $0x24] sm:$0xf] %vm2634, %v6505
        %6592 = vst.msk [vmem:[#allocation3 + $0x28] sm:$0xf] %vm2634, %v6507
        %6593 = vst.msk [vmem:[#allocation3 + $0x2c] sm:$0xf] %vm2634, %v6509
        %6594 = vst.msk [vmem:[#allocation3 + $0x30] sm:$0xf] %vm2634, %v6511
        %6595 = vst.msk [vmem:[#allocation3 + $0x34] sm:$0xf] %vm2634, %v6513
        %6596 = vst.msk [vmem:[#allocation3 + $0x38] sm:$0xf] %vm2634, %v6515
        %6597 = vst.msk [vmem:[#allocation3 + $0x3c] sm:$0xf] %vm2634, %v6517
        %6598 = vst.msk [vmem:[#allocation3 + $0x40] sm:$0xf] %vm2634, %v6519
        %6599 = vst.msk [vmem:[#allocation3 + $0x44] sm:$0xf] %vm2634, %v6521
        %6600 = vst.msk [vmem:[#allocation3 + $0x48] sm:$0xf] %vm2634, %v6523
        %6601 = vst.msk [vmem:[#allocation3 + $0x4c] sm:$0xf] %vm2634, %v6525
        %6602 = vst.msk [vmem:[#allocation3 + $0x50] sm:$0xf] %vm2634, %v6527
        %6603 = vst.msk [vmem:[#allocation3 + $0x54] sm:$0xf] %vm2634, %v6529
        %6604 = vst.msk [vmem:[#allocation3 + $0x58] sm:$0xf] %vm2634, %v6531
        %6605 = vst.msk [vmem:[#allocation3 + $0x5c] sm:$0xf] %vm2634, %v6533
        %6606 = vst.msk [vmem:[#allocation3 + $0x60] sm:$0xf] %vm2634, %v6535
        %6607 = vst.msk [vmem:[#allocation3 + $0x64] sm:$0xf] %vm2634, %v6537
        %6608 = vst.msk [vmem:[#allocation3 + $0x68] sm:$0xf] %vm2634, %v6539
        %6609 = vst.msk [vmem:[#allocation3 + $0x6c] sm:$0xf] %vm2634, %v6541
        %6610 = vst.msk [vmem:[#allocation3 + $0x70] sm:$0xf] %vm2634, %v6543
        %6611 = vst.msk [vmem:[#allocation3 + $0x74] sm:$0xf] %vm2634, %v6545
        %6612 = vst.msk [vmem:[#allocation3 + $0x78] sm:$0xf] %vm2634, %v6547
        %6613 = vst.msk [vmem:[#allocation3 + $0x7c] sm:$0xf] %vm2634, %v6549
        %v6614 = vld [vmem:[%s310] sm:$0xe]
        %v6615 = vld [vmem:[%s310 + $0x4] sm:$0xf]
        %v6616 = vld [vmem:[%s310 + $0x8] sm:$0x1]
        %v6617 = vld [vmem:[%s310 + $0xc] sm:$0xe]
        %v6618 = vld [vmem:[%s310 + $0x10] sm:$0xf]
        %v6619 = vld [vmem:[%s310 + $0x14] sm:$0x1]
        %v6620 = vld [vmem:[%s310 + $0x18] sm:$0xe]
        %v6621 = vld [vmem:[%s310 + $0x1c] sm:$0xf]
        %v6622 = vld [vmem:[%s310 + $0x20] sm:$0x1]
        %v6623 = vld [vmem:[%s310 + $0x24] sm:$0xe]
        %v6624 = vld [vmem:[%s310 + $0x28] sm:$0xf]
        %v6625 = vld [vmem:[%s310 + $0x2c] sm:$0x1]
        %v6626 = vld [vmem:[%s310 + $0x30] sm:$0xe]
        %v6627 = vld [vmem:[%s310 + $0x34] sm:$0xf]
        %v6628 = vld [vmem:[%s310 + $0x38] sm:$0x1]
        %v6629 = vld [vmem:[%s310 + $0x3c] sm:$0xe]
        %v6630 = vld [vmem:[%s310 + $0x40] sm:$0xf]
        %v6631 = vld [vmem:[%s310 + $0x44] sm:$0x1]
        %v6632 = vld [vmem:[%s310 + $0x48] sm:$0xe]
        %v6633 = vld [vmem:[%s310 + $0x4c] sm:$0xf]
        %v6634 = vld [vmem:[%s310 + $0x50] sm:$0x1]
        %v6635 = vld [vmem:[%s310 + $0x54] sm:$0xe]
        %v6636 = vld [vmem:[%s310 + $0x58] sm:$0xf]
        %v6637 = vld [vmem:[%s310 + $0x5c] sm:$0x1]
        %v6638 = vld [vmem:[%s310 + $0x60] sm:$0xe]
        %v6639 = vld [vmem:[%s310 + $0x64] sm:$0xf]
        %v6640 = vld [vmem:[%s310 + $0x68] sm:$0x1]
        %v6641 = vld [vmem:[%s310 + $0x6c] sm:$0xe]
        %v6642 = vld [vmem:[%s310 + $0x70] sm:$0xf]
        %v6643 = vld [vmem:[%s310 + $0x74] sm:$0x1]
        %v6644 = vld [vmem:[%s310 + $0x78] sm:$0xe]
        %v6645 = vld [vmem:[%s310 + $0x7c] sm:$0xf]
        %v6646 = vld [vmem:[%s310 + $0x80] sm:$0x1]
        %v6647 = vld [vmem:[%s310 + $0x84] sm:$0xe]
        %v6648 = vld [vmem:[%s310 + $0x88] sm:$0xf]
        %v6649 = vld [vmem:[%s310 + $0x8c] sm:$0x1]
        %v6650 = vld [vmem:[%s310 + $0x90] sm:$0xe]
        %v6651 = vld [vmem:[%s310 + $0x94] sm:$0xf]
        %v6652 = vld [vmem:[%s310 + $0x98] sm:$0x1]
        %v6653 = vld [vmem:[%s310 + $0x9c] sm:$0xe]
        %v6654 = vld [vmem:[%s310 + $0xa0] sm:$0xf]
        %v6655 = vld [vmem:[%s310 + $0xa4] sm:$0x1]
        %v6656 = vld [vmem:[%s310 + $0xa8] sm:$0xe]
        %v6657 = vld [vmem:[%s310 + $0xac] sm:$0xf]
        %v6658 = vld [vmem:[%s310 + $0xb0] sm:$0x1]
        %v6659 = vld [vmem:[%s310 + $0xb4] sm:$0xe]
        %v6660 = vld [vmem:[%s310 + $0xb8] sm:$0xf]
        %v6661 = vld [vmem:[%s310 + $0xbc] sm:$0x1]
        %v6710 = vrot.slane %v6614, 5
        %v6711 = vrot.slane %v6710, 4
        %v6712 = vrot.slane %v6615, 5
        %v6713 = vsel %vm1671, %v6711, %v6712
        %v6714 = vrot.slane %v6712, 4
        %v6715 = vrot.slane %v6616, 5
        %v6716 = vsel %vm1671, %v6714, %v6715
        %v6717 = vrot.slane %v6617, 5
        %v6718 = vrot.slane %v6717, 4
        %v6719 = vrot.slane %v6618, 5
        %v6720 = vsel %vm1671, %v6718, %v6719
        %v6721 = vrot.slane %v6719, 4
        %v6722 = vrot.slane %v6619, 5
        %v6723 = vsel %vm1671, %v6721, %v6722
        %v6724 = vrot.slane %v6620, 5
        %v6725 = vrot.slane %v6724, 4
        %v6726 = vrot.slane %v6621, 5
        %v6727 = vsel %vm1671, %v6725, %v6726
        %v6728 = vrot.slane %v6726, 4
        %v6729 = vrot.slane %v6622, 5
        %v6730 = vsel %vm1671, %v6728, %v6729
        %v6731 = vrot.slane %v6623, 5
        %v6732 = vrot.slane %v6731, 4
        %v6733 = vrot.slane %v6624, 5
        %v6734 = vsel %vm1671, %v6732, %v6733
        %v6735 = vrot.slane %v6733, 4
        %v6736 = vrot.slane %v6625, 5
        %v6737 = vsel %vm1671, %v6735, %v6736
        %v6738 = vrot.slane %v6626, 5
        %v6739 = vrot.slane %v6738, 4
        %v6740 = vrot.slane %v6627, 5
        %v6741 = vsel %vm1671, %v6739, %v6740
        %v6742 = vrot.slane %v6740, 4
        %v6743 = vrot.slane %v6628, 5
        %v6744 = vsel %vm1671, %v6742, %v6743
        %v6745 = vrot.slane %v6629, 5
        %v6746 = vrot.slane %v6745, 4
        %v6747 = vrot.slane %v6630, 5
        %v6748 = vsel %vm1671, %v6746, %v6747
        %v6749 = vrot.slane %v6747, 4
        %v6750 = vrot.slane %v6631, 5
        %v6751 = vsel %vm1671, %v6749, %v6750
        %v6752 = vrot.slane %v6632, 5
        %v6753 = vrot.slane %v6752, 4
        %v6754 = vrot.slane %v6633, 5
        %v6755 = vsel %vm1671, %v6753, %v6754
        %v6756 = vrot.slane %v6754, 4
        %v6757 = vrot.slane %v6634, 5
        %v6758 = vsel %vm1671, %v6756, %v6757
        %v6759 = vrot.slane %v6635, 5
        %v6760 = vrot.slane %v6759, 4
        %v6761 = vrot.slane %v6636, 5
        %v6762 = vsel %vm1671, %v6760, %v6761
        %v6763 = vrot.slane %v6761, 4
        %v6764 = vrot.slane %v6637, 5
        %v6765 = vsel %vm1671, %v6763, %v6764
        %v6766 = vrot.slane %v6638, 5
        %v6767 = vrot.slane %v6766, 4
        %v6768 = vrot.slane %v6639, 5
        %v6769 = vsel %vm1671, %v6767, %v6768
        %v6770 = vrot.slane %v6768, 4
        %v6771 = vrot.slane %v6640, 5
        %v6772 = vsel %vm1671, %v6770, %v6771
        %v6773 = vrot.slane %v6641, 5
        %v6774 = vrot.slane %v6773, 4
        %v6775 = vrot.slane %v6642, 5
        %v6776 = vsel %vm1671, %v6774, %v6775
        %v6777 = vrot.slane %v6775, 4
        %v6778 = vrot.slane %v6643, 5
        %v6779 = vsel %vm1671, %v6777, %v6778
        %v6780 = vrot.slane %v6644, 5
        %v6781 = vrot.slane %v6780, 4
        %v6782 = vrot.slane %v6645, 5
        %v6783 = vsel %vm1671, %v6781, %v6782
        %v6784 = vrot.slane %v6782, 4
        %v6785 = vrot.slane %v6646, 5
        %v6786 = vsel %vm1671, %v6784, %v6785
        %v6787 = vrot.slane %v6647, 5
        %v6788 = vrot.slane %v6787, 4
        %v6789 = vrot.slane %v6648, 5
        %v6790 = vsel %vm1671, %v6788, %v6789
        %v6791 = vrot.slane %v6789, 4
        %v6792 = vrot.slane %v6649, 5
        %v6793 = vsel %vm1671, %v6791, %v6792
        %v6794 = vrot.slane %v6650, 5
        %v6795 = vrot.slane %v6794, 4
        %v6796 = vrot.slane %v6651, 5
        %v6797 = vsel %vm1671, %v6795, %v6796
        %v6798 = vrot.slane %v6796, 4
        %v6799 = vrot.slane %v6652, 5
        %v6800 = vsel %vm1671, %v6798, %v6799
        %v6801 = vrot.slane %v6653, 5
        %v6802 = vrot.slane %v6801, 4
        %v6803 = vrot.slane %v6654, 5
        %v6804 = vsel %vm1671, %v6802, %v6803
        %v6805 = vrot.slane %v6803, 4
        %v6806 = vrot.slane %v6655, 5
        %v6807 = vsel %vm1671, %v6805, %v6806
        %v6808 = vrot.slane %v6656, 5
        %v6809 = vrot.slane %v6808, 4
        %v6810 = vrot.slane %v6657, 5
        %v6811 = vsel %vm1671, %v6809, %v6810
        %v6812 = vrot.slane %v6810, 4
        %v6813 = vrot.slane %v6658, 5
        %v6814 = vsel %vm1671, %v6812, %v6813
        %v6815 = vrot.slane %v6659, 5
        %v6816 = vrot.slane %v6815, 4
        %v6817 = vrot.slane %v6660, 5
        %v6818 = vsel %vm1671, %v6816, %v6817
        %v6819 = vrot.slane %v6817, 4
        %v6820 = vrot.slane %v6661, 5
        %v6821 = vsel %vm1671, %v6819, %v6820
        %6822 = vrot.lane.b32.xlu0 %v6713, 20
        %v6823 = vpop.permute.xlu0 %6822
        %6824 = vrot.lane.b32.xlu0 %v6716, 20
        %v6825 = vpop.permute.xlu0 %6824
        %6826 = vrot.lane.b32.xlu0 %v6720, 20
        %v6827 = vpop.permute.xlu0 %6826
        %6828 = vrot.lane.b32.xlu0 %v6723, 20
        %v6829 = vpop.permute.xlu0 %6828
        %6830 = vrot.lane.b32.xlu0 %v6727, 20
        %v6831 = vpop.permute.xlu0 %6830
        %6832 = vrot.lane.b32.xlu0 %v6730, 20
        %v6833 = vpop.permute.xlu0 %6832
        %6834 = vrot.lane.b32.xlu0 %v6734, 20
        %v6835 = vpop.permute.xlu0 %6834
        %6836 = vrot.lane.b32.xlu0 %v6737, 20
        %v6837 = vpop.permute.xlu0 %6836
        %6838 = vrot.lane.b32.xlu0 %v6741, 20
        %v6839 = vpop.permute.xlu0 %6838
        %6840 = vrot.lane.b32.xlu0 %v6744, 20
        %v6841 = vpop.permute.xlu0 %6840
        %6842 = vrot.lane.b32.xlu0 %v6748, 20
        %v6843 = vpop.permute.xlu0 %6842
        %6844 = vrot.lane.b32.xlu0 %v6751, 20
        %v6845 = vpop.permute.xlu0 %6844
        %6846 = vrot.lane.b32.xlu0 %v6755, 20
        %v6847 = vpop.permute.xlu0 %6846
        %6848 = vrot.lane.b32.xlu0 %v6758, 20
        %v6849 = vpop.permute.xlu0 %6848
        %6850 = vrot.lane.b32.xlu0 %v6762, 20
        %v6851 = vpop.permute.xlu0 %6850
        %6852 = vrot.lane.b32.xlu0 %v6765, 20
        %v6853 = vpop.permute.xlu0 %6852
        %6854 = vrot.lane.b32.xlu0 %v6769, 20
        %v6855 = vpop.permute.xlu0 %6854
        %6856 = vrot.lane.b32.xlu0 %v6772, 20
        %v6857 = vpop.permute.xlu0 %6856
        %6858 = vrot.lane.b32.xlu0 %v6776, 20
        %v6859 = vpop.permute.xlu0 %6858
        %6860 = vrot.lane.b32.xlu0 %v6779, 20
        %v6861 = vpop.permute.xlu0 %6860
        %6862 = vrot.lane.b32.xlu0 %v6783, 20
        %v6863 = vpop.permute.xlu0 %6862
        %6864 = vrot.lane.b32.xlu0 %v6786, 20
        %v6865 = vpop.permute.xlu0 %6864
        %6866 = vrot.lane.b32.xlu0 %v6790, 20
        %v6867 = vpop.permute.xlu0 %6866
        %6868 = vrot.lane.b32.xlu0 %v6793, 20
        %v6869 = vpop.permute.xlu0 %6868
        %6870 = vrot.lane.b32.xlu0 %v6797, 20
        %v6871 = vpop.permute.xlu0 %6870
        %6872 = vrot.lane.b32.xlu0 %v6800, 20
        %v6873 = vpop.permute.xlu0 %6872
        %6874 = vrot.lane.b32.xlu0 %v6804, 20
        %v6875 = vpop.permute.xlu0 %6874
        %6876 = vrot.lane.b32.xlu0 %v6807, 20
        %v6877 = vpop.permute.xlu0 %6876
        %6878 = vrot.lane.b32.xlu0 %v6811, 20
        %v6879 = vpop.permute.xlu0 %6878
        %6880 = vrot.lane.b32.xlu0 %v6814, 20
        %v6881 = vpop.permute.xlu0 %6880
        %6882 = vrot.lane.b32.xlu0 %v6818, 20
        %v6883 = vpop.permute.xlu0 %6882
        %6884 = vrot.lane.b32.xlu0 %v6821, 20
        %v6885 = vpop.permute.xlu0 %6884
        %6918 = vst.msk [vmem:[#allocation3] sm:$0xf] %vm2971, %v6823
        %6919 = vst.msk [vmem:[#allocation3 + $0x4] sm:$0xf] %vm2971, %v6825
        %6920 = vst.msk [vmem:[#allocation3 + $0x8] sm:$0xf] %vm2971, %v6827
        %6921 = vst.msk [vmem:[#allocation3 + $0xc] sm:$0xf] %vm2971, %v6829
        %6922 = vst.msk [vmem:[#allocation3 + $0x10] sm:$0xf] %vm2971, %v6831
        %6923 = vst.msk [vmem:[#allocation3 + $0x14] sm:$0xf] %vm2971, %v6833
        %6924 = vst.msk [vmem:[#allocation3 + $0x18] sm:$0xf] %vm2971, %v6835
        %6925 = vst.msk [vmem:[#allocation3 + $0x1c] sm:$0xf] %vm2971, %v6837
        %6926 = vst.msk [vmem:[#allocation3 + $0x20] sm:$0xf] %vm2971, %v6839
        %6927 = vst.msk [vmem:[#allocation3 + $0x24] sm:$0xf] %vm2971, %v6841
        %6928 = vst.msk [vmem:[#allocation3 + $0x28] sm:$0xf] %vm2971, %v6843
        %6929 = vst.msk [vmem:[#allocation3 + $0x2c] sm:$0xf] %vm2971, %v6845
        %6930 = vst.msk [vmem:[#allocation3 + $0x30] sm:$0xf] %vm2971, %v6847
        %6931 = vst.msk [vmem:[#allocation3 + $0x34] sm:$0xf] %vm2971, %v6849
        %6932 = vst.msk [vmem:[#allocation3 + $0x38] sm:$0xf] %vm2971, %v6851
        %6933 = vst.msk [vmem:[#allocation3 + $0x3c] sm:$0xf] %vm2971, %v6853
        %6934 = vst.msk [vmem:[#allocation3 + $0x40] sm:$0xf] %vm2971, %v6855
        %6935 = vst.msk [vmem:[#allocation3 + $0x44] sm:$0xf] %vm2971, %v6857
        %6936 = vst.msk [vmem:[#allocation3 + $0x48] sm:$0xf] %vm2971, %v6859
        %6937 = vst.msk [vmem:[#allocation3 + $0x4c] sm:$0xf] %vm2971, %v6861
        %6938 = vst.msk [vmem:[#allocation3 + $0x50] sm:$0xf] %vm2971, %v6863
        %6939 = vst.msk [vmem:[#allocation3 + $0x54] sm:$0xf] %vm2971, %v6865
        %6940 = vst.msk [vmem:[#allocation3 + $0x58] sm:$0xf] %vm2971, %v6867
        %6941 = vst.msk [vmem:[#allocation3 + $0x5c] sm:$0xf] %vm2971, %v6869
        %6942 = vst.msk [vmem:[#allocation3 + $0x60] sm:$0xf] %vm2971, %v6871
        %6943 = vst.msk [vmem:[#allocation3 + $0x64] sm:$0xf] %vm2971, %v6873
        %6944 = vst.msk [vmem:[#allocation3 + $0x68] sm:$0xf] %vm2971, %v6875
        %6945 = vst.msk [vmem:[#allocation3 + $0x6c] sm:$0xf] %vm2971, %v6877
        %6946 = vst.msk [vmem:[#allocation3 + $0x70] sm:$0xf] %vm2971, %v6879
        %6947 = vst.msk [vmem:[#allocation3 + $0x74] sm:$0xf] %vm2971, %v6881
        %6948 = vst.msk [vmem:[#allocation3 + $0x78] sm:$0xf] %vm2971, %v6883
        %6949 = vst.msk [vmem:[#allocation3 + $0x7c] sm:$0xf] %vm2971, %v6885
        %v6950 = vld [vmem:[%s3004] sm:$0xf]
        %v6951 = vld [vmem:[%s3004 + $0x4] sm:$0xf]
        %v6952 = vld [vmem:[%s3004 + $0xc] sm:$0xf]
        %v6953 = vld [vmem:[%s3004 + $0x10] sm:$0xf]
        %v6954 = vld [vmem:[%s3004 + $0x18] sm:$0xf]
        %v6955 = vld [vmem:[%s3004 + $0x1c] sm:$0xf]
        %v6956 = vld [vmem:[%s3004 + $0x24] sm:$0xf]
        %v6957 = vld [vmem:[%s3004 + $0x28] sm:$0xf]
        %v6958 = vld [vmem:[%s3004 + $0x30] sm:$0xf]
        %v6959 = vld [vmem:[%s3004 + $0x34] sm:$0xf]
        %v6960 = vld [vmem:[%s3004 + $0x3c] sm:$0xf]
        %v6961 = vld [vmem:[%s3004 + $0x40] sm:$0xf]
        %v6962 = vld [vmem:[%s3004 + $0x48] sm:$0xf]
        %v6963 = vld [vmem:[%s3004 + $0x4c] sm:$0xf]
        %v6964 = vld [vmem:[%s3004 + $0x54] sm:$0xf]
        %v6965 = vld [vmem:[%s3004 + $0x58] sm:$0xf]
        %v6966 = vld [vmem:[%s3004 + $0x60] sm:$0xf]
        %v6967 = vld [vmem:[%s3004 + $0x64] sm:$0xf]
        %v6968 = vld [vmem:[%s3004 + $0x6c] sm:$0xf]
        %v6969 = vld [vmem:[%s3004 + $0x70] sm:$0xf]
        %v6970 = vld [vmem:[%s3004 + $0x78] sm:$0xf]
        %v6971 = vld [vmem:[%s3004 + $0x7c] sm:$0xf]
        %v6972 = vld [vmem:[%s3004 + $0x84] sm:$0xf]
        %v6973 = vld [vmem:[%s3004 + $0x88] sm:$0xf]
        %v6974 = vld [vmem:[%s3004 + $0x90] sm:$0xf]
        %v6975 = vld [vmem:[%s3004 + $0x94] sm:$0xf]
        %v6976 = vld [vmem:[%s3004 + $0x9c] sm:$0xf]
        %v6977 = vld [vmem:[%s3004 + $0xa0] sm:$0xf]
        %v6978 = vld [vmem:[%s3004 + $0xa8] sm:$0xf]
        %v6979 = vld [vmem:[%s3004 + $0xac] sm:$0xf]
        %v6980 = vld [vmem:[%s3004 + $0xb4] sm:$0xf]
        %v6981 = vld [vmem:[%s3004 + $0xb8] sm:$0xf]
        %7014 = vrot.lane.b32.xlu0 %v6950, 24
        %v7015 = vpop.permute.xlu0 %7014
        %7016 = vrot.lane.b32.xlu0 %v6951, 24
        %v7017 = vpop.permute.xlu0 %7016
        %7018 = vrot.lane.b32.xlu0 %v6952, 24
        %v7019 = vpop.permute.xlu0 %7018
        %7020 = vrot.lane.b32.xlu0 %v6953, 24
        %v7021 = vpop.permute.xlu0 %7020
        %7022 = vrot.lane.b32.xlu0 %v6954, 24
        %v7023 = vpop.permute.xlu0 %7022
        %7024 = vrot.lane.b32.xlu0 %v6955, 24
        %v7025 = vpop.permute.xlu0 %7024
        %7026 = vrot.lane.b32.xlu0 %v6956, 24
        %v7027 = vpop.permute.xlu0 %7026
        %7028 = vrot.lane.b32.xlu0 %v6957, 24
        %v7029 = vpop.permute.xlu0 %7028
        %7030 = vrot.lane.b32.xlu0 %v6958, 24
        %v7031 = vpop.permute.xlu0 %7030
        %7032 = vrot.lane.b32.xlu0 %v6959, 24
        %v7033 = vpop.permute.xlu0 %7032
        %7034 = vrot.lane.b32.xlu0 %v6960, 24
        %v7035 = vpop.permute.xlu0 %7034
        %7036 = vrot.lane.b32.xlu0 %v6961, 24
        %v7037 = vpop.permute.xlu0 %7036
        %7038 = vrot.lane.b32.xlu0 %v6962, 24
        %v7039 = vpop.permute.xlu0 %7038
        %7040 = vrot.lane.b32.xlu0 %v6963, 24
        %v7041 = vpop.permute.xlu0 %7040
        %7042 = vrot.lane.b32.xlu0 %v6964, 24
        %v7043 = vpop.permute.xlu0 %7042
        %7044 = vrot.lane.b32.xlu0 %v6965, 24
        %v7045 = vpop.permute.xlu0 %7044
        %7046 = vrot.lane.b32.xlu0 %v6966, 24
        %v7047 = vpop.permute.xlu0 %7046
        %7048 = vrot.lane.b32.xlu0 %v6967, 24
        %v7049 = vpop.permute.xlu0 %7048
        %7050 = vrot.lane.b32.xlu0 %v6968, 24
        %v7051 = vpop.permute.xlu0 %7050
        %7052 = vrot.lane.b32.xlu0 %v6969, 24
        %v7053 = vpop.permute.xlu0 %7052
        %7054 = vrot.lane.b32.xlu0 %v6970, 24
        %v7055 = vpop.permute.xlu0 %7054
        %7056 = vrot.lane.b32.xlu0 %v6971, 24
        %v7057 = vpop.permute.xlu0 %7056
        %7058 = vrot.lane.b32.xlu0 %v6972, 24
        %v7059 = vpop.permute.xlu0 %7058
        %7060 = vrot.lane.b32.xlu0 %v6973, 24
        %v7061 = vpop.permute.xlu0 %7060
        %7062 = vrot.lane.b32.xlu0 %v6974, 24
        %v7063 = vpop.permute.xlu0 %7062
        %7064 = vrot.lane.b32.xlu0 %v6975, 24
        %v7065 = vpop.permute.xlu0 %7064
        %7066 = vrot.lane.b32.xlu0 %v6976, 24
        %v7067 = vpop.permute.xlu0 %7066
        %7068 = vrot.lane.b32.xlu0 %v6977, 24
        %v7069 = vpop.permute.xlu0 %7068
        %7070 = vrot.lane.b32.xlu0 %v6978, 24
        %v7071 = vpop.permute.xlu0 %7070
        %7072 = vrot.lane.b32.xlu0 %v6979, 24
        %v7073 = vpop.permute.xlu0 %7072
        %7074 = vrot.lane.b32.xlu0 %v6980, 24
        %v7075 = vpop.permute.xlu0 %7074
        %7076 = vrot.lane.b32.xlu0 %v6981, 24
        %v7077 = vpop.permute.xlu0 %7076
        %7110 = vst.msk [vmem:[#allocation3] sm:$0xf] %vm3165, %v7015
        %7111 = vst.msk [vmem:[#allocation3 + $0x4] sm:$0xf] %vm3165, %v7017
        %7112 = vst.msk [vmem:[#allocation3 + $0x8] sm:$0xf] %vm3165, %v7019
        %7113 = vst.msk [vmem:[#allocation3 + $0xc] sm:$0xf] %vm3165, %v7021
        %7114 = vst.msk [vmem:[#allocation3 + $0x10] sm:$0xf] %vm3165, %v7023
        %7115 = vst.msk [vmem:[#allocation3 + $0x14] sm:$0xf] %vm3165, %v7025
        %7116 = vst.msk [vmem:[#allocation3 + $0x18] sm:$0xf] %vm3165, %v7027
        %7117 = vst.msk [vmem:[#allocation3 + $0x1c] sm:$0xf] %vm3165, %v7029
        %7118 = vst.msk [vmem:[#allocation3 + $0x20] sm:$0xf] %vm3165, %v7031
        %7119 = vst.msk [vmem:[#allocation3 + $0x24] sm:$0xf] %vm3165, %v7033
        %7120 = vst.msk [vmem:[#allocation3 + $0x28] sm:$0xf] %vm3165, %v7035
        %7121 = vst.msk [vmem:[#allocation3 + $0x2c] sm:$0xf] %vm3165, %v7037
        %7122 = vst.msk [vmem:[#allocation3 + $0x30] sm:$0xf] %vm3165, %v7039
        %7123 = vst.msk [vmem:[#allocation3 + $0x34] sm:$0xf] %vm3165, %v7041
        %7124 = vst.msk [vmem:[#allocation3 + $0x38] sm:$0xf] %vm3165, %v7043
        %7125 = vst.msk [vmem:[#allocation3 + $0x3c] sm:$0xf] %vm3165, %v7045
        %7126 = vst.msk [vmem:[#allocation3 + $0x40] sm:$0xf] %vm3165, %v7047
        %7127 = vst.msk [vmem:[#allocation3 + $0x44] sm:$0xf] %vm3165, %v7049
        %7128 = vst.msk [vmem:[#allocation3 + $0x48] sm:$0xf] %vm3165, %v7051
        %7129 = vst.msk [vmem:[#allocation3 + $0x4c] sm:$0xf] %vm3165, %v7053
        %7130 = vst.msk [vmem:[#allocation3 + $0x50] sm:$0xf] %vm3165, %v7055
        %7131 = vst.msk [vmem:[#allocation3 + $0x54] sm:$0xf] %vm3165, %v7057
        %7132 = vst.msk [vmem:[#allocation3 + $0x58] sm:$0xf] %vm3165, %v7059
        %7133 = vst.msk [vmem:[#allocation3 + $0x5c] sm:$0xf] %vm3165, %v7061
        %7134 = vst.msk [vmem:[#allocation3 + $0x60] sm:$0xf] %vm3165, %v7063
        %7135 = vst.msk [vmem:[#allocation3 + $0x64] sm:$0xf] %vm3165, %v7065
        %7136 = vst.msk [vmem:[#allocation3 + $0x68] sm:$0xf] %vm3165, %v7067
        %7137 = vst.msk [vmem:[#allocation3 + $0x6c] sm:$0xf] %vm3165, %v7069
        %7138 = vst.msk [vmem:[#allocation3 + $0x70] sm:$0xf] %vm3165, %v7071
        %7139 = vst.msk [vmem:[#allocation3 + $0x74] sm:$0xf] %vm3165, %v7073
        %7140 = vst.msk [vmem:[#allocation3 + $0x78] sm:$0xf] %vm3165, %v7075
        %7141 = vst.msk [vmem:[#allocation3 + $0x7c] sm:$0xf] %vm3165, %v7077
        %v7142 = vld [vmem:[%s3004] sm:$0xf]
        %v7143 = vld [vmem:[%s3004 + $0x4] sm:$0xf]
        %v7144 = vld [vmem:[%s3004 + $0x8] sm:$0x1]
        %v7145 = vld [vmem:[%s3004 + $0xc] sm:$0xf]
        %v7146 = vld [vmem:[%s3004 + $0x10] sm:$0xf]
        %v7147 = vld [vmem:[%s3004 + $0x14] sm:$0x1]
        %v7148 = vld [vmem:[%s3004 + $0x18] sm:$0xf]
        %v7149 = vld [vmem:[%s3004 + $0x1c] sm:$0xf]
        %v7150 = vld [vmem:[%s3004 + $0x20] sm:$0x1]
        %v7151 = vld [vmem:[%s3004 + $0x24] sm:$0xf]
        %v7152 = vld [vmem:[%s3004 + $0x28] sm:$0xf]
        %v7153 = vld [vmem:[%s3004 + $0x2c] sm:$0x1]
        %v7154 = vld [vmem:[%s3004 + $0x30] sm:$0xf]
        %v7155 = vld [vmem:[%s3004 + $0x34] sm:$0xf]
        %v7156 = vld [vmem:[%s3004 + $0x38] sm:$0x1]
        %v7157 = vld [vmem:[%s3004 + $0x3c] sm:$0xf]
        %v7158 = vld [vmem:[%s3004 + $0x40] sm:$0xf]
        %v7159 = vld [vmem:[%s3004 + $0x44] sm:$0x1]
        %v7160 = vld [vmem:[%s3004 + $0x48] sm:$0xf]
        %v7161 = vld [vmem:[%s3004 + $0x4c] sm:$0xf]
        %v7162 = vld [vmem:[%s3004 + $0x50] sm:$0x1]
        %v7163 = vld [vmem:[%s3004 + $0x54] sm:$0xf]
        %v7164 = vld [vmem:[%s3004 + $0x58] sm:$0xf]
        %v7165 = vld [vmem:[%s3004 + $0x5c] sm:$0x1]
        %v7166 = vld [vmem:[%s3004 + $0x60] sm:$0xf]
        %v7167 = vld [vmem:[%s3004 + $0x64] sm:$0xf]
        %v7168 = vld [vmem:[%s3004 + $0x68] sm:$0x1]
        %v7169 = vld [vmem:[%s3004 + $0x6c] sm:$0xf]
        %v7170 = vld [vmem:[%s3004 + $0x70] sm:$0xf]
        %v7171 = vld [vmem:[%s3004 + $0x74] sm:$0x1]
        %v7172 = vld [vmem:[%s3004 + $0x78] sm:$0xf]
        %v7173 = vld [vmem:[%s3004 + $0x7c] sm:$0xf]
        %v7174 = vld [vmem:[%s3004 + $0x80] sm:$0x1]
        %v7175 = vld [vmem:[%s3004 + $0x84] sm:$0xf]
        %v7176 = vld [vmem:[%s3004 + $0x88] sm:$0xf]
        %v7177 = vld [vmem:[%s3004 + $0x8c] sm:$0x1]
        %v7178 = vld [vmem:[%s3004 + $0x90] sm:$0xf]
        %v7179 = vld [vmem:[%s3004 + $0x94] sm:$0xf]
        %v7180 = vld [vmem:[%s3004 + $0x98] sm:$0x1]
        %v7181 = vld [vmem:[%s3004 + $0x9c] sm:$0xf]
        %v7182 = vld [vmem:[%s3004 + $0xa0] sm:$0xf]
        %v7183 = vld [vmem:[%s3004 + $0xa4] sm:$0x1]
        %v7184 = vld [vmem:[%s3004 + $0xa8] sm:$0xf]
        %v7185 = vld [vmem:[%s3004 + $0xac] sm:$0xf]
        %v7186 = vld [vmem:[%s3004 + $0xb0] sm:$0x1]
        %v7187 = vld [vmem:[%s3004 + $0xb4] sm:$0xf]
        %v7188 = vld [vmem:[%s3004 + $0xb8] sm:$0xf]
        %v7189 = vld [vmem:[%s3004 + $0xbc] sm:$0x1]
        %v7191 = vshrl.u32 %v7142, 16
        %v7193 = vrot.slane %v7191, 4
        %v7194 = vshll.u32 %v7142, 16
        %v7196 = vrot.slane %v7194, 5
        %v7197 = vor.u32 %v7193, %v7196
        %v7198 = vrot.slane %v7197, 4
        %v7200 = vshll.u32 %v7143, 16
        %v7202 = vrot.slane %v7200, 5
        %v7203 = vsel %vm1059, %v7198, %v7202
        %v7204 = vshrl.u32 %v7143, 16
        %v7206 = vrot.slane %v7204, 4
        %v7207 = vor.u32 %v7206, %v7202
        %v7208 = vrot.slane %v7207, 4
        %v7210 = vshll.u32 %v7144, 16
        %v7212 = vrot.slane %v7210, 5
        %v7213 = vsel %vm1059, %v7208, %v7212
        %v7215 = vshrl.u32 %v7145, 16
        %v7217 = vrot.slane %v7215, 4
        %v7218 = vshll.u32 %v7145, 16
        %v7220 = vrot.slane %v7218, 5
        %v7221 = vor.u32 %v7217, %v7220
        %v7222 = vrot.slane %v7221, 4
        %v7224 = vshll.u32 %v7146, 16
        %v7226 = vrot.slane %v7224, 5
        %v7227 = vsel %vm1059, %v7222, %v7226
        %v7228 = vshrl.u32 %v7146, 16
        %v7230 = vrot.slane %v7228, 4
        %v7231 = vor.u32 %v7230, %v7226
        %v7232 = vrot.slane %v7231, 4
        %v7234 = vshll.u32 %v7147, 16
        %v7236 = vrot.slane %v7234, 5
        %v7237 = vsel %vm1059, %v7232, %v7236
        %v7239 = vshrl.u32 %v7148, 16
        %v7241 = vrot.slane %v7239, 4
        %v7242 = vshll.u32 %v7148, 16
        %v7244 = vrot.slane %v7242, 5
        %v7245 = vor.u32 %v7241, %v7244
        %v7246 = vrot.slane %v7245, 4
        %v7248 = vshll.u32 %v7149, 16
        %v7250 = vrot.slane %v7248, 5
        %v7251 = vsel %vm1059, %v7246, %v7250
        %v7252 = vshrl.u32 %v7149, 16
        %v7254 = vrot.slane %v7252, 4
        %v7255 = vor.u32 %v7254, %v7250
        %v7256 = vrot.slane %v7255, 4
        %v7258 = vshll.u32 %v7150, 16
        %v7260 = vrot.slane %v7258, 5
        %v7261 = vsel %vm1059, %v7256, %v7260
        %v7263 = vshrl.u32 %v7151, 16
        %v7265 = vrot.slane %v7263, 4
        %v7266 = vshll.u32 %v7151, 16
        %v7268 = vrot.slane %v7266, 5
        %v7269 = vor.u32 %v7265, %v7268
        %v7270 = vrot.slane %v7269, 4
        %v7272 = vshll.u32 %v7152, 16
        %v7274 = vrot.slane %v7272, 5
        %v7275 = vsel %vm1059, %v7270, %v7274
        %v7276 = vshrl.u32 %v7152, 16
        %v7278 = vrot.slane %v7276, 4
        %v7279 = vor.u32 %v7278, %v7274
        %v7280 = vrot.slane %v7279, 4
        %v7282 = vshll.u32 %v7153, 16
        %v7284 = vrot.slane %v7282, 5
        %v7285 = vsel %vm1059, %v7280, %v7284
        %v7287 = vshrl.u32 %v7154, 16
        %v7289 = vrot.slane %v7287, 4
        %v7290 = vshll.u32 %v7154, 16
        %v7292 = vrot.slane %v7290, 5
        %v7293 = vor.u32 %v7289, %v7292
        %v7294 = vrot.slane %v7293, 4
        %v7296 = vshll.u32 %v7155, 16
        %v7298 = vrot.slane %v7296, 5
        %v7299 = vsel %vm1059, %v7294, %v7298
        %v7300 = vshrl.u32 %v7155, 16
        %v7302 = vrot.slane %v7300, 4
        %v7303 = vor.u32 %v7302, %v7298
        %v7304 = vrot.slane %v7303, 4
        %v7306 = vshll.u32 %v7156, 16
        %v7308 = vrot.slane %v7306, 5
        %v7309 = vsel %vm1059, %v7304, %v7308
        %v7311 = vshrl.u32 %v7157, 16
        %v7313 = vrot.slane %v7311, 4
        %v7314 = vshll.u32 %v7157, 16
        %v7316 = vrot.slane %v7314, 5
        %v7317 = vor.u32 %v7313, %v7316
        %v7318 = vrot.slane %v7317, 4
        %v7320 = vshll.u32 %v7158, 16
        %v7322 = vrot.slane %v7320, 5
        %v7323 = vsel %vm1059, %v7318, %v7322
        %v7324 = vshrl.u32 %v7158, 16
        %v7326 = vrot.slane %v7324, 4
        %v7327 = vor.u32 %v7326, %v7322
        %v7328 = vrot.slane %v7327, 4
        %v7330 = vshll.u32 %v7159, 16
        %v7332 = vrot.slane %v7330, 5
        %v7333 = vsel %vm1059, %v7328, %v7332
        %v7335 = vshrl.u32 %v7160, 16
        %v7337 = vrot.slane %v7335, 4
        %v7338 = vshll.u32 %v7160, 16
        %v7340 = vrot.slane %v7338, 5
        %v7341 = vor.u32 %v7337, %v7340
        %v7342 = vrot.slane %v7341, 4
        %v7344 = vshll.u32 %v7161, 16
        %v7346 = vrot.slane %v7344, 5
        %v7347 = vsel %vm1059, %v7342, %v7346
        %v7348 = vshrl.u32 %v7161, 16
        %v7350 = vrot.slane %v7348, 4
        %v7351 = vor.u32 %v7350, %v7346
        %v7352 = vrot.slane %v7351, 4
        %v7354 = vshll.u32 %v7162, 16
        %v7356 = vrot.slane %v7354, 5
        %v7357 = vsel %vm1059, %v7352, %v7356
        %v7359 = vshrl.u32 %v7163, 16
        %v7361 = vrot.slane %v7359, 4
        %v7362 = vshll.u32 %v7163, 16
        %v7364 = vrot.slane %v7362, 5
        %v7365 = vor.u32 %v7361, %v7364
        %v7366 = vrot.slane %v7365, 4
        %v7368 = vshll.u32 %v7164, 16
        %v7370 = vrot.slane %v7368, 5
        %v7371 = vsel %vm1059, %v7366, %v7370
        %v7372 = vshrl.u32 %v7164, 16
        %v7374 = vrot.slane %v7372, 4
        %v7375 = vor.u32 %v7374, %v7370
        %v7376 = vrot.slane %v7375, 4
        %v7378 = vshll.u32 %v7165, 16
        %v7380 = vrot.slane %v7378, 5
        %v7381 = vsel %vm1059, %v7376, %v7380
        %v7383 = vshrl.u32 %v7166, 16
        %v7385 = vrot.slane %v7383, 4
        %v7386 = vshll.u32 %v7166, 16
        %v7388 = vrot.slane %v7386, 5
        %v7389 = vor.u32 %v7385, %v7388
        %v7390 = vrot.slane %v7389, 4
        %v7392 = vshll.u32 %v7167, 16
        %v7394 = vrot.slane %v7392, 5
        %v7395 = vsel %vm1059, %v7390, %v7394
        %v7396 = vshrl.u32 %v7167, 16
        %v7398 = vrot.slane %v7396, 4
        %v7399 = vor.u32 %v7398, %v7394
        %v7400 = vrot.slane %v7399, 4
        %v7402 = vshll.u32 %v7168, 16
        %v7404 = vrot.slane %v7402, 5
        %v7405 = vsel %vm1059, %v7400, %v7404
        %v7407 = vshrl.u32 %v7169, 16
        %v7409 = vrot.slane %v7407, 4
        %v7410 = vshll.u32 %v7169, 16
        %v7412 = vrot.slane %v7410, 5
        %v7413 = vor.u32 %v7409, %v7412
        %v7414 = vrot.slane %v7413, 4
        %v7416 = vshll.u32 %v7170, 16
        %v7418 = vrot.slane %v7416, 5
        %v7419 = vsel %vm1059, %v7414, %v7418
        %v7420 = vshrl.u32 %v7170, 16
        %v7422 = vrot.slane %v7420, 4
        %v7423 = vor.u32 %v7422, %v7418
        %v7424 = vrot.slane %v7423, 4
        %v7426 = vshll.u32 %v7171, 16
        %v7428 = vrot.slane %v7426, 5
        %v7429 = vsel %vm1059, %v7424, %v7428
        %v7431 = vshrl.u32 %v7172, 16
        %v7433 = vrot.slane %v7431, 4
        %v7434 = vshll.u32 %v7172, 16
        %v7436 = vrot.slane %v7434, 5
        %v7437 = vor.u32 %v7433, %v7436
        %v7438 = vrot.slane %v7437, 4
        %v7440 = vshll.u32 %v7173, 16
        %v7442 = vrot.slane %v7440, 5
        %v7443 = vsel %vm1059, %v7438, %v7442
        %v7444 = vshrl.u32 %v7173, 16
        %v7446 = vrot.slane %v7444, 4
        %v7447 = vor.u32 %v7446, %v7442
        %v7448 = vrot.slane %v7447, 4
        %v7450 = vshll.u32 %v7174, 16
        %v7452 = vrot.slane %v7450, 5
        %v7453 = vsel %vm1059, %v7448, %v7452
        %v7455 = vshrl.u32 %v7175, 16
        %v7457 = vrot.slane %v7455, 4
        %v7458 = vshll.u32 %v7175, 16
        %v7460 = vrot.slane %v7458, 5
        %v7461 = vor.u32 %v7457, %v7460
        %v7462 = vrot.slane %v7461, 4
        %v7464 = vshll.u32 %v7176, 16
        %v7466 = vrot.slane %v7464, 5
        %v7467 = vsel %vm1059, %v7462, %v7466
        %v7468 = vshrl.u32 %v7176, 16
        %v7470 = vrot.slane %v7468, 4
        %v7471 = vor.u32 %v7470, %v7466
        %v7472 = vrot.slane %v7471, 4
        %v7474 = vshll.u32 %v7177, 16
        %v7476 = vrot.slane %v7474, 5
        %v7477 = vsel %vm1059, %v7472, %v7476
        %v7479 = vshrl.u32 %v7178, 16
        %v7481 = vrot.slane %v7479, 4
        %v7482 = vshll.u32 %v7178, 16
        %v7484 = vrot.slane %v7482, 5
        %v7485 = vor.u32 %v7481, %v7484
        %v7486 = vrot.slane %v7485, 4
        %v7488 = vshll.u32 %v7179, 16
        %v7490 = vrot.slane %v7488, 5
        %v7491 = vsel %vm1059, %v7486, %v7490
        %v7492 = vshrl.u32 %v7179, 16
        %v7494 = vrot.slane %v7492, 4
        %v7495 = vor.u32 %v7494, %v7490
        %v7496 = vrot.slane %v7495, 4
        %v7498 = vshll.u32 %v7180, 16
        %v7500 = vrot.slane %v7498, 5
        %v7501 = vsel %vm1059, %v7496, %v7500
        %v7503 = vshrl.u32 %v7181, 16
        %v7505 = vrot.slane %v7503, 4
        %v7506 = vshll.u32 %v7181, 16
        %v7508 = vrot.slane %v7506, 5
        %v7509 = vor.u32 %v7505, %v7508
        %v7510 = vrot.slane %v7509, 4
        %v7512 = vshll.u32 %v7182, 16
        %v7514 = vrot.slane %v7512, 5
        %v7515 = vsel %vm1059, %v7510, %v7514
        %v7516 = vshrl.u32 %v7182, 16
        %v7518 = vrot.slane %v7516, 4
        %v7519 = vor.u32 %v7518, %v7514
        %v7520 = vrot.slane %v7519, 4
        %v7522 = vshll.u32 %v7183, 16
        %v7524 = vrot.slane %v7522, 5
        %v7525 = vsel %vm1059, %v7520, %v7524
        %v7527 = vshrl.u32 %v7184, 16
        %v7529 = vrot.slane %v7527, 4
        %v7530 = vshll.u32 %v7184, 16
        %v7532 = vrot.slane %v7530, 5
        %v7533 = vor.u32 %v7529, %v7532
        %v7534 = vrot.slane %v7533, 4
        %v7536 = vshll.u32 %v7185, 16
        %v7538 = vrot.slane %v7536, 5
        %v7539 = vsel %vm1059, %v7534, %v7538
        %v7540 = vshrl.u32 %v7185, 16
        %v7542 = vrot.slane %v7540, 4
        %v7543 = vor.u32 %v7542, %v7538
        %v7544 = vrot.slane %v7543, 4
        %v7546 = vshll.u32 %v7186, 16
        %v7548 = vrot.slane %v7546, 5
        %v7549 = vsel %vm1059, %v7544, %v7548
        %v7551 = vshrl.u32 %v7187, 16
        %v7553 = vrot.slane %v7551, 4
        %v7554 = vshll.u32 %v7187, 16
        %v7556 = vrot.slane %v7554, 5
        %v7557 = vor.u32 %v7553, %v7556
        %v7558 = vrot.slane %v7557, 4
        %v7560 = vshll.u32 %v7188, 16
        %v7562 = vrot.slane %v7560, 5
        %v7563 = vsel %vm1059, %v7558, %v7562
        %v7564 = vshrl.u32 %v7188, 16
        %v7566 = vrot.slane %v7564, 4
        %v7567 = vor.u32 %v7566, %v7562
        %v7568 = vrot.slane %v7567, 4
        %v7570 = vshll.u32 %v7189, 16
        %v7572 = vrot.slane %v7570, 5
        %v7573 = vsel %vm1059, %v7568, %v7572
        %7574 = vrot.lane.b32.xlu0 %v7203, 28
        %v7575 = vpop.permute.xlu0 %7574
        %7576 = vrot.lane.b32.xlu0 %v7213, 28
        %v7577 = vpop.permute.xlu0 %7576
        %7578 = vrot.lane.b32.xlu0 %v7227, 28
        %v7579 = vpop.permute.xlu0 %7578
        %7580 = vrot.lane.b32.xlu0 %v7237, 28
        %v7581 = vpop.permute.xlu0 %7580
        %7582 = vrot.lane.b32.xlu0 %v7251, 28
        %v7583 = vpop.permute.xlu0 %7582
        %7584 = vrot.lane.b32.xlu0 %v7261, 28
        %v7585 = vpop.permute.xlu0 %7584
        %7586 = vrot.lane.b32.xlu0 %v7275, 28
        %v7587 = vpop.permute.xlu0 %7586
        %7588 = vrot.lane.b32.xlu0 %v7285, 28
        %v7589 = vpop.permute.xlu0 %7588
        %7590 = vrot.lane.b32.xlu0 %v7299, 28
        %v7591 = vpop.permute.xlu0 %7590
        %7592 = vrot.lane.b32.xlu0 %v7309, 28
        %v7593 = vpop.permute.xlu0 %7592
        %7594 = vrot.lane.b32.xlu0 %v7323, 28
        %v7595 = vpop.permute.xlu0 %7594
        %7596 = vrot.lane.b32.xlu0 %v7333, 28
        %v7597 = vpop.permute.xlu0 %7596
        %7598 = vrot.lane.b32.xlu0 %v7347, 28
        %v7599 = vpop.permute.xlu0 %7598
        %7600 = vrot.lane.b32.xlu0 %v7357, 28
        %v7601 = vpop.permute.xlu0 %7600
        %7602 = vrot.lane.b32.xlu0 %v7371, 28
        %v7603 = vpop.permute.xlu0 %7602
        %7604 = vrot.lane.b32.xlu0 %v7381, 28
        %v7605 = vpop.permute.xlu0 %7604
        %7606 = vrot.lane.b32.xlu0 %v7395, 28
        %v7607 = vpop.permute.xlu0 %7606
        %7608 = vrot.lane.b32.xlu0 %v7405, 28
        %v7609 = vpop.permute.xlu0 %7608
        %7610 = vrot.lane.b32.xlu0 %v7419, 28
        %v7611 = vpop.permute.xlu0 %7610
        %7612 = vrot.lane.b32.xlu0 %v7429, 28
        %v7613 = vpop.permute.xlu0 %7612
        %7614 = vrot.lane.b32.xlu0 %v7443, 28
        %v7615 = vpop.permute.xlu0 %7614
        %7616 = vrot.lane.b32.xlu0 %v7453, 28
        %v7617 = vpop.permute.xlu0 %7616
        %7618 = vrot.lane.b32.xlu0 %v7467, 28
        %v7619 = vpop.permute.xlu0 %7618
        %7620 = vrot.lane.b32.xlu0 %v7477, 28
        %v7621 = vpop.permute.xlu0 %7620
        %7622 = vrot.lane.b32.xlu0 %v7491, 28
        %v7623 = vpop.permute.xlu0 %7622
        %7624 = vrot.lane.b32.xlu0 %v7501, 28
        %v7625 = vpop.permute.xlu0 %7624
        %7626 = vrot.lane.b32.xlu0 %v7515, 28
        %v7627 = vpop.permute.xlu0 %7626
        %7628 = vrot.lane.b32.xlu0 %v7525, 28
        %v7629 = vpop.permute.xlu0 %7628
        %7630 = vrot.lane.b32.xlu0 %v7539, 28
        %v7631 = vpop.permute.xlu0 %7630
        %7632 = vrot.lane.b32.xlu0 %v7549, 28
        %v7633 = vpop.permute.xlu0 %7632
        %7634 = vrot.lane.b32.xlu0 %v7563, 28
        %v7635 = vpop.permute.xlu0 %7634
        %7636 = vrot.lane.b32.xlu0 %v7573, 28
        %v7637 = vpop.permute.xlu0 %7636
        %7670 = vst.msk [vmem:[#allocation3] sm:$0xf] %vm3726, %v7575
        %7671 = vst.msk [vmem:[#allocation3 + $0x4] sm:$0xf] %vm3726, %v7577
        %7672 = vst.msk [vmem:[#allocation3 + $0x8] sm:$0xf] %vm3726, %v7579
        %7673 = vst.msk [vmem:[#allocation3 + $0xc] sm:$0xf] %vm3726, %v7581
        %7674 = vst.msk [vmem:[#allocation3 + $0x10] sm:$0xf] %vm3726, %v7583
        %7675 = vst.msk [vmem:[#allocation3 + $0x14] sm:$0xf] %vm3726, %v7585
        %7676 = vst.msk [vmem:[#allocation3 + $0x18] sm:$0xf] %vm3726, %v7587
        %7677 = vst.msk [vmem:[#allocation3 + $0x1c] sm:$0xf] %vm3726, %v7589
        %7678 = vst.msk [vmem:[#allocation3 + $0x20] sm:$0xf] %vm3726, %v7591
        %7679 = vst.msk [vmem:[#allocation3 + $0x24] sm:$0xf] %vm3726, %v7593
        %7680 = vst.msk [vmem:[#allocation3 + $0x28] sm:$0xf] %vm3726, %v7595
        %7681 = vst.msk [vmem:[#allocation3 + $0x2c] sm:$0xf] %vm3726, %v7597
        %7682 = vst.msk [vmem:[#allocation3 + $0x30] sm:$0xf] %vm3726, %v7599
        %7683 = vst.msk [vmem:[#allocation3 + $0x34] sm:$0xf] %vm3726, %v7601
        %7684 = vst.msk [vmem:[#allocation3 + $0x38] sm:$0xf] %vm3726, %v7603
        %7685 = vst.msk [vmem:[#allocation3 + $0x3c] sm:$0xf] %vm3726, %v7605
        %7686 = vst.msk [vmem:[#allocation3 + $0x40] sm:$0xf] %vm3726, %v7607
        %7687 = vst.msk [vmem:[#allocation3 + $0x44] sm:$0xf] %vm3726, %v7609
        %7688 = vst.msk [vmem:[#allocation3 + $0x48] sm:$0xf] %vm3726, %v7611
        %7689 = vst.msk [vmem:[#allocation3 + $0x4c] sm:$0xf] %vm3726, %v7613
        %7690 = vst.msk [vmem:[#allocation3 + $0x50] sm:$0xf] %vm3726, %v7615
        %7691 = vst.msk [vmem:[#allocation3 + $0x54] sm:$0xf] %vm3726, %v7617
        %7692 = vst.msk [vmem:[#allocation3 + $0x58] sm:$0xf] %vm3726, %v7619
        %7693 = vst.msk [vmem:[#allocation3 + $0x5c] sm:$0xf] %vm3726, %v7621
        %7694 = vst.msk [vmem:[#allocation3 + $0x60] sm:$0xf] %vm3726, %v7623
        %7695 = vst.msk [vmem:[#allocation3 + $0x64] sm:$0xf] %vm3726, %v7625
        %7696 = vst.msk [vmem:[#allocation3 + $0x68] sm:$0xf] %vm3726, %v7627
        %7697 = vst.msk [vmem:[#allocation3 + $0x6c] sm:$0xf] %vm3726, %v7629
        %7698 = vst.msk [vmem:[#allocation3 + $0x70] sm:$0xf] %vm3726, %v7631
        %7699 = vst.msk [vmem:[#allocation3 + $0x74] sm:$0xf] %vm3726, %v7633
        %7700 = vst.msk [vmem:[#allocation3 + $0x78] sm:$0xf] %vm3726, %v7635
        %7701 = vst.msk [vmem:[#allocation3 + $0x7c] sm:$0xf] %vm3726, %v7637
        %v7702 = vld [vmem:[%s3004] sm:$0xe]
        %v7703 = vld [vmem:[%s3004 + $0x4] sm:$0xf]
        %v7704 = vld [vmem:[%s3004 + $0x8] sm:$0x1]
        %v7705 = vld [vmem:[%s3004 + $0xc] sm:$0xe]
        %v7706 = vld [vmem:[%s3004 + $0x10] sm:$0xf]
        %v7707 = vld [vmem:[%s3004 + $0x14] sm:$0x1]
        %v7708 = vld [vmem:[%s3004 + $0x18] sm:$0xe]
        %v7709 = vld [vmem:[%s3004 + $0x1c] sm:$0xf]
        %v7710 = vld [vmem:[%s3004 + $0x20] sm:$0x1]
        %v7711 = vld [vmem:[%s3004 + $0x24] sm:$0xe]
        %v7712 = vld [vmem:[%s3004 + $0x28] sm:$0xf]
        %v7713 = vld [vmem:[%s3004 + $0x2c] sm:$0x1]
        %v7714 = vld [vmem:[%s3004 + $0x30] sm:$0xe]
        %v7715 = vld [vmem:[%s3004 + $0x34] sm:$0xf]
        %v7716 = vld [vmem:[%s3004 + $0x38] sm:$0x1]
        %v7717 = vld [vmem:[%s3004 + $0x3c] sm:$0xe]
        %v7718 = vld [vmem:[%s3004 + $0x40] sm:$0xf]
        %v7719 = vld [vmem:[%s3004 + $0x44] sm:$0x1]
        %v7720 = vld [vmem:[%s3004 + $0x48] sm:$0xe]
        %v7721 = vld [vmem:[%s3004 + $0x4c] sm:$0xf]
        %v7722 = vld [vmem:[%s3004 + $0x50] sm:$0x1]
        %v7723 = vld [vmem:[%s3004 + $0x54] sm:$0xe]
        %v7724 = vld [vmem:[%s3004 + $0x58] sm:$0xf]
        %v7725 = vld [vmem:[%s3004 + $0x5c] sm:$0x1]
        %v7726 = vld [vmem:[%s3004 + $0x60] sm:$0xe]
        %v7727 = vld [vmem:[%s3004 + $0x64] sm:$0xf]
        %v7728 = vld [vmem:[%s3004 + $0x68] sm:$0x1]
        %v7729 = vld [vmem:[%s3004 + $0x6c] sm:$0xe]
        %v7730 = vld [vmem:[%s3004 + $0x70] sm:$0xf]
        %v7731 = vld [vmem:[%s3004 + $0x74] sm:$0x1]
        %v7732 = vld [vmem:[%s3004 + $0x78] sm:$0xe]
        %v7733 = vld [vmem:[%s3004 + $0x7c] sm:$0xf]
        %v7734 = vld [vmem:[%s3004 + $0x80] sm:$0x1]
        %v7735 = vld [vmem:[%s3004 + $0x84] sm:$0xe]
        %v7736 = vld [vmem:[%s3004 + $0x88] sm:$0xf]
        %v7737 = vld [vmem:[%s3004 + $0x8c] sm:$0x1]
        %v7738 = vld [vmem:[%s3004 + $0x90] sm:$0xe]
        %v7739 = vld [vmem:[%s3004 + $0x94] sm:$0xf]
        %v7740 = vld [vmem:[%s3004 + $0x98] sm:$0x1]
        %v7741 = vld [vmem:[%s3004 + $0x9c] sm:$0xe]
        %v7742 = vld [vmem:[%s3004 + $0xa0] sm:$0xf]
        %v7743 = vld [vmem:[%s3004 + $0xa4] sm:$0x1]
        %v7744 = vld [vmem:[%s3004 + $0xa8] sm:$0xe]
        %v7745 = vld [vmem:[%s3004 + $0xac] sm:$0xf]
        %v7746 = vld [vmem:[%s3004 + $0xb0] sm:$0x1]
        %v7747 = vld [vmem:[%s3004 + $0xb4] sm:$0xe]
        %v7748 = vld [vmem:[%s3004 + $0xb8] sm:$0xf]
        %v7749 = vld [vmem:[%s3004 + $0xbc] sm:$0x1]
        %v7798 = vrot.slane %v7702, 5
        %v7799 = vrot.slane %v7798, 4
        %v7800 = vrot.slane %v7703, 5
        %v7801 = vsel %vm1671, %v7799, %v7800
        %v7802 = vrot.slane %v7800, 4
        %v7803 = vrot.slane %v7704, 5
        %v7804 = vsel %vm1671, %v7802, %v7803
        %v7805 = vrot.slane %v7705, 5
        %v7806 = vrot.slane %v7805, 4
        %v7807 = vrot.slane %v7706, 5
        %v7808 = vsel %vm1671, %v7806, %v7807
        %v7809 = vrot.slane %v7807, 4
        %v7810 = vrot.slane %v7707, 5
        %v7811 = vsel %vm1671, %v7809, %v7810
        %v7812 = vrot.slane %v7708, 5
        %v7813 = vrot.slane %v7812, 4
        %v7814 = vrot.slane %v7709, 5
        %v7815 = vsel %vm1671, %v7813, %v7814
        %v7816 = vrot.slane %v7814, 4
        %v7817 = vrot.slane %v7710, 5
        %v7818 = vsel %vm1671, %v7816, %v7817
        %v7819 = vrot.slane %v7711, 5
        %v7820 = vrot.slane %v7819, 4
        %v7821 = vrot.slane %v7712, 5
        %v7822 = vsel %vm1671, %v7820, %v7821
        %v7823 = vrot.slane %v7821, 4
        %v7824 = vrot.slane %v7713, 5
        %v7825 = vsel %vm1671, %v7823, %v7824
        %v7826 = vrot.slane %v7714, 5
        %v7827 = vrot.slane %v7826, 4
        %v7828 = vrot.slane %v7715, 5
        %v7829 = vsel %vm1671, %v7827, %v7828
        %v7830 = vrot.slane %v7828, 4
        %v7831 = vrot.slane %v7716, 5
        %v7832 = vsel %vm1671, %v7830, %v7831
        %v7833 = vrot.slane %v7717, 5
        %v7834 = vrot.slane %v7833, 4
        %v7835 = vrot.slane %v7718, 5
        %v7836 = vsel %vm1671, %v7834, %v7835
        %v7837 = vrot.slane %v7835, 4
        %v7838 = vrot.slane %v7719, 5
        %v7839 = vsel %vm1671, %v7837, %v7838
        %v7840 = vrot.slane %v7720, 5
        %v7841 = vrot.slane %v7840, 4
        %v7842 = vrot.slane %v7721, 5
        %v7843 = vsel %vm1671, %v7841, %v7842
        %v7844 = vrot.slane %v7842, 4
        %v7845 = vrot.slane %v7722, 5
        %v7846 = vsel %vm1671, %v7844, %v7845
        %v7847 = vrot.slane %v7723, 5
        %v7848 = vrot.slane %v7847, 4
        %v7849 = vrot.slane %v7724, 5
        %v7850 = vsel %vm1671, %v7848, %v7849
        %v7851 = vrot.slane %v7849, 4
        %v7852 = vrot.slane %v7725, 5
        %v7853 = vsel %vm1671, %v7851, %v7852
        %v7854 = vrot.slane %v7726, 5
        %v7855 = vrot.slane %v7854, 4
        %v7856 = vrot.slane %v7727, 5
        %v7857 = vsel %vm1671, %v7855, %v7856
        %v7858 = vrot.slane %v7856, 4
        %v7859 = vrot.slane %v7728, 5
        %v7860 = vsel %vm1671, %v7858, %v7859
        %v7861 = vrot.slane %v7729, 5
        %v7862 = vrot.slane %v7861, 4
        %v7863 = vrot.slane %v7730, 5
        %v7864 = vsel %vm1671, %v7862, %v7863
        %v7865 = vrot.slane %v7863, 4
        %v7866 = vrot.slane %v7731, 5
        %v7867 = vsel %vm1671, %v7865, %v7866
        %v7868 = vrot.slane %v7732, 5
        %v7869 = vrot.slane %v7868, 4
        %v7870 = vrot.slane %v7733, 5
        %v7871 = vsel %vm1671, %v7869, %v7870
        %v7872 = vrot.slane %v7870, 4
        %v7873 = vrot.slane %v7734, 5
        %v7874 = vsel %vm1671, %v7872, %v7873
        %v7875 = vrot.slane %v7735, 5
        %v7876 = vrot.slane %v7875, 4
        %v7877 = vrot.slane %v7736, 5
        %v7878 = vsel %vm1671, %v7876, %v7877
        %v7879 = vrot.slane %v7877, 4
        %v7880 = vrot.slane %v7737, 5
        %v7881 = vsel %vm1671, %v7879, %v7880
        %v7882 = vrot.slane %v7738, 5
        %v7883 = vrot.slane %v7882, 4
        %v7884 = vrot.slane %v7739, 5
        %v7885 = vsel %vm1671, %v7883, %v7884
        %v7886 = vrot.slane %v7884, 4
        %v7887 = vrot.slane %v7740, 5
        %v7888 = vsel %vm1671, %v7886, %v7887
        %v7889 = vrot.slane %v7741, 5
        %v7890 = vrot.slane %v7889, 4
        %v7891 = vrot.slane %v7742, 5
        %v7892 = vsel %vm1671, %v7890, %v7891
        %v7893 = vrot.slane %v7891, 4
        %v7894 = vrot.slane %v7743, 5
        %v7895 = vsel %vm1671, %v7893, %v7894
        %v7896 = vrot.slane %v7744, 5
        %v7897 = vrot.slane %v7896, 4
        %v7898 = vrot.slane %v7745, 5
        %v7899 = vsel %vm1671, %v7897, %v7898
        %v7900 = vrot.slane %v7898, 4
        %v7901 = vrot.slane %v7746, 5
        %v7902 = vsel %vm1671, %v7900, %v7901
        %v7903 = vrot.slane %v7747, 5
        %v7904 = vrot.slane %v7903, 4
        %v7905 = vrot.slane %v7748, 5
        %v7906 = vsel %vm1671, %v7904, %v7905
        %v7907 = vrot.slane %v7905, 4
        %v7908 = vrot.slane %v7749, 5
        %v7909 = vsel %vm1671, %v7907, %v7908
        %7910 = vrot.lane.b32.xlu0 %v7801, 32
        %v7911 = vpop.permute.xlu0 %7910
        %7912 = vrot.lane.b32.xlu0 %v7804, 32
        %v7913 = vpop.permute.xlu0 %7912
        %7914 = vrot.lane.b32.xlu0 %v7808, 32
        %v7915 = vpop.permute.xlu0 %7914
        %7916 = vrot.lane.b32.xlu0 %v7811, 32
        %v7917 = vpop.permute.xlu0 %7916
        %7918 = vrot.lane.b32.xlu0 %v7815, 32
        %v7919 = vpop.permute.xlu0 %7918
        %7920 = vrot.lane.b32.xlu0 %v7818, 32
        %v7921 = vpop.permute.xlu0 %7920
        %7922 = vrot.lane.b32.xlu0 %v7822, 32
        %v7923 = vpop.permute.xlu0 %7922
        %7924 = vrot.lane.b32.xlu0 %v7825, 32
        %v7925 = vpop.permute.xlu0 %7924
        %7926 = vrot.lane.b32.xlu0 %v7829, 32
        %v7927 = vpop.permute.xlu0 %7926
        %7928 = vrot.lane.b32.xlu0 %v7832, 32
        %v7929 = vpop.permute.xlu0 %7928
        %7930 = vrot.lane.b32.xlu0 %v7836, 32
        %v7931 = vpop.permute.xlu0 %7930
        %7932 = vrot.lane.b32.xlu0 %v7839, 32
        %v7933 = vpop.permute.xlu0 %7932
        %7934 = vrot.lane.b32.xlu0 %v7843, 32
        %v7935 = vpop.permute.xlu0 %7934
        %7936 = vrot.lane.b32.xlu0 %v7846, 32
        %v7937 = vpop.permute.xlu0 %7936
        %7938 = vrot.lane.b32.xlu0 %v7850, 32
        %v7939 = vpop.permute.xlu0 %7938
        %7940 = vrot.lane.b32.xlu0 %v7853, 32
        %v7941 = vpop.permute.xlu0 %7940
        %7942 = vrot.lane.b32.xlu0 %v7857, 32
        %v7943 = vpop.permute.xlu0 %7942
        %7944 = vrot.lane.b32.xlu0 %v7860, 32
        %v7945 = vpop.permute.xlu0 %7944
        %7946 = vrot.lane.b32.xlu0 %v7864, 32
        %v7947 = vpop.permute.xlu0 %7946
        %7948 = vrot.lane.b32.xlu0 %v7867, 32
        %v7949 = vpop.permute.xlu0 %7948
        %7950 = vrot.lane.b32.xlu0 %v7871, 32
        %v7951 = vpop.permute.xlu0 %7950
        %7952 = vrot.lane.b32.xlu0 %v7874, 32
        %v7953 = vpop.permute.xlu0 %7952
        %7954 = vrot.lane.b32.xlu0 %v7878, 32
        %v7955 = vpop.permute.xlu0 %7954
        %7956 = vrot.lane.b32.xlu0 %v7881, 32
        %v7957 = vpop.permute.xlu0 %7956
        %7958 = vrot.lane.b32.xlu0 %v7885, 32
        %v7959 = vpop.permute.xlu0 %7958
        %7960 = vrot.lane.b32.xlu0 %v7888, 32
        %v7961 = vpop.permute.xlu0 %7960
        %7962 = vrot.lane.b32.xlu0 %v7892, 32
        %v7963 = vpop.permute.xlu0 %7962
        %7964 = vrot.lane.b32.xlu0 %v7895, 32
        %v7965 = vpop.permute.xlu0 %7964
        %7966 = vrot.lane.b32.xlu0 %v7899, 32
        %v7967 = vpop.permute.xlu0 %7966
        %7968 = vrot.lane.b32.xlu0 %v7902, 32
        %v7969 = vpop.permute.xlu0 %7968
        %7970 = vrot.lane.b32.xlu0 %v7906, 32
        %v7971 = vpop.permute.xlu0 %7970
        %7972 = vrot.lane.b32.xlu0 %v7909, 32
        %v7973 = vpop.permute.xlu0 %7972
        %8006 = vst.msk [vmem:[#allocation3] sm:$0xf] %vm4063, %v7911
        %8007 = vst.msk [vmem:[#allocation3 + $0x4] sm:$0xf] %vm4063, %v7913
        %8008 = vst.msk [vmem:[#allocation3 + $0x8] sm:$0xf] %vm4063, %v7915
        %8009 = vst.msk [vmem:[#allocation3 + $0xc] sm:$0xf] %vm4063, %v7917
        %8010 = vst.msk [vmem:[#allocation3 + $0x10] sm:$0xf] %vm4063, %v7919
        %8011 = vst.msk [vmem:[#allocation3 + $0x14] sm:$0xf] %vm4063, %v7921
        %8012 = vst.msk [vmem:[#allocation3 + $0x18] sm:$0xf] %vm4063, %v7923
        %8013 = vst.msk [vmem:[#allocation3 + $0x1c] sm:$0xf] %vm4063, %v7925
        %8014 = vst.msk [vmem:[#allocation3 + $0x20] sm:$0xf] %vm4063, %v7927
        %8015 = vst.msk [vmem:[#allocation3 + $0x24] sm:$0xf] %vm4063, %v7929
        %8016 = vst.msk [vmem:[#allocation3 + $0x28] sm:$0xf] %vm4063, %v7931
        %8017 = vst.msk [vmem:[#allocation3 + $0x2c] sm:$0xf] %vm4063, %v7933
        %8018 = vst.msk [vmem:[#allocation3 + $0x30] sm:$0xf] %vm4063, %v7935
        %8019 = vst.msk [vmem:[#allocation3 + $0x34] sm:$0xf] %vm4063, %v7937
        %8020 = vst.msk [vmem:[#allocation3 + $0x38] sm:$0xf] %vm4063, %v7939
        %8021 = vst.msk [vmem:[#allocation3 + $0x3c] sm:$0xf] %vm4063, %v7941
        %8022 = vst.msk [vmem:[#allocation3 + $0x40] sm:$0xf] %vm4063, %v7943
        %8023 = vst.msk [vmem:[#allocation3 + $0x44] sm:$0xf] %vm4063, %v7945
        %8024 = vst.msk [vmem:[#allocation3 + $0x48] sm:$0xf] %vm4063, %v7947
        %8025 = vst.msk [vmem:[#allocation3 + $0x4c] sm:$0xf] %vm4063, %v7949
        %8026 = vst.msk [vmem:[#allocation3 + $0x50] sm:$0xf] %vm4063, %v7951
        %8027 = vst.msk [vmem:[#allocation3 + $0x54] sm:$0xf] %vm4063, %v7953
        %8028 = vst.msk [vmem:[#allocation3 + $0x58] sm:$0xf] %vm4063, %v7955
        %8029 = vst.msk [vmem:[#allocation3 + $0x5c] sm:$0xf] %vm4063, %v7957
        %8030 = vst.msk [vmem:[#allocation3 + $0x60] sm:$0xf] %vm4063, %v7959
        %8031 = vst.msk [vmem:[#allocation3 + $0x64] sm:$0xf] %vm4063, %v7961
        %8032 = vst.msk [vmem:[#allocation3 + $0x68] sm:$0xf] %vm4063, %v7963
        %8033 = vst.msk [vmem:[#allocation3 + $0x6c] sm:$0xf] %vm4063, %v7965
        %8034 = vst.msk [vmem:[#allocation3 + $0x70] sm:$0xf] %vm4063, %v7967
        %8035 = vst.msk [vmem:[#allocation3 + $0x74] sm:$0xf] %vm4063, %v7969
        %8036 = vst.msk [vmem:[#allocation3 + $0x78] sm:$0xf] %vm4063, %v7971
        %8037 = vst.msk [vmem:[#allocation3 + $0x7c] sm:$0xf] %vm4063, %v7973
        %v8038 = vld [vmem:[#allocation3] sm:$0xf]
        %v8039 = vld [vmem:[#allocation3 + $0x4] sm:$0xf]
        %v8040 = vld [vmem:[#allocation3 + $0x8] sm:$0xf]
        %v8041 = vld [vmem:[#allocation3 + $0xc] sm:$0xf]
        %v8042 = vld [vmem:[#allocation3 + $0x10] sm:$0xf]
        %v8043 = vld [vmem:[#allocation3 + $0x14] sm:$0xf]
        %v8044 = vld [vmem:[#allocation3 + $0x18] sm:$0xf]
        %v8045 = vld [vmem:[#allocation3 + $0x1c] sm:$0xf]
        %v8046 = vld [vmem:[#allocation3 + $0x20] sm:$0xf]
        %v8047 = vld [vmem:[#allocation3 + $0x24] sm:$0xf]
        %v8048 = vld [vmem:[#allocation3 + $0x28] sm:$0xf]
        %v8049 = vld [vmem:[#allocation3 + $0x2c] sm:$0xf]
        %v8050 = vld [vmem:[#allocation3 + $0x30] sm:$0xf]
        %v8051 = vld [vmem:[#allocation3 + $0x34] sm:$0xf]
        %v8052 = vld [vmem:[#allocation3 + $0x38] sm:$0xf]
        %v8053 = vld [vmem:[#allocation3 + $0x3c] sm:$0xf]
        %v8054 = vld [vmem:[#allocation3 + $0x40] sm:$0xf]
        %v8055 = vld [vmem:[#allocation3 + $0x44] sm:$0xf]
        %v8056 = vld [vmem:[#allocation3 + $0x48] sm:$0xf]
        %v8057 = vld [vmem:[#allocation3 + $0x4c] sm:$0xf]
        %v8058 = vld [vmem:[#allocation3 + $0x50] sm:$0xf]
        %v8059 = vld [vmem:[#allocation3 + $0x54] sm:$0xf]
        %v8060 = vld [vmem:[#allocation3 + $0x58] sm:$0xf]
        %v8061 = vld [vmem:[#allocation3 + $0x5c] sm:$0xf]
        %v8062 = vld [vmem:[#allocation3 + $0x60] sm:$0xf]
        %v8063 = vld [vmem:[#allocation3 + $0x64] sm:$0xf]
        %v8064 = vld [vmem:[#allocation3 + $0x68] sm:$0xf]
        %v8065 = vld [vmem:[#allocation3 + $0x6c] sm:$0xf]
        %v8066 = vld [vmem:[#allocation3 + $0x70] sm:$0xf]
        %v8067 = vld [vmem:[#allocation3 + $0x74] sm:$0xf]
        %v8068 = vld [vmem:[#allocation3 + $0x78] sm:$0xf]
        %v8069 = vld [vmem:[#allocation3 + $0x7c] sm:$0xf]
        %v8070 = vld [vmem:[%s4] sm:$0xf]
        %v8071 = vld [vmem:[%s4 + $0x4] sm:$0xf]
        %v8072 = vld [vmem:[%s4 + $0x8] sm:$0xf]
        %v8073 = vld [vmem:[%s4 + $0xc] sm:$0xf]
        %v8074 = vld [vmem:[%s4 + $0x10] sm:$0x3]
        %v8075 = vld [vmem:[%s5] sm:$0x1]
        %v8077 = vperm.slane %v8075, 0
        %v8111 = vunpack.c.l.b16 %v8038
        %v8112 = vunpack.c.l.b16 %v8039
        %v8113 = vunpack.c.l.b16 %v8040
        %v8114 = vunpack.c.l.b16 %v8041
        %v8115 = vunpack.c.l.b16 %v8042
        %v8116 = vunpack.c.l.b16 %v8043
        %v8117 = vunpack.c.l.b16 %v8044
        %v8118 = vunpack.c.l.b16 %v8045
        %v8119 = vunpack.c.l.b16 %v8046
        %v8120 = vunpack.c.l.b16 %v8047
        %v8121 = vunpack.c.l.b16 %v8048
        %v8122 = vunpack.c.l.b16 %v8049
        %v8123 = vunpack.c.l.b16 %v8050
        %v8124 = vunpack.c.l.b16 %v8051
        %v8125 = vunpack.c.l.b16 %v8052
        %v8126 = vunpack.c.l.b16 %v8053
        %v8127 = vunpack.c.l.b16 %v8054
        %v8128 = vunpack.c.l.b16 %v8055
        %v8129 = vunpack.c.l.b16 %v8056
        %v8130 = vunpack.c.l.b16 %v8057
        %v8131 = vunpack.c.l.b16 %v8058
        %v8132 = vunpack.c.l.b16 %v8059
        %v8133 = vunpack.c.l.b16 %v8060
        %v8134 = vunpack.c.l.b16 %v8061
        %v8135 = vunpack.c.l.b16 %v8062
        %v8136 = vunpack.c.l.b16 %v8063
        %v8137 = vunpack.c.l.b16 %v8064
        %v8138 = vunpack.c.l.b16 %v8065
        %v8139 = vunpack.c.l.b16 %v8066
        %v8140 = vunpack.c.l.b16 %v8067
        %v8141 = vunpack.c.l.b16 %v8068
        %v8142 = vunpack.c.l.b16 %v8069
        %v8143 = vpack.c.b16 %v8112, %v8111
        %v8144 = vpack.c.b16 %v8114, %v8113
        %v8145 = vpack.c.b16 %v8116, %v8115
        %v8146 = vpack.c.b16 %v8118, %v8117
        %v8147 = vpack.c.b16 %v8120, %v8119
        %v8148 = vpack.c.b16 %v8122, %v8121
        %v8149 = vpack.c.b16 %v8124, %v8123
        %v8150 = vpack.c.b16 %v8126, %v8125
        %v8151 = vpack.c.b16 %v8128, %v8127
        %v8152 = vpack.c.b16 %v8130, %v8129
        %v8153 = vpack.c.b16 %v8132, %v8131
        %v8154 = vpack.c.b16 %v8134, %v8133
        %v8155 = vpack.c.b16 %v8136, %v8135
        %v8156 = vpack.c.b16 %v8138, %v8137
        %v8157 = vpack.c.b16 %v8140, %v8139
        %v8158 = vpack.c.b16 %v8142, %v8141
        %v8164 = vunpack.c.l.b16 %v8070
        %v8165 = vunpack.c.l.b16 %v8071
        %v8166 = vunpack.c.l.b16 %v8072
        %v8167 = vunpack.c.l.b16 %v8073
        %v8168 = vunpack.c.l.b16 %v8074
        %v8169 = vpack.c.b16 %v8165, %v8164
        %v8170 = vpack.c.b16 %v8167, %v8166
        %v8171 = vpack.c.b16 %v8168, %v8168
        %v8175 = vsel %vm4232, %v8143, 0
        %v8178 = vsel %vm4232, %v8144, 0
        %v8181 = vsel %vm4232, %v8145, 0
        %v8184 = vsel %vm4232, %v8146, 0
        %v8187 = vsel %vm4232, %v8147, 0
        %v8190 = vsel %vm4232, %v8148, 0
        %v8193 = vsel %vm4232, %v8149, 0
        %v8196 = vsel %vm4232, %v8150, 0
        %v8199 = vsel %vm4232, %v8151, 0
        %v8202 = vsel %vm4232, %v8152, 0
        %v8205 = vsel %vm4232, %v8153, 0
        %v8208 = vsel %vm4232, %v8154, 0
        %v8211 = vsel %vm4232, %v8155, 0
        %v8214 = vsel %vm4232, %v8156, 0
        %v8217 = vsel %vm4232, %v8157, 0
        %v8220 = vsel %vm4232, %v8158, 0
        %v8223 = vsel %vm4281, %v8171, 0
        %8225 = vmatpush.bf16.msra.mxu0 0
        %8226 = vmatpush.bf16.msra.mxu0 0
        %8227 = vmatpush.bf16.msra.mxu0 0
        %8228 = vmatpush.bf16.msra.mxu0 0
        %8229 = vmatpush.bf16.msra.mxu0 0
        %8230 = vmatpush.bf16.msra.mxu0 %v8223
        %8231 = vmatpush.bf16.msra.mxu0 %v8170
        %8232 = vmatpush.bf16.msra.mxu0 %v8169
        %8233 = vmatmul.bf16.gmra.mxu0 %v8175
        %v8234 = vpop.f32.mrf.mxu0
        %v8235 = vadd.f32 %v8077, %v8234
        %v8236 = vpop.f32.mrf.mxu0
        %v8237 = vadd.f32 %v8077, %v8236
        %8238 = vmatmul.bf16.gmra.mxu0 %v8178
        %v8239 = vpop.f32.mrf.mxu0
        %v8240 = vadd.f32 %v8077, %v8239
        %v8241 = vpop.f32.mrf.mxu0
        %v8242 = vadd.f32 %v8077, %v8241
        %8243 = vmatmul.bf16.gmra.mxu0 %v8181
        %v8244 = vpop.f32.mrf.mxu0
        %v8245 = vadd.f32 %v8077, %v8244
        %v8246 = vpop.f32.mrf.mxu0
        %v8247 = vadd.f32 %v8077, %v8246
        %8248 = vmatmul.bf16.gmra.mxu0 %v8184
        %v8249 = vpop.f32.mrf.mxu0
        %v8250 = vadd.f32 %v8077, %v8249
        %v8251 = vpop.f32.mrf.mxu0
        %v8252 = vadd.f32 %v8077, %v8251
        %8253 = vmatmul.bf16.gmra.mxu0 %v8187
        %v8254 = vpop.f32.mrf.mxu0
        %v8255 = vadd.f32 %v8077, %v8254
        %v8256 = vpop.f32.mrf.mxu0
        %v8257 = vadd.f32 %v8077, %v8256
        %8258 = vmatmul.bf16.gmra.mxu0 %v8190
        %v8259 = vpop.f32.mrf.mxu0
        %v8260 = vadd.f32 %v8077, %v8259
        %v8261 = vpop.f32.mrf.mxu0
        %v8262 = vadd.f32 %v8077, %v8261
        %8263 = vmatmul.bf16.gmra.mxu0 %v8193
        %v8264 = vpop.f32.mrf.mxu0
        %v8265 = vadd.f32 %v8077, %v8264
        %v8266 = vpop.f32.mrf.mxu0
        %v8267 = vadd.f32 %v8077, %v8266
        %8268 = vmatmul.bf16.gmra.mxu0 %v8196
        %v8269 = vpop.f32.mrf.mxu0
        %v8270 = vadd.f32 %v8077, %v8269
        %v8271 = vpop.f32.mrf.mxu0
        %v8272 = vadd.f32 %v8077, %v8271
        %8273 = vmatmul.bf16.gmra.mxu0 %v8199
        %v8274 = vpop.f32.mrf.mxu0
        %v8275 = vadd.f32 %v8077, %v8274
        %v8276 = vpop.f32.mrf.mxu0
        %v8277 = vadd.f32 %v8077, %v8276
        %8278 = vmatmul.bf16.gmra.mxu0 %v8202
        %v8279 = vpop.f32.mrf.mxu0
        %v8280 = vadd.f32 %v8077, %v8279
        %v8281 = vpop.f32.mrf.mxu0
        %v8282 = vadd.f32 %v8077, %v8281
        %8283 = vmatmul.bf16.gmra.mxu0 %v8205
        %v8284 = vpop.f32.mrf.mxu0
        %v8285 = vadd.f32 %v8077, %v8284
        %v8286 = vpop.f32.mrf.mxu0
        %v8287 = vadd.f32 %v8077, %v8286
        %8288 = vmatmul.bf16.gmra.mxu0 %v8208
        %v8289 = vpop.f32.mrf.mxu0
        %v8290 = vadd.f32 %v8077, %v8289
        %v8291 = vpop.f32.mrf.mxu0
        %v8292 = vadd.f32 %v8077, %v8291
        %8293 = vmatmul.bf16.gmra.mxu0 %v8211
        %v8294 = vpop.f32.mrf.mxu0
        %v8295 = vadd.f32 %v8077, %v8294
        %v8296 = vpop.f32.mrf.mxu0
        %v8297 = vadd.f32 %v8077, %v8296
        %8298 = vmatmul.bf16.gmra.mxu0 %v8214
        %v8299 = vpop.f32.mrf.mxu0
        %v8300 = vadd.f32 %v8077, %v8299
        %v8301 = vpop.f32.mrf.mxu0
        %v8302 = vadd.f32 %v8077, %v8301
        %8303 = vmatmul.bf16.gmra.mxu0 %v8217
        %v8304 = vpop.f32.mrf.mxu0
        %v8305 = vadd.f32 %v8077, %v8304
        %v8306 = vpop.f32.mrf.mxu0
        %v8307 = vadd.f32 %v8077, %v8306
        %8308 = vmatmul.bf16.gmra.mxu0 %v8220
        %v8309 = vpop.f32.mrf.mxu0
        %v8310 = vadd.f32 %v8077, %v8309
        %v8311 = vpop.f32.mrf.mxu0
        %v8312 = vadd.f32 %v8077, %v8311
        %8313 = vdwg.mxu0
        %v8314 = vstv %s268
        %v8315 = vmul.f32 %v8235, %v8314
        %v8316 = vmul.f32 %v8237, %v8314
        %v8317 = vmul.f32 %v8240, %v8314
        %v8318 = vmul.f32 %v8242, %v8314
        %v8319 = vmul.f32 %v8245, %v8314
        %v8320 = vmul.f32 %v8247, %v8314
        %v8321 = vmul.f32 %v8250, %v8314
        %v8322 = vmul.f32 %v8252, %v8314
        %v8323 = vmul.f32 %v8255, %v8314
        %v8324 = vmul.f32 %v8257, %v8314
        %v8325 = vmul.f32 %v8260, %v8314
        %v8326 = vmul.f32 %v8262, %v8314
        %v8327 = vmul.f32 %v8265, %v8314
        %v8328 = vmul.f32 %v8267, %v8314
        %v8329 = vmul.f32 %v8270, %v8314
        %v8330 = vmul.f32 %v8272, %v8314
        %v8331 = vmul.f32 %v8275, %v8314
        %v8332 = vmul.f32 %v8277, %v8314
        %v8333 = vmul.f32 %v8280, %v8314
        %v8334 = vmul.f32 %v8282, %v8314
        %v8335 = vmul.f32 %v8285, %v8314
        %v8336 = vmul.f32 %v8287, %v8314
        %v8337 = vmul.f32 %v8290, %v8314
        %v8338 = vmul.f32 %v8292, %v8314
        %v8339 = vmul.f32 %v8295, %v8314
        %v8340 = vmul.f32 %v8297, %v8314
        %v8341 = vmul.f32 %v8300, %v8314
        %v8342 = vmul.f32 %v8302, %v8314
        %v8343 = vmul.f32 %v8305, %v8314
        %v8344 = vmul.f32 %v8307, %v8314
        %v8345 = vmul.f32 %v8310, %v8314
        %v8346 = vmul.f32 %v8312, %v8314
        %v8347 = vadd.f32 %v8315, %v269
        %v8348 = vadd.f32 %v8316, %v270
        %v8349 = vadd.f32 %v8317, %v271
        %v8350 = vadd.f32 %v8318, %v272
        %v8351 = vadd.f32 %v8319, %v273
        %v8352 = vadd.f32 %v8320, %v274
        %v8353 = vadd.f32 %v8321, %v275
        %v8354 = vadd.f32 %v8322, %v276
        %v8355 = vadd.f32 %v8323, %v277
        %v8356 = vadd.f32 %v8324, %v278
        %v8357 = vadd.f32 %v8325, %v279
        %v8358 = vadd.f32 %v8326, %v280
        %v8359 = vadd.f32 %v8327, %v281
        %v8360 = vadd.f32 %v8328, %v282
        %v8361 = vadd.f32 %v8329, %v283
        %v8362 = vadd.f32 %v8330, %v284
        %v8363 = vadd.f32 %v8331, %v285
        %v8364 = vadd.f32 %v8332, %v286
        %v8365 = vadd.f32 %v8333, %v287
        %v8366 = vadd.f32 %v8334, %v288
        %v8367 = vadd.f32 %v8335, %v289
        %v8368 = vadd.f32 %v8336, %v290
        %v8369 = vadd.f32 %v8337, %v291
        %v8370 = vadd.f32 %v8338, %v292
        %v8371 = vadd.f32 %v8339, %v293
        %v8372 = vadd.f32 %v8340, %v294
        %v8373 = vadd.f32 %v8341, %v295
        %v8374 = vadd.f32 %v8342, %v296
        %v8375 = vadd.f32 %v8343, %v297
        %v8376 = vadd.f32 %v8344, %v298
        %v8377 = vadd.f32 %v8345, %v299
        %v8378 = vadd.f32 %v8346, %v300
        %vm8379 = vcmask 31744
        %8380 = vst.msk [vmem:[%s265] sm:$0xff] %vm8379, %v8347
        %8381 = vst.msk [vmem:[%s265 + $0x8] sm:$0xff] %vm8379, %v8348
        %8382 = vst.msk [vmem:[%s265 + $0x10] sm:$0xff] %vm8379, %v8349
        %8383 = vst.msk [vmem:[%s265 + $0x18] sm:$0xff] %vm8379, %v8350
        %8384 = vst.msk [vmem:[%s265 + $0x20] sm:$0xff] %vm8379, %v8351
        %8385 = vst.msk [vmem:[%s265 + $0x28] sm:$0xff] %vm8379, %v8352
        %8386 = vst.msk [vmem:[%s265 + $0x30] sm:$0xff] %vm8379, %v8353
        %8387 = vst.msk [vmem:[%s265 + $0x38] sm:$0xff] %vm8379, %v8354
        %8388 = vst.msk [vmem:[%s265 + $0x40] sm:$0xff] %vm8379, %v8355
        %8389 = vst.msk [vmem:[%s265 + $0x48] sm:$0xff] %vm8379, %v8356
        %8390 = vst.msk [vmem:[%s265 + $0x50] sm:$0xff] %vm8379, %v8357
        %8391 = vst.msk [vmem:[%s265 + $0x58] sm:$0xff] %vm8379, %v8358
        %8392 = vst.msk [vmem:[%s265 + $0x60] sm:$0xff] %vm8379, %v8359
        %8393 = vst.msk [vmem:[%s265 + $0x68] sm:$0xff] %vm8379, %v8360
        %8394 = vst.msk [vmem:[%s265 + $0x70] sm:$0xff] %vm8379, %v8361
        %8395 = vst.msk [vmem:[%s265 + $0x78] sm:$0xff] %vm8379, %v8362
        %8396 = vst.msk [vmem:[%s265 + $0x80] sm:$0xff] %vm8379, %v8363
        %8397 = vst.msk [vmem:[%s265 + $0x88] sm:$0xff] %vm8379, %v8364
        %8398 = vst.msk [vmem:[%s265 + $0x90] sm:$0xff] %vm8379, %v8365
        %8399 = vst.msk [vmem:[%s265 + $0x98] sm:$0xff] %vm8379, %v8366
        %8400 = vst.msk [vmem:[%s265 + $0xa0] sm:$0xff] %vm8379, %v8367
        %8401 = vst.msk [vmem:[%s265 + $0xa8] sm:$0xff] %vm8379, %v8368
        %8402 = vst.msk [vmem:[%s265 + $0xb0] sm:$0xff] %vm8379, %v8369
        %8403 = vst.msk [vmem:[%s265 + $0xb8] sm:$0xff] %vm8379, %v8370
        %8404 = vst.msk [vmem:[%s265 + $0xc0] sm:$0xff] %vm8379, %v8371
        %8405 = vst.msk [vmem:[%s265 + $0xc8] sm:$0xff] %vm8379, %v8372
        %8406 = vst.msk [vmem:[%s265 + $0xd0] sm:$0xff] %vm8379, %v8373
        %8407 = vst.msk [vmem:[%s265 + $0xd8] sm:$0xff] %vm8379, %v8374
        %8408 = vst.msk [vmem:[%s265 + $0xe0] sm:$0xff] %vm8379, %v8375
        %8409 = vst.msk [vmem:[%s265 + $0xe8] sm:$0xff] %vm8379, %v8376
        %8410 = vst.msk [vmem:[%s265 + $0xf0] sm:$0xff] %vm8379, %v8377
        %8411 = vst.msk [vmem:[%s265 + $0xf8] sm:$0xff] %vm8379, %v8378
        %p8412 = scmp.lt.s32.totalorder %s18, 1
        %s8413 = scalar_select %p8412, %s18, 1
        %s8414 = smul.addr %s8413, 32
        %s8415 = smul.addr %s8414, 8
        %s8416 = scalar_lea.vmem %s6, %s8415
        // Predicated region
        $region49: #{basic_block_forward.1} parent=43 // pred_check
          %p8417 = pneg %p167
        $region50: #{basic_block_forward.1} parent=43 // pred_check_branch
          %8419 = sbr.rel (%p8417) target = $region52
        $region51: #{basic_block_forward.1} parent=43 // pred_region
          _
        $region52: #{basic_block_forward.1} parent=43 // pred_fallthru
          _
      $region44: #{basic_block_forward.1} parent=5 // pred_fallthru
        _
      %p8420 = scmp.le.s32.totalorder 2, %s13
      // Predicated region
      $region53: #{basic_block_forward.1} parent=5 // pred_check
        %p8421 = pneg %p8420
      $region54: #{basic_block_forward.1} parent=5 // pred_check_branch
        %8423 = sbr.rel (%p8421) target = $region56
      $region55: #{basic_block_forward.1} parent=5 // pred_region
        %s8424 = ssub.s32 %s13, 2
        // Predicated region
        $region57: #{basic_block_forward.1} parent=55 // pred_check
          %p8425 = pneg %p173
        $region58: #{basic_block_forward.1} parent=55 // pred_check_branch
          %8427 = sbr.rel (%p8425) target = $region60
        $region59: #{basic_block_forward.1} parent=55 // pred_region
          %p8428 = scmp.lt.s32.totalorder %s19, 1
          %s8429 = scalar_select %p8428, %s19, 1
          %s8430 = smul.addr %s8429, 32
          %s8431 = smul.addr %s8430, 8
          %s8432 = scalar_lea.vmem %s6, %s8431
        $region60: #{basic_block_forward.1} parent=55 // pred_fallthru
          _
      $region56: #{basic_block_forward.1} parent=5 // pred_fallthru
        _
    $region6: #{basic_block_forward.1} parent=1 // loop_footer
      %s17 = sadd.s32 1, %s13
    $region7: #{basic_block_forward.1} parent=1 // loop_footer_branch
      %12 = sbr.rel target = $region3
    $region8: #{basic_block_forward.1} parent=1 // loop_exit
      _
    %8433 = vsyncpa [#allocation5], 1
    %s8434 = scalar_lea.sflag [#allocation5], 1
    %8435 = vsyncpa %s8434, 1

</llo_original>
